<compile_context>
chip_gen: v6e
topology: v6e:2x2x1
jax: 0.10.0
libtpu: 0.0.40
codegen_flags: <defaults>
</compile_context>

<pallas_src>
import functools
import math

import jax
import jax.numpy as jnp
from jax import lax
from jax.experimental import pallas as pl
from jax.experimental.pallas import tpu as pltpu

# ---- small synthetic BERT dimensions ----
H = 32          # hidden size
NH = 2          # attention heads
DH = H // NH    # head dim
INTER = 64      # FFN intermediate
LAYERS = 2      # encoder layers (synthetic stand-in for bert-base's 12)
S = 8           # tokens per chunk (== 8 sublanes -> tile-aligned reshapes)
VOCAB = 100
MAXPOS = 64
TYPES = 2

# ---- slab row layout: every small bias / LN / head vector packed into one
#      (SLAB_ROWS, 128) f32 array -> a single DMA instead of ~25 tiny ones ----
BERT_VEC_ROWS = 3 + 8 * LAYERS        # emb_ln_g, emb_ln_b, pooler_b + 8 rows/layer
LIN_BASE = 0
CHK_BASE = BERT_VEC_ROWS
HEAD_BASE = 2 * BERT_VEC_ROWS
R_LIN_WTOK = HEAD_BASE + 0            # linear mlp_w rows for tok-max part (1,H)
R_LIN_WPOOL = HEAD_BASE + 1           # linear mlp_w rows for pooled part  (1,H)
R_LIN_MLPB = HEAD_BASE + 2            # linear mlp bias                    (1,1)
R_BLSTM = HEAD_BASE + 3               # LSTM bias (b_ih + b_hh)            (1,4H)
R_BOMEGA = HEAD_BASE + 4              # attention b_omega                  (1,H)
R_UROW = HEAD_BASE + 5                # u_omega^T                          (1,H)
R_CHK_WMLP = HEAD_BASE + 6            # chunk mlp_w^T                      (1,H)
R_CHK_MLPB = HEAD_BASE + 7            # chunk mlp bias                     (1,1)
SLAB_ROWS = ((HEAD_BASE + 8 + 7) // 8) * 8


# ------------------------------------------------------------------
# In-kernel helpers (traced into the fused kernel)
# ------------------------------------------------------------------
def _row(slab_ref, r, w):
    """One packed vector from the slab: (1, w) f32."""
    return slab_ref[r:r + 1, 0:w]


def _ln(x, g, b):
    mu = jnp.mean(x, axis=-1, keepdims=True)
    var = jnp.mean((x - mu) ** 2, axis=-1, keepdims=True)
    return (x - mu) * lax.rsqrt(var + 1e-12) * g + b


def _bert_encoder(x, bias, n, slab_ref, base,
                  wqkv_ref, wo_ref, wi_ref, wo2_ref, pooler_w):
    """Fused BERT stack on VMEM-resident values (bf16 MXU operands, f32 accum).

    x    : (n*S, H) embedding sum (word+pos+type), f32
    bias : (n, S)   additive attention-mask bias
    Heads are folded into the einsum batch dim (b = NH*n): no per-head Python
    loop, and the output projection is one (nS,H)@(H,H) matmul.  The 1/sqrt(DH)
    scale is folded into the packed q weights/bias host-side.
    Returns (x3, pooled): x3 (n, S, H) final hidden states, pooled (n, H).
    """
    x = _ln(x, _row(slab_ref, base + 0, H), _row(slab_ref, base + 1, H))

    # hoisted: head-batched additive attention bias (identical for every layer/head)
    bias_b = jnp.concatenate([bias] * NH, axis=0)[:, None, :]           # (NH*n, 1, S)

    for l in range(LAYERS):
        r = base + 3 + 8 * l
        xb = x.astype(jnp.bfloat16)
        # fused, head-major QKV projection: one (nS,H)@(H,3H) bf16 matmul
        qkv = (jnp.dot(xb, wqkv_ref[l], preferred_element_type=jnp.float32)
               + _row(slab_ref, r + 0, 3 * H))                          # (nS, 3H)
        # fold heads into the batch dim: (NH*n, S, 3*DH); major-dim regroup only
        qkv_b = jnp.stack(
            [qkv[:, h * 3 * DH:(h + 1) * 3 * DH] for h in range(NH)], axis=0
        ).reshape(NH * n, S, 3 * DH)
        q = qkv_b[:, :, 0:DH].astype(jnp.bfloat16)
        k = qkv_b[:, :, DH:2 * DH].astype(jnp.bfloat16)
        v = qkv_b[:, :, 2 * DH:3 * DH].astype(jnp.bfloat16)
        s = jnp.einsum("bqd,bkd->bqk", q, k,
                       preferred_element_type=jnp.float32) + bias_b     # (NH*n, S, S)
        m = jnp.max(s, axis=-1, keepdims=True)
        e = jnp.exp(s - m)
        p = e * pl.reciprocal(jnp.sum(e, axis=-1, keepdims=True), approx=True)
        c = jnp.einsum("bqk,bkd->bqd", p.astype(jnp.bfloat16), v,
                       preferred_element_type=jnp.float32)              # (NH*n, S, DH)
        # recombine heads into lanes (one small concat) -> ONE (nS,H)@(H,H) matmul
        ctx = jnp.concatenate(
            [c[h * n:(h + 1) * n].reshape(n * S, DH) for h in range(NH)], axis=1)
        attn = (jnp.dot(ctx.astype(jnp.bfloat16), wo_ref[l],
                        preferred_element_type=jnp.float32)
                + _row(slab_ref, r + 1, H))
        x1 = _ln(attn + x, _row(slab_ref, r + 2, H), _row(slab_ref, r + 3, H))
        inter = jax.nn.gelu(
            jnp.dot(x1.astype(jnp.bfloat16), wi_ref[l],
                    preferred_element_type=jnp.float32) + _row(slab_ref, r + 4, INTER),
            approximate=True)
        ffn = (jnp.dot(inter.astype(jnp.bfloat16), wo2_ref[l],
                       preferred_element_type=jnp.float32)
               + _row(slab_ref, r + 5, H))
        x = _ln(ffn + x1, _row(slab_ref, r + 6, H), _row(slab_ref, r + 7, H))

    x3 = x.reshape(n, S, H)                                             # per-chunk view
    # CLS row per chunk via a size-1 reduce (same lowering path as token max-pool)
    cls = jnp.max(x3[:, 0:1, :], axis=1)                                # (n, H)
    pooled = jnp.tanh(jnp.dot(cls.astype(jnp.bfloat16), pooler_w,
                              preferred_element_type=jnp.float32)
                      + _row(slab_ref, base + 2, H))
    return x3, pooled


def _lstm_attn(gates_x, valid, w_hh, w_om, b_om, u_row, off, t_steps, bsz):
    """LSTM over chunks + tanh attention pooling for ONE chunk configuration.

    gates_x rows [off, off + t_steps*bsz) are this config's chunks laid out
    time-major (row = off + t*bsz + b); x@W_ih + b is already hoisted into it.
    """
    h = jnp.zeros((bsz, H), jnp.float32)
    c = jnp.zeros((bsz, H), jnp.float32)
    au, hm = [], []
    for t in range(t_steps):                                            # tiny static T
        r0 = off + t * bsz
        g = gates_x[r0:r0 + bsz, :] + jnp.dot(h.astype(jnp.bfloat16), w_hh,
                                              preferred_element_type=jnp.float32)
        i_g = jax.nn.sigmoid(g[:, 0:H])
        f_g = jax.nn.sigmoid(g[:, H:2 * H])
        g_g = jnp.tanh(g[:, 2 * H:3 * H])
        o_g = jax.nn.sigmoid(g[:, 3 * H:4 * H])
        c = f_g * c + i_g * g_g
        h = o_g * jnp.tanh(c)
        # pad_packed_sequence semantics: zero outputs past each doc's length
        hmt = h * valid[r0:r0 + bsz, :]
        aw = jnp.tanh(jnp.dot(hmt.astype(jnp.bfloat16), w_om,
                              preferred_element_type=jnp.float32) + b_om)
        au.append(jnp.sum(aw * u_row, axis=-1, keepdims=True))          # (B, 1)
        hm.append(hmt)

    # softmax over time (dim=1 in the reference), pads included
    m = au[0]
    for a in au[1:]:
        m = jnp.maximum(m, a)
    e = [jnp.exp(a - m) for a in au]
    den = e[0]
    for x in e[1:]:
        den = den + x
    inv = pl.reciprocal(den, approx=True)
    hidden = hm[0] * (e[0] * inv)
    for t in range(1, t_steps):
        hidden = hidden + hm[t] * (e[t] * inv)                          # (B, H)
    return hidden


# ------------------------------------------------------------------
# THE fused kernel: full multiBert forward -> (B, 1)
# ------------------------------------------------------------------
def _multibert_kernel(emb_lin_ref, bias_lin_ref,
                      emb_chk_ref, bias_chk_ref, valid_ref,
                      slab_ref,
                      lin_wqkv_ref, lin_wo_ref, lin_wi_ref, lin_wo2_ref,
                      chk_wqkv_ref, chk_wo_ref, chk_wi_ref, chk_wo2_ref,
                      mats_ref, lstm_w_ref,
                      out_ref, *, segments, bsz):
    mats = mats_ref[...]                       # (3H, H) bf16
    pw_lin = mats[0:H, :]
    pw_chk = mats[H:2 * H, :]
    w_om = mats[2 * H:3 * H, :]
    lstm_w = lstm_w_ref[...]                   # (2H, 4H) bf16
    w_ih = lstm_w[0:H, :]
    w_hh = lstm_w[H:2 * H, :]

    # ---------- linear submodel: BERT + tok-max + pooler + Linear(2H,1)+Sigmoid ----
    n_lin = bias_lin_ref.shape[0]
    x3, pooled_lin = _bert_encoder(emb_lin_ref[...], bias_lin_ref[...], n_lin,
                                   slab_ref, LIN_BASE,
                                   lin_wqkv_ref, lin_wo_ref, lin_wi_ref, lin_wo2_ref,
                                   pw_lin)
    tok_max = jnp.max(x3, axis=1)                                       # (B, H)
    # concat(tok_max, pooled) @ W == tok_max·W[:H] + pooled·W[H:]
    logit_lin = (jnp.sum(tok_max * _row(slab_ref, R_LIN_WTOK, H), axis=-1, keepdims=True)
                 + jnp.sum(pooled_lin * _row(slab_ref, R_LIN_WPOOL, H),
                           axis=-1, keepdims=True)
                 + _row(slab_ref, R_LIN_MLPB, 1))
    pred = jax.nn.sigmoid(logit_lin)

    # ---------- chunk submodel: BOTH chunk configs share one encoder pass ----------
    n_chk = bias_chk_ref.shape[0]
    _, pooled_chk = _bert_encoder(emb_chk_ref[...], bias_chk_ref[...], n_chk,
                                  slab_ref, CHK_BASE,
                                  chk_wqkv_ref, chk_wo_ref, chk_wi_ref, chk_wo2_ref,
                                  pw_chk)
    # torch.nan_to_num(nan=0.0): NaN -> 0, +/-Inf -> +/- float32 max
    fmax = jnp.finfo(jnp.float32).max
    pooled_chk = jnp.clip(jnp.where(jnp.isnan(pooled_chk), 0.0, pooled_chk),
                          -fmax, fmax)
    valid = valid_ref[...]                                              # (n_chk, 1)
    pooled_chk = pooled_chk * valid                                     # zero pad chunks

    # LSTM input projection hoisted out of the time loop: one (n_chk,H)@(H,4H) matmul
    gates_x = (jnp.dot(pooled_chk.astype(jnp.bfloat16), w_ih,
                       preferred_element_type=jnp.float32)
               + _row(slab_ref, R_BLSTM, 4 * H))                        # (n_chk, 4H)

    b_om = _row(slab_ref, R_BOMEGA, H)
    u_row = _row(slab_ref, R_UROW, H)
    w_mlp = _row(slab_ref, R_CHK_WMLP, H)
    b_mlp = _row(slab_ref, R_CHK_MLPB, 1)
    for off, t_steps in segments:
        hidden = _lstm_attn(gates_x, valid, w_hh, w_om, b_om, u_row, off, t_steps, bsz)
        logit_c = jnp.sum(hidden * w_mlp, axis=-1, keepdims=True) + b_mlp
        pred = pred + jax.nn.sigmoid(logit_c)

    out_ref[...] = pred


# ------------------------------------------------------------------
# Host-side glue (embeddings / layout only; all math in the kernel)
# ------------------------------------------------------------------
def embed_tokens(bert_p, ids, tt):
    n, s = ids.shape
    emb = (bert_p["word_emb"][ids]
           + bert_p["pos_emb"][:s][None, :, :]
           + bert_p["type_emb"][tt])                                    # (n, S, H)
    return emb.reshape(n * s, H).astype(jnp.float32)


def multi_bert_forward(params, packed, document_single, chunked_documents, lengths):
    slab, lin_mats, chk_mats, mats2d, lstm_w = packed
    bsz = document_single.shape[0]

    # --- linear submodel inputs: first chunk of each document (bert_batch_size=1)
    ids = document_single[:, 0, 0, :]
    tt = document_single[:, 0, 1, :]
    am = document_single[:, 0, 2, :]
    emb_lin = embed_tokens(params["linear"]["bert"], ids, tt)
    bias_lin = (1.0 - am.astype(jnp.float32)) * -10000.0                # (B, S)

    # --- chunk submodel inputs: all chunk configurations concatenated,
    #     time-major rows (row = offset + t*B + b), padded to each config's max length
    emb_parts, bias_parts, valid_parts, segments = [], [], [], []
    off = 0
    for ci, doc in enumerate(chunked_documents):
        lens = [int(l) for l in lengths[ci]]
        t_max = max(lens)                                               # static python int
        sel = jnp.transpose(doc[:, :t_max], (1, 0, 2, 3))               # (T, B, 3, S)
        ids_c = sel[:, :, 0, :].reshape(t_max * bsz, S)
        tt_c = sel[:, :, 1, :].reshape(t_max * bsz, S)
        am_c = sel[:, :, 2, :].reshape(t_max * bsz, S)
        emb_parts.append(embed_tokens(params["chunk"]["bert"], ids_c, tt_c))
        bias_parts.append((1.0 - am_c.astype(jnp.float32)) * -10000.0)
        valid = (jnp.arange(t_max)[:, None]
                 < jnp.asarray(lens)[None, :]).astype(jnp.float32)      # (T, B)
        valid_parts.append(valid.reshape(t_max * bsz, 1))
        segments.append((off, t_max))
        off += t_max * bsz

    emb_chk = jnp.concatenate(emb_parts, axis=0)
    bias_chk = jnp.concatenate(bias_parts, axis=0)
    valid_chk = jnp.concatenate(valid_parts, axis=0)

    kernel = functools.partial(_multibert_kernel, segments=tuple(segments), bsz=bsz)
    return pl.pallas_call(
        kernel,
        out_shape=jax.ShapeDtypeStruct((bsz, 1), jnp.float32),
        compiler_params=pltpu.CompilerParams(vmem_limit_bytes=32 * 1024 * 1024),
    )(emb_lin, bias_lin, emb_chk, bias_chk, valid_chk,
      slab, *lin_mats, *chk_mats, mats2d, lstm_w)


# ------------------------------------------------------------------
# Deterministic parameter init (matches the torch module's init scheme)
# ------------------------------------------------------------------
def _normal(key, shape, scale=0.02):
    return jax.random.normal(key, shape, jnp.float32) * scale


def _uniform(key, shape, lim):
    return jax.random.uniform(key, shape, jnp.float32, -lim, lim)


def _xavier(key, shape):
    lim = math.sqrt(6.0 / (shape[0] + shape[1]))
    return jax.random.uniform(key, shape, jnp.float32, -lim, lim)


def init_bert_params(key):
    ks = jax.random.split(key, 4 + LAYERS)
    params = {
        "word_emb": _normal(ks[0], (VOCAB, H)),
        "pos_emb": _normal(ks[1], (MAXPOS, H)),
        "type_emb": _normal(ks[2], (TYPES, H)),
        "emb_ln_g": jnp.ones((1, H), jnp.float32),
        "emb_ln_b": jnp.zeros((1, H), jnp.float32),
        "pooler_w": _normal(ks[3], (H, H)),
        "pooler_b": jnp.zeros((1, H), jnp.float32),
        "layers": [],
    }
    for l in range(LAYERS):
        lk = jax.random.split(ks[4 + l], 6)
        params["layers"].append({
            "wq": _normal(lk[0], (H, H)), "bq": jnp.zeros((1, H), jnp.float32),
            "wk": _normal(lk[1], (H, H)), "bk": jnp.zeros((1, H), jnp.float32),
            "wv": _normal(lk[2], (H, H)), "bv": jnp.zeros((1, H), jnp.float32),
            "wo": _normal(lk[3], (H, H)), "bo": jnp.zeros((1, H), jnp.float32),
            "ln1_g": jnp.ones((1, H), jnp.float32), "ln1_b": jnp.zeros((1, H), jnp.float32),
            "wi": _normal(lk[4], (H, INTER)), "bi": jnp.zeros((1, INTER), jnp.float32),
            "wo2": _normal(lk[5], (INTER, H)), "bo2": jnp.zeros((1, H), jnp.float32),
            "ln2_g": jnp.ones((1, H), jnp.float32), "ln2_b": jnp.zeros((1, H), jnp.float32),
        })
    return params


def init_multibert_params(key):
    k_lin_bert, k_lin_mlp, k_chunk_bert, k_lstm, k_omega, k_chunk_mlp = jax.random.split(key, 6)

    linear = {
        "bert": init_bert_params(k_lin_bert),
        "mlp_w": _xavier(k_lin_mlp, (2 * H, 1)),
        "mlp_b": jnp.full((1, 1), 7.0, jnp.float32),        # init_weights bias fill(7)
    }

    k_ih, k_hh, k_bih, k_bhh = jax.random.split(k_lstm, 4)
    kw, kb, ku = jax.random.split(k_omega, 3)
    lstm_lim = 1.0 / math.sqrt(H)
    chunk = {
        "bert": init_bert_params(k_chunk_bert),
        "w_ih": _uniform(k_ih, (H, 4 * H), lstm_lim),        # gate order [i, f, g, o]
        "w_hh": _uniform(k_hh, (H, 4 * H), lstm_lim),
        "b_lstm": _uniform(k_bih, (1, 4 * H), lstm_lim) + _uniform(k_bhh, (1, 4 * H), lstm_lim),
        "w_omega": _uniform(kw, (H, H), 0.1),
        "b_omega": _uniform(kb, (1, H), 0.1),
        "u_omega": _uniform(ku, (H, 1), 0.1),
        "mlp_w": _xavier(k_chunk_mlp, (H, 1)),
        "mlp_b": jnp.full((1, 1), 7.0, jnp.float32),
    }
    return {"linear": linear, "chunk": chunk}


# ------------------------------------------------------------------
# Packing: build the fused kernel's operand list
# ------------------------------------------------------------------
def _head_major_qkv(lp, scale):
    """Fuse Q/K/V columns head-major ([q_h|k_h|v_h] per head) and fold the
    1/sqrt(DH) attention scale into the q weights/bias."""
    wq = lp["wq"] * scale
    bq = lp["bq"] * scale
    w_blocks, b_blocks = [], []
    for h in range(NH):
        sl = slice(h * DH, (h + 1) * DH)
        w_blocks.append(jnp.concatenate([wq[:, sl], lp["wk"][:, sl], lp["wv"][:, sl]], axis=1))
        b_blocks.append(jnp.concatenate([bq[:, sl], lp["bk"][:, sl], lp["bv"][:, sl]], axis=1))
    return jnp.concatenate(w_blocks, axis=1), jnp.concatenate(b_blocks, axis=1)


def pack_params(params):
    """One (SLAB_ROWS,128) f32 slab for every small vector + bf16 layer-stacked
    big weights for both BERTs + packed [pooler_lin;pooler_chk;w_omega] and
    [w_ih;w_hh]."""
    scale = 1.0 / math.sqrt(DH)
    rows = []

    def add_row(v):
        v = jnp.reshape(jnp.asarray(v, jnp.float32), (-1,))
        rows.append(jnp.pad(v, (0, 128 - v.shape[0])))

    def add_bert_rows(bp):
        add_row(bp["emb_ln_g"]); add_row(bp["emb_ln_b"]); add_row(bp["pooler_b"])
        for lp in bp["layers"]:
            _, bqkv = _head_major_qkv(lp, scale)
            add_row(bqkv); add_row(lp["bo"]); add_row(lp["ln1_g"]); add_row(lp["ln1_b"])
            add_row(lp["bi"]); add_row(lp["bo2"]); add_row(lp["ln2_g"]); add_row(lp["ln2_b"])

    lin, chk = params["linear"], params["chunk"]
    add_bert_rows(lin["bert"])
    add_bert_rows(chk["bert"])
    add_row(lin["mlp_w"][0:H, 0])                 # R_LIN_WTOK
    add_row(lin["mlp_w"][H:2 * H, 0])             # R_LIN_WPOOL
    add_row(lin["mlp_b"])                         # R_LIN_MLPB
    add_row(chk["b_lstm"])                        # R_BLSTM
    add_row(chk["b_omega"])                       # R_BOMEGA
    add_row(jnp.transpose(chk["u_omega"]))        # R_UROW
    add_row(chk["mlp_w"][:, 0])                   # R_CHK_WMLP
    add_row(chk["mlp_b"])                         # R_CHK_MLPB
    while len(rows) < SLAB_ROWS:
        rows.append(jnp.zeros((128,), jnp.float32))
    slab = jnp.stack(rows, axis=0)

    def bert_mats(bp):
        wqkv = jnp.stack([_head_major_qkv(lp, scale)[0] for lp in bp["layers"]], axis=0)
        wo = jnp.stack([lp["wo"] for lp in bp["layers"]], axis=0)
        wi = jnp.stack([lp["wi"] for lp in bp["layers"]], axis=0)
        wo2 = jnp.stack([lp["wo2"] for lp in bp["layers"]], axis=0)
        return tuple(w.astype(jnp.bfloat16) for w in (wqkv, wo, wi, wo2))

    lin_mats = bert_mats(lin["bert"])
    chk_mats = bert_mats(chk["bert"])
    mats2d = jnp.concatenate([lin["bert"]["pooler_w"], chk["bert"]["pooler_w"],
                              chk["w_omega"]], axis=0).astype(jnp.bfloat16)   # (3H, H)
    lstm_w = jnp.concatenate([chk["w_ih"], chk["w_hh"]], axis=0).astype(jnp.bfloat16)  # (2H,4H)
    return (slab, lin_mats, chk_mats, mats2d, lstm_w)


def make_documents(key, batch, num_chunks):
    ids = jax.random.randint(key, (batch, num_chunks, S), 0, VOCAB, dtype=jnp.int32)
    tt = jnp.zeros((batch, num_chunks, S), jnp.int32)
    am = jnp.ones((batch, num_chunks, S), jnp.int32)
    return jnp.stack([ids, tt, am], axis=2)       # (B, C, 3, S)


if __name__ == "__main__":
    key = jax.random.PRNGKey(0)
    k_params, k_d0, k_d1, k_d2 = jax.random.split(key, 4)

    params = init_multibert_params(k_params)
    packed = pack_params(params)

    B = 2
    document_single = make_documents(k_d0, B, 2)                        # (2, 2, 3, 8)
    chunked_documents = [
        make_documents(k_d1, B, 3),                                     # (2, 3, 3, 8)
        make_documents(k_d2, B, 2),                                     # (2, 2, 3, 8)
    ]
    lengths = [[3, 2], [2, 1]]                    # chunks used per doc, per config

    @jax.jit
    def run(prm, pkd, doc_single, chunk0, chunk1):
        return multi_bert_forward(prm, pkd, doc_single, [chunk0, chunk1], lengths)

    preds = run(params, packed, document_single, *chunked_documents)
    jax.block_until_ready(preds)
    assert preds.shape == (B, 1)
    print("KERNEL_OK")
</pallas_src>

<mosaic_0001>
module attributes {stable_mosaic.version = 11 : i64} {
  func.func @_multibert_kernel(%arg0: memref<16x32xf32, #tpu.memory_space<vmem>>, %arg1: memref<2x8xf32, #tpu.memory_space<vmem>>, %arg2: memref<80x32xf32, #tpu.memory_space<vmem>>, %arg3: memref<10x8xf32, #tpu.memory_space<vmem>>, %arg4: memref<10x1xf32, #tpu.memory_space<vmem>>, %arg5: memref<48x128xf32, #tpu.memory_space<vmem>>, %arg6: memref<2x32x96xbf16, #tpu.memory_space<vmem>>, %arg7: memref<2x32x32xbf16, #tpu.memory_space<vmem>>, %arg8: memref<2x32x64xbf16, #tpu.memory_space<vmem>>, %arg9: memref<2x64x32xbf16, #tpu.memory_space<vmem>>, %arg10: memref<2x32x96xbf16, #tpu.memory_space<vmem>>, %arg11: memref<2x32x32xbf16, #tpu.memory_space<vmem>>, %arg12: memref<2x32x64xbf16, #tpu.memory_space<vmem>>, %arg13: memref<2x64x32xbf16, #tpu.memory_space<vmem>>, %arg14: memref<96x32xbf16, #tpu.memory_space<vmem>>, %arg15: memref<64x128xbf16, #tpu.memory_space<vmem>>, %arg16: memref<2x1xf32, #tpu.memory_space<vmem>>) attributes {dimension_semantics = [], scalar_prefetch = 0 : i64, scratch_operands = 0 : i64, tpu.core_type = #tpu.core_type<tc>} {
    %c0 = arith.constant 0 : index
    %c0_0 = arith.constant 0 : index
    %0 = vector.load %arg14[%c0, %c0_0] : memref<96x32xbf16, #tpu.memory_space<vmem>>, vector<96x32xbf16>
    %1 = vector.extract_strided_slice %0 {offsets = [0, 0], sizes = [32, 32], strides = [1, 1]} : vector<96x32xbf16> to vector<32x32xbf16>
    %2 = vector.extract_strided_slice %0 {offsets = [32, 0], sizes = [32, 32], strides = [1, 1]} : vector<96x32xbf16> to vector<32x32xbf16>
    %3 = vector.extract_strided_slice %0 {offsets = [64, 0], sizes = [32, 32], strides = [1, 1]} : vector<96x32xbf16> to vector<32x32xbf16>
    %c0_1 = arith.constant 0 : index
    %c0_2 = arith.constant 0 : index
    %4 = vector.load %arg15[%c0_1, %c0_2] : memref<64x128xbf16, #tpu.memory_space<vmem>>, vector<64x128xbf16>
    %5 = vector.extract_strided_slice %4 {offsets = [0, 0], sizes = [32, 128], strides = [1, 1]} : vector<64x128xbf16> to vector<32x128xbf16>
    %6 = vector.extract_strided_slice %4 {offsets = [32, 0], sizes = [32, 128], strides = [1, 1]} : vector<64x128xbf16> to vector<32x128xbf16>
    %c0_3 = arith.constant 0 : index
    %c0_4 = arith.constant 0 : index
    %7 = vector.load %arg0[%c0_3, %c0_4] : memref<16x32xf32, #tpu.memory_space<vmem>>, vector<16x32xf32>
    %c0_5 = arith.constant 0 : index
    %c0_6 = arith.constant 0 : index
    %8 = vector.load %arg1[%c0_5, %c0_6] : memref<2x8xf32, #tpu.memory_space<vmem>>, vector<2x8xf32>
    %c0_7 = arith.constant 0 : index
    %c0_8 = arith.constant 0 : index
    %9 = vector.load %arg5[%c0_7, %c0_8] : memref<48x128xf32, #tpu.memory_space<vmem>>, vector<1x32xf32>
    %c1 = arith.constant 1 : index
    %c0_9 = arith.constant 0 : index
    %10 = vector.load %arg5[%c1, %c0_9] : memref<48x128xf32, #tpu.memory_space<vmem>>, vector<1x32xf32>
    %cst = arith.constant dense<0.000000e+00> : vector<16xf32>
    %11 = vector.multi_reduction <add>, %7, %cst [1] : vector<16x32xf32> to vector<16xf32>
    %12 = vector.shape_cast %11 : vector<16xf32> to vector<16x1xf32>
    %cst_10 = arith.constant 3.200000e+01 : f32
    %13 = vector.broadcast %cst_10 : f32 to vector<16x1xf32>
    %14 = arith.divf %12, %13 : vector<16x1xf32>
    %15 = vector.broadcast %14 : vector<16x1xf32> to vector<16x32xf32>
    %16 = arith.subf %7, %15 : vector<16x32xf32>
    %17 = arith.mulf %16, %16 : vector<16x32xf32>
    %cst_11 = arith.constant dense<0.000000e+00> : vector<16xf32>
    %18 = vector.multi_reduction <add>, %17, %cst_11 [1] : vector<16x32xf32> to vector<16xf32>
    %19 = vector.shape_cast %18 : vector<16xf32> to vector<16x1xf32>
    %cst_12 = arith.constant 3.200000e+01 : f32
    %20 = vector.broadcast %cst_12 : f32 to vector<16x1xf32>
    %21 = arith.divf %19, %20 : vector<16x1xf32>
    %22 = vector.broadcast %14 : vector<16x1xf32> to vector<16x32xf32>
    %23 = arith.subf %7, %22 : vector<16x32xf32>
    %cst_13 = arith.constant 9.99999996E-13 : f32
    %24 = vector.broadcast %cst_13 : f32 to vector<16x1xf32>
    %25 = arith.addf %21, %24 : vector<16x1xf32>
    %26 = math.rsqrt %25 : vector<16x1xf32>
    %27 = vector.broadcast %26 : vector<16x1xf32> to vector<16x32xf32>
    %28 = arith.mulf %23, %27 : vector<16x32xf32>
    %29 = vector.broadcast %9 : vector<1x32xf32> to vector<16x32xf32>
    %30 = arith.mulf %28, %29 : vector<16x32xf32>
    %31 = vector.broadcast %10 : vector<1x32xf32> to vector<16x32xf32>
    %32 = arith.addf %30, %31 : vector<16x32xf32>
    %33 = tpu.concatenate %8, %8 in 0 : vector<2x8xf32>, vector<2x8xf32> -> vector<4x8xf32>
    %34 = vector.shape_cast %33 : vector<4x8xf32> to vector<4x1x8xf32>
    %35 = arith.truncf %32 : vector<16x32xf32> to vector<16x32xbf16>
    %c0_14 = arith.constant 0 : index
    %c0_15 = arith.constant 0 : index
    %c0_16 = arith.constant 0 : index
    %36 = vector.load %arg6[%c0_14, %c0_15, %c0_16] : memref<2x32x96xbf16, #tpu.memory_space<vmem>>, vector<1x32x96xbf16>
    %37 = vector.shape_cast %36 : vector<1x32x96xbf16> to vector<32x96xbf16>
    %cst_17 = arith.constant dense<0.000000e+00> : vector<16x96xf32>
    %38 = tpu.matmul %35, %37, %cst_17 {dimension_numbers = #tpu.dot_dimension_numbers<[1], [0], [0], [1], [0, 0, 1, 1], [], []>} : vector<16x32xbf16>, vector<32x96xbf16>, vector<16x96xf32> -> vector<16x96xf32>
    %c3 = arith.constant 3 : index
    %c0_18 = arith.constant 0 : index
    %39 = vector.load %arg5[%c3, %c0_18] : memref<48x128xf32, #tpu.memory_space<vmem>>, vector<1x96xf32>
    %40 = vector.broadcast %39 : vector<1x96xf32> to vector<16x96xf32>
    %41 = arith.addf %38, %40 : vector<16x96xf32>
    %42 = vector.extract_strided_slice %41 {offsets = [0, 0], sizes = [16, 48], strides = [1, 1]} : vector<16x96xf32> to vector<16x48xf32>
    %43 = vector.extract_strided_slice %41 {offsets = [0, 48], sizes = [16, 48], strides = [1, 1]} : vector<16x96xf32> to vector<16x48xf32>
    %44 = vector.shape_cast %42 : vector<16x48xf32> to vector<1x16x48xf32>
    %45 = vector.shape_cast %43 : vector<16x48xf32> to vector<1x16x48xf32>
    %46 = tpu.concatenate %44, %45 in 0 : vector<1x16x48xf32>, vector<1x16x48xf32> -> vector<2x16x48xf32>
    %47 = vector.shape_cast %46 : vector<2x16x48xf32> to vector<4x8x48xf32>
    %48 = vector.extract_strided_slice %47 {offsets = [0, 0, 0], sizes = [4, 8, 16], strides = [1, 1, 1]} : vector<4x8x48xf32> to vector<4x8x16xf32>
    %49 = arith.truncf %48 : vector<4x8x16xf32> to vector<4x8x16xbf16>
    %50 = vector.extract_strided_slice %47 {offsets = [0, 0, 16], sizes = [4, 8, 16], strides = [1, 1, 1]} : vector<4x8x48xf32> to vector<4x8x16xf32>
    %51 = arith.truncf %50 : vector<4x8x16xf32> to vector<4x8x16xbf16>
    %52 = vector.extract_strided_slice %47 {offsets = [0, 0, 32], sizes = [4, 8, 16], strides = [1, 1, 1]} : vector<4x8x48xf32> to vector<4x8x16xf32>
    %53 = arith.truncf %52 : vector<4x8x16xf32> to vector<4x8x16xbf16>
    "tpu.trace_start"() <{level = 10 : i32, message = "bqd,bkd->bqk"}> : () -> ()
    %cst_19 = arith.constant dense<0.000000e+00> : vector<4x8x8xf32>
    %54 = tpu.matmul %49, %51, %cst_19 {dimension_numbers = #tpu.dot_dimension_numbers<[2], [2], [1], [1], [0, 0, 0, 1, 1, 1], [0], [0]>} : vector<4x8x16xbf16>, vector<4x8x16xbf16>, vector<4x8x8xf32> -> vector<4x8x8xf32>
    "tpu.trace_stop"() : () -> ()
    %55 = vector.broadcast %34 : vector<4x1x8xf32> to vector<4x8x8xf32>
    %56 = arith.addf %54, %55 : vector<4x8x8xf32>
    %cst_20 = arith.constant dense<0xFF800000> : vector<4x8xf32>
    %57 = vector.multi_reduction <maximumf>, %56, %cst_20 [2] : vector<4x8x8xf32> to vector<4x8xf32>
    %58 = vector.shape_cast %57 : vector<4x8xf32> to vector<4x8x1xf32>
    %59 = vector.broadcast %58 : vector<4x8x1xf32> to vector<4x8x8xf32>
    %60 = arith.subf %56, %59 : vector<4x8x8xf32>
    %61 = math.exp %60 : vector<4x8x8xf32>
    %cst_21 = arith.constant dense<0.000000e+00> : vector<4x8xf32>
    %62 = vector.multi_reduction <add>, %61, %cst_21 [2] : vector<4x8x8xf32> to vector<4x8xf32>
    %63 = vector.shape_cast %62 : vector<4x8xf32> to vector<4x8x1xf32>
    %64 = tpu.reciprocal %63 {approx = true} : vector<4x8x1xf32> -> vector<4x8x1xf32>
    %65 = vector.broadcast %64 : vector<4x8x1xf32> to vector<4x8x8xf32>
    %66 = arith.mulf %61, %65 : vector<4x8x8xf32>
    %67 = arith.truncf %66 : vector<4x8x8xf32> to vector<4x8x8xbf16>
    "tpu.trace_start"() <{level = 10 : i32, message = "bqk,bkd->bqd"}> : () -> ()
    %cst_22 = arith.constant dense<0.000000e+00> : vector<4x8x16xf32>
    %68 = tpu.matmul %67, %53, %cst_22 {dimension_numbers = #tpu.dot_dimension_numbers<[2], [1], [1], [2], [0, 0, 0, 1, 1, 2], [0], [0]>} : vector<4x8x8xbf16>, vector<4x8x16xbf16>, vector<4x8x16xf32> -> vector<4x8x16xf32>
    "tpu.trace_stop"() : () -> ()
    %69 = vector.extract_strided_slice %68 {offsets = [0, 0, 0], sizes = [2, 8, 16], strides = [1, 1, 1]} : vector<4x8x16xf32> to vector<2x8x16xf32>
    %70 = vector.shape_cast %69 : vector<2x8x16xf32> to vector<16x16xf32>
    %71 = vector.extract_strided_slice %68 {offsets = [2, 0, 0], sizes = [2, 8, 16], strides = [1, 1, 1]} : vector<4x8x16xf32> to vector<2x8x16xf32>
    %72 = vector.shape_cast %71 : vector<2x8x16xf32> to vector<16x16xf32>
    %73 = tpu.concatenate %70, %72 in 1 : vector<16x16xf32>, vector<16x16xf32> -> vector<16x32xf32>
    %74 = arith.truncf %73 : vector<16x32xf32> to vector<16x32xbf16>
    %c0_23 = arith.constant 0 : index
    %c0_24 = arith.constant 0 : index
    %c0_25 = arith.constant 0 : index
    %75 = vector.load %arg7[%c0_23, %c0_24, %c0_25] : memref<2x32x32xbf16, #tpu.memory_space<vmem>>, vector<1x32x32xbf16>
    %76 = vector.shape_cast %75 : vector<1x32x32xbf16> to vector<32x32xbf16>
    %cst_26 = arith.constant dense<0.000000e+00> : vector<16x32xf32>
    %77 = tpu.matmul %74, %76, %cst_26 {dimension_numbers = #tpu.dot_dimension_numbers<[1], [0], [0], [1], [0, 0, 1, 1], [], []>} : vector<16x32xbf16>, vector<32x32xbf16>, vector<16x32xf32> -> vector<16x32xf32>
    %c4 = arith.constant 4 : index
    %c0_27 = arith.constant 0 : index
    %78 = vector.load %arg5[%c4, %c0_27] : memref<48x128xf32, #tpu.memory_space<vmem>>, vector<1x32xf32>
    %79 = vector.broadcast %78 : vector<1x32xf32> to vector<16x32xf32>
    %80 = arith.addf %77, %79 : vector<16x32xf32>
    %81 = arith.addf %80, %32 : vector<16x32xf32>
    %c5 = arith.constant 5 : index
    %c0_28 = arith.constant 0 : index
    %82 = vector.load %arg5[%c5, %c0_28] : memref<48x128xf32, #tpu.memory_space<vmem>>, vector<1x32xf32>
    %c6 = arith.constant 6 : index
    %c0_29 = arith.constant 0 : index
    %83 = vector.load %arg5[%c6, %c0_29] : memref<48x128xf32, #tpu.memory_space<vmem>>, vector<1x32xf32>
    %cst_30 = arith.constant dense<0.000000e+00> : vector<16xf32>
    %84 = vector.multi_reduction <add>, %81, %cst_30 [1] : vector<16x32xf32> to vector<16xf32>
    %85 = vector.shape_cast %84 : vector<16xf32> to vector<16x1xf32>
    %cst_31 = arith.constant 3.200000e+01 : f32
    %86 = vector.broadcast %cst_31 : f32 to vector<16x1xf32>
    %87 = arith.divf %85, %86 : vector<16x1xf32>
    %88 = vector.broadcast %87 : vector<16x1xf32> to vector<16x32xf32>
    %89 = arith.subf %81, %88 : vector<16x32xf32>
    %90 = arith.mulf %89, %89 : vector<16x32xf32>
    %cst_32 = arith.constant dense<0.000000e+00> : vector<16xf32>
    %91 = vector.multi_reduction <add>, %90, %cst_32 [1] : vector<16x32xf32> to vector<16xf32>
    %92 = vector.shape_cast %91 : vector<16xf32> to vector<16x1xf32>
    %cst_33 = arith.constant 3.200000e+01 : f32
    %93 = vector.broadcast %cst_33 : f32 to vector<16x1xf32>
    %94 = arith.divf %92, %93 : vector<16x1xf32>
    %95 = vector.broadcast %87 : vector<16x1xf32> to vector<16x32xf32>
    %96 = arith.subf %81, %95 : vector<16x32xf32>
    %cst_34 = arith.constant 9.99999996E-13 : f32
    %97 = vector.broadcast %cst_34 : f32 to vector<16x1xf32>
    %98 = arith.addf %94, %97 : vector<16x1xf32>
    %99 = math.rsqrt %98 : vector<16x1xf32>
    %100 = vector.broadcast %99 : vector<16x1xf32> to vector<16x32xf32>
    %101 = arith.mulf %96, %100 : vector<16x32xf32>
    %102 = vector.broadcast %82 : vector<1x32xf32> to vector<16x32xf32>
    %103 = arith.mulf %101, %102 : vector<16x32xf32>
    %104 = vector.broadcast %83 : vector<1x32xf32> to vector<16x32xf32>
    %105 = arith.addf %103, %104 : vector<16x32xf32>
    %106 = arith.truncf %105 : vector<16x32xf32> to vector<16x32xbf16>
    %c0_35 = arith.constant 0 : index
    %c0_36 = arith.constant 0 : index
    %c0_37 = arith.constant 0 : index
    %107 = vector.load %arg8[%c0_35, %c0_36, %c0_37] : memref<2x32x64xbf16, #tpu.memory_space<vmem>>, vector<1x32x64xbf16>
    %108 = vector.shape_cast %107 : vector<1x32x64xbf16> to vector<32x64xbf16>
    %cst_38 = arith.constant dense<0.000000e+00> : vector<16x64xf32>
    %109 = tpu.matmul %106, %108, %cst_38 {dimension_numbers = #tpu.dot_dimension_numbers<[1], [0], [0], [1], [0, 0, 1, 1], [], []>} : vector<16x32xbf16>, vector<32x64xbf16>, vector<16x64xf32> -> vector<16x64xf32>
    %c7 = arith.constant 7 : index
    %c0_39 = arith.constant 0 : index
    %110 = vector.load %arg5[%c7, %c0_39] : memref<48x128xf32, #tpu.memory_space<vmem>>, vector<1x64xf32>
    %111 = vector.broadcast %110 : vector<1x64xf32> to vector<16x64xf32>
    %112 = arith.addf %109, %111 : vector<16x64xf32>
    %113 = arith.mulf %112, %112 : vector<16x64xf32>
    %114 = arith.mulf %112, %113 : vector<16x64xf32>
    %cst_40 = arith.constant 4.471500e-02 : f32
    %115 = vector.broadcast %cst_40 : f32 to vector<16x64xf32>
    %116 = arith.mulf %115, %114 : vector<16x64xf32>
    %117 = arith.addf %112, %116 : vector<16x64xf32>
    %cst_41 = arith.constant 0.797884583 : f32
    %118 = vector.broadcast %cst_41 : f32 to vector<16x64xf32>
    %119 = arith.mulf %118, %117 : vector<16x64xf32>
    %120 = math.tanh %119 : vector<16x64xf32>
    %cst_42 = arith.constant 1.000000e+00 : f32
    %121 = vector.broadcast %cst_42 : f32 to vector<16x64xf32>
    %122 = arith.addf %121, %120 : vector<16x64xf32>
    %cst_43 = arith.constant 5.000000e-01 : f32
    %123 = vector.broadcast %cst_43 : f32 to vector<16x64xf32>
    %124 = arith.mulf %123, %122 : vector<16x64xf32>
    %125 = arith.mulf %112, %124 : vector<16x64xf32>
    %126 = arith.truncf %125 : vector<16x64xf32> to vector<16x64xbf16>
    %c0_44 = arith.constant 0 : index
    %c0_45 = arith.constant 0 : index
    %c0_46 = arith.constant 0 : index
    %127 = vector.load %arg9[%c0_44, %c0_45, %c0_46] : memref<2x64x32xbf16, #tpu.memory_space<vmem>>, vector<1x64x32xbf16>
    %128 = vector.shape_cast %127 : vector<1x64x32xbf16> to vector<64x32xbf16>
    %cst_47 = arith.constant dense<0.000000e+00> : vector<16x32xf32>
    %129 = tpu.matmul %126, %128, %cst_47 {dimension_numbers = #tpu.dot_dimension_numbers<[1], [0], [0], [1], [0, 0, 1, 1], [], []>} : vector<16x64xbf16>, vector<64x32xbf16>, vector<16x32xf32> -> vector<16x32xf32>
    %c8 = arith.constant 8 : index
    %c0_48 = arith.constant 0 : index
    %130 = vector.load %arg5[%c8, %c0_48] : memref<48x128xf32, #tpu.memory_space<vmem>>, vector<1x32xf32>
    %131 = vector.broadcast %130 : vector<1x32xf32> to vector<16x32xf32>
    %132 = arith.addf %129, %131 : vector<16x32xf32>
    %133 = arith.addf %132, %105 : vector<16x32xf32>
    %c9 = arith.constant 9 : index
    %c0_49 = arith.constant 0 : index
    %134 = vector.load %arg5[%c9, %c0_49] : memref<48x128xf32, #tpu.memory_space<vmem>>, vector<1x32xf32>
    %c10 = arith.constant 10 : index
    %c0_50 = arith.constant 0 : index
    %135 = vector.load %arg5[%c10, %c0_50] : memref<48x128xf32, #tpu.memory_space<vmem>>, vector<1x32xf32>
    %cst_51 = arith.constant dense<0.000000e+00> : vector<16xf32>
    %136 = vector.multi_reduction <add>, %133, %cst_51 [1] : vector<16x32xf32> to vector<16xf32>
    %137 = vector.shape_cast %136 : vector<16xf32> to vector<16x1xf32>
    %cst_52 = arith.constant 3.200000e+01 : f32
    %138 = vector.broadcast %cst_52 : f32 to vector<16x1xf32>
    %139 = arith.divf %137, %138 : vector<16x1xf32>
    %140 = vector.broadcast %139 : vector<16x1xf32> to vector<16x32xf32>
    %141 = arith.subf %133, %140 : vector<16x32xf32>
    %142 = arith.mulf %141, %141 : vector<16x32xf32>
    %cst_53 = arith.constant dense<0.000000e+00> : vector<16xf32>
    %143 = vector.multi_reduction <add>, %142, %cst_53 [1] : vector<16x32xf32> to vector<16xf32>
    %144 = vector.shape_cast %143 : vector<16xf32> to vector<16x1xf32>
    %cst_54 = arith.constant 3.200000e+01 : f32
    %145 = vector.broadcast %cst_54 : f32 to vector<16x1xf32>
    %146 = arith.divf %144, %145 : vector<16x1xf32>
    %147 = vector.broadcast %139 : vector<16x1xf32> to vector<16x32xf32>
    %148 = arith.subf %133, %147 : vector<16x32xf32>
    %cst_55 = arith.constant 9.99999996E-13 : f32
    %149 = vector.broadcast %cst_55 : f32 to vector<16x1xf32>
    %150 = arith.addf %146, %149 : vector<16x1xf32>
    %151 = math.rsqrt %150 : vector<16x1xf32>
    %152 = vector.broadcast %151 : vector<16x1xf32> to vector<16x32xf32>
    %153 = arith.mulf %148, %152 : vector<16x32xf32>
    %154 = vector.broadcast %134 : vector<1x32xf32> to vector<16x32xf32>
    %155 = arith.mulf %153, %154 : vector<16x32xf32>
    %156 = vector.broadcast %135 : vector<1x32xf32> to vector<16x32xf32>
    %157 = arith.addf %155, %156 : vector<16x32xf32>
    %158 = arith.truncf %157 : vector<16x32xf32> to vector<16x32xbf16>
    %c1_56 = arith.constant 1 : index
    %c0_57 = arith.constant 0 : index
    %c0_58 = arith.constant 0 : index
    %159 = vector.load %arg6[%c1_56, %c0_57, %c0_58] : memref<2x32x96xbf16, #tpu.memory_space<vmem>>, vector<1x32x96xbf16>
    %160 = vector.shape_cast %159 : vector<1x32x96xbf16> to vector<32x96xbf16>
    %cst_59 = arith.constant dense<0.000000e+00> : vector<16x96xf32>
    %161 = tpu.matmul %158, %160, %cst_59 {dimension_numbers = #tpu.dot_dimension_numbers<[1], [0], [0], [1], [0, 0, 1, 1], [], []>} : vector<16x32xbf16>, vector<32x96xbf16>, vector<16x96xf32> -> vector<16x96xf32>
    %c11 = arith.constant 11 : index
    %c0_60 = arith.constant 0 : index
    %162 = vector.load %arg5[%c11, %c0_60] : memref<48x128xf32, #tpu.memory_space<vmem>>, vector<1x96xf32>
    %163 = vector.broadcast %162 : vector<1x96xf32> to vector<16x96xf32>
    %164 = arith.addf %161, %163 : vector<16x96xf32>
    %165 = vector.extract_strided_slice %164 {offsets = [0, 0], sizes = [16, 48], strides = [1, 1]} : vector<16x96xf32> to vector<16x48xf32>
    %166 = vector.extract_strided_slice %164 {offsets = [0, 48], sizes = [16, 48], strides = [1, 1]} : vector<16x96xf32> to vector<16x48xf32>
    %167 = vector.shape_cast %165 : vector<16x48xf32> to vector<1x16x48xf32>
    %168 = vector.shape_cast %166 : vector<16x48xf32> to vector<1x16x48xf32>
    %169 = tpu.concatenate %167, %168 in 0 : vector<1x16x48xf32>, vector<1x16x48xf32> -> vector<2x16x48xf32>
    %170 = vector.shape_cast %169 : vector<2x16x48xf32> to vector<4x8x48xf32>
    %171 = vector.extract_strided_slice %170 {offsets = [0, 0, 0], sizes = [4, 8, 16], strides = [1, 1, 1]} : vector<4x8x48xf32> to vector<4x8x16xf32>
    %172 = arith.truncf %171 : vector<4x8x16xf32> to vector<4x8x16xbf16>
    %173 = vector.extract_strided_slice %170 {offsets = [0, 0, 16], sizes = [4, 8, 16], strides = [1, 1, 1]} : vector<4x8x48xf32> to vector<4x8x16xf32>
    %174 = arith.truncf %173 : vector<4x8x16xf32> to vector<4x8x16xbf16>
    %175 = vector.extract_strided_slice %170 {offsets = [0, 0, 32], sizes = [4, 8, 16], strides = [1, 1, 1]} : vector<4x8x48xf32> to vector<4x8x16xf32>
    %176 = arith.truncf %175 : vector<4x8x16xf32> to vector<4x8x16xbf16>
    "tpu.trace_start"() <{level = 10 : i32, message = "bqd,bkd->bqk"}> : () -> ()
    %cst_61 = arith.constant dense<0.000000e+00> : vector<4x8x8xf32>
    %177 = tpu.matmul %172, %174, %cst_61 {dimension_numbers = #tpu.dot_dimension_numbers<[2], [2], [1], [1], [0, 0, 0, 1, 1, 1], [0], [0]>} : vector<4x8x16xbf16>, vector<4x8x16xbf16>, vector<4x8x8xf32> -> vector<4x8x8xf32>
    "tpu.trace_stop"() : () -> ()
    %178 = vector.broadcast %34 : vector<4x1x8xf32> to vector<4x8x8xf32>
    %179 = arith.addf %177, %178 : vector<4x8x8xf32>
    %cst_62 = arith.constant dense<0xFF800000> : vector<4x8xf32>
    %180 = vector.multi_reduction <maximumf>, %179, %cst_62 [2] : vector<4x8x8xf32> to vector<4x8xf32>
    %181 = vector.shape_cast %180 : vector<4x8xf32> to vector<4x8x1xf32>
    %182 = vector.broadcast %181 : vector<4x8x1xf32> to vector<4x8x8xf32>
    %183 = arith.subf %179, %182 : vector<4x8x8xf32>
    %184 = math.exp %183 : vector<4x8x8xf32>
    %cst_63 = arith.constant dense<0.000000e+00> : vector<4x8xf32>
    %185 = vector.multi_reduction <add>, %184, %cst_63 [2] : vector<4x8x8xf32> to vector<4x8xf32>
    %186 = vector.shape_cast %185 : vector<4x8xf32> to vector<4x8x1xf32>
    %187 = tpu.reciprocal %186 {approx = true} : vector<4x8x1xf32> -> vector<4x8x1xf32>
    %188 = vector.broadcast %187 : vector<4x8x1xf32> to vector<4x8x8xf32>
    %189 = arith.mulf %184, %188 : vector<4x8x8xf32>
    %190 = arith.truncf %189 : vector<4x8x8xf32> to vector<4x8x8xbf16>
    "tpu.trace_start"() <{level = 10 : i32, message = "bqk,bkd->bqd"}> : () -> ()
    %cst_64 = arith.constant dense<0.000000e+00> : vector<4x8x16xf32>
    %191 = tpu.matmul %190, %176, %cst_64 {dimension_numbers = #tpu.dot_dimension_numbers<[2], [1], [1], [2], [0, 0, 0, 1, 1, 2], [0], [0]>} : vector<4x8x8xbf16>, vector<4x8x16xbf16>, vector<4x8x16xf32> -> vector<4x8x16xf32>
    "tpu.trace_stop"() : () -> ()
    %192 = vector.extract_strided_slice %191 {offsets = [0, 0, 0], sizes = [2, 8, 16], strides = [1, 1, 1]} : vector<4x8x16xf32> to vector<2x8x16xf32>
    %193 = vector.shape_cast %192 : vector<2x8x16xf32> to vector<16x16xf32>
    %194 = vector.extract_strided_slice %191 {offsets = [2, 0, 0], sizes = [2, 8, 16], strides = [1, 1, 1]} : vector<4x8x16xf32> to vector<2x8x16xf32>
    %195 = vector.shape_cast %194 : vector<2x8x16xf32> to vector<16x16xf32>
    %196 = tpu.concatenate %193, %195 in 1 : vector<16x16xf32>, vector<16x16xf32> -> vector<16x32xf32>
    %197 = arith.truncf %196 : vector<16x32xf32> to vector<16x32xbf16>
    %c1_65 = arith.constant 1 : index
    %c0_66 = arith.constant 0 : index
    %c0_67 = arith.constant 0 : index
    %198 = vector.load %arg7[%c1_65, %c0_66, %c0_67] : memref<2x32x32xbf16, #tpu.memory_space<vmem>>, vector<1x32x32xbf16>
    %199 = vector.shape_cast %198 : vector<1x32x32xbf16> to vector<32x32xbf16>
    %cst_68 = arith.constant dense<0.000000e+00> : vector<16x32xf32>
    %200 = tpu.matmul %197, %199, %cst_68 {dimension_numbers = #tpu.dot_dimension_numbers<[1], [0], [0], [1], [0, 0, 1, 1], [], []>} : vector<16x32xbf16>, vector<32x32xbf16>, vector<16x32xf32> -> vector<16x32xf32>
    %c12 = arith.constant 12 : index
    %c0_69 = arith.constant 0 : index
    %201 = vector.load %arg5[%c12, %c0_69] : memref<48x128xf32, #tpu.memory_space<vmem>>, vector<1x32xf32>
    %202 = vector.broadcast %201 : vector<1x32xf32> to vector<16x32xf32>
    %203 = arith.addf %200, %202 : vector<16x32xf32>
    %204 = arith.addf %203, %157 : vector<16x32xf32>
    %c13 = arith.constant 13 : index
    %c0_70 = arith.constant 0 : index
    %205 = vector.load %arg5[%c13, %c0_70] : memref<48x128xf32, #tpu.memory_space<vmem>>, vector<1x32xf32>
    %c14 = arith.constant 14 : index
    %c0_71 = arith.constant 0 : index
    %206 = vector.load %arg5[%c14, %c0_71] : memref<48x128xf32, #tpu.memory_space<vmem>>, vector<1x32xf32>
    %cst_72 = arith.constant dense<0.000000e+00> : vector<16xf32>
    %207 = vector.multi_reduction <add>, %204, %cst_72 [1] : vector<16x32xf32> to vector<16xf32>
    %208 = vector.shape_cast %207 : vector<16xf32> to vector<16x1xf32>
    %cst_73 = arith.constant 3.200000e+01 : f32
    %209 = vector.broadcast %cst_73 : f32 to vector<16x1xf32>
    %210 = arith.divf %208, %209 : vector<16x1xf32>
    %211 = vector.broadcast %210 : vector<16x1xf32> to vector<16x32xf32>
    %212 = arith.subf %204, %211 : vector<16x32xf32>
    %213 = arith.mulf %212, %212 : vector<16x32xf32>
    %cst_74 = arith.constant dense<0.000000e+00> : vector<16xf32>
    %214 = vector.multi_reduction <add>, %213, %cst_74 [1] : vector<16x32xf32> to vector<16xf32>
    %215 = vector.shape_cast %214 : vector<16xf32> to vector<16x1xf32>
    %cst_75 = arith.constant 3.200000e+01 : f32
    %216 = vector.broadcast %cst_75 : f32 to vector<16x1xf32>
    %217 = arith.divf %215, %216 : vector<16x1xf32>
    %218 = vector.broadcast %210 : vector<16x1xf32> to vector<16x32xf32>
    %219 = arith.subf %204, %218 : vector<16x32xf32>
    %cst_76 = arith.constant 9.99999996E-13 : f32
    %220 = vector.broadcast %cst_76 : f32 to vector<16x1xf32>
    %221 = arith.addf %217, %220 : vector<16x1xf32>
    %222 = math.rsqrt %221 : vector<16x1xf32>
    %223 = vector.broadcast %222 : vector<16x1xf32> to vector<16x32xf32>
    %224 = arith.mulf %219, %223 : vector<16x32xf32>
    %225 = vector.broadcast %205 : vector<1x32xf32> to vector<16x32xf32>
    %226 = arith.mulf %224, %225 : vector<16x32xf32>
    %227 = vector.broadcast %206 : vector<1x32xf32> to vector<16x32xf32>
    %228 = arith.addf %226, %227 : vector<16x32xf32>
    %229 = arith.truncf %228 : vector<16x32xf32> to vector<16x32xbf16>
    %c1_77 = arith.constant 1 : index
    %c0_78 = arith.constant 0 : index
    %c0_79 = arith.constant 0 : index
    %230 = vector.load %arg8[%c1_77, %c0_78, %c0_79] : memref<2x32x64xbf16, #tpu.memory_space<vmem>>, vector<1x32x64xbf16>
    %231 = vector.shape_cast %230 : vector<1x32x64xbf16> to vector<32x64xbf16>
    %cst_80 = arith.constant dense<0.000000e+00> : vector<16x64xf32>
    %232 = tpu.matmul %229, %231, %cst_80 {dimension_numbers = #tpu.dot_dimension_numbers<[1], [0], [0], [1], [0, 0, 1, 1], [], []>} : vector<16x32xbf16>, vector<32x64xbf16>, vector<16x64xf32> -> vector<16x64xf32>
    %c15 = arith.constant 15 : index
    %c0_81 = arith.constant 0 : index
    %233 = vector.load %arg5[%c15, %c0_81] : memref<48x128xf32, #tpu.memory_space<vmem>>, vector<1x64xf32>
    %234 = vector.broadcast %233 : vector<1x64xf32> to vector<16x64xf32>
    %235 = arith.addf %232, %234 : vector<16x64xf32>
    %236 = arith.mulf %235, %235 : vector<16x64xf32>
    %237 = arith.mulf %235, %236 : vector<16x64xf32>
    %cst_82 = arith.constant 4.471500e-02 : f32
    %238 = vector.broadcast %cst_82 : f32 to vector<16x64xf32>
    %239 = arith.mulf %238, %237 : vector<16x64xf32>
    %240 = arith.addf %235, %239 : vector<16x64xf32>
    %cst_83 = arith.constant 0.797884583 : f32
    %241 = vector.broadcast %cst_83 : f32 to vector<16x64xf32>
    %242 = arith.mulf %241, %240 : vector<16x64xf32>
    %243 = math.tanh %242 : vector<16x64xf32>
    %cst_84 = arith.constant 1.000000e+00 : f32
    %244 = vector.broadcast %cst_84 : f32 to vector<16x64xf32>
    %245 = arith.addf %244, %243 : vector<16x64xf32>
    %cst_85 = arith.constant 5.000000e-01 : f32
    %246 = vector.broadcast %cst_85 : f32 to vector<16x64xf32>
    %247 = arith.mulf %246, %245 : vector<16x64xf32>
    %248 = arith.mulf %235, %247 : vector<16x64xf32>
    %249 = arith.truncf %248 : vector<16x64xf32> to vector<16x64xbf16>
    %c1_86 = arith.constant 1 : index
    %c0_87 = arith.constant 0 : index
    %c0_88 = arith.constant 0 : index
    %250 = vector.load %arg9[%c1_86, %c0_87, %c0_88] : memref<2x64x32xbf16, #tpu.memory_space<vmem>>, vector<1x64x32xbf16>
    %251 = vector.shape_cast %250 : vector<1x64x32xbf16> to vector<64x32xbf16>
    %cst_89 = arith.constant dense<0.000000e+00> : vector<16x32xf32>
    %252 = tpu.matmul %249, %251, %cst_89 {dimension_numbers = #tpu.dot_dimension_numbers<[1], [0], [0], [1], [0, 0, 1, 1], [], []>} : vector<16x64xbf16>, vector<64x32xbf16>, vector<16x32xf32> -> vector<16x32xf32>
    %c16 = arith.constant 16 : index
    %c0_90 = arith.constant 0 : index
    %253 = vector.load %arg5[%c16, %c0_90] : memref<48x128xf32, #tpu.memory_space<vmem>>, vector<1x32xf32>
    %254 = vector.broadcast %253 : vector<1x32xf32> to vector<16x32xf32>
    %255 = arith.addf %252, %254 : vector<16x32xf32>
    %256 = arith.addf %255, %228 : vector<16x32xf32>
    %c17 = arith.constant 17 : index
    %c0_91 = arith.constant 0 : index
    %257 = vector.load %arg5[%c17, %c0_91] : memref<48x128xf32, #tpu.memory_space<vmem>>, vector<1x32xf32>
    %c18 = arith.constant 18 : index
    %c0_92 = arith.constant 0 : index
    %258 = vector.load %arg5[%c18, %c0_92] : memref<48x128xf32, #tpu.memory_space<vmem>>, vector<1x32xf32>
    %cst_93 = arith.constant dense<0.000000e+00> : vector<16xf32>
    %259 = vector.multi_reduction <add>, %256, %cst_93 [1] : vector<16x32xf32> to vector<16xf32>
    %260 = vector.shape_cast %259 : vector<16xf32> to vector<16x1xf32>
    %cst_94 = arith.constant 3.200000e+01 : f32
    %261 = vector.broadcast %cst_94 : f32 to vector<16x1xf32>
    %262 = arith.divf %260, %261 : vector<16x1xf32>
    %263 = vector.broadcast %262 : vector<16x1xf32> to vector<16x32xf32>
    %264 = arith.subf %256, %263 : vector<16x32xf32>
    %265 = arith.mulf %264, %264 : vector<16x32xf32>
    %cst_95 = arith.constant dense<0.000000e+00> : vector<16xf32>
    %266 = vector.multi_reduction <add>, %265, %cst_95 [1] : vector<16x32xf32> to vector<16xf32>
    %267 = vector.shape_cast %266 : vector<16xf32> to vector<16x1xf32>
    %cst_96 = arith.constant 3.200000e+01 : f32
    %268 = vector.broadcast %cst_96 : f32 to vector<16x1xf32>
    %269 = arith.divf %267, %268 : vector<16x1xf32>
    %270 = vector.broadcast %262 : vector<16x1xf32> to vector<16x32xf32>
    %271 = arith.subf %256, %270 : vector<16x32xf32>
    %cst_97 = arith.constant 9.99999996E-13 : f32
    %272 = vector.broadcast %cst_97 : f32 to vector<16x1xf32>
    %273 = arith.addf %269, %272 : vector<16x1xf32>
    %274 = math.rsqrt %273 : vector<16x1xf32>
    %275 = vector.broadcast %274 : vector<16x1xf32> to vector<16x32xf32>
    %276 = arith.mulf %271, %275 : vector<16x32xf32>
    %277 = vector.broadcast %257 : vector<1x32xf32> to vector<16x32xf32>
    %278 = arith.mulf %276, %277 : vector<16x32xf32>
    %279 = vector.broadcast %258 : vector<1x32xf32> to vector<16x32xf32>
    %280 = arith.addf %278, %279 : vector<16x32xf32>
    %281 = vector.shape_cast %280 : vector<16x32xf32> to vector<2x8x32xf32>
    %282 = vector.extract_strided_slice %281 {offsets = [0, 0, 0], sizes = [2, 1, 32], strides = [1, 1, 1]} : vector<2x8x32xf32> to vector<2x1x32xf32>
    %cst_98 = arith.constant dense<0xFF800000> : vector<2x32xf32>
    %283 = vector.multi_reduction <maximumf>, %282, %cst_98 [1] : vector<2x1x32xf32> to vector<2x32xf32>
    %284 = arith.truncf %283 : vector<2x32xf32> to vector<2x32xbf16>
    %cst_99 = arith.constant dense<0.000000e+00> : vector<2x32xf32>
    %285 = tpu.matmul %284, %1, %cst_99 {dimension_numbers = #tpu.dot_dimension_numbers<[1], [0], [0], [1], [0, 0, 1, 1], [], []>} : vector<2x32xbf16>, vector<32x32xbf16>, vector<2x32xf32> -> vector<2x32xf32>
    %c2 = arith.constant 2 : index
    %c0_100 = arith.constant 0 : index
    %286 = vector.load %arg5[%c2, %c0_100] : memref<48x128xf32, #tpu.memory_space<vmem>>, vector<1x32xf32>
    %287 = vector.broadcast %286 : vector<1x32xf32> to vector<2x32xf32>
    %288 = arith.addf %285, %287 : vector<2x32xf32>
    %289 = math.tanh %288 : vector<2x32xf32>
    %cst_101 = arith.constant dense<0xFF800000> : vector<2x32xf32>
    %290 = vector.multi_reduction <maximumf>, %281, %cst_101 [1] : vector<2x8x32xf32> to vector<2x32xf32>
    %c38 = arith.constant 38 : index
    %c0_102 = arith.constant 0 : index
    %291 = vector.load %arg5[%c38, %c0_102] : memref<48x128xf32, #tpu.memory_space<vmem>>, vector<1x32xf32>
    %292 = vector.broadcast %291 : vector<1x32xf32> to vector<2x32xf32>
    %293 = arith.mulf %290, %292 : vector<2x32xf32>
    %cst_103 = arith.constant dense<0.000000e+00> : vector<2xf32>
    %294 = vector.multi_reduction <add>, %293, %cst_103 [1] : vector<2x32xf32> to vector<2xf32>
    %295 = vector.shape_cast %294 : vector<2xf32> to vector<2x1xf32>
    %c39 = arith.constant 39 : index
    %c0_104 = arith.constant 0 : index
    %296 = vector.load %arg5[%c39, %c0_104] : memref<48x128xf32, #tpu.memory_space<vmem>>, vector<1x32xf32>
    %297 = vector.broadcast %296 : vector<1x32xf32> to vector<2x32xf32>
    %298 = arith.mulf %289, %297 : vector<2x32xf32>
    %cst_105 = arith.constant dense<0.000000e+00> : vector<2xf32>
    %299 = vector.multi_reduction <add>, %298, %cst_105 [1] : vector<2x32xf32> to vector<2xf32>
    %300 = vector.shape_cast %299 : vector<2xf32> to vector<2x1xf32>
    %301 = arith.addf %295, %300 : vector<2x1xf32>
    %c40 = arith.constant 40 : index
    %c0_106 = arith.constant 0 : index
    %302 = vector.load %arg5[%c40, %c0_106] : memref<48x128xf32, #tpu.memory_space<vmem>>, vector<1x1xf32>
    %303 = vector.broadcast %302 : vector<1x1xf32> to vector<2x1xf32>
    %304 = arith.addf %301, %303 : vector<2x1xf32>
    %305 = arith.negf %304 : vector<2x1xf32>
    %306 = math.exp %305 : vector<2x1xf32>
    %cst_107 = arith.constant 1.000000e+00 : f32
    %307 = vector.broadcast %cst_107 : f32 to vector<2x1xf32>
    %308 = arith.addf %307, %306 : vector<2x1xf32>
    %309 = arith.divf %307, %308 : vector<2x1xf32>
    %c0_108 = arith.constant 0 : index
    %c0_109 = arith.constant 0 : index
    %310 = vector.load %arg2[%c0_108, %c0_109] : memref<80x32xf32, #tpu.memory_space<vmem>>, vector<80x32xf32>
    %c0_110 = arith.constant 0 : index
    %c0_111 = arith.constant 0 : index
    %311 = vector.load %arg3[%c0_110, %c0_111] : memref<10x8xf32, #tpu.memory_space<vmem>>, vector<10x8xf32>
    %c19 = arith.constant 19 : index
    %c0_112 = arith.constant 0 : index
    %312 = vector.load %arg5[%c19, %c0_112] : memref<48x128xf32, #tpu.memory_space<vmem>>, vector<1x32xf32>
    %c20 = arith.constant 20 : index
    %c0_113 = arith.constant 0 : index
    %313 = vector.load %arg5[%c20, %c0_113] : memref<48x128xf32, #tpu.memory_space<vmem>>, vector<1x32xf32>
    %cst_114 = arith.constant dense<0.000000e+00> : vector<80xf32>
    %314 = vector.multi_reduction <add>, %310, %cst_114 [1] : vector<80x32xf32> to vector<80xf32>
    %315 = vector.shape_cast %314 : vector<80xf32> to vector<80x1xf32>
    %cst_115 = arith.constant 3.200000e+01 : f32
    %316 = vector.broadcast %cst_115 : f32 to vector<80x1xf32>
    %317 = arith.divf %315, %316 : vector<80x1xf32>
    %318 = vector.broadcast %317 : vector<80x1xf32> to vector<80x32xf32>
    %319 = arith.subf %310, %318 : vector<80x32xf32>
    %320 = arith.mulf %319, %319 : vector<80x32xf32>
    %cst_116 = arith.constant dense<0.000000e+00> : vector<80xf32>
    %321 = vector.multi_reduction <add>, %320, %cst_116 [1] : vector<80x32xf32> to vector<80xf32>
    %322 = vector.shape_cast %321 : vector<80xf32> to vector<80x1xf32>
    %cst_117 = arith.constant 3.200000e+01 : f32
    %323 = vector.broadcast %cst_117 : f32 to vector<80x1xf32>
    %324 = arith.divf %322, %323 : vector<80x1xf32>
    %325 = vector.broadcast %317 : vector<80x1xf32> to vector<80x32xf32>
    %326 = arith.subf %310, %325 : vector<80x32xf32>
    %cst_118 = arith.constant 9.99999996E-13 : f32
    %327 = vector.broadcast %cst_118 : f32 to vector<80x1xf32>
    %328 = arith.addf %324, %327 : vector<80x1xf32>
    %329 = math.rsqrt %328 : vector<80x1xf32>
    %330 = vector.broadcast %329 : vector<80x1xf32> to vector<80x32xf32>
    %331 = arith.mulf %326, %330 : vector<80x32xf32>
    %332 = vector.broadcast %312 : vector<1x32xf32> to vector<80x32xf32>
    %333 = arith.mulf %331, %332 : vector<80x32xf32>
    %334 = vector.broadcast %313 : vector<1x32xf32> to vector<80x32xf32>
    %335 = arith.addf %333, %334 : vector<80x32xf32>
    %336 = tpu.concatenate %311, %311 in 0 : vector<10x8xf32>, vector<10x8xf32> -> vector<20x8xf32>
    %337 = vector.shape_cast %336 : vector<20x8xf32> to vector<20x1x8xf32>
    %338 = arith.truncf %335 : vector<80x32xf32> to vector<80x32xbf16>
    %c0_119 = arith.constant 0 : index
    %c0_120 = arith.constant 0 : index
    %c0_121 = arith.constant 0 : index
    %339 = vector.load %arg10[%c0_119, %c0_120, %c0_121] : memref<2x32x96xbf16, #tpu.memory_space<vmem>>, vector<1x32x96xbf16>
    %340 = vector.shape_cast %339 : vector<1x32x96xbf16> to vector<32x96xbf16>
    %cst_122 = arith.constant dense<0.000000e+00> : vector<80x96xf32>
    %341 = tpu.matmul %338, %340, %cst_122 {dimension_numbers = #tpu.dot_dimension_numbers<[1], [0], [0], [1], [0, 0, 1, 1], [], []>} : vector<80x32xbf16>, vector<32x96xbf16>, vector<80x96xf32> -> vector<80x96xf32>
    %c22 = arith.constant 22 : index
    %c0_123 = arith.constant 0 : index
    %342 = vector.load %arg5[%c22, %c0_123] : memref<48x128xf32, #tpu.memory_space<vmem>>, vector<1x96xf32>
    %343 = vector.broadcast %342 : vector<1x96xf32> to vector<80x96xf32>
    %344 = arith.addf %341, %343 : vector<80x96xf32>
    %345 = vector.extract_strided_slice %344 {offsets = [0, 0], sizes = [80, 48], strides = [1, 1]} : vector<80x96xf32> to vector<80x48xf32>
    %346 = vector.extract_strided_slice %344 {offsets = [0, 48], sizes = [80, 48], strides = [1, 1]} : vector<80x96xf32> to vector<80x48xf32>
    %347 = vector.shape_cast %345 : vector<80x48xf32> to vector<1x80x48xf32>
    %348 = vector.shape_cast %346 : vector<80x48xf32> to vector<1x80x48xf32>
    %349 = tpu.concatenate %347, %348 in 0 : vector<1x80x48xf32>, vector<1x80x48xf32> -> vector<2x80x48xf32>
    %350 = vector.shape_cast %349 : vector<2x80x48xf32> to vector<20x8x48xf32>
    %351 = vector.extract_strided_slice %350 {offsets = [0, 0, 0], sizes = [20, 8, 16], strides = [1, 1, 1]} : vector<20x8x48xf32> to vector<20x8x16xf32>
    %352 = arith.truncf %351 : vector<20x8x16xf32> to vector<20x8x16xbf16>
    %353 = vector.extract_strided_slice %350 {offsets = [0, 0, 16], sizes = [20, 8, 16], strides = [1, 1, 1]} : vector<20x8x48xf32> to vector<20x8x16xf32>
    %354 = arith.truncf %353 : vector<20x8x16xf32> to vector<20x8x16xbf16>
    %355 = vector.extract_strided_slice %350 {offsets = [0, 0, 32], sizes = [20, 8, 16], strides = [1, 1, 1]} : vector<20x8x48xf32> to vector<20x8x16xf32>
    %356 = arith.truncf %355 : vector<20x8x16xf32> to vector<20x8x16xbf16>
    "tpu.trace_start"() <{level = 10 : i32, message = "bqd,bkd->bqk"}> : () -> ()
    %cst_124 = arith.constant dense<0.000000e+00> : vector<20x8x8xf32>
    %357 = tpu.matmul %352, %354, %cst_124 {dimension_numbers = #tpu.dot_dimension_numbers<[2], [2], [1], [1], [0, 0, 0, 1, 1, 1], [0], [0]>} : vector<20x8x16xbf16>, vector<20x8x16xbf16>, vector<20x8x8xf32> -> vector<20x8x8xf32>
    "tpu.trace_stop"() : () -> ()
    %358 = vector.broadcast %337 : vector<20x1x8xf32> to vector<20x8x8xf32>
    %359 = arith.addf %357, %358 : vector<20x8x8xf32>
    %cst_125 = arith.constant dense<0xFF800000> : vector<20x8xf32>
    %360 = vector.multi_reduction <maximumf>, %359, %cst_125 [2] : vector<20x8x8xf32> to vector<20x8xf32>
    %361 = vector.shape_cast %360 : vector<20x8xf32> to vector<20x8x1xf32>
    %362 = vector.broadcast %361 : vector<20x8x1xf32> to vector<20x8x8xf32>
    %363 = arith.subf %359, %362 : vector<20x8x8xf32>
    %364 = math.exp %363 : vector<20x8x8xf32>
    %cst_126 = arith.constant dense<0.000000e+00> : vector<20x8xf32>
    %365 = vector.multi_reduction <add>, %364, %cst_126 [2] : vector<20x8x8xf32> to vector<20x8xf32>
    %366 = vector.shape_cast %365 : vector<20x8xf32> to vector<20x8x1xf32>
    %367 = tpu.reciprocal %366 {approx = true} : vector<20x8x1xf32> -> vector<20x8x1xf32>
    %368 = vector.broadcast %367 : vector<20x8x1xf32> to vector<20x8x8xf32>
    %369 = arith.mulf %364, %368 : vector<20x8x8xf32>
    %370 = arith.truncf %369 : vector<20x8x8xf32> to vector<20x8x8xbf16>
    "tpu.trace_start"() <{level = 10 : i32, message = "bqk,bkd->bqd"}> : () -> ()
    %cst_127 = arith.constant dense<0.000000e+00> : vector<20x8x16xf32>
    %371 = tpu.matmul %370, %356, %cst_127 {dimension_numbers = #tpu.dot_dimension_numbers<[2], [1], [1], [2], [0, 0, 0, 1, 1, 2], [0], [0]>} : vector<20x8x8xbf16>, vector<20x8x16xbf16>, vector<20x8x16xf32> -> vector<20x8x16xf32>
    "tpu.trace_stop"() : () -> ()
    %372 = vector.extract_strided_slice %371 {offsets = [0, 0, 0], sizes = [10, 8, 16], strides = [1, 1, 1]} : vector<20x8x16xf32> to vector<10x8x16xf32>
    %373 = vector.shape_cast %372 : vector<10x8x16xf32> to vector<80x16xf32>
    %374 = vector.extract_strided_slice %371 {offsets = [10, 0, 0], sizes = [10, 8, 16], strides = [1, 1, 1]} : vector<20x8x16xf32> to vector<10x8x16xf32>
    %375 = vector.shape_cast %374 : vector<10x8x16xf32> to vector<80x16xf32>
    %376 = tpu.concatenate %373, %375 in 1 : vector<80x16xf32>, vector<80x16xf32> -> vector<80x32xf32>
    %377 = arith.truncf %376 : vector<80x32xf32> to vector<80x32xbf16>
    %c0_128 = arith.constant 0 : index
    %c0_129 = arith.constant 0 : index
    %c0_130 = arith.constant 0 : index
    %378 = vector.load %arg11[%c0_128, %c0_129, %c0_130] : memref<2x32x32xbf16, #tpu.memory_space<vmem>>, vector<1x32x32xbf16>
    %379 = vector.shape_cast %378 : vector<1x32x32xbf16> to vector<32x32xbf16>
    %cst_131 = arith.constant dense<0.000000e+00> : vector<80x32xf32>
    %380 = tpu.matmul %377, %379, %cst_131 {dimension_numbers = #tpu.dot_dimension_numbers<[1], [0], [0], [1], [0, 0, 1, 1], [], []>} : vector<80x32xbf16>, vector<32x32xbf16>, vector<80x32xf32> -> vector<80x32xf32>
    %c23 = arith.constant 23 : index
    %c0_132 = arith.constant 0 : index
    %381 = vector.load %arg5[%c23, %c0_132] : memref<48x128xf32, #tpu.memory_space<vmem>>, vector<1x32xf32>
    %382 = vector.broadcast %381 : vector<1x32xf32> to vector<80x32xf32>
    %383 = arith.addf %380, %382 : vector<80x32xf32>
    %384 = arith.addf %383, %335 : vector<80x32xf32>
    %c24 = arith.constant 24 : index
    %c0_133 = arith.constant 0 : index
    %385 = vector.load %arg5[%c24, %c0_133] : memref<48x128xf32, #tpu.memory_space<vmem>>, vector<1x32xf32>
    %c25 = arith.constant 25 : index
    %c0_134 = arith.constant 0 : index
    %386 = vector.load %arg5[%c25, %c0_134] : memref<48x128xf32, #tpu.memory_space<vmem>>, vector<1x32xf32>
    %cst_135 = arith.constant dense<0.000000e+00> : vector<80xf32>
    %387 = vector.multi_reduction <add>, %384, %cst_135 [1] : vector<80x32xf32> to vector<80xf32>
    %388 = vector.shape_cast %387 : vector<80xf32> to vector<80x1xf32>
    %cst_136 = arith.constant 3.200000e+01 : f32
    %389 = vector.broadcast %cst_136 : f32 to vector<80x1xf32>
    %390 = arith.divf %388, %389 : vector<80x1xf32>
    %391 = vector.broadcast %390 : vector<80x1xf32> to vector<80x32xf32>
    %392 = arith.subf %384, %391 : vector<80x32xf32>
    %393 = arith.mulf %392, %392 : vector<80x32xf32>
    %cst_137 = arith.constant dense<0.000000e+00> : vector<80xf32>
    %394 = vector.multi_reduction <add>, %393, %cst_137 [1] : vector<80x32xf32> to vector<80xf32>
    %395 = vector.shape_cast %394 : vector<80xf32> to vector<80x1xf32>
    %cst_138 = arith.constant 3.200000e+01 : f32
    %396 = vector.broadcast %cst_138 : f32 to vector<80x1xf32>
    %397 = arith.divf %395, %396 : vector<80x1xf32>
    %398 = vector.broadcast %390 : vector<80x1xf32> to vector<80x32xf32>
    %399 = arith.subf %384, %398 : vector<80x32xf32>
    %cst_139 = arith.constant 9.99999996E-13 : f32
    %400 = vector.broadcast %cst_139 : f32 to vector<80x1xf32>
    %401 = arith.addf %397, %400 : vector<80x1xf32>
    %402 = math.rsqrt %401 : vector<80x1xf32>
    %403 = vector.broadcast %402 : vector<80x1xf32> to vector<80x32xf32>
    %404 = arith.mulf %399, %403 : vector<80x32xf32>
    %405 = vector.broadcast %385 : vector<1x32xf32> to vector<80x32xf32>
    %406 = arith.mulf %404, %405 : vector<80x32xf32>
    %407 = vector.broadcast %386 : vector<1x32xf32> to vector<80x32xf32>
    %408 = arith.addf %406, %407 : vector<80x32xf32>
    %409 = arith.truncf %408 : vector<80x32xf32> to vector<80x32xbf16>
    %c0_140 = arith.constant 0 : index
    %c0_141 = arith.constant 0 : index
    %c0_142 = arith.constant 0 : index
    %410 = vector.load %arg12[%c0_140, %c0_141, %c0_142] : memref<2x32x64xbf16, #tpu.memory_space<vmem>>, vector<1x32x64xbf16>
    %411 = vector.shape_cast %410 : vector<1x32x64xbf16> to vector<32x64xbf16>
    %cst_143 = arith.constant dense<0.000000e+00> : vector<80x64xf32>
    %412 = tpu.matmul %409, %411, %cst_143 {dimension_numbers = #tpu.dot_dimension_numbers<[1], [0], [0], [1], [0, 0, 1, 1], [], []>} : vector<80x32xbf16>, vector<32x64xbf16>, vector<80x64xf32> -> vector<80x64xf32>
    %c26 = arith.constant 26 : index
    %c0_144 = arith.constant 0 : index
    %413 = vector.load %arg5[%c26, %c0_144] : memref<48x128xf32, #tpu.memory_space<vmem>>, vector<1x64xf32>
    %414 = vector.broadcast %413 : vector<1x64xf32> to vector<80x64xf32>
    %415 = arith.addf %412, %414 : vector<80x64xf32>
    %416 = arith.mulf %415, %415 : vector<80x64xf32>
    %417 = arith.mulf %415, %416 : vector<80x64xf32>
    %cst_145 = arith.constant 4.471500e-02 : f32
    %418 = vector.broadcast %cst_145 : f32 to vector<80x64xf32>
    %419 = arith.mulf %418, %417 : vector<80x64xf32>
    %420 = arith.addf %415, %419 : vector<80x64xf32>
    %cst_146 = arith.constant 0.797884583 : f32
    %421 = vector.broadcast %cst_146 : f32 to vector<80x64xf32>
    %422 = arith.mulf %421, %420 : vector<80x64xf32>
    %423 = math.tanh %422 : vector<80x64xf32>
    %cst_147 = arith.constant 1.000000e+00 : f32
    %424 = vector.broadcast %cst_147 : f32 to vector<80x64xf32>
    %425 = arith.addf %424, %423 : vector<80x64xf32>
    %cst_148 = arith.constant 5.000000e-01 : f32
    %426 = vector.broadcast %cst_148 : f32 to vector<80x64xf32>
    %427 = arith.mulf %426, %425 : vector<80x64xf32>
    %428 = arith.mulf %415, %427 : vector<80x64xf32>
    %429 = arith.truncf %428 : vector<80x64xf32> to vector<80x64xbf16>
    %c0_149 = arith.constant 0 : index
    %c0_150 = arith.constant 0 : index
    %c0_151 = arith.constant 0 : index
    %430 = vector.load %arg13[%c0_149, %c0_150, %c0_151] : memref<2x64x32xbf16, #tpu.memory_space<vmem>>, vector<1x64x32xbf16>
    %431 = vector.shape_cast %430 : vector<1x64x32xbf16> to vector<64x32xbf16>
    %cst_152 = arith.constant dense<0.000000e+00> : vector<80x32xf32>
    %432 = tpu.matmul %429, %431, %cst_152 {dimension_numbers = #tpu.dot_dimension_numbers<[1], [0], [0], [1], [0, 0, 1, 1], [], []>} : vector<80x64xbf16>, vector<64x32xbf16>, vector<80x32xf32> -> vector<80x32xf32>
    %c27 = arith.constant 27 : index
    %c0_153 = arith.constant 0 : index
    %433 = vector.load %arg5[%c27, %c0_153] : memref<48x128xf32, #tpu.memory_space<vmem>>, vector<1x32xf32>
    %434 = vector.broadcast %433 : vector<1x32xf32> to vector<80x32xf32>
    %435 = arith.addf %432, %434 : vector<80x32xf32>
    %436 = arith.addf %435, %408 : vector<80x32xf32>
    %c28 = arith.constant 28 : index
    %c0_154 = arith.constant 0 : index
    %437 = vector.load %arg5[%c28, %c0_154] : memref<48x128xf32, #tpu.memory_space<vmem>>, vector<1x32xf32>
    %c29 = arith.constant 29 : index
    %c0_155 = arith.constant 0 : index
    %438 = vector.load %arg5[%c29, %c0_155] : memref<48x128xf32, #tpu.memory_space<vmem>>, vector<1x32xf32>
    %cst_156 = arith.constant dense<0.000000e+00> : vector<80xf32>
    %439 = vector.multi_reduction <add>, %436, %cst_156 [1] : vector<80x32xf32> to vector<80xf32>
    %440 = vector.shape_cast %439 : vector<80xf32> to vector<80x1xf32>
    %cst_157 = arith.constant 3.200000e+01 : f32
    %441 = vector.broadcast %cst_157 : f32 to vector<80x1xf32>
    %442 = arith.divf %440, %441 : vector<80x1xf32>
    %443 = vector.broadcast %442 : vector<80x1xf32> to vector<80x32xf32>
    %444 = arith.subf %436, %443 : vector<80x32xf32>
    %445 = arith.mulf %444, %444 : vector<80x32xf32>
    %cst_158 = arith.constant dense<0.000000e+00> : vector<80xf32>
    %446 = vector.multi_reduction <add>, %445, %cst_158 [1] : vector<80x32xf32> to vector<80xf32>
    %447 = vector.shape_cast %446 : vector<80xf32> to vector<80x1xf32>
    %cst_159 = arith.constant 3.200000e+01 : f32
    %448 = vector.broadcast %cst_159 : f32 to vector<80x1xf32>
    %449 = arith.divf %447, %448 : vector<80x1xf32>
    %450 = vector.broadcast %442 : vector<80x1xf32> to vector<80x32xf32>
    %451 = arith.subf %436, %450 : vector<80x32xf32>
    %cst_160 = arith.constant 9.99999996E-13 : f32
    %452 = vector.broadcast %cst_160 : f32 to vector<80x1xf32>
    %453 = arith.addf %449, %452 : vector<80x1xf32>
    %454 = math.rsqrt %453 : vector<80x1xf32>
    %455 = vector.broadcast %454 : vector<80x1xf32> to vector<80x32xf32>
    %456 = arith.mulf %451, %455 : vector<80x32xf32>
    %457 = vector.broadcast %437 : vector<1x32xf32> to vector<80x32xf32>
    %458 = arith.mulf %456, %457 : vector<80x32xf32>
    %459 = vector.broadcast %438 : vector<1x32xf32> to vector<80x32xf32>
    %460 = arith.addf %458, %459 : vector<80x32xf32>
    %461 = arith.truncf %460 : vector<80x32xf32> to vector<80x32xbf16>
    %c1_161 = arith.constant 1 : index
    %c0_162 = arith.constant 0 : index
    %c0_163 = arith.constant 0 : index
    %462 = vector.load %arg10[%c1_161, %c0_162, %c0_163] : memref<2x32x96xbf16, #tpu.memory_space<vmem>>, vector<1x32x96xbf16>
    %463 = vector.shape_cast %462 : vector<1x32x96xbf16> to vector<32x96xbf16>
    %cst_164 = arith.constant dense<0.000000e+00> : vector<80x96xf32>
    %464 = tpu.matmul %461, %463, %cst_164 {dimension_numbers = #tpu.dot_dimension_numbers<[1], [0], [0], [1], [0, 0, 1, 1], [], []>} : vector<80x32xbf16>, vector<32x96xbf16>, vector<80x96xf32> -> vector<80x96xf32>
    %c30 = arith.constant 30 : index
    %c0_165 = arith.constant 0 : index
    %465 = vector.load %arg5[%c30, %c0_165] : memref<48x128xf32, #tpu.memory_space<vmem>>, vector<1x96xf32>
    %466 = vector.broadcast %465 : vector<1x96xf32> to vector<80x96xf32>
    %467 = arith.addf %464, %466 : vector<80x96xf32>
    %468 = vector.extract_strided_slice %467 {offsets = [0, 0], sizes = [80, 48], strides = [1, 1]} : vector<80x96xf32> to vector<80x48xf32>
    %469 = vector.extract_strided_slice %467 {offsets = [0, 48], sizes = [80, 48], strides = [1, 1]} : vector<80x96xf32> to vector<80x48xf32>
    %470 = vector.shape_cast %468 : vector<80x48xf32> to vector<1x80x48xf32>
    %471 = vector.shape_cast %469 : vector<80x48xf32> to vector<1x80x48xf32>
    %472 = tpu.concatenate %470, %471 in 0 : vector<1x80x48xf32>, vector<1x80x48xf32> -> vector<2x80x48xf32>
    %473 = vector.shape_cast %472 : vector<2x80x48xf32> to vector<20x8x48xf32>
    %474 = vector.extract_strided_slice %473 {offsets = [0, 0, 0], sizes = [20, 8, 16], strides = [1, 1, 1]} : vector<20x8x48xf32> to vector<20x8x16xf32>
    %475 = arith.truncf %474 : vector<20x8x16xf32> to vector<20x8x16xbf16>
    %476 = vector.extract_strided_slice %473 {offsets = [0, 0, 16], sizes = [20, 8, 16], strides = [1, 1, 1]} : vector<20x8x48xf32> to vector<20x8x16xf32>
    %477 = arith.truncf %476 : vector<20x8x16xf32> to vector<20x8x16xbf16>
    %478 = vector.extract_strided_slice %473 {offsets = [0, 0, 32], sizes = [20, 8, 16], strides = [1, 1, 1]} : vector<20x8x48xf32> to vector<20x8x16xf32>
    %479 = arith.truncf %478 : vector<20x8x16xf32> to vector<20x8x16xbf16>
    "tpu.trace_start"() <{level = 10 : i32, message = "bqd,bkd->bqk"}> : () -> ()
    %cst_166 = arith.constant dense<0.000000e+00> : vector<20x8x8xf32>
    %480 = tpu.matmul %475, %477, %cst_166 {dimension_numbers = #tpu.dot_dimension_numbers<[2], [2], [1], [1], [0, 0, 0, 1, 1, 1], [0], [0]>} : vector<20x8x16xbf16>, vector<20x8x16xbf16>, vector<20x8x8xf32> -> vector<20x8x8xf32>
    "tpu.trace_stop"() : () -> ()
    %481 = vector.broadcast %337 : vector<20x1x8xf32> to vector<20x8x8xf32>
    %482 = arith.addf %480, %481 : vector<20x8x8xf32>
    %cst_167 = arith.constant dense<0xFF800000> : vector<20x8xf32>
    %483 = vector.multi_reduction <maximumf>, %482, %cst_167 [2] : vector<20x8x8xf32> to vector<20x8xf32>
    %484 = vector.shape_cast %483 : vector<20x8xf32> to vector<20x8x1xf32>
    %485 = vector.broadcast %484 : vector<20x8x1xf32> to vector<20x8x8xf32>
    %486 = arith.subf %482, %485 : vector<20x8x8xf32>
    %487 = math.exp %486 : vector<20x8x8xf32>
    %cst_168 = arith.constant dense<0.000000e+00> : vector<20x8xf32>
    %488 = vector.multi_reduction <add>, %487, %cst_168 [2] : vector<20x8x8xf32> to vector<20x8xf32>
    %489 = vector.shape_cast %488 : vector<20x8xf32> to vector<20x8x1xf32>
    %490 = tpu.reciprocal %489 {approx = true} : vector<20x8x1xf32> -> vector<20x8x1xf32>
    %491 = vector.broadcast %490 : vector<20x8x1xf32> to vector<20x8x8xf32>
    %492 = arith.mulf %487, %491 : vector<20x8x8xf32>
    %493 = arith.truncf %492 : vector<20x8x8xf32> to vector<20x8x8xbf16>
    "tpu.trace_start"() <{level = 10 : i32, message = "bqk,bkd->bqd"}> : () -> ()
    %cst_169 = arith.constant dense<0.000000e+00> : vector<20x8x16xf32>
    %494 = tpu.matmul %493, %479, %cst_169 {dimension_numbers = #tpu.dot_dimension_numbers<[2], [1], [1], [2], [0, 0, 0, 1, 1, 2], [0], [0]>} : vector<20x8x8xbf16>, vector<20x8x16xbf16>, vector<20x8x16xf32> -> vector<20x8x16xf32>
    "tpu.trace_stop"() : () -> ()
    %495 = vector.extract_strided_slice %494 {offsets = [0, 0, 0], sizes = [10, 8, 16], strides = [1, 1, 1]} : vector<20x8x16xf32> to vector<10x8x16xf32>
    %496 = vector.shape_cast %495 : vector<10x8x16xf32> to vector<80x16xf32>
    %497 = vector.extract_strided_slice %494 {offsets = [10, 0, 0], sizes = [10, 8, 16], strides = [1, 1, 1]} : vector<20x8x16xf32> to vector<10x8x16xf32>
    %498 = vector.shape_cast %497 : vector<10x8x16xf32> to vector<80x16xf32>
    %499 = tpu.concatenate %496, %498 in 1 : vector<80x16xf32>, vector<80x16xf32> -> vector<80x32xf32>
    %500 = arith.truncf %499 : vector<80x32xf32> to vector<80x32xbf16>
    %c1_170 = arith.constant 1 : index
    %c0_171 = arith.constant 0 : index
    %c0_172 = arith.constant 0 : index
    %501 = vector.load %arg11[%c1_170, %c0_171, %c0_172] : memref<2x32x32xbf16, #tpu.memory_space<vmem>>, vector<1x32x32xbf16>
    %502 = vector.shape_cast %501 : vector<1x32x32xbf16> to vector<32x32xbf16>
    %cst_173 = arith.constant dense<0.000000e+00> : vector<80x32xf32>
    %503 = tpu.matmul %500, %502, %cst_173 {dimension_numbers = #tpu.dot_dimension_numbers<[1], [0], [0], [1], [0, 0, 1, 1], [], []>} : vector<80x32xbf16>, vector<32x32xbf16>, vector<80x32xf32> -> vector<80x32xf32>
    %c31 = arith.constant 31 : index
    %c0_174 = arith.constant 0 : index
    %504 = vector.load %arg5[%c31, %c0_174] : memref<48x128xf32, #tpu.memory_space<vmem>>, vector<1x32xf32>
    %505 = vector.broadcast %504 : vector<1x32xf32> to vector<80x32xf32>
    %506 = arith.addf %503, %505 : vector<80x32xf32>
    %507 = arith.addf %506, %460 : vector<80x32xf32>
    %c32 = arith.constant 32 : index
    %c0_175 = arith.constant 0 : index
    %508 = vector.load %arg5[%c32, %c0_175] : memref<48x128xf32, #tpu.memory_space<vmem>>, vector<1x32xf32>
    %c33 = arith.constant 33 : index
    %c0_176 = arith.constant 0 : index
    %509 = vector.load %arg5[%c33, %c0_176] : memref<48x128xf32, #tpu.memory_space<vmem>>, vector<1x32xf32>
    %cst_177 = arith.constant dense<0.000000e+00> : vector<80xf32>
    %510 = vector.multi_reduction <add>, %507, %cst_177 [1] : vector<80x32xf32> to vector<80xf32>
    %511 = vector.shape_cast %510 : vector<80xf32> to vector<80x1xf32>
    %cst_178 = arith.constant 3.200000e+01 : f32
    %512 = vector.broadcast %cst_178 : f32 to vector<80x1xf32>
    %513 = arith.divf %511, %512 : vector<80x1xf32>
    %514 = vector.broadcast %513 : vector<80x1xf32> to vector<80x32xf32>
    %515 = arith.subf %507, %514 : vector<80x32xf32>
    %516 = arith.mulf %515, %515 : vector<80x32xf32>
    %cst_179 = arith.constant dense<0.000000e+00> : vector<80xf32>
    %517 = vector.multi_reduction <add>, %516, %cst_179 [1] : vector<80x32xf32> to vector<80xf32>
    %518 = vector.shape_cast %517 : vector<80xf32> to vector<80x1xf32>
    %cst_180 = arith.constant 3.200000e+01 : f32
    %519 = vector.broadcast %cst_180 : f32 to vector<80x1xf32>
    %520 = arith.divf %518, %519 : vector<80x1xf32>
    %521 = vector.broadcast %513 : vector<80x1xf32> to vector<80x32xf32>
    %522 = arith.subf %507, %521 : vector<80x32xf32>
    %cst_181 = arith.constant 9.99999996E-13 : f32
    %523 = vector.broadcast %cst_181 : f32 to vector<80x1xf32>
    %524 = arith.addf %520, %523 : vector<80x1xf32>
    %525 = math.rsqrt %524 : vector<80x1xf32>
    %526 = vector.broadcast %525 : vector<80x1xf32> to vector<80x32xf32>
    %527 = arith.mulf %522, %526 : vector<80x32xf32>
    %528 = vector.broadcast %508 : vector<1x32xf32> to vector<80x32xf32>
    %529 = arith.mulf %527, %528 : vector<80x32xf32>
    %530 = vector.broadcast %509 : vector<1x32xf32> to vector<80x32xf32>
    %531 = arith.addf %529, %530 : vector<80x32xf32>
    %532 = arith.truncf %531 : vector<80x32xf32> to vector<80x32xbf16>
    %c1_182 = arith.constant 1 : index
    %c0_183 = arith.constant 0 : index
    %c0_184 = arith.constant 0 : index
    %533 = vector.load %arg12[%c1_182, %c0_183, %c0_184] : memref<2x32x64xbf16, #tpu.memory_space<vmem>>, vector<1x32x64xbf16>
    %534 = vector.shape_cast %533 : vector<1x32x64xbf16> to vector<32x64xbf16>
    %cst_185 = arith.constant dense<0.000000e+00> : vector<80x64xf32>
    %535 = tpu.matmul %532, %534, %cst_185 {dimension_numbers = #tpu.dot_dimension_numbers<[1], [0], [0], [1], [0, 0, 1, 1], [], []>} : vector<80x32xbf16>, vector<32x64xbf16>, vector<80x64xf32> -> vector<80x64xf32>
    %c34 = arith.constant 34 : index
    %c0_186 = arith.constant 0 : index
    %536 = vector.load %arg5[%c34, %c0_186] : memref<48x128xf32, #tpu.memory_space<vmem>>, vector<1x64xf32>
    %537 = vector.broadcast %536 : vector<1x64xf32> to vector<80x64xf32>
    %538 = arith.addf %535, %537 : vector<80x64xf32>
    %539 = arith.mulf %538, %538 : vector<80x64xf32>
    %540 = arith.mulf %538, %539 : vector<80x64xf32>
    %cst_187 = arith.constant 4.471500e-02 : f32
    %541 = vector.broadcast %cst_187 : f32 to vector<80x64xf32>
    %542 = arith.mulf %541, %540 : vector<80x64xf32>
    %543 = arith.addf %538, %542 : vector<80x64xf32>
    %cst_188 = arith.constant 0.797884583 : f32
    %544 = vector.broadcast %cst_188 : f32 to vector<80x64xf32>
    %545 = arith.mulf %544, %543 : vector<80x64xf32>
    %546 = math.tanh %545 : vector<80x64xf32>
    %cst_189 = arith.constant 1.000000e+00 : f32
    %547 = vector.broadcast %cst_189 : f32 to vector<80x64xf32>
    %548 = arith.addf %547, %546 : vector<80x64xf32>
    %cst_190 = arith.constant 5.000000e-01 : f32
    %549 = vector.broadcast %cst_190 : f32 to vector<80x64xf32>
    %550 = arith.mulf %549, %548 : vector<80x64xf32>
    %551 = arith.mulf %538, %550 : vector<80x64xf32>
    %552 = arith.truncf %551 : vector<80x64xf32> to vector<80x64xbf16>
    %c1_191 = arith.constant 1 : index
    %c0_192 = arith.constant 0 : index
    %c0_193 = arith.constant 0 : index
    %553 = vector.load %arg13[%c1_191, %c0_192, %c0_193] : memref<2x64x32xbf16, #tpu.memory_space<vmem>>, vector<1x64x32xbf16>
    %554 = vector.shape_cast %553 : vector<1x64x32xbf16> to vector<64x32xbf16>
    %cst_194 = arith.constant dense<0.000000e+00> : vector<80x32xf32>
    %555 = tpu.matmul %552, %554, %cst_194 {dimension_numbers = #tpu.dot_dimension_numbers<[1], [0], [0], [1], [0, 0, 1, 1], [], []>} : vector<80x64xbf16>, vector<64x32xbf16>, vector<80x32xf32> -> vector<80x32xf32>
    %c35 = arith.constant 35 : index
    %c0_195 = arith.constant 0 : index
    %556 = vector.load %arg5[%c35, %c0_195] : memref<48x128xf32, #tpu.memory_space<vmem>>, vector<1x32xf32>
    %557 = vector.broadcast %556 : vector<1x32xf32> to vector<80x32xf32>
    %558 = arith.addf %555, %557 : vector<80x32xf32>
    %559 = arith.addf %558, %531 : vector<80x32xf32>
    %c36 = arith.constant 36 : index
    %c0_196 = arith.constant 0 : index
    %560 = vector.load %arg5[%c36, %c0_196] : memref<48x128xf32, #tpu.memory_space<vmem>>, vector<1x32xf32>
    %c37 = arith.constant 37 : index
    %c0_197 = arith.constant 0 : index
    %561 = vector.load %arg5[%c37, %c0_197] : memref<48x128xf32, #tpu.memory_space<vmem>>, vector<1x32xf32>
    %cst_198 = arith.constant dense<0.000000e+00> : vector<80xf32>
    %562 = vector.multi_reduction <add>, %559, %cst_198 [1] : vector<80x32xf32> to vector<80xf32>
    %563 = vector.shape_cast %562 : vector<80xf32> to vector<80x1xf32>
    %cst_199 = arith.constant 3.200000e+01 : f32
    %564 = vector.broadcast %cst_199 : f32 to vector<80x1xf32>
    %565 = arith.divf %563, %564 : vector<80x1xf32>
    %566 = vector.broadcast %565 : vector<80x1xf32> to vector<80x32xf32>
    %567 = arith.subf %559, %566 : vector<80x32xf32>
    %568 = arith.mulf %567, %567 : vector<80x32xf32>
    %cst_200 = arith.constant dense<0.000000e+00> : vector<80xf32>
    %569 = vector.multi_reduction <add>, %568, %cst_200 [1] : vector<80x32xf32> to vector<80xf32>
    %570 = vector.shape_cast %569 : vector<80xf32> to vector<80x1xf32>
    %cst_201 = arith.constant 3.200000e+01 : f32
    %571 = vector.broadcast %cst_201 : f32 to vector<80x1xf32>
    %572 = arith.divf %570, %571 : vector<80x1xf32>
    %573 = vector.broadcast %565 : vector<80x1xf32> to vector<80x32xf32>
    %574 = arith.subf %559, %573 : vector<80x32xf32>
    %cst_202 = arith.constant 9.99999996E-13 : f32
    %575 = vector.broadcast %cst_202 : f32 to vector<80x1xf32>
    %576 = arith.addf %572, %575 : vector<80x1xf32>
    %577 = math.rsqrt %576 : vector<80x1xf32>
    %578 = vector.broadcast %577 : vector<80x1xf32> to vector<80x32xf32>
    %579 = arith.mulf %574, %578 : vector<80x32xf32>
    %580 = vector.broadcast %560 : vector<1x32xf32> to vector<80x32xf32>
    %581 = arith.mulf %579, %580 : vector<80x32xf32>
    %582 = vector.broadcast %561 : vector<1x32xf32> to vector<80x32xf32>
    %583 = arith.addf %581, %582 : vector<80x32xf32>
    %584 = vector.shape_cast %583 : vector<80x32xf32> to vector<10x8x32xf32>
    %585 = vector.extract_strided_slice %584 {offsets = [0, 0, 0], sizes = [10, 1, 32], strides = [1, 1, 1]} : vector<10x8x32xf32> to vector<10x1x32xf32>
    %cst_203 = arith.constant dense<0xFF800000> : vector<10x32xf32>
    %586 = vector.multi_reduction <maximumf>, %585, %cst_203 [1] : vector<10x1x32xf32> to vector<10x32xf32>
    %587 = arith.truncf %586 : vector<10x32xf32> to vector<10x32xbf16>
    %cst_204 = arith.constant dense<0.000000e+00> : vector<10x32xf32>
    %588 = tpu.matmul %587, %2, %cst_204 {dimension_numbers = #tpu.dot_dimension_numbers<[1], [0], [0], [1], [0, 0, 1, 1], [], []>} : vector<10x32xbf16>, vector<32x32xbf16>, vector<10x32xf32> -> vector<10x32xf32>
    %c21 = arith.constant 21 : index
    %c0_205 = arith.constant 0 : index
    %589 = vector.load %arg5[%c21, %c0_205] : memref<48x128xf32, #tpu.memory_space<vmem>>, vector<1x32xf32>
    %590 = vector.broadcast %589 : vector<1x32xf32> to vector<10x32xf32>
    %591 = arith.addf %588, %590 : vector<10x32xf32>
    %592 = math.tanh %591 : vector<10x32xf32>
    %593 = arith.cmpf one, %592, %592 : vector<10x32xf32>
    %cst_206 = arith.constant 0.000000e+00 : f32
    %594 = vector.broadcast %cst_206 : f32 to vector<10x32xf32>
    %595 = arith.select %593, %594, %592 : vector<10x32xi1>, vector<10x32xf32>
    %cst_207 = arith.constant -3.40282347E+38 : f32
    %cst_208 = arith.constant 3.40282347E+38 : f32
    %596 = vector.broadcast %cst_207 : f32 to vector<10x32xf32>
    %597 = arith.maximumf %596, %595 : vector<10x32xf32>
    %598 = vector.broadcast %cst_208 : f32 to vector<10x32xf32>
    %599 = arith.minimumf %598, %597 : vector<10x32xf32>
    %c0_209 = arith.constant 0 : index
    %c0_210 = arith.constant 0 : index
    %600 = vector.load %arg4[%c0_209, %c0_210] : memref<10x1xf32, #tpu.memory_space<vmem>>, vector<10x1xf32>
    %601 = vector.broadcast %600 : vector<10x1xf32> to vector<10x32xf32>
    %602 = arith.mulf %599, %601 : vector<10x32xf32>
    %603 = arith.truncf %602 : vector<10x32xf32> to vector<10x32xbf16>
    %cst_211 = arith.constant dense<0.000000e+00> : vector<10x128xf32>
    %604 = tpu.matmul %603, %5, %cst_211 {dimension_numbers = #tpu.dot_dimension_numbers<[1], [0], [0], [1], [0, 0, 1, 1], [], []>} : vector<10x32xbf16>, vector<32x128xbf16>, vector<10x128xf32> -> vector<10x128xf32>
    %c41 = arith.constant 41 : index
    %c0_212 = arith.constant 0 : index
    %605 = vector.load %arg5[%c41, %c0_212] : memref<48x128xf32, #tpu.memory_space<vmem>>, vector<1x128xf32>
    %606 = vector.broadcast %605 : vector<1x128xf32> to vector<10x128xf32>
    %607 = arith.addf %604, %606 : vector<10x128xf32>
    %c42 = arith.constant 42 : index
    %c0_213 = arith.constant 0 : index
    %608 = vector.load %arg5[%c42, %c0_213] : memref<48x128xf32, #tpu.memory_space<vmem>>, vector<1x32xf32>
    %c43 = arith.constant 43 : index
    %c0_214 = arith.constant 0 : index
    %609 = vector.load %arg5[%c43, %c0_214] : memref<48x128xf32, #tpu.memory_space<vmem>>, vector<1x32xf32>
    %c44 = arith.constant 44 : index
    %c0_215 = arith.constant 0 : index
    %610 = vector.load %arg5[%c44, %c0_215] : memref<48x128xf32, #tpu.memory_space<vmem>>, vector<1x32xf32>
    %c45 = arith.constant 45 : index
    %c0_216 = arith.constant 0 : index
    %611 = vector.load %arg5[%c45, %c0_216] : memref<48x128xf32, #tpu.memory_space<vmem>>, vector<1x1xf32>
    %cst_217 = arith.constant 0.000000e+00 : f32
    %612 = vector.broadcast %cst_217 : f32 to vector<2x32xf32>
    %cst_218 = arith.constant 0.000000e+00 : f32
    %613 = vector.broadcast %cst_218 : f32 to vector<2x32xf32>
    %614 = vector.extract_strided_slice %607 {offsets = [0, 0], sizes = [2, 128], strides = [1, 1]} : vector<10x128xf32> to vector<2x128xf32>
    %615 = arith.truncf %612 : vector<2x32xf32> to vector<2x32xbf16>
    %cst_219 = arith.constant dense<0.000000e+00> : vector<2x128xf32>
    %616 = tpu.matmul %615, %6, %cst_219 {dimension_numbers = #tpu.dot_dimension_numbers<[1], [0], [0], [1], [0, 0, 1, 1], [], []>} : vector<2x32xbf16>, vector<32x128xbf16>, vector<2x128xf32> -> vector<2x128xf32>
    %617 = arith.addf %614, %616 : vector<2x128xf32>
    %618 = vector.extract_strided_slice %617 {offsets = [0, 0], sizes = [2, 32], strides = [1, 1]} : vector<2x128xf32> to vector<2x32xf32>
    %619 = arith.negf %618 : vector<2x32xf32>
    %620 = math.exp %619 : vector<2x32xf32>
    %cst_220 = arith.constant 1.000000e+00 : f32
    %621 = vector.broadcast %cst_220 : f32 to vector<2x32xf32>
    %622 = arith.addf %621, %620 : vector<2x32xf32>
    %623 = arith.divf %621, %622 : vector<2x32xf32>
    %624 = vector.extract_strided_slice %617 {offsets = [0, 32], sizes = [2, 32], strides = [1, 1]} : vector<2x128xf32> to vector<2x32xf32>
    %625 = arith.negf %624 : vector<2x32xf32>
    %626 = math.exp %625 : vector<2x32xf32>
    %cst_221 = arith.constant 1.000000e+00 : f32
    %627 = vector.broadcast %cst_221 : f32 to vector<2x32xf32>
    %628 = arith.addf %627, %626 : vector<2x32xf32>
    %629 = arith.divf %627, %628 : vector<2x32xf32>
    %630 = vector.extract_strided_slice %617 {offsets = [0, 64], sizes = [2, 32], strides = [1, 1]} : vector<2x128xf32> to vector<2x32xf32>
    %631 = math.tanh %630 : vector<2x32xf32>
    %632 = vector.extract_strided_slice %617 {offsets = [0, 96], sizes = [2, 32], strides = [1, 1]} : vector<2x128xf32> to vector<2x32xf32>
    %633 = arith.negf %632 : vector<2x32xf32>
    %634 = math.exp %633 : vector<2x32xf32>
    %cst_222 = arith.constant 1.000000e+00 : f32
    %635 = vector.broadcast %cst_222 : f32 to vector<2x32xf32>
    %636 = arith.addf %635, %634 : vector<2x32xf32>
    %637 = arith.divf %635, %636 : vector<2x32xf32>
    %638 = arith.mulf %629, %613 : vector<2x32xf32>
    %639 = arith.mulf %623, %631 : vector<2x32xf32>
    %640 = arith.addf %638, %639 : vector<2x32xf32>
    %641 = math.tanh %640 : vector<2x32xf32>
    %642 = arith.mulf %637, %641 : vector<2x32xf32>
    %643 = vector.extract_strided_slice %600 {offsets = [0, 0], sizes = [2, 1], strides = [1, 1]} : vector<10x1xf32> to vector<2x1xf32>
    %644 = vector.broadcast %643 : vector<2x1xf32> to vector<2x32xf32>
    %645 = arith.mulf %642, %644 : vector<2x32xf32>
    %646 = arith.truncf %645 : vector<2x32xf32> to vector<2x32xbf16>
    %cst_223 = arith.constant dense<0.000000e+00> : vector<2x32xf32>
    %647 = tpu.matmul %646, %3, %cst_223 {dimension_numbers = #tpu.dot_dimension_numbers<[1], [0], [0], [1], [0, 0, 1, 1], [], []>} : vector<2x32xbf16>, vector<32x32xbf16>, vector<2x32xf32> -> vector<2x32xf32>
    %648 = vector.broadcast %608 : vector<1x32xf32> to vector<2x32xf32>
    %649 = arith.addf %647, %648 : vector<2x32xf32>
    %650 = math.tanh %649 : vector<2x32xf32>
    %651 = vector.broadcast %609 : vector<1x32xf32> to vector<2x32xf32>
    %652 = arith.mulf %650, %651 : vector<2x32xf32>
    %cst_224 = arith.constant dense<0.000000e+00> : vector<2xf32>
    %653 = vector.multi_reduction <add>, %652, %cst_224 [1] : vector<2x32xf32> to vector<2xf32>
    %654 = vector.shape_cast %653 : vector<2xf32> to vector<2x1xf32>
    %655 = vector.extract_strided_slice %607 {offsets = [2, 0], sizes = [2, 128], strides = [1, 1]} : vector<10x128xf32> to vector<2x128xf32>
    %656 = arith.truncf %642 : vector<2x32xf32> to vector<2x32xbf16>
    %cst_225 = arith.constant dense<0.000000e+00> : vector<2x128xf32>
    %657 = tpu.matmul %656, %6, %cst_225 {dimension_numbers = #tpu.dot_dimension_numbers<[1], [0], [0], [1], [0, 0, 1, 1], [], []>} : vector<2x32xbf16>, vector<32x128xbf16>, vector<2x128xf32> -> vector<2x128xf32>
    %658 = arith.addf %655, %657 : vector<2x128xf32>
    %659 = vector.extract_strided_slice %658 {offsets = [0, 0], sizes = [2, 32], strides = [1, 1]} : vector<2x128xf32> to vector<2x32xf32>
    %660 = arith.negf %659 : vector<2x32xf32>
    %661 = math.exp %660 : vector<2x32xf32>
    %cst_226 = arith.constant 1.000000e+00 : f32
    %662 = vector.broadcast %cst_226 : f32 to vector<2x32xf32>
    %663 = arith.addf %662, %661 : vector<2x32xf32>
    %664 = arith.divf %662, %663 : vector<2x32xf32>
    %665 = vector.extract_strided_slice %658 {offsets = [0, 32], sizes = [2, 32], strides = [1, 1]} : vector<2x128xf32> to vector<2x32xf32>
    %666 = arith.negf %665 : vector<2x32xf32>
    %667 = math.exp %666 : vector<2x32xf32>
    %cst_227 = arith.constant 1.000000e+00 : f32
    %668 = vector.broadcast %cst_227 : f32 to vector<2x32xf32>
    %669 = arith.addf %668, %667 : vector<2x32xf32>
    %670 = arith.divf %668, %669 : vector<2x32xf32>
    %671 = vector.extract_strided_slice %658 {offsets = [0, 64], sizes = [2, 32], strides = [1, 1]} : vector<2x128xf32> to vector<2x32xf32>
    %672 = math.tanh %671 : vector<2x32xf32>
    %673 = vector.extract_strided_slice %658 {offsets = [0, 96], sizes = [2, 32], strides = [1, 1]} : vector<2x128xf32> to vector<2x32xf32>
    %674 = arith.negf %673 : vector<2x32xf32>
    %675 = math.exp %674 : vector<2x32xf32>
    %cst_228 = arith.constant 1.000000e+00 : f32
    %676 = vector.broadcast %cst_228 : f32 to vector<2x32xf32>
    %677 = arith.addf %676, %675 : vector<2x32xf32>
    %678 = arith.divf %676, %677 : vector<2x32xf32>
    %679 = arith.mulf %670, %640 : vector<2x32xf32>
    %680 = arith.mulf %664, %672 : vector<2x32xf32>
    %681 = arith.addf %679, %680 : vector<2x32xf32>
    %682 = math.tanh %681 : vector<2x32xf32>
    %683 = arith.mulf %678, %682 : vector<2x32xf32>
    %684 = vector.extract_strided_slice %600 {offsets = [2, 0], sizes = [2, 1], strides = [1, 1]} : vector<10x1xf32> to vector<2x1xf32>
    %685 = vector.broadcast %684 : vector<2x1xf32> to vector<2x32xf32>
    %686 = arith.mulf %683, %685 : vector<2x32xf32>
    %687 = arith.truncf %686 : vector<2x32xf32> to vector<2x32xbf16>
    %cst_229 = arith.constant dense<0.000000e+00> : vector<2x32xf32>
    %688 = tpu.matmul %687, %3, %cst_229 {dimension_numbers = #tpu.dot_dimension_numbers<[1], [0], [0], [1], [0, 0, 1, 1], [], []>} : vector<2x32xbf16>, vector<32x32xbf16>, vector<2x32xf32> -> vector<2x32xf32>
    %689 = vector.broadcast %608 : vector<1x32xf32> to vector<2x32xf32>
    %690 = arith.addf %688, %689 : vector<2x32xf32>
    %691 = math.tanh %690 : vector<2x32xf32>
    %692 = vector.broadcast %609 : vector<1x32xf32> to vector<2x32xf32>
    %693 = arith.mulf %691, %692 : vector<2x32xf32>
    %cst_230 = arith.constant dense<0.000000e+00> : vector<2xf32>
    %694 = vector.multi_reduction <add>, %693, %cst_230 [1] : vector<2x32xf32> to vector<2xf32>
    %695 = vector.shape_cast %694 : vector<2xf32> to vector<2x1xf32>
    %696 = vector.extract_strided_slice %607 {offsets = [4, 0], sizes = [2, 128], strides = [1, 1]} : vector<10x128xf32> to vector<2x128xf32>
    %697 = arith.truncf %683 : vector<2x32xf32> to vector<2x32xbf16>
    %cst_231 = arith.constant dense<0.000000e+00> : vector<2x128xf32>
    %698 = tpu.matmul %697, %6, %cst_231 {dimension_numbers = #tpu.dot_dimension_numbers<[1], [0], [0], [1], [0, 0, 1, 1], [], []>} : vector<2x32xbf16>, vector<32x128xbf16>, vector<2x128xf32> -> vector<2x128xf32>
    %699 = arith.addf %696, %698 : vector<2x128xf32>
    %700 = vector.extract_strided_slice %699 {offsets = [0, 0], sizes = [2, 32], strides = [1, 1]} : vector<2x128xf32> to vector<2x32xf32>
    %701 = arith.negf %700 : vector<2x32xf32>
    %702 = math.exp %701 : vector<2x32xf32>
    %cst_232 = arith.constant 1.000000e+00 : f32
    %703 = vector.broadcast %cst_232 : f32 to vector<2x32xf32>
    %704 = arith.addf %703, %702 : vector<2x32xf32>
    %705 = arith.divf %703, %704 : vector<2x32xf32>
    %706 = vector.extract_strided_slice %699 {offsets = [0, 32], sizes = [2, 32], strides = [1, 1]} : vector<2x128xf32> to vector<2x32xf32>
    %707 = arith.negf %706 : vector<2x32xf32>
    %708 = math.exp %707 : vector<2x32xf32>
    %cst_233 = arith.constant 1.000000e+00 : f32
    %709 = vector.broadcast %cst_233 : f32 to vector<2x32xf32>
    %710 = arith.addf %709, %708 : vector<2x32xf32>
    %711 = arith.divf %709, %710 : vector<2x32xf32>
    %712 = vector.extract_strided_slice %699 {offsets = [0, 64], sizes = [2, 32], strides = [1, 1]} : vector<2x128xf32> to vector<2x32xf32>
    %713 = math.tanh %712 : vector<2x32xf32>
    %714 = vector.extract_strided_slice %699 {offsets = [0, 96], sizes = [2, 32], strides = [1, 1]} : vector<2x128xf32> to vector<2x32xf32>
    %715 = arith.negf %714 : vector<2x32xf32>
    %716 = math.exp %715 : vector<2x32xf32>
    %cst_234 = arith.constant 1.000000e+00 : f32
    %717 = vector.broadcast %cst_234 : f32 to vector<2x32xf32>
    %718 = arith.addf %717, %716 : vector<2x32xf32>
    %719 = arith.divf %717, %718 : vector<2x32xf32>
    %720 = arith.mulf %711, %681 : vector<2x32xf32>
    %721 = arith.mulf %705, %713 : vector<2x32xf32>
    %722 = arith.addf %720, %721 : vector<2x32xf32>
    %723 = math.tanh %722 : vector<2x32xf32>
    %724 = arith.mulf %719, %723 : vector<2x32xf32>
    %725 = vector.extract_strided_slice %600 {offsets = [4, 0], sizes = [2, 1], strides = [1, 1]} : vector<10x1xf32> to vector<2x1xf32>
    %726 = vector.broadcast %725 : vector<2x1xf32> to vector<2x32xf32>
    %727 = arith.mulf %724, %726 : vector<2x32xf32>
    %728 = arith.truncf %727 : vector<2x32xf32> to vector<2x32xbf16>
    %cst_235 = arith.constant dense<0.000000e+00> : vector<2x32xf32>
    %729 = tpu.matmul %728, %3, %cst_235 {dimension_numbers = #tpu.dot_dimension_numbers<[1], [0], [0], [1], [0, 0, 1, 1], [], []>} : vector<2x32xbf16>, vector<32x32xbf16>, vector<2x32xf32> -> vector<2x32xf32>
    %730 = vector.broadcast %608 : vector<1x32xf32> to vector<2x32xf32>
    %731 = arith.addf %729, %730 : vector<2x32xf32>
    %732 = math.tanh %731 : vector<2x32xf32>
    %733 = vector.broadcast %609 : vector<1x32xf32> to vector<2x32xf32>
    %734 = arith.mulf %732, %733 : vector<2x32xf32>
    %cst_236 = arith.constant dense<0.000000e+00> : vector<2xf32>
    %735 = vector.multi_reduction <add>, %734, %cst_236 [1] : vector<2x32xf32> to vector<2xf32>
    %736 = vector.shape_cast %735 : vector<2xf32> to vector<2x1xf32>
    %737 = arith.maximumf %654, %695 : vector<2x1xf32>
    %738 = arith.maximumf %737, %736 : vector<2x1xf32>
    %739 = arith.subf %654, %738 : vector<2x1xf32>
    %740 = math.exp %739 : vector<2x1xf32>
    %741 = arith.subf %695, %738 : vector<2x1xf32>
    %742 = math.exp %741 : vector<2x1xf32>
    %743 = arith.subf %736, %738 : vector<2x1xf32>
    %744 = math.exp %743 : vector<2x1xf32>
    %745 = arith.addf %740, %742 : vector<2x1xf32>
    %746 = arith.addf %745, %744 : vector<2x1xf32>
    %747 = tpu.reciprocal %746 {approx = true} : vector<2x1xf32> -> vector<2x1xf32>
    %748 = arith.mulf %740, %747 : vector<2x1xf32>
    %749 = vector.broadcast %748 : vector<2x1xf32> to vector<2x32xf32>
    %750 = arith.mulf %645, %749 : vector<2x32xf32>
    %751 = arith.mulf %742, %747 : vector<2x1xf32>
    %752 = vector.broadcast %751 : vector<2x1xf32> to vector<2x32xf32>
    %753 = arith.mulf %686, %752 : vector<2x32xf32>
    %754 = arith.addf %750, %753 : vector<2x32xf32>
    %755 = arith.mulf %744, %747 : vector<2x1xf32>
    %756 = vector.broadcast %755 : vector<2x1xf32> to vector<2x32xf32>
    %757 = arith.mulf %727, %756 : vector<2x32xf32>
    %758 = arith.addf %754, %757 : vector<2x32xf32>
    %759 = vector.broadcast %610 : vector<1x32xf32> to vector<2x32xf32>
    %760 = arith.mulf %758, %759 : vector<2x32xf32>
    %cst_237 = arith.constant dense<0.000000e+00> : vector<2xf32>
    %761 = vector.multi_reduction <add>, %760, %cst_237 [1] : vector<2x32xf32> to vector<2xf32>
    %762 = vector.shape_cast %761 : vector<2xf32> to vector<2x1xf32>
    %763 = vector.broadcast %611 : vector<1x1xf32> to vector<2x1xf32>
    %764 = arith.addf %762, %763 : vector<2x1xf32>
    %765 = arith.negf %764 : vector<2x1xf32>
    %766 = math.exp %765 : vector<2x1xf32>
    %cst_238 = arith.constant 1.000000e+00 : f32
    %767 = vector.broadcast %cst_238 : f32 to vector<2x1xf32>
    %768 = arith.addf %767, %766 : vector<2x1xf32>
    %769 = arith.divf %767, %768 : vector<2x1xf32>
    %770 = arith.addf %309, %769 : vector<2x1xf32>
    %cst_239 = arith.constant 0.000000e+00 : f32
    %771 = vector.broadcast %cst_239 : f32 to vector<2x32xf32>
    %cst_240 = arith.constant 0.000000e+00 : f32
    %772 = vector.broadcast %cst_240 : f32 to vector<2x32xf32>
    %773 = vector.extract_strided_slice %607 {offsets = [6, 0], sizes = [2, 128], strides = [1, 1]} : vector<10x128xf32> to vector<2x128xf32>
    %774 = arith.truncf %771 : vector<2x32xf32> to vector<2x32xbf16>
    %cst_241 = arith.constant dense<0.000000e+00> : vector<2x128xf32>
    %775 = tpu.matmul %774, %6, %cst_241 {dimension_numbers = #tpu.dot_dimension_numbers<[1], [0], [0], [1], [0, 0, 1, 1], [], []>} : vector<2x32xbf16>, vector<32x128xbf16>, vector<2x128xf32> -> vector<2x128xf32>
    %776 = arith.addf %773, %775 : vector<2x128xf32>
    %777 = vector.extract_strided_slice %776 {offsets = [0, 0], sizes = [2, 32], strides = [1, 1]} : vector<2x128xf32> to vector<2x32xf32>
    %778 = arith.negf %777 : vector<2x32xf32>
    %779 = math.exp %778 : vector<2x32xf32>
    %cst_242 = arith.constant 1.000000e+00 : f32
    %780 = vector.broadcast %cst_242 : f32 to vector<2x32xf32>
    %781 = arith.addf %780, %779 : vector<2x32xf32>
    %782 = arith.divf %780, %781 : vector<2x32xf32>
    %783 = vector.extract_strided_slice %776 {offsets = [0, 32], sizes = [2, 32], strides = [1, 1]} : vector<2x128xf32> to vector<2x32xf32>
    %784 = arith.negf %783 : vector<2x32xf32>
    %785 = math.exp %784 : vector<2x32xf32>
    %cst_243 = arith.constant 1.000000e+00 : f32
    %786 = vector.broadcast %cst_243 : f32 to vector<2x32xf32>
    %787 = arith.addf %786, %785 : vector<2x32xf32>
    %788 = arith.divf %786, %787 : vector<2x32xf32>
    %789 = vector.extract_strided_slice %776 {offsets = [0, 64], sizes = [2, 32], strides = [1, 1]} : vector<2x128xf32> to vector<2x32xf32>
    %790 = math.tanh %789 : vector<2x32xf32>
    %791 = vector.extract_strided_slice %776 {offsets = [0, 96], sizes = [2, 32], strides = [1, 1]} : vector<2x128xf32> to vector<2x32xf32>
    %792 = arith.negf %791 : vector<2x32xf32>
    %793 = math.exp %792 : vector<2x32xf32>
    %cst_244 = arith.constant 1.000000e+00 : f32
    %794 = vector.broadcast %cst_244 : f32 to vector<2x32xf32>
    %795 = arith.addf %794, %793 : vector<2x32xf32>
    %796 = arith.divf %794, %795 : vector<2x32xf32>
    %797 = arith.mulf %788, %772 : vector<2x32xf32>
    %798 = arith.mulf %782, %790 : vector<2x32xf32>
    %799 = arith.addf %797, %798 : vector<2x32xf32>
    %800 = math.tanh %799 : vector<2x32xf32>
    %801 = arith.mulf %796, %800 : vector<2x32xf32>
    %802 = vector.extract_strided_slice %600 {offsets = [6, 0], sizes = [2, 1], strides = [1, 1]} : vector<10x1xf32> to vector<2x1xf32>
    %803 = vector.broadcast %802 : vector<2x1xf32> to vector<2x32xf32>
    %804 = arith.mulf %801, %803 : vector<2x32xf32>
    %805 = arith.truncf %804 : vector<2x32xf32> to vector<2x32xbf16>
    %cst_245 = arith.constant dense<0.000000e+00> : vector<2x32xf32>
    %806 = tpu.matmul %805, %3, %cst_245 {dimension_numbers = #tpu.dot_dimension_numbers<[1], [0], [0], [1], [0, 0, 1, 1], [], []>} : vector<2x32xbf16>, vector<32x32xbf16>, vector<2x32xf32> -> vector<2x32xf32>
    %807 = vector.broadcast %608 : vector<1x32xf32> to vector<2x32xf32>
    %808 = arith.addf %806, %807 : vector<2x32xf32>
    %809 = math.tanh %808 : vector<2x32xf32>
    %810 = vector.broadcast %609 : vector<1x32xf32> to vector<2x32xf32>
    %811 = arith.mulf %809, %810 : vector<2x32xf32>
    %cst_246 = arith.constant dense<0.000000e+00> : vector<2xf32>
    %812 = vector.multi_reduction <add>, %811, %cst_246 [1] : vector<2x32xf32> to vector<2xf32>
    %813 = vector.shape_cast %812 : vector<2xf32> to vector<2x1xf32>
    %814 = vector.extract_strided_slice %607 {offsets = [8, 0], sizes = [2, 128], strides = [1, 1]} : vector<10x128xf32> to vector<2x128xf32>
    %815 = arith.truncf %801 : vector<2x32xf32> to vector<2x32xbf16>
    %cst_247 = arith.constant dense<0.000000e+00> : vector<2x128xf32>
    %816 = tpu.matmul %815, %6, %cst_247 {dimension_numbers = #tpu.dot_dimension_numbers<[1], [0], [0], [1], [0, 0, 1, 1], [], []>} : vector<2x32xbf16>, vector<32x128xbf16>, vector<2x128xf32> -> vector<2x128xf32>
    %817 = arith.addf %814, %816 : vector<2x128xf32>
    %818 = vector.extract_strided_slice %817 {offsets = [0, 0], sizes = [2, 32], strides = [1, 1]} : vector<2x128xf32> to vector<2x32xf32>
    %819 = arith.negf %818 : vector<2x32xf32>
    %820 = math.exp %819 : vector<2x32xf32>
    %cst_248 = arith.constant 1.000000e+00 : f32
    %821 = vector.broadcast %cst_248 : f32 to vector<2x32xf32>
    %822 = arith.addf %821, %820 : vector<2x32xf32>
    %823 = arith.divf %821, %822 : vector<2x32xf32>
    %824 = vector.extract_strided_slice %817 {offsets = [0, 32], sizes = [2, 32], strides = [1, 1]} : vector<2x128xf32> to vector<2x32xf32>
    %825 = arith.negf %824 : vector<2x32xf32>
    %826 = math.exp %825 : vector<2x32xf32>
    %cst_249 = arith.constant 1.000000e+00 : f32
    %827 = vector.broadcast %cst_249 : f32 to vector<2x32xf32>
    %828 = arith.addf %827, %826 : vector<2x32xf32>
    %829 = arith.divf %827, %828 : vector<2x32xf32>
    %830 = vector.extract_strided_slice %817 {offsets = [0, 64], sizes = [2, 32], strides = [1, 1]} : vector<2x128xf32> to vector<2x32xf32>
    %831 = math.tanh %830 : vector<2x32xf32>
    %832 = vector.extract_strided_slice %817 {offsets = [0, 96], sizes = [2, 32], strides = [1, 1]} : vector<2x128xf32> to vector<2x32xf32>
    %833 = arith.negf %832 : vector<2x32xf32>
    %834 = math.exp %833 : vector<2x32xf32>
    %cst_250 = arith.constant 1.000000e+00 : f32
    %835 = vector.broadcast %cst_250 : f32 to vector<2x32xf32>
    %836 = arith.addf %835, %834 : vector<2x32xf32>
    %837 = arith.divf %835, %836 : vector<2x32xf32>
    %838 = arith.mulf %829, %799 : vector<2x32xf32>
    %839 = arith.mulf %823, %831 : vector<2x32xf32>
    %840 = arith.addf %838, %839 : vector<2x32xf32>
    %841 = math.tanh %840 : vector<2x32xf32>
    %842 = arith.mulf %837, %841 : vector<2x32xf32>
    %843 = vector.extract_strided_slice %600 {offsets = [8, 0], sizes = [2, 1], strides = [1, 1]} : vector<10x1xf32> to vector<2x1xf32>
    %844 = vector.broadcast %843 : vector<2x1xf32> to vector<2x32xf32>
    %845 = arith.mulf %842, %844 : vector<2x32xf32>
    %846 = arith.truncf %845 : vector<2x32xf32> to vector<2x32xbf16>
    %cst_251 = arith.constant dense<0.000000e+00> : vector<2x32xf32>
    %847 = tpu.matmul %846, %3, %cst_251 {dimension_numbers = #tpu.dot_dimension_numbers<[1], [0], [0], [1], [0, 0, 1, 1], [], []>} : vector<2x32xbf16>, vector<32x32xbf16>, vector<2x32xf32> -> vector<2x32xf32>
    %848 = vector.broadcast %608 : vector<1x32xf32> to vector<2x32xf32>
    %849 = arith.addf %847, %848 : vector<2x32xf32>
    %850 = math.tanh %849 : vector<2x32xf32>
    %851 = vector.broadcast %609 : vector<1x32xf32> to vector<2x32xf32>
    %852 = arith.mulf %850, %851 : vector<2x32xf32>
    %cst_252 = arith.constant dense<0.000000e+00> : vector<2xf32>
    %853 = vector.multi_reduction <add>, %852, %cst_252 [1] : vector<2x32xf32> to vector<2xf32>
    %854 = vector.shape_cast %853 : vector<2xf32> to vector<2x1xf32>
    %855 = arith.maximumf %813, %854 : vector<2x1xf32>
    %856 = arith.subf %813, %855 : vector<2x1xf32>
    %857 = math.exp %856 : vector<2x1xf32>
    %858 = arith.subf %854, %855 : vector<2x1xf32>
    %859 = math.exp %858 : vector<2x1xf32>
    %860 = arith.addf %857, %859 : vector<2x1xf32>
    %861 = tpu.reciprocal %860 {approx = true} : vector<2x1xf32> -> vector<2x1xf32>
    %862 = arith.mulf %857, %861 : vector<2x1xf32>
    %863 = vector.broadcast %862 : vector<2x1xf32> to vector<2x32xf32>
    %864 = arith.mulf %804, %863 : vector<2x32xf32>
    %865 = arith.mulf %859, %861 : vector<2x1xf32>
    %866 = vector.broadcast %865 : vector<2x1xf32> to vector<2x32xf32>
    %867 = arith.mulf %845, %866 : vector<2x32xf32>
    %868 = arith.addf %864, %867 : vector<2x32xf32>
    %869 = vector.broadcast %610 : vector<1x32xf32> to vector<2x32xf32>
    %870 = arith.mulf %868, %869 : vector<2x32xf32>
    %cst_253 = arith.constant dense<0.000000e+00> : vector<2xf32>
    %871 = vector.multi_reduction <add>, %870, %cst_253 [1] : vector<2x32xf32> to vector<2xf32>
    %872 = vector.shape_cast %871 : vector<2xf32> to vector<2x1xf32>
    %873 = vector.broadcast %611 : vector<1x1xf32> to vector<2x1xf32>
    %874 = arith.addf %872, %873 : vector<2x1xf32>
    %875 = arith.negf %874 : vector<2x1xf32>
    %876 = math.exp %875 : vector<2x1xf32>
    %cst_254 = arith.constant 1.000000e+00 : f32
    %877 = vector.broadcast %cst_254 : f32 to vector<2x1xf32>
    %878 = arith.addf %877, %876 : vector<2x1xf32>
    %879 = arith.divf %877, %878 : vector<2x1xf32>
    %880 = arith.addf %770, %879 : vector<2x1xf32>
    %c0_255 = arith.constant 0 : index
    %c0_256 = arith.constant 0 : index
    %881 = vector.load %arg16[%c0_255, %c0_256] : memref<2x1xf32, #tpu.memory_space<vmem>>, vector<2x1xf32>
    tpu.vector_store %arg16[%c0_255, %c0_256], %880 {strides = array<i32>} : memref<2x1xf32, #tpu.memory_space<vmem>>, vector<2x1xf32>,
    return
  }
}

</mosaic_0001>

<llo_original>
// kernel: run.1
$region0: #{run.1}
  #allocation0 [shape = 'u32[]', space=smem, size = 0x4, offset = 0x4, fixed_abs, tag = 'smem constant byte address 0x4 - core index']
  #allocation1 [shape = 'u32[144,128]{1,0:T(1,128)}', space=vmem, size = 0x12000, scoped, tag = 'internal scratch']
  %s0 = inlined_call_operand.vmem [shape: f32[16,32], index: 0, kind: input, shape index: {}]
  %s1 = inlined_call_operand.vmem [shape: f32[2,8], index: 1, kind: input, shape index: {}]
  %s2 = inlined_call_operand.vmem [shape: f32[80,32], index: 2, kind: input, shape index: {}]
  %s3 = inlined_call_operand.vmem [shape: f32[10,8], index: 3, kind: input, shape index: {}]
  %s4 = inlined_call_operand.vmem [shape: f32[10,1], index: 4, kind: input, shape index: {}]
  %s5 = inlined_call_operand.vmem [shape: f32[48,128], index: 5, kind: input, shape index: {}]
  %s6 = inlined_call_operand.vmem [shape: bf16[2,32,96], index: 6, kind: input, shape index: {}]
  %s7 = inlined_call_operand.vmem [shape: bf16[2,32,32], index: 7, kind: input, shape index: {}]
  %s8 = inlined_call_operand.vmem [shape: bf16[2,32,64], index: 8, kind: input, shape index: {}]
  %s9 = inlined_call_operand.vmem [shape: bf16[2,64,32], index: 9, kind: input, shape index: {}]
  %s10 = inlined_call_operand.vmem [shape: bf16[2,32,96], index: 10, kind: input, shape index: {}]
  %s11 = inlined_call_operand.vmem [shape: bf16[2,32,32], index: 11, kind: input, shape index: {}]
  %s12 = inlined_call_operand.vmem [shape: bf16[2,32,64], index: 12, kind: input, shape index: {}]
  %s13 = inlined_call_operand.vmem [shape: bf16[2,64,32], index: 13, kind: input, shape index: {}]
  %s14 = inlined_call_operand.vmem [shape: bf16[96,32], index: 14, kind: input, shape index: {}]
  %s15 = inlined_call_operand.vmem [shape: bf16[64,128], index: 15, kind: input, shape index: {}]
  %s16 = inlined_call_operand.vmem [shape: f32[2,1], index: 16, kind: output, shape index: {}]
  %s17 = sld [smem:[#allocation0]]
  $region74: #{run.1} parent=0
    _
  %s19 = ssub.s32 1, %s17
  %s20 = scalar_select 0, %s19, %s17
  // Predicated region
  $region2: #{run.1} parent=0 // pred_check
    _
  $region3: #{run.1} parent=0 // pred_check_branch
    %22 = sbr.rel (0) target = $region5
  $region4: #{run.1} parent=0 // pred_region
    _
  $region5: #{run.1} parent=0 // pred_fallthru
    _
  // Predicated region
  $region6: #{run.1} parent=0 // pred_check
    _
  $region7: #{run.1} parent=0 // pred_check_branch
    %24 = sbr.rel (0) target = $region9
  $region8: #{run.1} parent=0 // pred_region
    _
  $region9: #{run.1} parent=0 // pred_fallthru
    _
  // Predicated region
  $region10: #{run.1} parent=0 // pred_check
    _
  $region11: #{run.1} parent=0 // pred_check_branch
    %26 = sbr.rel (0) target = $region13
  $region12: #{run.1} parent=0 // pred_region
    _
  $region13: #{run.1} parent=0 // pred_fallthru
    _
  // Predicated region
  $region14: #{run.1} parent=0 // pred_check
    _
  $region15: #{run.1} parent=0 // pred_check_branch
    %28 = sbr.rel (0) target = $region17
  $region16: #{run.1} parent=0 // pred_region
    _
  $region17: #{run.1} parent=0 // pred_fallthru
    _
  // Predicated region
  $region18: #{run.1} parent=0 // pred_check
    _
  $region19: #{run.1} parent=0 // pred_check_branch
    %30 = sbr.rel (0) target = $region21
  $region20: #{run.1} parent=0 // pred_region
    _
  $region21: #{run.1} parent=0 // pred_fallthru
    _
  // Predicated region
  $region22: #{run.1} parent=0 // pred_check
    _
  $region23: #{run.1} parent=0 // pred_check_branch
    %32 = sbr.rel (0) target = $region25
  $region24: #{run.1} parent=0 // pred_region
    _
  $region25: #{run.1} parent=0 // pred_fallthru
    _
  // Predicated region
  $region26: #{run.1} parent=0 // pred_check
    _
  $region27: #{run.1} parent=0 // pred_check_branch
    %34 = sbr.rel (0) target = $region29
  $region28: #{run.1} parent=0 // pred_region
    _
  $region29: #{run.1} parent=0 // pred_fallthru
    _
  // Predicated region
  $region30: #{run.1} parent=0 // pred_check
    _
  $region31: #{run.1} parent=0 // pred_check_branch
    %36 = sbr.rel (0) target = $region33
  $region32: #{run.1} parent=0 // pred_region
    _
  $region33: #{run.1} parent=0 // pred_fallthru
    _
  // Predicated region
  $region34: #{run.1} parent=0 // pred_check
    _
  $region35: #{run.1} parent=0 // pred_check_branch
    %38 = sbr.rel (0) target = $region37
  $region36: #{run.1} parent=0 // pred_region
    _
  $region37: #{run.1} parent=0 // pred_fallthru
    _
  // Predicated region
  $region38: #{run.1} parent=0 // pred_check
    _
  $region39: #{run.1} parent=0 // pred_check_branch
    %40 = sbr.rel (0) target = $region41
  $region40: #{run.1} parent=0 // pred_region
    _
  $region41: #{run.1} parent=0 // pred_fallthru
    _
  // Predicated region
  $region42: #{run.1} parent=0 // pred_check
    _
  $region43: #{run.1} parent=0 // pred_check_branch
    %42 = sbr.rel (0) target = $region45
  $region44: #{run.1} parent=0 // pred_region
    _
  $region45: #{run.1} parent=0 // pred_fallthru
    _
  // Predicated region
  $region46: #{run.1} parent=0 // pred_check
    _
  $region47: #{run.1} parent=0 // pred_check_branch
    %44 = sbr.rel (0) target = $region49
  $region48: #{run.1} parent=0 // pred_region
    _
  $region49: #{run.1} parent=0 // pred_fallthru
    _
  // Predicated region
  $region50: #{run.1} parent=0 // pred_check
    _
  $region51: #{run.1} parent=0 // pred_check_branch
    %46 = sbr.rel (0) target = $region53
  $region52: #{run.1} parent=0 // pred_region
    _
  $region53: #{run.1} parent=0 // pred_fallthru
    _
  // Predicated region
  $region54: #{run.1} parent=0 // pred_check
    _
  $region55: #{run.1} parent=0 // pred_check_branch
    %48 = sbr.rel (0) target = $region57
  $region56: #{run.1} parent=0 // pred_region
    _
  $region57: #{run.1} parent=0 // pred_fallthru
    _
  // Predicated region
  $region58: #{run.1} parent=0 // pred_check
    _
  $region59: #{run.1} parent=0 // pred_check_branch
    %50 = sbr.rel (0) target = $region61
  $region60: #{run.1} parent=0 // pred_region
    _
  $region61: #{run.1} parent=0 // pred_fallthru
    _
  // Predicated region
  $region62: #{run.1} parent=0 // pred_check
    _
  $region63: #{run.1} parent=0 // pred_check_branch
    %52 = sbr.rel (0) target = $region65
  $region64: #{run.1} parent=0 // pred_region
    _
  $region65: #{run.1} parent=0 // pred_fallthru
    _
  %v54 = vld [vmem:[%s14] sm:$0xf]
  %v55 = vld [vmem:[%s14 + $0x4] sm:$0xf]
  %v56 = vld [vmem:[%s14 + $0x8] sm:$0xf]
  %v57 = vld [vmem:[%s14 + $0xc] sm:$0xf]
  %v58 = vld [vmem:[%s14 + $0x10] sm:$0xf]
  %v59 = vld [vmem:[%s14 + $0x14] sm:$0xf]
  %v60 = vld [vmem:[%s14 + $0x18] sm:$0xf]
  %v61 = vld [vmem:[%s14 + $0x1c] sm:$0xf]
  %v62 = vld [vmem:[%s14 + $0x20] sm:$0xf]
  %v63 = vld [vmem:[%s14 + $0x24] sm:$0xf]
  %v64 = vld [vmem:[%s14 + $0x28] sm:$0xf]
  %v65 = vld [vmem:[%s14 + $0x2c] sm:$0xf]
  %v66 = vld [vmem:[%s15] sm:$0xf]
  %v67 = vld [vmem:[%s15 + $0x4] sm:$0xf]
  %v68 = vld [vmem:[%s15 + $0x8] sm:$0xf]
  %v69 = vld [vmem:[%s15 + $0xc] sm:$0xf]
  %v70 = vld [vmem:[%s15 + $0x10] sm:$0xf]
  %v71 = vld [vmem:[%s15 + $0x14] sm:$0xf]
  %v72 = vld [vmem:[%s15 + $0x18] sm:$0xf]
  %v73 = vld [vmem:[%s15 + $0x1c] sm:$0xf]
  %v74 = vld [vmem:[%s0] sm:$0xff]
  %v75 = vld [vmem:[%s0 + $0x8] sm:$0xff]
  %v76 = vld [vmem:[%s1] sm:$0x3]
  %v77 = vld [vmem:[%s5] sm:$0x1]
  %v78 = vld [vmem:[%s5 + $0x1] sm:$0x1]
  %vm79 = vcmask 261120
  %v80 = vsel %vm79, %v74, 0.0
  %81 = vadd.xlane.f32.xlu0 %v80
  %v82 = vpop.xlane.xlu0 %81
  %v83 = vsel %vm79, %v75, 0.0
  %84 = vadd.xlane.f32.xlu0 %v83
  %v85 = vpop.xlane.xlu0 %84
  %v86 = vrcp.pop 32.0
  %v87 = vmul.f32 %v82, %v86
  %v88 = vmul.f32 %v85, %v86
  %v89 = vsub.f32 %v74, %v87
  %v90 = vsub.f32 %v75, %v88
  %v91 = vmul.f32 %v89, %v89
  %v92 = vmul.f32 %v90, %v90
  %v93 = vsel %vm79, %v91, 0.0
  %94 = vadd.xlane.f32.xlu0 %v93
  %v95 = vpop.xlane.xlu0 %94
  %v96 = vsel %vm79, %v92, 0.0
  %97 = vadd.xlane.f32.xlu0 %v96
  %v98 = vpop.xlane.xlu0 %97
  %v99 = vmul.f32 %v95, %v86
  %v100 = vmul.f32 %v98, %v86
  %v101 = vadd.f32 %v99, 1e-12
  %v102 = vadd.f32 %v100, 1e-12
  %v103 = vrsqrt.pop %v101
  %v104 = vrsqrt.pop %v102
  %v105 = vmul.f32 %v89, %v103
  %v106 = vmul.f32 %v90, %v104
  %v107 = vlaneseq
  %v108 = vshrl.u32 %v107, 7
  %v109 = vsub.s32 0, %v108
  %v110 = vrot.slane %v77, %v109
  %v111 = vmul.f32 %v105, %v110
  %v112 = vmul.f32 %v106, %v110
  %v113 = vlaneseq
  %v114 = vshrl.u32 %v113, 7
  %v115 = vsub.s32 0, %v114
  %v116 = vrot.slane %v78, %v115
  %v117 = vadd.f32 %v111, %v116
  %v118 = vadd.f32 %v112, %v116
  %v120 = vrot.slane %v76, 6
  %vm122 = vcmask 1041408
  %v123 = vsel %vm122, %v76, %v120
  %v126 = vunpack.c.l.s4 1966171168
  %v127 = vunpack.c.0.s8 %v126
  %v128 = vlaneseq
  %v129 = vshrl.u32 %v128, 7
  %v130 = vsub.s32 %v127, %v129
  %v131 = vrot.slane %v123, %v130
  %v132 = vcombine.high %v131, %v131
  %v134 = vunpack.c.l.s4 1966171168
  %v135 = vunpack.c.0.s8 %v134
  %v136 = vlaneseq
  %v137 = vshrl.u32 %v136, 7
  %v138 = vsub.s32 %v135, %v137
  %v139 = vrot.slane %v131, %v138
  %v141 = vunpack.c.l.s4 1966171168
  %v142 = vunpack.c.0.s8 %v141
  %v143 = vlaneseq
  %v144 = vshrl.u32 %v143, 7
  %v145 = vsub.s32 %v142, %v144
  %v146 = vrot.slane %v132, %v145
  %v147 = vcombine.high %v139, %v139
  %v148 = vcombine.high %v146, %v146
  %v149 = vpack.c.bf16 %v118, %v117
  %v150 = vld [vmem:[%s6] sm:$0xf]
  %v151 = vld [vmem:[%s6 + $0x4] sm:$0xf]
  %v152 = vld [vmem:[%s6 + $0x8] sm:$0xf]
  %v153 = vld [vmem:[%s6 + $0xc] sm:$0xf]
  %v154 = vld [vmem:[%s5 + $0x3] sm:$0x1]
  %v155 = vlaneseq
  %v156 = vshrl.u32 %v155, 7
  %v157 = vsub.s32 0, %v156
  %v158 = vrot.slane %v154, %v157
  %v163 = vunpack.c.l.b16 %v150
  %v164 = vunpack.c.l.b16 %v151
  %v165 = vunpack.c.l.b16 %v152
  %v166 = vunpack.c.l.b16 %v153
  %v167 = vpack.c.b16 %v164, %v163
  %v168 = vpack.c.b16 %v166, %v165
  %v172 = vsel %vm79, %v149, 0
  %174 = vmatprep.subr.bf16.mxu0 0
  %175 = vmatpush1.bf16.msra.mxu0 0
  %176 = vmatprep.subr.bf16.mxu0 0
  %177 = vmatpush1.bf16.msra.mxu0 0
  %178 = vmatprep.subr.bf16.mxu0 0
  %179 = vmatpush1.bf16.msra.mxu0 0
  %180 = vmatprep.subr.bf16.mxu0 0
  %181 = vmatpush1.bf16.msra.mxu0 0
  %182 = vmatprep.subr.bf16.mxu0 0
  %183 = vmatpush1.bf16.msra.mxu0 0
  %184 = vmatprep.subr.bf16.mxu0 0
  %185 = vmatpush1.bf16.msra.mxu0 0
  %186 = vmatprep.subr.bf16.mxu0 0
  %187 = vmatpush1.bf16.msra.mxu0 %v168
  %188 = vmatprep.subr.bf16.mxu0 0
  %189 = vmatpush1.bf16.msra.mxu0 %v167
  %190 = vmatprep.subr.bf16.mxu0 0
  %191 = vmatpush2.bf16.msra.mxu0 0
  %192 = vmatprep.subr.bf16.mxu0 0
  %193 = vmatpush2.bf16.msra.mxu0 0
  %194 = vmatprep.subr.bf16.mxu0 0
  %195 = vmatpush2.bf16.msra.mxu0 0
  %196 = vmatprep.subr.bf16.mxu0 0
  %197 = vmatpush2.bf16.msra.mxu0 0
  %198 = vmatprep.subr.bf16.mxu0 0
  %199 = vmatpush2.bf16.msra.mxu0 0
  %200 = vmatprep.subr.bf16.mxu0 0
  %201 = vmatpush2.bf16.msra.mxu0 0
  %202 = vmatprep.subr.bf16.mxu0 0
  %203 = vmatpush2.bf16.msra.mxu0 0
  %204 = vmatprep.subr.bf16.mxu0 0
  %205 = vmatpush2.bf16.msra.mxu0 0
  %206 = vmatprep.mubr.bf16.mxu0 0
  %207 = vmatmul.mubr.bf16.gmra.mxu0 %v172
  %v208 = vpop.f32.mrf.mxu0
  %v209 = vadd.f32 %v158, %v208
  %v210 = vpop.f32.mrf.mxu0
  %v211 = vpop.f32.mrf.mxu0
  %v212 = vadd.f32 %v158, %v211
  %v213 = vpop.f32.mrf.mxu0
  %214 = vdwg.mxu0
  %217 = vrot.lane.b32.xlu0 %v209, 80
  %v218 = vpop.permute.xlu0 %217
  %219 = vrot.lane.b32.xlu0 %v212, 80
  %v220 = vpop.permute.xlu0 %219
  %v223 = vpack.c.bf16 %v209, %v209
  %v224 = vpack.c.bf16 %v212, %v212
  %v225 = vpack.c.bf16 %v218, %v218
  %v226 = vpack.c.bf16 %v220, %v220
  %v227 = vlaneseq
  %v228 = vshrl.u32 %v227, 7
  %v229 = vsub.s32 0, %v228
  %v230 = vrot.slane %v139, %v229
  %v231 = vlaneseq
  %v232 = vshrl.u32 %v231, 7
  %v233 = vsub.s32 0, %v232
  %v234 = vrot.slane %v146, %v233
  %v235 = vlaneseq
  %v236 = vshrl.u32 %v235, 7
  %v237 = vsub.s32 0, %v236
  %v238 = vrot.slane %v147, %v237
  %v239 = vlaneseq
  %v240 = vshrl.u32 %v239, 7
  %v241 = vsub.s32 0, %v240
  %v242 = vrot.slane %v148, %v241
  %248 = vrot.lane.b32.xlu0 %v223, 112
  %v249 = vpop.permute.xlu0 %248
  %vm250 = vcmask 130048
  %v252 = vsel %vm250, %v223, 0
  %v255 = vsel %vm250, %v249, 0
  %257 = vmatprep.subr.bf16.mxu0 0
  %258 = vmatpush1.bf16.xpose.msra.mxu0 0
  %259 = vmatprep.subr.bf16.mxu0 0
  %260 = vmatpush1.bf16.xpose.msra.mxu0 0
  %261 = vmatprep.subr.bf16.mxu0 0
  %262 = vmatpush1.bf16.xpose.msra.mxu0 0
  %263 = vmatprep.subr.bf16.mxu0 0
  %264 = vmatpush1.bf16.xpose.msra.mxu0 0
  %265 = vmatprep.subr.bf16.mxu0 0
  %266 = vmatpush1.bf16.xpose.msra.mxu0 0
  %267 = vmatprep.subr.bf16.mxu0 0
  %268 = vmatpush1.bf16.xpose.msra.mxu0 0
  %269 = vmatprep.subr.bf16.mxu0 0
  %270 = vmatpush1.bf16.xpose.msra.mxu0 0
  %271 = vmatprep.subr.bf16.mxu0 0
  %272 = vmatpush1.bf16.xpose.msra.mxu0 %v255
  %273 = vmatprep.subr.bf16.mxu0 0
  %274 = vmatpush2.bf16.xpose.msra.mxu0 0
  %275 = vmatprep.subr.bf16.mxu0 0
  %276 = vmatpush2.bf16.xpose.msra.mxu0 0
  %277 = vmatprep.subr.bf16.mxu0 0
  %278 = vmatpush2.bf16.xpose.msra.mxu0 0
  %279 = vmatprep.subr.bf16.mxu0 0
  %280 = vmatpush2.bf16.xpose.msra.mxu0 0
  %281 = vmatprep.subr.bf16.mxu0 0
  %282 = vmatpush2.bf16.xpose.msra.mxu0 0
  %283 = vmatprep.subr.bf16.mxu0 0
  %284 = vmatpush2.bf16.xpose.msra.mxu0 0
  %285 = vmatprep.subr.bf16.mxu0 0
  %286 = vmatpush2.bf16.xpose.msra.mxu0 0
  %287 = vmatprep.subr.bf16.mxu0 0
  %288 = vmatpush2.bf16.xpose.msra.mxu0 0
  %289 = vmatprep.mubr.bf16.mxu0 0
  %290 = vmatmul.mubr.bf16.gmra.mxu0 %v252
  %v291 = vpop.f32.mrf.mxu0
  %v292 = vadd.f32 %v230, %v291
  %v293 = vpop.f32.mrf.mxu0
  %v294 = vpop.f32.mrf.mxu0
  %v295 = vpop.f32.mrf.mxu0
  %296 = vdwg.mxu0
  %298 = vrot.lane.b32.xlu0 %v224, 112
  %v299 = vpop.permute.xlu0 %298
  %v301 = vsel %vm250, %v224, 0
  %v304 = vsel %vm250, %v299, 0
  %306 = vmatprep.subr.bf16.mxu0 0
  %307 = vmatpush1.bf16.xpose.msra.mxu0 0
  %308 = vmatprep.subr.bf16.mxu0 0
  %309 = vmatpush1.bf16.xpose.msra.mxu0 0
  %310 = vmatprep.subr.bf16.mxu0 0
  %311 = vmatpush1.bf16.xpose.msra.mxu0 0
  %312 = vmatprep.subr.bf16.mxu0 0
  %313 = vmatpush1.bf16.xpose.msra.mxu0 0
  %314 = vmatprep.subr.bf16.mxu0 0
  %315 = vmatpush1.bf16.xpose.msra.mxu0 0
  %316 = vmatprep.subr.bf16.mxu0 0
  %317 = vmatpush1.bf16.xpose.msra.mxu0 0
  %318 = vmatprep.subr.bf16.mxu0 0
  %319 = vmatpush1.bf16.xpose.msra.mxu0 0
  %320 = vmatprep.subr.bf16.mxu0 0
  %321 = vmatpush1.bf16.xpose.msra.mxu0 %v304
  %322 = vmatprep.subr.bf16.mxu0 0
  %323 = vmatpush2.bf16.xpose.msra.mxu0 0
  %324 = vmatprep.subr.bf16.mxu0 0
  %325 = vmatpush2.bf16.xpose.msra.mxu0 0
  %326 = vmatprep.subr.bf16.mxu0 0
  %327 = vmatpush2.bf16.xpose.msra.mxu0 0
  %328 = vmatprep.subr.bf16.mxu0 0
  %329 = vmatpush2.bf16.xpose.msra.mxu0 0
  %330 = vmatprep.subr.bf16.mxu0 0
  %331 = vmatpush2.bf16.xpose.msra.mxu0 0
  %332 = vmatprep.subr.bf16.mxu0 0
  %333 = vmatpush2.bf16.xpose.msra.mxu0 0
  %334 = vmatprep.subr.bf16.mxu0 0
  %335 = vmatpush2.bf16.xpose.msra.mxu0 0
  %336 = vmatprep.subr.bf16.mxu0 0
  %337 = vmatpush2.bf16.xpose.msra.mxu0 0
  %338 = vmatprep.mubr.bf16.mxu0 0
  %339 = vmatmul.mubr.bf16.gmra.mxu0 %v301
  %v340 = vpop.f32.mrf.mxu0
  %v341 = vadd.f32 %v234, %v340
  %v342 = vpop.f32.mrf.mxu0
  %v343 = vpop.f32.mrf.mxu0
  %v344 = vpop.f32.mrf.mxu0
  %345 = vdwg.mxu0
  %347 = vrot.lane.b32.xlu0 %v225, 112
  %v348 = vpop.permute.xlu0 %347
  %v350 = vsel %vm250, %v225, 0
  %v353 = vsel %vm250, %v348, 0
  %355 = vmatprep.subr.bf16.mxu0 0
  %356 = vmatpush1.bf16.xpose.msra.mxu0 0
  %357 = vmatprep.subr.bf16.mxu0 0
  %358 = vmatpush1.bf16.xpose.msra.mxu0 0
  %359 = vmatprep.subr.bf16.mxu0 0
  %360 = vmatpush1.bf16.xpose.msra.mxu0 0
  %361 = vmatprep.subr.bf16.mxu0 0
  %362 = vmatpush1.bf16.xpose.msra.mxu0 0
  %363 = vmatprep.subr.bf16.mxu0 0
  %364 = vmatpush1.bf16.xpose.msra.mxu0 0
  %365 = vmatprep.subr.bf16.mxu0 0
  %366 = vmatpush1.bf16.xpose.msra.mxu0 0
  %367 = vmatprep.subr.bf16.mxu0 0
  %368 = vmatpush1.bf16.xpose.msra.mxu0 0
  %369 = vmatprep.subr.bf16.mxu0 0
  %370 = vmatpush1.bf16.xpose.msra.mxu0 %v353
  %371 = vmatprep.subr.bf16.mxu0 0
  %372 = vmatpush2.bf16.xpose.msra.mxu0 0
  %373 = vmatprep.subr.bf16.mxu0 0
  %374 = vmatpush2.bf16.xpose.msra.mxu0 0
  %375 = vmatprep.subr.bf16.mxu0 0
  %376 = vmatpush2.bf16.xpose.msra.mxu0 0
  %377 = vmatprep.subr.bf16.mxu0 0
  %378 = vmatpush2.bf16.xpose.msra.mxu0 0
  %379 = vmatprep.subr.bf16.mxu0 0
  %380 = vmatpush2.bf16.xpose.msra.mxu0 0
  %381 = vmatprep.subr.bf16.mxu0 0
  %382 = vmatpush2.bf16.xpose.msra.mxu0 0
  %383 = vmatprep.subr.bf16.mxu0 0
  %384 = vmatpush2.bf16.xpose.msra.mxu0 0
  %385 = vmatprep.subr.bf16.mxu0 0
  %386 = vmatpush2.bf16.xpose.msra.mxu0 0
  %387 = vmatprep.mubr.bf16.mxu0 0
  %388 = vmatmul.mubr.bf16.gmra.mxu0 %v350
  %v389 = vpop.f32.mrf.mxu0
  %v390 = vadd.f32 %v238, %v389
  %v391 = vpop.f32.mrf.mxu0
  %v392 = vpop.f32.mrf.mxu0
  %v393 = vpop.f32.mrf.mxu0
  %394 = vdwg.mxu0
  %396 = vrot.lane.b32.xlu0 %v226, 112
  %v397 = vpop.permute.xlu0 %396
  %v399 = vsel %vm250, %v226, 0
  %v402 = vsel %vm250, %v397, 0
  %404 = vmatprep.subr.bf16.mxu0 0
  %405 = vmatpush1.bf16.xpose.msra.mxu0 0
  %406 = vmatprep.subr.bf16.mxu0 0
  %407 = vmatpush1.bf16.xpose.msra.mxu0 0
  %408 = vmatprep.subr.bf16.mxu0 0
  %409 = vmatpush1.bf16.xpose.msra.mxu0 0
  %410 = vmatprep.subr.bf16.mxu0 0
  %411 = vmatpush1.bf16.xpose.msra.mxu0 0
  %412 = vmatprep.subr.bf16.mxu0 0
  %413 = vmatpush1.bf16.xpose.msra.mxu0 0
  %414 = vmatprep.subr.bf16.mxu0 0
  %415 = vmatpush1.bf16.xpose.msra.mxu0 0
  %416 = vmatprep.subr.bf16.mxu0 0
  %417 = vmatpush1.bf16.xpose.msra.mxu0 0
  %418 = vmatprep.subr.bf16.mxu0 0
  %419 = vmatpush1.bf16.xpose.msra.mxu0 %v402
  %420 = vmatprep.subr.bf16.mxu0 0
  %421 = vmatpush2.bf16.xpose.msra.mxu0 0
  %422 = vmatprep.subr.bf16.mxu0 0
  %423 = vmatpush2.bf16.xpose.msra.mxu0 0
  %424 = vmatprep.subr.bf16.mxu0 0
  %425 = vmatpush2.bf16.xpose.msra.mxu0 0
  %426 = vmatprep.subr.bf16.mxu0 0
  %427 = vmatpush2.bf16.xpose.msra.mxu0 0
  %428 = vmatprep.subr.bf16.mxu0 0
  %429 = vmatpush2.bf16.xpose.msra.mxu0 0
  %430 = vmatprep.subr.bf16.mxu0 0
  %431 = vmatpush2.bf16.xpose.msra.mxu0 0
  %432 = vmatprep.subr.bf16.mxu0 0
  %433 = vmatpush2.bf16.xpose.msra.mxu0 0
  %434 = vmatprep.subr.bf16.mxu0 0
  %435 = vmatpush2.bf16.xpose.msra.mxu0 0
  %436 = vmatprep.mubr.bf16.mxu0 0
  %437 = vmatmul.mubr.bf16.gmra.mxu0 %v399
  %v438 = vpop.f32.mrf.mxu0
  %v439 = vadd.f32 %v242, %v438
  %v440 = vpop.f32.mrf.mxu0
  %v441 = vpop.f32.mrf.mxu0
  %v442 = vpop.f32.mrf.mxu0
  %443 = vdwg.mxu0
  %vm444 = vcmask 64512
  %v445 = vsel %vm444, %v292, -inf
  %446 = vmax.xlane.f32.xlu0 %v445
  %v447 = vpop.xlane.xlu0 %446
  %v448 = vsel %vm444, %v341, -inf
  %449 = vmax.xlane.f32.xlu0 %v448
  %v450 = vpop.xlane.xlu0 %449
  %v451 = vsel %vm444, %v390, -inf
  %452 = vmax.xlane.f32.xlu0 %v451
  %v453 = vpop.xlane.xlu0 %452
  %v454 = vsel %vm444, %v439, -inf
  %455 = vmax.xlane.f32.xlu0 %v454
  %v456 = vpop.xlane.xlu0 %455
  %v457 = vsub.f32 %v292, %v447
  %v458 = vsub.f32 %v341, %v450
  %v459 = vsub.f32 %v390, %v453
  %v460 = vsub.f32 %v439, %v456
  %v461 = vmul.f32 %v457, 1.442695
  %v462 = vpow.pop %v461
  %v463 = vmul.f32 %v458, 1.442695
  %v464 = vpow.pop %v463
  %v465 = vmul.f32 %v459, 1.442695
  %v466 = vpow.pop %v465
  %v467 = vmul.f32 %v460, 1.442695
  %v468 = vpow.pop %v467
  %v469 = vsel %vm444, %v462, 0.0
  %470 = vadd.xlane.f32.xlu0 %v469
  %v471 = vpop.xlane.xlu0 %470
  %v472 = vsel %vm444, %v464, 0.0
  %473 = vadd.xlane.f32.xlu0 %v472
  %v474 = vpop.xlane.xlu0 %473
  %v475 = vsel %vm444, %v466, 0.0
  %476 = vadd.xlane.f32.xlu0 %v475
  %v477 = vpop.xlane.xlu0 %476
  %v478 = vsel %vm444, %v468, 0.0
  %479 = vadd.xlane.f32.xlu0 %v478
  %v480 = vpop.xlane.xlu0 %479
  %v481 = vrcp.pop %v471
  %v482 = vrcp.pop %v474
  %v483 = vrcp.pop %v477
  %v484 = vrcp.pop %v480
  %v485 = vmul.f32 %v462, %v481
  %v486 = vmul.f32 %v464, %v482
  %v487 = vmul.f32 %v466, %v483
  %v488 = vmul.f32 %v468, %v484
  %v489 = vpack.c.bf16 %v485, %v485
  %v490 = vpack.c.bf16 %v486, %v486
  %v491 = vpack.c.bf16 %v487, %v487
  %v492 = vpack.c.bf16 %v488, %v488
  %493 = vrot.lane.b32.xlu0 %v223, 96
  %v494 = vpop.permute.xlu0 %493
  %v496 = vsel %vm444, %v489, 0
  %vm498 = vcmask 1043456
  %v500 = vsel %vm498, %v494, 0
  %502 = vmatprep.subr.bf16.mxu0 0
  %503 = vmatpush1.bf16.msra.mxu0 0
  %504 = vmatprep.subr.bf16.mxu0 0
  %505 = vmatpush1.bf16.msra.mxu0 0
  %506 = vmatprep.subr.bf16.mxu0 0
  %507 = vmatpush1.bf16.msra.mxu0 0
  %508 = vmatprep.subr.bf16.mxu0 0
  %509 = vmatpush1.bf16.msra.mxu0 0
  %510 = vmatprep.subr.bf16.mxu0 0
  %511 = vmatpush1.bf16.msra.mxu0 0
  %512 = vmatprep.subr.bf16.mxu0 0
  %513 = vmatpush1.bf16.msra.mxu0 0
  %514 = vmatprep.subr.bf16.mxu0 0
  %515 = vmatpush1.bf16.msra.mxu0 0
  %516 = vmatprep.subr.bf16.mxu0 0
  %517 = vmatpush1.bf16.msra.mxu0 %v500
  %518 = vmatprep.subr.bf16.mxu0 0
  %519 = vmatpush2.bf16.msra.mxu0 0
  %520 = vmatprep.subr.bf16.mxu0 0
  %521 = vmatpush2.bf16.msra.mxu0 0
  %522 = vmatprep.subr.bf16.mxu0 0
  %523 = vmatpush2.bf16.msra.mxu0 0
  %524 = vmatprep.subr.bf16.mxu0 0
  %525 = vmatpush2.bf16.msra.mxu0 0
  %526 = vmatprep.subr.bf16.mxu0 0
  %527 = vmatpush2.bf16.msra.mxu0 0
  %528 = vmatprep.subr.bf16.mxu0 0
  %529 = vmatpush2.bf16.msra.mxu0 0
  %530 = vmatprep.subr.bf16.mxu0 0
  %531 = vmatpush2.bf16.msra.mxu0 0
  %532 = vmatprep.subr.bf16.mxu0 0
  %533 = vmatpush2.bf16.msra.mxu0 0
  %534 = vmatprep.mubr.bf16.mxu0 0
  %535 = vmatmul.mubr.bf16.gmra.mxu0 %v496
  %v536 = vpop.f32.mrf.mxu0
  %v537 = vadd.f32 0.0, %v536
  %v538 = vpop.f32.mrf.mxu0
  %v539 = vpop.f32.mrf.mxu0
  %v540 = vpop.f32.mrf.mxu0
  %541 = vdwg.mxu0
  %542 = vrot.lane.b32.xlu0 %v224, 96
  %v543 = vpop.permute.xlu0 %542
  %v545 = vsel %vm444, %v490, 0
  %v548 = vsel %vm498, %v543, 0
  %550 = vmatprep.subr.bf16.mxu0 0
  %551 = vmatpush1.bf16.msra.mxu0 0
  %552 = vmatprep.subr.bf16.mxu0 0
  %553 = vmatpush1.bf16.msra.mxu0 0
  %554 = vmatprep.subr.bf16.mxu0 0
  %555 = vmatpush1.bf16.msra.mxu0 0
  %556 = vmatprep.subr.bf16.mxu0 0
  %557 = vmatpush1.bf16.msra.mxu0 0
  %558 = vmatprep.subr.bf16.mxu0 0
  %559 = vmatpush1.bf16.msra.mxu0 0
  %560 = vmatprep.subr.bf16.mxu0 0
  %561 = vmatpush1.bf16.msra.mxu0 0
  %562 = vmatprep.subr.bf16.mxu0 0
  %563 = vmatpush1.bf16.msra.mxu0 0
  %564 = vmatprep.subr.bf16.mxu0 0
  %565 = vmatpush1.bf16.msra.mxu0 %v548
  %566 = vmatprep.subr.bf16.mxu0 0
  %567 = vmatpush2.bf16.msra.mxu0 0
  %568 = vmatprep.subr.bf16.mxu0 0
  %569 = vmatpush2.bf16.msra.mxu0 0
  %570 = vmatprep.subr.bf16.mxu0 0
  %571 = vmatpush2.bf16.msra.mxu0 0
  %572 = vmatprep.subr.bf16.mxu0 0
  %573 = vmatpush2.bf16.msra.mxu0 0
  %574 = vmatprep.subr.bf16.mxu0 0
  %575 = vmatpush2.bf16.msra.mxu0 0
  %576 = vmatprep.subr.bf16.mxu0 0
  %577 = vmatpush2.bf16.msra.mxu0 0
  %578 = vmatprep.subr.bf16.mxu0 0
  %579 = vmatpush2.bf16.msra.mxu0 0
  %580 = vmatprep.subr.bf16.mxu0 0
  %581 = vmatpush2.bf16.msra.mxu0 0
  %582 = vmatprep.mubr.bf16.mxu0 0
  %583 = vmatmul.mubr.bf16.gmra.mxu0 %v545
  %v584 = vpop.f32.mrf.mxu0
  %v585 = vadd.f32 0.0, %v584
  %v586 = vpop.f32.mrf.mxu0
  %v587 = vpop.f32.mrf.mxu0
  %v588 = vpop.f32.mrf.mxu0
  %589 = vdwg.mxu0
  %590 = vrot.lane.b32.xlu0 %v225, 96
  %v591 = vpop.permute.xlu0 %590
  %v593 = vsel %vm444, %v491, 0
  %v596 = vsel %vm498, %v591, 0
  %598 = vmatprep.subr.bf16.mxu0 0
  %599 = vmatpush1.bf16.msra.mxu0 0
  %600 = vmatprep.subr.bf16.mxu0 0
  %601 = vmatpush1.bf16.msra.mxu0 0
  %602 = vmatprep.subr.bf16.mxu0 0
  %603 = vmatpush1.bf16.msra.mxu0 0
  %604 = vmatprep.subr.bf16.mxu0 0
  %605 = vmatpush1.bf16.msra.mxu0 0
  %606 = vmatprep.subr.bf16.mxu0 0
  %607 = vmatpush1.bf16.msra.mxu0 0
  %608 = vmatprep.subr.bf16.mxu0 0
  %609 = vmatpush1.bf16.msra.mxu0 0
  %610 = vmatprep.subr.bf16.mxu0 0
  %611 = vmatpush1.bf16.msra.mxu0 0
  %612 = vmatprep.subr.bf16.mxu0 0
  %613 = vmatpush1.bf16.msra.mxu0 %v596
  %614 = vmatprep.subr.bf16.mxu0 0
  %615 = vmatpush2.bf16.msra.mxu0 0
  %616 = vmatprep.subr.bf16.mxu0 0
  %617 = vmatpush2.bf16.msra.mxu0 0
  %618 = vmatprep.subr.bf16.mxu0 0
  %619 = vmatpush2.bf16.msra.mxu0 0
  %620 = vmatprep.subr.bf16.mxu0 0
  %621 = vmatpush2.bf16.msra.mxu0 0
  %622 = vmatprep.subr.bf16.mxu0 0
  %623 = vmatpush2.bf16.msra.mxu0 0
  %624 = vmatprep.subr.bf16.mxu0 0
  %625 = vmatpush2.bf16.msra.mxu0 0
  %626 = vmatprep.subr.bf16.mxu0 0
  %627 = vmatpush2.bf16.msra.mxu0 0
  %628 = vmatprep.subr.bf16.mxu0 0
  %629 = vmatpush2.bf16.msra.mxu0 0
  %630 = vmatprep.mubr.bf16.mxu0 0
  %631 = vmatmul.mubr.bf16.gmra.mxu0 %v593
  %v632 = vpop.f32.mrf.mxu0
  %v633 = vadd.f32 0.0, %v632
  %v634 = vpop.f32.mrf.mxu0
  %v635 = vpop.f32.mrf.mxu0
  %v636 = vpop.f32.mrf.mxu0
  %637 = vdwg.mxu0
  %638 = vrot.lane.b32.xlu0 %v226, 96
  %v639 = vpop.permute.xlu0 %638
  %v641 = vsel %vm444, %v492, 0
  %v644 = vsel %vm498, %v639, 0
  %646 = vmatprep.subr.bf16.mxu0 0
  %647 = vmatpush1.bf16.msra.mxu0 0
  %648 = vmatprep.subr.bf16.mxu0 0
  %649 = vmatpush1.bf16.msra.mxu0 0
  %650 = vmatprep.subr.bf16.mxu0 0
  %651 = vmatpush1.bf16.msra.mxu0 0
  %652 = vmatprep.subr.bf16.mxu0 0
  %653 = vmatpush1.bf16.msra.mxu0 0
  %654 = vmatprep.subr.bf16.mxu0 0
  %655 = vmatpush1.bf16.msra.mxu0 0
  %656 = vmatprep.subr.bf16.mxu0 0
  %657 = vmatpush1.bf16.msra.mxu0 0
  %658 = vmatprep.subr.bf16.mxu0 0
  %659 = vmatpush1.bf16.msra.mxu0 0
  %660 = vmatprep.subr.bf16.mxu0 0
  %661 = vmatpush1.bf16.msra.mxu0 %v644
  %662 = vmatprep.subr.bf16.mxu0 0
  %663 = vmatpush2.bf16.msra.mxu0 0
  %664 = vmatprep.subr.bf16.mxu0 0
  %665 = vmatpush2.bf16.msra.mxu0 0
  %666 = vmatprep.subr.bf16.mxu0 0
  %667 = vmatpush2.bf16.msra.mxu0 0
  %668 = vmatprep.subr.bf16.mxu0 0
  %669 = vmatpush2.bf16.msra.mxu0 0
  %670 = vmatprep.subr.bf16.mxu0 0
  %671 = vmatpush2.bf16.msra.mxu0 0
  %672 = vmatprep.subr.bf16.mxu0 0
  %673 = vmatpush2.bf16.msra.mxu0 0
  %674 = vmatprep.subr.bf16.mxu0 0
  %675 = vmatpush2.bf16.msra.mxu0 0
  %676 = vmatprep.subr.bf16.mxu0 0
  %677 = vmatpush2.bf16.msra.mxu0 0
  %678 = vmatprep.mubr.bf16.mxu0 0
  %679 = vmatmul.mubr.bf16.gmra.mxu0 %v641
  %v680 = vpop.f32.mrf.mxu0
  %v681 = vadd.f32 0.0, %v680
  %v682 = vpop.f32.mrf.mxu0
  %v683 = vpop.f32.mrf.mxu0
  %v684 = vpop.f32.mrf.mxu0
  %685 = vdwg.mxu0
  %688 = vrot.lane.b32.xlu0 %v633, 16
  %v689 = vpop.permute.xlu0 %688
  %690 = vrot.lane.b32.xlu0 %v681, 16
  %v691 = vpop.permute.xlu0 %690
  %v694 = vsel %vm250, %v537, %v689
  %v695 = vsel %vm250, %v585, %v691
  %v696 = vpack.c.bf16 %v695, %v694
  %v697 = vld [vmem:[%s7] sm:$0xf]
  %v698 = vld [vmem:[%s7 + $0x4] sm:$0xf]
  %v699 = vld [vmem:[%s7 + $0x8] sm:$0xf]
  %v700 = vld [vmem:[%s7 + $0xc] sm:$0xf]
  %v701 = vld [vmem:[%s5 + $0x4] sm:$0x1]
  %v702 = vlaneseq
  %v703 = vshrl.u32 %v702, 7
  %v704 = vsub.s32 0, %v703
  %v705 = vrot.slane %v701, %v704
  %v710 = vunpack.c.l.b16 %v697
  %v711 = vunpack.c.l.b16 %v698
  %v712 = vunpack.c.l.b16 %v699
  %v713 = vunpack.c.l.b16 %v700
  %v714 = vpack.c.b16 %v711, %v710
  %v715 = vpack.c.b16 %v713, %v712
  %v719 = vsel %vm79, %v696, 0
  %721 = vmatprep.subr.bf16.mxu0 0
  %722 = vmatpush1.bf16.msra.mxu0 0
  %723 = vmatprep.subr.bf16.mxu0 0
  %724 = vmatpush1.bf16.msra.mxu0 0
  %725 = vmatprep.subr.bf16.mxu0 0
  %726 = vmatpush1.bf16.msra.mxu0 0
  %727 = vmatprep.subr.bf16.mxu0 0
  %728 = vmatpush1.bf16.msra.mxu0 0
  %729 = vmatprep.subr.bf16.mxu0 0
  %730 = vmatpush1.bf16.msra.mxu0 0
  %731 = vmatprep.subr.bf16.mxu0 0
  %732 = vmatpush1.bf16.msra.mxu0 0
  %733 = vmatprep.subr.bf16.mxu0 0
  %734 = vmatpush1.bf16.msra.mxu0 %v715
  %735 = vmatprep.subr.bf16.mxu0 0
  %736 = vmatpush1.bf16.msra.mxu0 %v714
  %737 = vmatprep.subr.bf16.mxu0 0
  %738 = vmatpush2.bf16.msra.mxu0 0
  %739 = vmatprep.subr.bf16.mxu0 0
  %740 = vmatpush2.bf16.msra.mxu0 0
  %741 = vmatprep.subr.bf16.mxu0 0
  %742 = vmatpush2.bf16.msra.mxu0 0
  %743 = vmatprep.subr.bf16.mxu0 0
  %744 = vmatpush2.bf16.msra.mxu0 0
  %745 = vmatprep.subr.bf16.mxu0 0
  %746 = vmatpush2.bf16.msra.mxu0 0
  %747 = vmatprep.subr.bf16.mxu0 0
  %748 = vmatpush2.bf16.msra.mxu0 0
  %749 = vmatprep.subr.bf16.mxu0 0
  %750 = vmatpush2.bf16.msra.mxu0 0
  %751 = vmatprep.subr.bf16.mxu0 0
  %752 = vmatpush2.bf16.msra.mxu0 0
  %753 = vmatprep.mubr.bf16.mxu0 0
  %754 = vmatmul.mubr.bf16.gmra.mxu0 %v719
  %v755 = vpop.f32.mrf.mxu0
  %v756 = vadd.f32 %v705, %v755
  %v757 = vpop.f32.mrf.mxu0
  %v758 = vpop.f32.mrf.mxu0
  %v759 = vadd.f32 %v705, %v758
  %v760 = vpop.f32.mrf.mxu0
  %761 = vdwg.mxu0
  %v762 = vadd.f32 %v756, %v117
  %v763 = vadd.f32 %v759, %v118
  %v764 = vld [vmem:[%s5 + $0x5] sm:$0x1]
  %v765 = vld [vmem:[%s5 + $0x6] sm:$0x1]
  %v766 = vsel %vm79, %v762, 0.0
  %767 = vadd.xlane.f32.xlu0 %v766
  %v768 = vpop.xlane.xlu0 %767
  %v769 = vsel %vm79, %v763, 0.0
  %770 = vadd.xlane.f32.xlu0 %v769
  %v771 = vpop.xlane.xlu0 %770
  %v772 = vmul.f32 %v768, %v86
  %v773 = vmul.f32 %v771, %v86
  %v774 = vsub.f32 %v762, %v772
  %v775 = vsub.f32 %v763, %v773
  %v776 = vmul.f32 %v774, %v774
  %v777 = vmul.f32 %v775, %v775
  %v778 = vsel %vm79, %v776, 0.0
  %779 = vadd.xlane.f32.xlu0 %v778
  %v780 = vpop.xlane.xlu0 %779
  %v781 = vsel %vm79, %v777, 0.0
  %782 = vadd.xlane.f32.xlu0 %v781
  %v783 = vpop.xlane.xlu0 %782
  %v784 = vmul.f32 %v780, %v86
  %v785 = vmul.f32 %v783, %v86
  %v786 = vadd.f32 %v784, 1e-12
  %v787 = vadd.f32 %v785, 1e-12
  %v788 = vrsqrt.pop %v786
  %v789 = vrsqrt.pop %v787
  %v790 = vmul.f32 %v774, %v788
  %v791 = vmul.f32 %v775, %v789
  %v792 = vlaneseq
  %v793 = vshrl.u32 %v792, 7
  %v794 = vsub.s32 0, %v793
  %v795 = vrot.slane %v764, %v794
  %v796 = vmul.f32 %v790, %v795
  %v797 = vmul.f32 %v791, %v795
  %v798 = vlaneseq
  %v799 = vshrl.u32 %v798, 7
  %v800 = vsub.s32 0, %v799
  %v801 = vrot.slane %v765, %v800
  %v802 = vadd.f32 %v796, %v801
  %v803 = vadd.f32 %v797, %v801
  %v804 = vpack.c.bf16 %v803, %v802
  %v805 = vld [vmem:[%s8] sm:$0xf]
  %v806 = vld [vmem:[%s8 + $0x4] sm:$0xf]
  %v807 = vld [vmem:[%s8 + $0x8] sm:$0xf]
  %v808 = vld [vmem:[%s8 + $0xc] sm:$0xf]
  %v809 = vld [vmem:[%s5 + $0x7] sm:$0x1]
  %v810 = vlaneseq
  %v811 = vshrl.u32 %v810, 7
  %v812 = vsub.s32 0, %v811
  %v813 = vrot.slane %v809, %v812
  %v818 = vunpack.c.l.b16 %v805
  %v819 = vunpack.c.l.b16 %v806
  %v820 = vunpack.c.l.b16 %v807
  %v821 = vunpack.c.l.b16 %v808
  %v822 = vpack.c.b16 %v819, %v818
  %v823 = vpack.c.b16 %v821, %v820
  %v827 = vsel %vm79, %v804, 0
  %829 = vmatprep.subr.bf16.mxu0 0
  %830 = vmatpush1.bf16.msra.mxu0 0
  %831 = vmatprep.subr.bf16.mxu0 0
  %832 = vmatpush1.bf16.msra.mxu0 0
  %833 = vmatprep.subr.bf16.mxu0 0
  %834 = vmatpush1.bf16.msra.mxu0 0
  %835 = vmatprep.subr.bf16.mxu0 0
  %836 = vmatpush1.bf16.msra.mxu0 0
  %837 = vmatprep.subr.bf16.mxu0 0
  %838 = vmatpush1.bf16.msra.mxu0 0
  %839 = vmatprep.subr.bf16.mxu0 0
  %840 = vmatpush1.bf16.msra.mxu0 0
  %841 = vmatprep.subr.bf16.mxu0 0
  %842 = vmatpush1.bf16.msra.mxu0 %v823
  %843 = vmatprep.subr.bf16.mxu0 0
  %844 = vmatpush1.bf16.msra.mxu0 %v822
  %845 = vmatprep.subr.bf16.mxu0 0
  %846 = vmatpush2.bf16.msra.mxu0 0
  %847 = vmatprep.subr.bf16.mxu0 0
  %848 = vmatpush2.bf16.msra.mxu0 0
  %849 = vmatprep.subr.bf16.mxu0 0
  %850 = vmatpush2.bf16.msra.mxu0 0
  %851 = vmatprep.subr.bf16.mxu0 0
  %852 = vmatpush2.bf16.msra.mxu0 0
  %853 = vmatprep.subr.bf16.mxu0 0
  %854 = vmatpush2.bf16.msra.mxu0 0
  %855 = vmatprep.subr.bf16.mxu0 0
  %856 = vmatpush2.bf16.msra.mxu0 0
  %857 = vmatprep.subr.bf16.mxu0 0
  %858 = vmatpush2.bf16.msra.mxu0 0
  %859 = vmatprep.subr.bf16.mxu0 0
  %860 = vmatpush2.bf16.msra.mxu0 0
  %861 = vmatprep.mubr.bf16.mxu0 0
  %862 = vmatmul.mubr.bf16.gmra.mxu0 %v827
  %v863 = vpop.f32.mrf.mxu0
  %v864 = vadd.f32 %v813, %v863
  %v865 = vpop.f32.mrf.mxu0
  %v866 = vpop.f32.mrf.mxu0
  %v867 = vadd.f32 %v813, %v866
  %v868 = vpop.f32.mrf.mxu0
  %869 = vdwg.mxu0
  %v870 = vmul.f32 %v864, %v864
  %v871 = vmul.f32 %v867, %v867
  %v872 = vmul.f32 %v864, %v870
  %v873 = vmul.f32 %v867, %v871
  %v874 = vmul.f32 %v872, 0.044715
  %v875 = vmul.f32 %v873, 0.044715
  %v876 = vadd.f32 %v864, %v874
  %v877 = vadd.f32 %v867, %v875
  %v878 = vmul.f32 %v876, 0.7978846
  %v879 = vmul.f32 %v877, 0.7978846
  %v880 = vtanh.pop %v878
  %v881 = vtanh.pop %v879
  %v882 = vadd.f32 %v880, 1.0
  %v883 = vadd.f32 %v881, 1.0
  %v884 = vmul.f32 %v882, 0.5
  %v885 = vmul.f32 %v883, 0.5
  %v886 = vmul.f32 %v864, %v884
  %v887 = vmul.f32 %v867, %v885
  %v888 = vpack.c.bf16 %v887, %v886
  %v889 = vld [vmem:[%s9] sm:$0xf]
  %v890 = vld [vmem:[%s9 + $0x4] sm:$0xf]
  %v891 = vld [vmem:[%s9 + $0x8] sm:$0xf]
  %v892 = vld [vmem:[%s9 + $0xc] sm:$0xf]
  %v893 = vld [vmem:[%s9 + $0x10] sm:$0xf]
  %v894 = vld [vmem:[%s9 + $0x14] sm:$0xf]
  %v895 = vld [vmem:[%s9 + $0x18] sm:$0xf]
  %v896 = vld [vmem:[%s9 + $0x1c] sm:$0xf]
  %v897 = vld [vmem:[%s5 + $0x8] sm:$0x1]
  %v898 = vlaneseq
  %v899 = vshrl.u32 %v898, 7
  %v900 = vsub.s32 0, %v899
  %v901 = vrot.slane %v897, %v900
  %v910 = vunpack.c.l.b16 %v889
  %v911 = vunpack.c.l.b16 %v890
  %v912 = vunpack.c.l.b16 %v891
  %v913 = vunpack.c.l.b16 %v892
  %v914 = vunpack.c.l.b16 %v893
  %v915 = vunpack.c.l.b16 %v894
  %v916 = vunpack.c.l.b16 %v895
  %v917 = vunpack.c.l.b16 %v896
  %v918 = vpack.c.b16 %v911, %v910
  %v919 = vpack.c.b16 %v913, %v912
  %v920 = vpack.c.b16 %v915, %v914
  %v921 = vpack.c.b16 %v917, %v916
  %vm926 = vcmask 523264
  %v928 = vsel %vm926, %v888, 0
  %930 = vmatprep.subr.bf16.mxu0 0
  %931 = vmatpush1.bf16.msra.mxu0 0
  %932 = vmatprep.subr.bf16.mxu0 0
  %933 = vmatpush1.bf16.msra.mxu0 0
  %934 = vmatprep.subr.bf16.mxu0 0
  %935 = vmatpush1.bf16.msra.mxu0 0
  %936 = vmatprep.subr.bf16.mxu0 0
  %937 = vmatpush1.bf16.msra.mxu0 0
  %938 = vmatprep.subr.bf16.mxu0 0
  %939 = vmatpush1.bf16.msra.mxu0 %v921
  %940 = vmatprep.subr.bf16.mxu0 0
  %941 = vmatpush1.bf16.msra.mxu0 %v920
  %942 = vmatprep.subr.bf16.mxu0 0
  %943 = vmatpush1.bf16.msra.mxu0 %v919
  %944 = vmatprep.subr.bf16.mxu0 0
  %945 = vmatpush1.bf16.msra.mxu0 %v918
  %946 = vmatprep.subr.bf16.mxu0 0
  %947 = vmatpush2.bf16.msra.mxu0 0
  %948 = vmatprep.subr.bf16.mxu0 0
  %949 = vmatpush2.bf16.msra.mxu0 0
  %950 = vmatprep.subr.bf16.mxu0 0
  %951 = vmatpush2.bf16.msra.mxu0 0
  %952 = vmatprep.subr.bf16.mxu0 0
  %953 = vmatpush2.bf16.msra.mxu0 0
  %954 = vmatprep.subr.bf16.mxu0 0
  %955 = vmatpush2.bf16.msra.mxu0 0
  %956 = vmatprep.subr.bf16.mxu0 0
  %957 = vmatpush2.bf16.msra.mxu0 0
  %958 = vmatprep.subr.bf16.mxu0 0
  %959 = vmatpush2.bf16.msra.mxu0 0
  %960 = vmatprep.subr.bf16.mxu0 0
  %961 = vmatpush2.bf16.msra.mxu0 0
  %962 = vmatprep.mubr.bf16.mxu0 0
  %963 = vmatmul.mubr.bf16.gmra.mxu0 %v928
  %v964 = vpop.f32.mrf.mxu0
  %v965 = vadd.f32 %v901, %v964
  %v966 = vpop.f32.mrf.mxu0
  %v967 = vpop.f32.mrf.mxu0
  %v968 = vadd.f32 %v901, %v967
  %v969 = vpop.f32.mrf.mxu0
  %970 = vdwg.mxu0
  %v971 = vadd.f32 %v965, %v802
  %v972 = vadd.f32 %v968, %v803
  %v973 = vld [vmem:[%s5 + $0x9] sm:$0x1]
  %v974 = vld [vmem:[%s5 + $0xa] sm:$0x1]
  %v975 = vsel %vm79, %v971, 0.0
  %976 = vadd.xlane.f32.xlu0 %v975
  %v977 = vpop.xlane.xlu0 %976
  %v978 = vsel %vm79, %v972, 0.0
  %979 = vadd.xlane.f32.xlu0 %v978
  %v980 = vpop.xlane.xlu0 %979
  %v981 = vmul.f32 %v977, %v86
  %v982 = vmul.f32 %v980, %v86
  %v983 = vsub.f32 %v971, %v981
  %v984 = vsub.f32 %v972, %v982
  %v985 = vmul.f32 %v983, %v983
  %v986 = vmul.f32 %v984, %v984
  %v987 = vsel %vm79, %v985, 0.0
  %988 = vadd.xlane.f32.xlu0 %v987
  %v989 = vpop.xlane.xlu0 %988
  %v990 = vsel %vm79, %v986, 0.0
  %991 = vadd.xlane.f32.xlu0 %v990
  %v992 = vpop.xlane.xlu0 %991
  %v993 = vmul.f32 %v989, %v86
  %v994 = vmul.f32 %v992, %v86
  %v995 = vadd.f32 %v993, 1e-12
  %v996 = vadd.f32 %v994, 1e-12
  %v997 = vrsqrt.pop %v995
  %v998 = vrsqrt.pop %v996
  %v999 = vmul.f32 %v983, %v997
  %v1000 = vmul.f32 %v984, %v998
  %v1001 = vlaneseq
  %v1002 = vshrl.u32 %v1001, 7
  %v1003 = vsub.s32 0, %v1002
  %v1004 = vrot.slane %v973, %v1003
  %v1005 = vmul.f32 %v999, %v1004
  %v1006 = vmul.f32 %v1000, %v1004
  %v1007 = vlaneseq
  %v1008 = vshrl.u32 %v1007, 7
  %v1009 = vsub.s32 0, %v1008
  %v1010 = vrot.slane %v974, %v1009
  %v1011 = vadd.f32 %v1005, %v1010
  %v1012 = vadd.f32 %v1006, %v1010
  %v1013 = vpack.c.bf16 %v1012, %v1011
  %s1014 = scalar_lea.vmem %s6, 16
  %v1015 = vld [vmem:[%s1014] sm:$0xf]
  %v1016 = vld [vmem:[%s1014 + $0x4] sm:$0xf]
  %v1017 = vld [vmem:[%s1014 + $0x8] sm:$0xf]
  %v1018 = vld [vmem:[%s1014 + $0xc] sm:$0xf]
  %v1019 = vld [vmem:[%s5 + $0xb] sm:$0x1]
  %v1020 = vlaneseq
  %v1021 = vshrl.u32 %v1020, 7
  %v1022 = vsub.s32 0, %v1021
  %v1023 = vrot.slane %v1019, %v1022
  %v1028 = vunpack.c.l.b16 %v1015
  %v1029 = vunpack.c.l.b16 %v1016
  %v1030 = vunpack.c.l.b16 %v1017
  %v1031 = vunpack.c.l.b16 %v1018
  %v1032 = vpack.c.b16 %v1029, %v1028
  %v1033 = vpack.c.b16 %v1031, %v1030
  %v1037 = vsel %vm79, %v1013, 0
  %1039 = vmatprep.subr.bf16.mxu0 0
  %1040 = vmatpush1.bf16.msra.mxu0 0
  %1041 = vmatprep.subr.bf16.mxu0 0
  %1042 = vmatpush1.bf16.msra.mxu0 0
  %1043 = vmatprep.subr.bf16.mxu0 0
  %1044 = vmatpush1.bf16.msra.mxu0 0
  %1045 = vmatprep.subr.bf16.mxu0 0
  %1046 = vmatpush1.bf16.msra.mxu0 0
  %1047 = vmatprep.subr.bf16.mxu0 0
  %1048 = vmatpush1.bf16.msra.mxu0 0
  %1049 = vmatprep.subr.bf16.mxu0 0
  %1050 = vmatpush1.bf16.msra.mxu0 0
  %1051 = vmatprep.subr.bf16.mxu0 0
  %1052 = vmatpush1.bf16.msra.mxu0 %v1033
  %1053 = vmatprep.subr.bf16.mxu0 0
  %1054 = vmatpush1.bf16.msra.mxu0 %v1032
  %1055 = vmatprep.subr.bf16.mxu0 0
  %1056 = vmatpush2.bf16.msra.mxu0 0
  %1057 = vmatprep.subr.bf16.mxu0 0
  %1058 = vmatpush2.bf16.msra.mxu0 0
  %1059 = vmatprep.subr.bf16.mxu0 0
  %1060 = vmatpush2.bf16.msra.mxu0 0
  %1061 = vmatprep.subr.bf16.mxu0 0
  %1062 = vmatpush2.bf16.msra.mxu0 0
  %1063 = vmatprep.subr.bf16.mxu0 0
  %1064 = vmatpush2.bf16.msra.mxu0 0
  %1065 = vmatprep.subr.bf16.mxu0 0
  %1066 = vmatpush2.bf16.msra.mxu0 0
  %1067 = vmatprep.subr.bf16.mxu0 0
  %1068 = vmatpush2.bf16.msra.mxu0 0
  %1069 = vmatprep.subr.bf16.mxu0 0
  %1070 = vmatpush2.bf16.msra.mxu0 0
  %1071 = vmatprep.mubr.bf16.mxu0 0
  %1072 = vmatmul.mubr.bf16.gmra.mxu0 %v1037
  %v1073 = vpop.f32.mrf.mxu0
  %v1074 = vadd.f32 %v1023, %v1073
  %v1075 = vpop.f32.mrf.mxu0
  %v1076 = vpop.f32.mrf.mxu0
  %v1077 = vadd.f32 %v1023, %v1076
  %v1078 = vpop.f32.mrf.mxu0
  %1079 = vdwg.mxu0
  %1082 = vrot.lane.b32.xlu0 %v1074, 80
  %v1083 = vpop.permute.xlu0 %1082
  %1084 = vrot.lane.b32.xlu0 %v1077, 80
  %v1085 = vpop.permute.xlu0 %1084
  %v1088 = vpack.c.bf16 %v1074, %v1074
  %v1089 = vpack.c.bf16 %v1077, %v1077
  %v1090 = vpack.c.bf16 %v1083, %v1083
  %v1091 = vpack.c.bf16 %v1085, %v1085
  %1093 = vrot.lane.b32.xlu0 %v1088, 112
  %v1094 = vpop.permute.xlu0 %1093
  %v1096 = vsel %vm250, %v1088, 0
  %v1099 = vsel %vm250, %v1094, 0
  %1101 = vmatprep.subr.bf16.mxu0 0
  %1102 = vmatpush1.bf16.xpose.msra.mxu0 0
  %1103 = vmatprep.subr.bf16.mxu0 0
  %1104 = vmatpush1.bf16.xpose.msra.mxu0 0
  %1105 = vmatprep.subr.bf16.mxu0 0
  %1106 = vmatpush1.bf16.xpose.msra.mxu0 0
  %1107 = vmatprep.subr.bf16.mxu0 0
  %1108 = vmatpush1.bf16.xpose.msra.mxu0 0
  %1109 = vmatprep.subr.bf16.mxu0 0
  %1110 = vmatpush1.bf16.xpose.msra.mxu0 0
  %1111 = vmatprep.subr.bf16.mxu0 0
  %1112 = vmatpush1.bf16.xpose.msra.mxu0 0
  %1113 = vmatprep.subr.bf16.mxu0 0
  %1114 = vmatpush1.bf16.xpose.msra.mxu0 0
  %1115 = vmatprep.subr.bf16.mxu0 0
  %1116 = vmatpush1.bf16.xpose.msra.mxu0 %v1099
  %1117 = vmatprep.subr.bf16.mxu0 0
  %1118 = vmatpush2.bf16.xpose.msra.mxu0 0
  %1119 = vmatprep.subr.bf16.mxu0 0
  %1120 = vmatpush2.bf16.xpose.msra.mxu0 0
  %1121 = vmatprep.subr.bf16.mxu0 0
  %1122 = vmatpush2.bf16.xpose.msra.mxu0 0
  %1123 = vmatprep.subr.bf16.mxu0 0
  %1124 = vmatpush2.bf16.xpose.msra.mxu0 0
  %1125 = vmatprep.subr.bf16.mxu0 0
  %1126 = vmatpush2.bf16.xpose.msra.mxu0 0
  %1127 = vmatprep.subr.bf16.mxu0 0
  %1128 = vmatpush2.bf16.xpose.msra.mxu0 0
  %1129 = vmatprep.subr.bf16.mxu0 0
  %1130 = vmatpush2.bf16.xpose.msra.mxu0 0
  %1131 = vmatprep.subr.bf16.mxu0 0
  %1132 = vmatpush2.bf16.xpose.msra.mxu0 0
  %1133 = vmatprep.mubr.bf16.mxu0 0
  %1134 = vmatmul.mubr.bf16.gmra.mxu0 %v1096
  %v1135 = vpop.f32.mrf.mxu0
  %v1136 = vadd.f32 %v230, %v1135
  %v1137 = vpop.f32.mrf.mxu0
  %v1138 = vpop.f32.mrf.mxu0
  %v1139 = vpop.f32.mrf.mxu0
  %1140 = vdwg.mxu0
  %1142 = vrot.lane.b32.xlu0 %v1089, 112
  %v1143 = vpop.permute.xlu0 %1142
  %v1145 = vsel %vm250, %v1089, 0
  %v1148 = vsel %vm250, %v1143, 0
  %1150 = vmatprep.subr.bf16.mxu0 0
  %1151 = vmatpush1.bf16.xpose.msra.mxu0 0
  %1152 = vmatprep.subr.bf16.mxu0 0
  %1153 = vmatpush1.bf16.xpose.msra.mxu0 0
  %1154 = vmatprep.subr.bf16.mxu0 0
  %1155 = vmatpush1.bf16.xpose.msra.mxu0 0
  %1156 = vmatprep.subr.bf16.mxu0 0
  %1157 = vmatpush1.bf16.xpose.msra.mxu0 0
  %1158 = vmatprep.subr.bf16.mxu0 0
  %1159 = vmatpush1.bf16.xpose.msra.mxu0 0
  %1160 = vmatprep.subr.bf16.mxu0 0
  %1161 = vmatpush1.bf16.xpose.msra.mxu0 0
  %1162 = vmatprep.subr.bf16.mxu0 0
  %1163 = vmatpush1.bf16.xpose.msra.mxu0 0
  %1164 = vmatprep.subr.bf16.mxu0 0
  %1165 = vmatpush1.bf16.xpose.msra.mxu0 %v1148
  %1166 = vmatprep.subr.bf16.mxu0 0
  %1167 = vmatpush2.bf16.xpose.msra.mxu0 0
  %1168 = vmatprep.subr.bf16.mxu0 0
  %1169 = vmatpush2.bf16.xpose.msra.mxu0 0
  %1170 = vmatprep.subr.bf16.mxu0 0
  %1171 = vmatpush2.bf16.xpose.msra.mxu0 0
  %1172 = vmatprep.subr.bf16.mxu0 0
  %1173 = vmatpush2.bf16.xpose.msra.mxu0 0
  %1174 = vmatprep.subr.bf16.mxu0 0
  %1175 = vmatpush2.bf16.xpose.msra.mxu0 0
  %1176 = vmatprep.subr.bf16.mxu0 0
  %1177 = vmatpush2.bf16.xpose.msra.mxu0 0
  %1178 = vmatprep.subr.bf16.mxu0 0
  %1179 = vmatpush2.bf16.xpose.msra.mxu0 0
  %1180 = vmatprep.subr.bf16.mxu0 0
  %1181 = vmatpush2.bf16.xpose.msra.mxu0 0
  %1182 = vmatprep.mubr.bf16.mxu0 0
  %1183 = vmatmul.mubr.bf16.gmra.mxu0 %v1145
  %v1184 = vpop.f32.mrf.mxu0
  %v1185 = vadd.f32 %v234, %v1184
  %v1186 = vpop.f32.mrf.mxu0
  %v1187 = vpop.f32.mrf.mxu0
  %v1188 = vpop.f32.mrf.mxu0
  %1189 = vdwg.mxu0
  %1191 = vrot.lane.b32.xlu0 %v1090, 112
  %v1192 = vpop.permute.xlu0 %1191
  %v1194 = vsel %vm250, %v1090, 0
  %v1197 = vsel %vm250, %v1192, 0
  %1199 = vmatprep.subr.bf16.mxu0 0
  %1200 = vmatpush1.bf16.xpose.msra.mxu0 0
  %1201 = vmatprep.subr.bf16.mxu0 0
  %1202 = vmatpush1.bf16.xpose.msra.mxu0 0
  %1203 = vmatprep.subr.bf16.mxu0 0
  %1204 = vmatpush1.bf16.xpose.msra.mxu0 0
  %1205 = vmatprep.subr.bf16.mxu0 0
  %1206 = vmatpush1.bf16.xpose.msra.mxu0 0
  %1207 = vmatprep.subr.bf16.mxu0 0
  %1208 = vmatpush1.bf16.xpose.msra.mxu0 0
  %1209 = vmatprep.subr.bf16.mxu0 0
  %1210 = vmatpush1.bf16.xpose.msra.mxu0 0
  %1211 = vmatprep.subr.bf16.mxu0 0
  %1212 = vmatpush1.bf16.xpose.msra.mxu0 0
  %1213 = vmatprep.subr.bf16.mxu0 0
  %1214 = vmatpush1.bf16.xpose.msra.mxu0 %v1197
  %1215 = vmatprep.subr.bf16.mxu0 0
  %1216 = vmatpush2.bf16.xpose.msra.mxu0 0
  %1217 = vmatprep.subr.bf16.mxu0 0
  %1218 = vmatpush2.bf16.xpose.msra.mxu0 0
  %1219 = vmatprep.subr.bf16.mxu0 0
  %1220 = vmatpush2.bf16.xpose.msra.mxu0 0
  %1221 = vmatprep.subr.bf16.mxu0 0
  %1222 = vmatpush2.bf16.xpose.msra.mxu0 0
  %1223 = vmatprep.subr.bf16.mxu0 0
  %1224 = vmatpush2.bf16.xpose.msra.mxu0 0
  %1225 = vmatprep.subr.bf16.mxu0 0
  %1226 = vmatpush2.bf16.xpose.msra.mxu0 0
  %1227 = vmatprep.subr.bf16.mxu0 0
  %1228 = vmatpush2.bf16.xpose.msra.mxu0 0
  %1229 = vmatprep.subr.bf16.mxu0 0
  %1230 = vmatpush2.bf16.xpose.msra.mxu0 0
  %1231 = vmatprep.mubr.bf16.mxu0 0
  %1232 = vmatmul.mubr.bf16.gmra.mxu0 %v1194
  %v1233 = vpop.f32.mrf.mxu0
  %v1234 = vadd.f32 %v238, %v1233
  %v1235 = vpop.f32.mrf.mxu0
  %v1236 = vpop.f32.mrf.mxu0
  %v1237 = vpop.f32.mrf.mxu0
  %1238 = vdwg.mxu0
  %1240 = vrot.lane.b32.xlu0 %v1091, 112
  %v1241 = vpop.permute.xlu0 %1240
  %v1243 = vsel %vm250, %v1091, 0
  %v1246 = vsel %vm250, %v1241, 0
  %1248 = vmatprep.subr.bf16.mxu0 0
  %1249 = vmatpush1.bf16.xpose.msra.mxu0 0
  %1250 = vmatprep.subr.bf16.mxu0 0
  %1251 = vmatpush1.bf16.xpose.msra.mxu0 0
  %1252 = vmatprep.subr.bf16.mxu0 0
  %1253 = vmatpush1.bf16.xpose.msra.mxu0 0
  %1254 = vmatprep.subr.bf16.mxu0 0
  %1255 = vmatpush1.bf16.xpose.msra.mxu0 0
  %1256 = vmatprep.subr.bf16.mxu0 0
  %1257 = vmatpush1.bf16.xpose.msra.mxu0 0
  %1258 = vmatprep.subr.bf16.mxu0 0
  %1259 = vmatpush1.bf16.xpose.msra.mxu0 0
  %1260 = vmatprep.subr.bf16.mxu0 0
  %1261 = vmatpush1.bf16.xpose.msra.mxu0 0
  %1262 = vmatprep.subr.bf16.mxu0 0
  %1263 = vmatpush1.bf16.xpose.msra.mxu0 %v1246
  %1264 = vmatprep.subr.bf16.mxu0 0
  %1265 = vmatpush2.bf16.xpose.msra.mxu0 0
  %1266 = vmatprep.subr.bf16.mxu0 0
  %1267 = vmatpush2.bf16.xpose.msra.mxu0 0
  %1268 = vmatprep.subr.bf16.mxu0 0
  %1269 = vmatpush2.bf16.xpose.msra.mxu0 0
  %1270 = vmatprep.subr.bf16.mxu0 0
  %1271 = vmatpush2.bf16.xpose.msra.mxu0 0
  %1272 = vmatprep.subr.bf16.mxu0 0
  %1273 = vmatpush2.bf16.xpose.msra.mxu0 0
  %1274 = vmatprep.subr.bf16.mxu0 0
  %1275 = vmatpush2.bf16.xpose.msra.mxu0 0
  %1276 = vmatprep.subr.bf16.mxu0 0
  %1277 = vmatpush2.bf16.xpose.msra.mxu0 0
  %1278 = vmatprep.subr.bf16.mxu0 0
  %1279 = vmatpush2.bf16.xpose.msra.mxu0 0
  %1280 = vmatprep.mubr.bf16.mxu0 0
  %1281 = vmatmul.mubr.bf16.gmra.mxu0 %v1243
  %v1282 = vpop.f32.mrf.mxu0
  %v1283 = vadd.f32 %v242, %v1282
  %v1284 = vpop.f32.mrf.mxu0
  %v1285 = vpop.f32.mrf.mxu0
  %v1286 = vpop.f32.mrf.mxu0
  %1287 = vdwg.mxu0
  %v1288 = vsel %vm444, %v1136, -inf
  %1289 = vmax.xlane.f32.xlu0 %v1288
  %v1290 = vpop.xlane.xlu0 %1289
  %v1291 = vsel %vm444, %v1185, -inf
  %1292 = vmax.xlane.f32.xlu0 %v1291
  %v1293 = vpop.xlane.xlu0 %1292
  %v1294 = vsel %vm444, %v1234, -inf
  %1295 = vmax.xlane.f32.xlu0 %v1294
  %v1296 = vpop.xlane.xlu0 %1295
  %v1297 = vsel %vm444, %v1283, -inf
  %1298 = vmax.xlane.f32.xlu0 %v1297
  %v1299 = vpop.xlane.xlu0 %1298
  %v1300 = vsub.f32 %v1136, %v1290
  %v1301 = vsub.f32 %v1185, %v1293
  %v1302 = vsub.f32 %v1234, %v1296
  %v1303 = vsub.f32 %v1283, %v1299
  %v1304 = vmul.f32 %v1300, 1.442695
  %v1305 = vpow.pop %v1304
  %v1306 = vmul.f32 %v1301, 1.442695
  %v1307 = vpow.pop %v1306
  %v1308 = vmul.f32 %v1302, 1.442695
  %v1309 = vpow.pop %v1308
  %v1310 = vmul.f32 %v1303, 1.442695
  %v1311 = vpow.pop %v1310
  %v1312 = vsel %vm444, %v1305, 0.0
  %1313 = vadd.xlane.f32.xlu0 %v1312
  %v1314 = vpop.xlane.xlu0 %1313
  %v1315 = vsel %vm444, %v1307, 0.0
  %1316 = vadd.xlane.f32.xlu0 %v1315
  %v1317 = vpop.xlane.xlu0 %1316
  %v1318 = vsel %vm444, %v1309, 0.0
  %1319 = vadd.xlane.f32.xlu0 %v1318
  %v1320 = vpop.xlane.xlu0 %1319
  %v1321 = vsel %vm444, %v1311, 0.0
  %1322 = vadd.xlane.f32.xlu0 %v1321
  %v1323 = vpop.xlane.xlu0 %1322
  %v1324 = vrcp.pop %v1314
  %v1325 = vrcp.pop %v1317
  %v1326 = vrcp.pop %v1320
  %v1327 = vrcp.pop %v1323
  %v1328 = vmul.f32 %v1305, %v1324
  %v1329 = vmul.f32 %v1307, %v1325
  %v1330 = vmul.f32 %v1309, %v1326
  %v1331 = vmul.f32 %v1311, %v1327
  %v1332 = vpack.c.bf16 %v1328, %v1328
  %v1333 = vpack.c.bf16 %v1329, %v1329
  %v1334 = vpack.c.bf16 %v1330, %v1330
  %v1335 = vpack.c.bf16 %v1331, %v1331
  %1336 = vrot.lane.b32.xlu0 %v1088, 96
  %v1337 = vpop.permute.xlu0 %1336
  %v1339 = vsel %vm444, %v1332, 0
  %v1342 = vsel %vm498, %v1337, 0
  %1344 = vmatprep.subr.bf16.mxu0 0
  %1345 = vmatpush1.bf16.msra.mxu0 0
  %1346 = vmatprep.subr.bf16.mxu0 0
  %1347 = vmatpush1.bf16.msra.mxu0 0
  %1348 = vmatprep.subr.bf16.mxu0 0
  %1349 = vmatpush1.bf16.msra.mxu0 0
  %1350 = vmatprep.subr.bf16.mxu0 0
  %1351 = vmatpush1.bf16.msra.mxu0 0
  %1352 = vmatprep.subr.bf16.mxu0 0
  %1353 = vmatpush1.bf16.msra.mxu0 0
  %1354 = vmatprep.subr.bf16.mxu0 0
  %1355 = vmatpush1.bf16.msra.mxu0 0
  %1356 = vmatprep.subr.bf16.mxu0 0
  %1357 = vmatpush1.bf16.msra.mxu0 0
  %1358 = vmatprep.subr.bf16.mxu0 0
  %1359 = vmatpush1.bf16.msra.mxu0 %v1342
  %1360 = vmatprep.subr.bf16.mxu0 0
  %1361 = vmatpush2.bf16.msra.mxu0 0
  %1362 = vmatprep.subr.bf16.mxu0 0
  %1363 = vmatpush2.bf16.msra.mxu0 0
  %1364 = vmatprep.subr.bf16.mxu0 0
  %1365 = vmatpush2.bf16.msra.mxu0 0
  %1366 = vmatprep.subr.bf16.mxu0 0
  %1367 = vmatpush2.bf16.msra.mxu0 0
  %1368 = vmatprep.subr.bf16.mxu0 0
  %1369 = vmatpush2.bf16.msra.mxu0 0
  %1370 = vmatprep.subr.bf16.mxu0 0
  %1371 = vmatpush2.bf16.msra.mxu0 0
  %1372 = vmatprep.subr.bf16.mxu0 0
  %1373 = vmatpush2.bf16.msra.mxu0 0
  %1374 = vmatprep.subr.bf16.mxu0 0
  %1375 = vmatpush2.bf16.msra.mxu0 0
  %1376 = vmatprep.mubr.bf16.mxu0 0
  %1377 = vmatmul.mubr.bf16.gmra.mxu0 %v1339
  %v1378 = vpop.f32.mrf.mxu0
  %v1379 = vadd.f32 0.0, %v1378
  %v1380 = vpop.f32.mrf.mxu0
  %v1381 = vpop.f32.mrf.mxu0
  %v1382 = vpop.f32.mrf.mxu0
  %1383 = vdwg.mxu0
  %1384 = vrot.lane.b32.xlu0 %v1089, 96
  %v1385 = vpop.permute.xlu0 %1384
  %v1387 = vsel %vm444, %v1333, 0
  %v1390 = vsel %vm498, %v1385, 0
  %1392 = vmatprep.subr.bf16.mxu0 0
  %1393 = vmatpush1.bf16.msra.mxu0 0
  %1394 = vmatprep.subr.bf16.mxu0 0
  %1395 = vmatpush1.bf16.msra.mxu0 0
  %1396 = vmatprep.subr.bf16.mxu0 0
  %1397 = vmatpush1.bf16.msra.mxu0 0
  %1398 = vmatprep.subr.bf16.mxu0 0
  %1399 = vmatpush1.bf16.msra.mxu0 0
  %1400 = vmatprep.subr.bf16.mxu0 0
  %1401 = vmatpush1.bf16.msra.mxu0 0
  %1402 = vmatprep.subr.bf16.mxu0 0
  %1403 = vmatpush1.bf16.msra.mxu0 0
  %1404 = vmatprep.subr.bf16.mxu0 0
  %1405 = vmatpush1.bf16.msra.mxu0 0
  %1406 = vmatprep.subr.bf16.mxu0 0
  %1407 = vmatpush1.bf16.msra.mxu0 %v1390
  %1408 = vmatprep.subr.bf16.mxu0 0
  %1409 = vmatpush2.bf16.msra.mxu0 0
  %1410 = vmatprep.subr.bf16.mxu0 0
  %1411 = vmatpush2.bf16.msra.mxu0 0
  %1412 = vmatprep.subr.bf16.mxu0 0
  %1413 = vmatpush2.bf16.msra.mxu0 0
  %1414 = vmatprep.subr.bf16.mxu0 0
  %1415 = vmatpush2.bf16.msra.mxu0 0
  %1416 = vmatprep.subr.bf16.mxu0 0
  %1417 = vmatpush2.bf16.msra.mxu0 0
  %1418 = vmatprep.subr.bf16.mxu0 0
  %1419 = vmatpush2.bf16.msra.mxu0 0
  %1420 = vmatprep.subr.bf16.mxu0 0
  %1421 = vmatpush2.bf16.msra.mxu0 0
  %1422 = vmatprep.subr.bf16.mxu0 0
  %1423 = vmatpush2.bf16.msra.mxu0 0
  %1424 = vmatprep.mubr.bf16.mxu0 0
  %1425 = vmatmul.mubr.bf16.gmra.mxu0 %v1387
  %v1426 = vpop.f32.mrf.mxu0
  %v1427 = vadd.f32 0.0, %v1426
  %v1428 = vpop.f32.mrf.mxu0
  %v1429 = vpop.f32.mrf.mxu0
  %v1430 = vpop.f32.mrf.mxu0
  %1431 = vdwg.mxu0
  %1432 = vrot.lane.b32.xlu0 %v1090, 96
  %v1433 = vpop.permute.xlu0 %1432
  %v1435 = vsel %vm444, %v1334, 0
  %v1438 = vsel %vm498, %v1433, 0
  %1440 = vmatprep.subr.bf16.mxu0 0
  %1441 = vmatpush1.bf16.msra.mxu0 0
  %1442 = vmatprep.subr.bf16.mxu0 0
  %1443 = vmatpush1.bf16.msra.mxu0 0
  %1444 = vmatprep.subr.bf16.mxu0 0
  %1445 = vmatpush1.bf16.msra.mxu0 0
  %1446 = vmatprep.subr.bf16.mxu0 0
  %1447 = vmatpush1.bf16.msra.mxu0 0
  %1448 = vmatprep.subr.bf16.mxu0 0
  %1449 = vmatpush1.bf16.msra.mxu0 0
  %1450 = vmatprep.subr.bf16.mxu0 0
  %1451 = vmatpush1.bf16.msra.mxu0 0
  %1452 = vmatprep.subr.bf16.mxu0 0
  %1453 = vmatpush1.bf16.msra.mxu0 0
  %1454 = vmatprep.subr.bf16.mxu0 0
  %1455 = vmatpush1.bf16.msra.mxu0 %v1438
  %1456 = vmatprep.subr.bf16.mxu0 0
  %1457 = vmatpush2.bf16.msra.mxu0 0
  %1458 = vmatprep.subr.bf16.mxu0 0
  %1459 = vmatpush2.bf16.msra.mxu0 0
  %1460 = vmatprep.subr.bf16.mxu0 0
  %1461 = vmatpush2.bf16.msra.mxu0 0
  %1462 = vmatprep.subr.bf16.mxu0 0
  %1463 = vmatpush2.bf16.msra.mxu0 0
  %1464 = vmatprep.subr.bf16.mxu0 0
  %1465 = vmatpush2.bf16.msra.mxu0 0
  %1466 = vmatprep.subr.bf16.mxu0 0
  %1467 = vmatpush2.bf16.msra.mxu0 0
  %1468 = vmatprep.subr.bf16.mxu0 0
  %1469 = vmatpush2.bf16.msra.mxu0 0
  %1470 = vmatprep.subr.bf16.mxu0 0
  %1471 = vmatpush2.bf16.msra.mxu0 0
  %1472 = vmatprep.mubr.bf16.mxu0 0
  %1473 = vmatmul.mubr.bf16.gmra.mxu0 %v1435
  %v1474 = vpop.f32.mrf.mxu0
  %v1475 = vadd.f32 0.0, %v1474
  %v1476 = vpop.f32.mrf.mxu0
  %v1477 = vpop.f32.mrf.mxu0
  %v1478 = vpop.f32.mrf.mxu0
  %1479 = vdwg.mxu0
  %1480 = vrot.lane.b32.xlu0 %v1091, 96
  %v1481 = vpop.permute.xlu0 %1480
  %v1483 = vsel %vm444, %v1335, 0
  %v1486 = vsel %vm498, %v1481, 0
  %1488 = vmatprep.subr.bf16.mxu0 0
  %1489 = vmatpush1.bf16.msra.mxu0 0
  %1490 = vmatprep.subr.bf16.mxu0 0
  %1491 = vmatpush1.bf16.msra.mxu0 0
  %1492 = vmatprep.subr.bf16.mxu0 0
  %1493 = vmatpush1.bf16.msra.mxu0 0
  %1494 = vmatprep.subr.bf16.mxu0 0
  %1495 = vmatpush1.bf16.msra.mxu0 0
  %1496 = vmatprep.subr.bf16.mxu0 0
  %1497 = vmatpush1.bf16.msra.mxu0 0
  %1498 = vmatprep.subr.bf16.mxu0 0
  %1499 = vmatpush1.bf16.msra.mxu0 0
  %1500 = vmatprep.subr.bf16.mxu0 0
  %1501 = vmatpush1.bf16.msra.mxu0 0
  %1502 = vmatprep.subr.bf16.mxu0 0
  %1503 = vmatpush1.bf16.msra.mxu0 %v1486
  %1504 = vmatprep.subr.bf16.mxu0 0
  %1505 = vmatpush2.bf16.msra.mxu0 0
  %1506 = vmatprep.subr.bf16.mxu0 0
  %1507 = vmatpush2.bf16.msra.mxu0 0
  %1508 = vmatprep.subr.bf16.mxu0 0
  %1509 = vmatpush2.bf16.msra.mxu0 0
  %1510 = vmatprep.subr.bf16.mxu0 0
  %1511 = vmatpush2.bf16.msra.mxu0 0
  %1512 = vmatprep.subr.bf16.mxu0 0
  %1513 = vmatpush2.bf16.msra.mxu0 0
  %1514 = vmatprep.subr.bf16.mxu0 0
  %1515 = vmatpush2.bf16.msra.mxu0 0
  %1516 = vmatprep.subr.bf16.mxu0 0
  %1517 = vmatpush2.bf16.msra.mxu0 0
  %1518 = vmatprep.subr.bf16.mxu0 0
  %1519 = vmatpush2.bf16.msra.mxu0 0
  %1520 = vmatprep.mubr.bf16.mxu0 0
  %1521 = vmatmul.mubr.bf16.gmra.mxu0 %v1483
  %v1522 = vpop.f32.mrf.mxu0
  %v1523 = vadd.f32 0.0, %v1522
  %v1524 = vpop.f32.mrf.mxu0
  %v1525 = vpop.f32.mrf.mxu0
  %v1526 = vpop.f32.mrf.mxu0
  %1527 = vdwg.mxu0
  %1530 = vrot.lane.b32.xlu0 %v1475, 16
  %v1531 = vpop.permute.xlu0 %1530
  %1532 = vrot.lane.b32.xlu0 %v1523, 16
  %v1533 = vpop.permute.xlu0 %1532
  %v1536 = vsel %vm250, %v1379, %v1531
  %v1537 = vsel %vm250, %v1427, %v1533
  %v1538 = vpack.c.bf16 %v1537, %v1536
  %s1539 = scalar_lea.vmem %s7, 16
  %v1540 = vld [vmem:[%s1539] sm:$0xf]
  %v1541 = vld [vmem:[%s1539 + $0x4] sm:$0xf]
  %v1542 = vld [vmem:[%s1539 + $0x8] sm:$0xf]
  %v1543 = vld [vmem:[%s1539 + $0xc] sm:$0xf]
  %v1544 = vld [vmem:[%s5 + $0xc] sm:$0x1]
  %v1545 = vlaneseq
  %v1546 = vshrl.u32 %v1545, 7
  %v1547 = vsub.s32 0, %v1546
  %v1548 = vrot.slane %v1544, %v1547
  %v1553 = vunpack.c.l.b16 %v1540
  %v1554 = vunpack.c.l.b16 %v1541
  %v1555 = vunpack.c.l.b16 %v1542
  %v1556 = vunpack.c.l.b16 %v1543
  %v1557 = vpack.c.b16 %v1554, %v1553
  %v1558 = vpack.c.b16 %v1556, %v1555
  %v1562 = vsel %vm79, %v1538, 0
  %1564 = vmatprep.subr.bf16.mxu0 0
  %1565 = vmatpush1.bf16.msra.mxu0 0
  %1566 = vmatprep.subr.bf16.mxu0 0
  %1567 = vmatpush1.bf16.msra.mxu0 0
  %1568 = vmatprep.subr.bf16.mxu0 0
  %1569 = vmatpush1.bf16.msra.mxu0 0
  %1570 = vmatprep.subr.bf16.mxu0 0
  %1571 = vmatpush1.bf16.msra.mxu0 0
  %1572 = vmatprep.subr.bf16.mxu0 0
  %1573 = vmatpush1.bf16.msra.mxu0 0
  %1574 = vmatprep.subr.bf16.mxu0 0
  %1575 = vmatpush1.bf16.msra.mxu0 0
  %1576 = vmatprep.subr.bf16.mxu0 0
  %1577 = vmatpush1.bf16.msra.mxu0 %v1558
  %1578 = vmatprep.subr.bf16.mxu0 0
  %1579 = vmatpush1.bf16.msra.mxu0 %v1557
  %1580 = vmatprep.subr.bf16.mxu0 0
  %1581 = vmatpush2.bf16.msra.mxu0 0
  %1582 = vmatprep.subr.bf16.mxu0 0
  %1583 = vmatpush2.bf16.msra.mxu0 0
  %1584 = vmatprep.subr.bf16.mxu0 0
  %1585 = vmatpush2.bf16.msra.mxu0 0
  %1586 = vmatprep.subr.bf16.mxu0 0
  %1587 = vmatpush2.bf16.msra.mxu0 0
  %1588 = vmatprep.subr.bf16.mxu0 0
  %1589 = vmatpush2.bf16.msra.mxu0 0
  %1590 = vmatprep.subr.bf16.mxu0 0
  %1591 = vmatpush2.bf16.msra.mxu0 0
  %1592 = vmatprep.subr.bf16.mxu0 0
  %1593 = vmatpush2.bf16.msra.mxu0 0
  %1594 = vmatprep.subr.bf16.mxu0 0
  %1595 = vmatpush2.bf16.msra.mxu0 0
  %1596 = vmatprep.mubr.bf16.mxu0 0
  %1597 = vmatmul.mubr.bf16.gmra.mxu0 %v1562
  %v1598 = vpop.f32.mrf.mxu0
  %v1599 = vadd.f32 %v1548, %v1598
  %v1600 = vpop.f32.mrf.mxu0
  %v1601 = vpop.f32.mrf.mxu0
  %v1602 = vadd.f32 %v1548, %v1601
  %v1603 = vpop.f32.mrf.mxu0
  %1604 = vdwg.mxu0
  %v1605 = vadd.f32 %v1599, %v1011
  %v1606 = vadd.f32 %v1602, %v1012
  %v1607 = vld [vmem:[%s5 + $0xd] sm:$0x1]
  %v1608 = vld [vmem:[%s5 + $0xe] sm:$0x1]
  %v1609 = vsel %vm79, %v1605, 0.0
  %1610 = vadd.xlane.f32.xlu0 %v1609
  %v1611 = vpop.xlane.xlu0 %1610
  %v1612 = vsel %vm79, %v1606, 0.0
  %1613 = vadd.xlane.f32.xlu0 %v1612
  %v1614 = vpop.xlane.xlu0 %1613
  %v1615 = vmul.f32 %v1611, %v86
  %v1616 = vmul.f32 %v1614, %v86
  %v1617 = vsub.f32 %v1605, %v1615
  %v1618 = vsub.f32 %v1606, %v1616
  %v1619 = vmul.f32 %v1617, %v1617
  %v1620 = vmul.f32 %v1618, %v1618
  %v1621 = vsel %vm79, %v1619, 0.0
  %1622 = vadd.xlane.f32.xlu0 %v1621
  %v1623 = vpop.xlane.xlu0 %1622
  %v1624 = vsel %vm79, %v1620, 0.0
  %1625 = vadd.xlane.f32.xlu0 %v1624
  %v1626 = vpop.xlane.xlu0 %1625
  %v1627 = vmul.f32 %v1623, %v86
  %v1628 = vmul.f32 %v1626, %v86
  %v1629 = vadd.f32 %v1627, 1e-12
  %v1630 = vadd.f32 %v1628, 1e-12
  %v1631 = vrsqrt.pop %v1629
  %v1632 = vrsqrt.pop %v1630
  %v1633 = vmul.f32 %v1617, %v1631
  %v1634 = vmul.f32 %v1618, %v1632
  %v1635 = vlaneseq
  %v1636 = vshrl.u32 %v1635, 7
  %v1637 = vsub.s32 0, %v1636
  %v1638 = vrot.slane %v1607, %v1637
  %v1639 = vmul.f32 %v1633, %v1638
  %v1640 = vmul.f32 %v1634, %v1638
  %v1641 = vlaneseq
  %v1642 = vshrl.u32 %v1641, 7
  %v1643 = vsub.s32 0, %v1642
  %v1644 = vrot.slane %v1608, %v1643
  %v1645 = vadd.f32 %v1639, %v1644
  %v1646 = vadd.f32 %v1640, %v1644
  %v1647 = vpack.c.bf16 %v1646, %v1645
  %s1648 = scalar_lea.vmem %s8, 16
  %v1649 = vld [vmem:[%s1648] sm:$0xf]
  %v1650 = vld [vmem:[%s1648 + $0x4] sm:$0xf]
  %v1651 = vld [vmem:[%s1648 + $0x8] sm:$0xf]
  %v1652 = vld [vmem:[%s1648 + $0xc] sm:$0xf]
  %v1653 = vld [vmem:[%s5 + $0xf] sm:$0x1]
  %v1654 = vlaneseq
  %v1655 = vshrl.u32 %v1654, 7
  %v1656 = vsub.s32 0, %v1655
  %v1657 = vrot.slane %v1653, %v1656
  %v1662 = vunpack.c.l.b16 %v1649
  %v1663 = vunpack.c.l.b16 %v1650
  %v1664 = vunpack.c.l.b16 %v1651
  %v1665 = vunpack.c.l.b16 %v1652
  %v1666 = vpack.c.b16 %v1663, %v1662
  %v1667 = vpack.c.b16 %v1665, %v1664
  %v1671 = vsel %vm79, %v1647, 0
  %1673 = vmatprep.subr.bf16.mxu0 0
  %1674 = vmatpush1.bf16.msra.mxu0 0
  %1675 = vmatprep.subr.bf16.mxu0 0
  %1676 = vmatpush1.bf16.msra.mxu0 0
  %1677 = vmatprep.subr.bf16.mxu0 0
  %1678 = vmatpush1.bf16.msra.mxu0 0
  %1679 = vmatprep.subr.bf16.mxu0 0
  %1680 = vmatpush1.bf16.msra.mxu0 0
  %1681 = vmatprep.subr.bf16.mxu0 0
  %1682 = vmatpush1.bf16.msra.mxu0 0
  %1683 = vmatprep.subr.bf16.mxu0 0
  %1684 = vmatpush1.bf16.msra.mxu0 0
  %1685 = vmatprep.subr.bf16.mxu0 0
  %1686 = vmatpush1.bf16.msra.mxu0 %v1667
  %1687 = vmatprep.subr.bf16.mxu0 0
  %1688 = vmatpush1.bf16.msra.mxu0 %v1666
  %1689 = vmatprep.subr.bf16.mxu0 0
  %1690 = vmatpush2.bf16.msra.mxu0 0
  %1691 = vmatprep.subr.bf16.mxu0 0
  %1692 = vmatpush2.bf16.msra.mxu0 0
  %1693 = vmatprep.subr.bf16.mxu0 0
  %1694 = vmatpush2.bf16.msra.mxu0 0
  %1695 = vmatprep.subr.bf16.mxu0 0
  %1696 = vmatpush2.bf16.msra.mxu0 0
  %1697 = vmatprep.subr.bf16.mxu0 0
  %1698 = vmatpush2.bf16.msra.mxu0 0
  %1699 = vmatprep.subr.bf16.mxu0 0
  %1700 = vmatpush2.bf16.msra.mxu0 0
  %1701 = vmatprep.subr.bf16.mxu0 0
  %1702 = vmatpush2.bf16.msra.mxu0 0
  %1703 = vmatprep.subr.bf16.mxu0 0
  %1704 = vmatpush2.bf16.msra.mxu0 0
  %1705 = vmatprep.mubr.bf16.mxu0 0
  %1706 = vmatmul.mubr.bf16.gmra.mxu0 %v1671
  %v1707 = vpop.f32.mrf.mxu0
  %v1708 = vadd.f32 %v1657, %v1707
  %v1709 = vpop.f32.mrf.mxu0
  %v1710 = vpop.f32.mrf.mxu0
  %v1711 = vadd.f32 %v1657, %v1710
  %v1712 = vpop.f32.mrf.mxu0
  %1713 = vdwg.mxu0
  %v1714 = vmul.f32 %v1708, %v1708
  %v1715 = vmul.f32 %v1711, %v1711
  %v1716 = vmul.f32 %v1708, %v1714
  %v1717 = vmul.f32 %v1711, %v1715
  %v1718 = vmul.f32 %v1716, 0.044715
  %v1719 = vmul.f32 %v1717, 0.044715
  %v1720 = vadd.f32 %v1708, %v1718
  %v1721 = vadd.f32 %v1711, %v1719
  %v1722 = vmul.f32 %v1720, 0.7978846
  %v1723 = vmul.f32 %v1721, 0.7978846
  %v1724 = vtanh.pop %v1722
  %v1725 = vtanh.pop %v1723
  %v1726 = vadd.f32 %v1724, 1.0
  %v1727 = vadd.f32 %v1725, 1.0
  %v1728 = vmul.f32 %v1726, 0.5
  %v1729 = vmul.f32 %v1727, 0.5
  %v1730 = vmul.f32 %v1708, %v1728
  %v1731 = vmul.f32 %v1711, %v1729
  %v1732 = vpack.c.bf16 %v1731, %v1730
  %s1733 = scalar_lea.vmem %s9, 32
  %v1734 = vld [vmem:[%s1733] sm:$0xf]
  %v1735 = vld [vmem:[%s1733 + $0x4] sm:$0xf]
  %v1736 = vld [vmem:[%s1733 + $0x8] sm:$0xf]
  %v1737 = vld [vmem:[%s1733 + $0xc] sm:$0xf]
  %v1738 = vld [vmem:[%s1733 + $0x10] sm:$0xf]
  %v1739 = vld [vmem:[%s1733 + $0x14] sm:$0xf]
  %v1740 = vld [vmem:[%s1733 + $0x18] sm:$0xf]
  %v1741 = vld [vmem:[%s1733 + $0x1c] sm:$0xf]
  %v1742 = vld [vmem:[%s5 + $0x10] sm:$0x1]
  %v1743 = vlaneseq
  %v1744 = vshrl.u32 %v1743, 7
  %v1745 = vsub.s32 0, %v1744
  %v1746 = vrot.slane %v1742, %v1745
  %v1755 = vunpack.c.l.b16 %v1734
  %v1756 = vunpack.c.l.b16 %v1735
  %v1757 = vunpack.c.l.b16 %v1736
  %v1758 = vunpack.c.l.b16 %v1737
  %v1759 = vunpack.c.l.b16 %v1738
  %v1760 = vunpack.c.l.b16 %v1739
  %v1761 = vunpack.c.l.b16 %v1740
  %v1762 = vunpack.c.l.b16 %v1741
  %v1763 = vpack.c.b16 %v1756, %v1755
  %v1764 = vpack.c.b16 %v1758, %v1757
  %v1765 = vpack.c.b16 %v1760, %v1759
  %v1766 = vpack.c.b16 %v1762, %v1761
  %v1772 = vsel %vm926, %v1732, 0
  %1774 = vmatprep.subr.bf16.mxu0 0
  %1775 = vmatpush1.bf16.msra.mxu0 0
  %1776 = vmatprep.subr.bf16.mxu0 0
  %1777 = vmatpush1.bf16.msra.mxu0 0
  %1778 = vmatprep.subr.bf16.mxu0 0
  %1779 = vmatpush1.bf16.msra.mxu0 0
  %1780 = vmatprep.subr.bf16.mxu0 0
  %1781 = vmatpush1.bf16.msra.mxu0 0
  %1782 = vmatprep.subr.bf16.mxu0 0
  %1783 = vmatpush1.bf16.msra.mxu0 %v1766
  %1784 = vmatprep.subr.bf16.mxu0 0
  %1785 = vmatpush1.bf16.msra.mxu0 %v1765
  %1786 = vmatprep.subr.bf16.mxu0 0
  %1787 = vmatpush1.bf16.msra.mxu0 %v1764
  %1788 = vmatprep.subr.bf16.mxu0 0
  %1789 = vmatpush1.bf16.msra.mxu0 %v1763
  %1790 = vmatprep.subr.bf16.mxu0 0
  %1791 = vmatpush2.bf16.msra.mxu0 0
  %1792 = vmatprep.subr.bf16.mxu0 0
  %1793 = vmatpush2.bf16.msra.mxu0 0
  %1794 = vmatprep.subr.bf16.mxu0 0
  %1795 = vmatpush2.bf16.msra.mxu0 0
  %1796 = vmatprep.subr.bf16.mxu0 0
  %1797 = vmatpush2.bf16.msra.mxu0 0
  %1798 = vmatprep.subr.bf16.mxu0 0
  %1799 = vmatpush2.bf16.msra.mxu0 0
  %1800 = vmatprep.subr.bf16.mxu0 0
  %1801 = vmatpush2.bf16.msra.mxu0 0
  %1802 = vmatprep.subr.bf16.mxu0 0
  %1803 = vmatpush2.bf16.msra.mxu0 0
  %1804 = vmatprep.subr.bf16.mxu0 0
  %1805 = vmatpush2.bf16.msra.mxu0 0
  %1806 = vmatprep.mubr.bf16.mxu0 0
  %1807 = vmatmul.mubr.bf16.gmra.mxu0 %v1772
  %v1808 = vpop.f32.mrf.mxu0
  %v1809 = vadd.f32 %v1746, %v1808
  %v1810 = vpop.f32.mrf.mxu0
  %v1811 = vpop.f32.mrf.mxu0
  %v1812 = vadd.f32 %v1746, %v1811
  %v1813 = vpop.f32.mrf.mxu0
  %1814 = vdwg.mxu0
  %v1815 = vadd.f32 %v1809, %v1645
  %v1816 = vadd.f32 %v1812, %v1646
  %v1817 = vld [vmem:[%s5 + $0x11] sm:$0x1]
  %v1818 = vld [vmem:[%s5 + $0x12] sm:$0x1]
  %v1819 = vsel %vm79, %v1815, 0.0
  %1820 = vadd.xlane.f32.xlu0 %v1819
  %v1821 = vpop.xlane.xlu0 %1820
  %v1822 = vsel %vm79, %v1816, 0.0
  %1823 = vadd.xlane.f32.xlu0 %v1822
  %v1824 = vpop.xlane.xlu0 %1823
  %v1825 = vmul.f32 %v1821, %v86
  %v1826 = vmul.f32 %v1824, %v86
  %v1827 = vsub.f32 %v1815, %v1825
  %v1828 = vsub.f32 %v1816, %v1826
  %v1829 = vmul.f32 %v1827, %v1827
  %v1830 = vmul.f32 %v1828, %v1828
  %v1831 = vsel %vm79, %v1829, 0.0
  %1832 = vadd.xlane.f32.xlu0 %v1831
  %v1833 = vpop.xlane.xlu0 %1832
  %v1834 = vsel %vm79, %v1830, 0.0
  %1835 = vadd.xlane.f32.xlu0 %v1834
  %v1836 = vpop.xlane.xlu0 %1835
  %v1837 = vmul.f32 %v1833, %v86
  %v1838 = vmul.f32 %v1836, %v86
  %v1839 = vadd.f32 %v1837, 1e-12
  %v1840 = vadd.f32 %v1838, 1e-12
  %v1841 = vrsqrt.pop %v1839
  %v1842 = vrsqrt.pop %v1840
  %v1843 = vmul.f32 %v1827, %v1841
  %v1844 = vmul.f32 %v1828, %v1842
  %v1845 = vlaneseq
  %v1846 = vshrl.u32 %v1845, 7
  %v1847 = vsub.s32 0, %v1846
  %v1848 = vrot.slane %v1817, %v1847
  %v1849 = vmul.f32 %v1843, %v1848
  %v1850 = vmul.f32 %v1844, %v1848
  %v1851 = vlaneseq
  %v1852 = vshrl.u32 %v1851, 7
  %v1853 = vsub.s32 0, %v1852
  %v1854 = vrot.slane %v1818, %v1853
  %v1855 = vadd.f32 %v1849, %v1854
  %v1856 = vadd.f32 %v1850, %v1854
  %v1857 = vpack.c.bf16 %v1855, %v1855
  %v1858 = vpack.c.bf16 %v1856, %v1856
  %v1859 = vld [vmem:[%s5 + $0x2] sm:$0x1]
  %v1860 = vlaneseq
  %v1861 = vshrl.u32 %v1860, 7
  %v1862 = vsub.s32 0, %v1861
  %v1863 = vrot.slane %v1859, %v1862
  %v1866 = vunpack.c.l.b16 %v1857
  %v1867 = vunpack.c.l.b16 %v1858
  %v1868 = vrot.slane %v1867, 7
  %vm1869 = vcmask 1041409
  %v1870 = vsel %vm1869, %v1868, %v1866
  %v1871 = vpack.c.b16 %v1870, %v1870
  %v1876 = vunpack.c.l.b16 %v54
  %v1877 = vunpack.c.l.b16 %v55
  %v1878 = vunpack.c.l.b16 %v56
  %v1879 = vunpack.c.l.b16 %v57
  %v1880 = vpack.c.b16 %v1877, %v1876
  %v1881 = vpack.c.b16 %v1879, %v1878
  %v1885 = vsel %vm79, %v1871, 0
  %1887 = vmatprep.subr.bf16.mxu0 0
  %1888 = vmatpush1.bf16.msra.mxu0 0
  %1889 = vmatprep.subr.bf16.mxu0 0
  %1890 = vmatpush1.bf16.msra.mxu0 0
  %1891 = vmatprep.subr.bf16.mxu0 0
  %1892 = vmatpush1.bf16.msra.mxu0 0
  %1893 = vmatprep.subr.bf16.mxu0 0
  %1894 = vmatpush1.bf16.msra.mxu0 0
  %1895 = vmatprep.subr.bf16.mxu0 0
  %1896 = vmatpush1.bf16.msra.mxu0 0
  %1897 = vmatprep.subr.bf16.mxu0 0
  %1898 = vmatpush1.bf16.msra.mxu0 0
  %1899 = vmatprep.subr.bf16.mxu0 0
  %1900 = vmatpush1.bf16.msra.mxu0 %v1881
  %1901 = vmatprep.subr.bf16.mxu0 0
  %1902 = vmatpush1.bf16.msra.mxu0 %v1880
  %1903 = vmatprep.subr.bf16.mxu0 0
  %1904 = vmatpush2.bf16.msra.mxu0 0
  %1905 = vmatprep.subr.bf16.mxu0 0
  %1906 = vmatpush2.bf16.msra.mxu0 0
  %1907 = vmatprep.subr.bf16.mxu0 0
  %1908 = vmatpush2.bf16.msra.mxu0 0
  %1909 = vmatprep.subr.bf16.mxu0 0
  %1910 = vmatpush2.bf16.msra.mxu0 0
  %1911 = vmatprep.subr.bf16.mxu0 0
  %1912 = vmatpush2.bf16.msra.mxu0 0
  %1913 = vmatprep.subr.bf16.mxu0 0
  %1914 = vmatpush2.bf16.msra.mxu0 0
  %1915 = vmatprep.subr.bf16.mxu0 0
  %1916 = vmatpush2.bf16.msra.mxu0 0
  %1917 = vmatprep.subr.bf16.mxu0 0
  %1918 = vmatpush2.bf16.msra.mxu0 0
  %1919 = vmatprep.mubr.bf16.mxu0 0
  %1920 = vmatmul.mubr.bf16.gmra.mxu0 %v1885
  %v1921 = vpop.f32.mrf.mxu0
  %v1922 = vadd.f32 %v1863, %v1921
  %v1923 = vpop.f32.mrf.mxu0
  %v1924 = vpop.f32.mrf.mxu0
  %v1925 = vpop.f32.mrf.mxu0
  %1926 = vdwg.mxu0
  %v1927 = vtanh.pop %v1922
  %v1928 = vsel %vm79, %v1855, -inf
  %v1929 = vrot.slane %v1928, 4
  %v1930 = vmax.f32 %v1928, %v1929
  %v1931 = vrot.slane %v1930, 2
  %v1932 = vmax.f32 %v1930, %v1931
  %v1933 = vrot.slane %v1932, 1
  %v1934 = vmax.f32 %v1932, %v1933
  %v1935 = vsel %vm79, %v1856, -inf
  %v1936 = vrot.slane %v1935, 4
  %v1937 = vmax.f32 %v1935, %v1936
  %v1938 = vrot.slane %v1937, 2
  %v1939 = vmax.f32 %v1937, %v1938
  %v1940 = vrot.slane %v1939, 1
  %v1941 = vmax.f32 %v1939, %v1940
  %v1942 = vld [vmem:[%s5 + $0x26] sm:$0x1]
  %v1943 = vlaneseq
  %v1944 = vshrl.u32 %v1943, 7
  %v1945 = vsub.s32 0, %v1944
  %v1946 = vrot.slane %v1942, %v1945
  %v1947 = vmul.f32 %v1934, %v1946
  %v1948 = vmul.f32 %v1941, %v1946
  %v1951 = vrot.slane %v1948, 7
  %v1952 = vsel %vm1869, %v1951, %v1947
  %vm1954 = vcmask 254976
  %v1955 = vsel %vm1954, %v1952, 0.0
  %1956 = vadd.xlane.f32.xlu0 %v1955
  %v1957 = vpop.xlane.xlu0 %1956
  %v1958 = vld [vmem:[%s5 + $0x27] sm:$0x1]
  %v1959 = vlaneseq
  %v1960 = vshrl.u32 %v1959, 7
  %v1961 = vsub.s32 0, %v1960
  %v1962 = vrot.slane %v1958, %v1961
  %v1963 = vmul.f32 %v1927, %v1962
  %v1964 = vsel %vm1954, %v1963, 0.0
  %1965 = vadd.xlane.f32.xlu0 %v1964
  %v1966 = vpop.xlane.xlu0 %1965
  %v1967 = vadd.f32 %v1957, %v1966
  %v1968 = vld [vmem:[%s5 + $0x28] sm:$0x1]
  %v1969 = vlaneseq
  %v1970 = vshrl.u32 %v1969, 7
  %v1971 = vsub.s32 0, %v1970
  %v1972 = vrot.slane %v1968, %v1971
  %v1973 = vadd.f32 %v1967, %v1972
  %v1974 = vxor.u32 %v1973, 2147483648
  %v1975 = vmul.f32 %v1974, 1.442695
  %v1976 = vpow.pop %v1975
  %v1977 = vadd.f32 %v1976, 1.0
  %v1978 = vrcp.pop %v1977
  %v1979 = vmul.f32 1.0, %v1978
  %v1980 = vld [vmem:[%s2] sm:$0xff]
  %v1981 = vld [vmem:[%s2 + $0x8] sm:$0xff]
  %v1982 = vld [vmem:[%s2 + $0x10] sm:$0xff]
  %v1983 = vld [vmem:[%s2 + $0x18] sm:$0xff]
  %v1984 = vld [vmem:[%s2 + $0x20] sm:$0xff]
  %v1985 = vld [vmem:[%s2 + $0x28] sm:$0xff]
  %v1986 = vld [vmem:[%s2 + $0x30] sm:$0xff]
  %v1987 = vld [vmem:[%s2 + $0x38] sm:$0xff]
  %v1988 = vld [vmem:[%s2 + $0x40] sm:$0xff]
  %v1989 = vld [vmem:[%s2 + $0x48] sm:$0xff]
  %v1990 = vld [vmem:[%s3] sm:$0xff]
  %v1991 = vld [vmem:[%s3 + $0x8] sm:$0x3]
  %v1992 = vld [vmem:[%s5 + $0x13] sm:$0x1]
  %v1993 = vld [vmem:[%s5 + $0x14] sm:$0x1]
  %v1994 = vsel %vm79, %v1980, 0.0
  %1995 = vadd.xlane.f32.xlu0 %v1994
  %v1996 = vpop.xlane.xlu0 %1995
  %v1997 = vsel %vm79, %v1981, 0.0
  %1998 = vadd.xlane.f32.xlu0 %v1997
  %v1999 = vpop.xlane.xlu0 %1998
  %v2000 = vsel %vm79, %v1982, 0.0
  %2001 = vadd.xlane.f32.xlu0 %v2000
  %v2002 = vpop.xlane.xlu0 %2001
  %v2003 = vsel %vm79, %v1983, 0.0
  %2004 = vadd.xlane.f32.xlu0 %v2003
  %v2005 = vpop.xlane.xlu0 %2004
  %v2006 = vsel %vm79, %v1984, 0.0
  %2007 = vadd.xlane.f32.xlu0 %v2006
  %v2008 = vpop.xlane.xlu0 %2007
  %v2009 = vsel %vm79, %v1985, 0.0
  %2010 = vadd.xlane.f32.xlu0 %v2009
  %v2011 = vpop.xlane.xlu0 %2010
  %v2012 = vsel %vm79, %v1986, 0.0
  %2013 = vadd.xlane.f32.xlu0 %v2012
  %v2014 = vpop.xlane.xlu0 %2013
  %v2015 = vsel %vm79, %v1987, 0.0
  %2016 = vadd.xlane.f32.xlu0 %v2015
  %v2017 = vpop.xlane.xlu0 %2016
  %v2018 = vsel %vm79, %v1988, 0.0
  %2019 = vadd.xlane.f32.xlu0 %v2018
  %v2020 = vpop.xlane.xlu0 %2019
  %v2021 = vsel %vm79, %v1989, 0.0
  %2022 = vadd.xlane.f32.xlu0 %v2021
  %v2023 = vpop.xlane.xlu0 %2022
  %v2024 = vmul.f32 %v1996, %v86
  %v2025 = vmul.f32 %v1999, %v86
  %v2026 = vmul.f32 %v2002, %v86
  %v2027 = vmul.f32 %v2005, %v86
  %v2028 = vmul.f32 %v2008, %v86
  %v2029 = vmul.f32 %v2011, %v86
  %v2030 = vmul.f32 %v2014, %v86
  %v2031 = vmul.f32 %v2017, %v86
  %v2032 = vmul.f32 %v2020, %v86
  %v2033 = vmul.f32 %v2023, %v86
  %v2034 = vsub.f32 %v1980, %v2024
  %v2035 = vsub.f32 %v1981, %v2025
  %v2036 = vsub.f32 %v1982, %v2026
  %v2037 = vsub.f32 %v1983, %v2027
  %v2038 = vsub.f32 %v1984, %v2028
  %v2039 = vsub.f32 %v1985, %v2029
  %v2040 = vsub.f32 %v1986, %v2030
  %v2041 = vsub.f32 %v1987, %v2031
  %v2042 = vsub.f32 %v1988, %v2032
  %v2043 = vsub.f32 %v1989, %v2033
  %v2044 = vmul.f32 %v2034, %v2034
  %v2045 = vmul.f32 %v2035, %v2035
  %v2046 = vmul.f32 %v2036, %v2036
  %v2047 = vmul.f32 %v2037, %v2037
  %v2048 = vmul.f32 %v2038, %v2038
  %v2049 = vmul.f32 %v2039, %v2039
  %v2050 = vmul.f32 %v2040, %v2040
  %v2051 = vmul.f32 %v2041, %v2041
  %v2052 = vmul.f32 %v2042, %v2042
  %v2053 = vmul.f32 %v2043, %v2043
  %v2054 = vsel %vm79, %v2044, 0.0
  %2055 = vadd.xlane.f32.xlu0 %v2054
  %v2056 = vpop.xlane.xlu0 %2055
  %v2057 = vsel %vm79, %v2045, 0.0
  %2058 = vadd.xlane.f32.xlu0 %v2057
  %v2059 = vpop.xlane.xlu0 %2058
  %v2060 = vsel %vm79, %v2046, 0.0
  %2061 = vadd.xlane.f32.xlu0 %v2060
  %v2062 = vpop.xlane.xlu0 %2061
  %v2063 = vsel %vm79, %v2047, 0.0
  %2064 = vadd.xlane.f32.xlu0 %v2063
  %v2065 = vpop.xlane.xlu0 %2064
  %v2066 = vsel %vm79, %v2048, 0.0
  %2067 = vadd.xlane.f32.xlu0 %v2066
  %v2068 = vpop.xlane.xlu0 %2067
  %v2069 = vsel %vm79, %v2049, 0.0
  %2070 = vadd.xlane.f32.xlu0 %v2069
  %v2071 = vpop.xlane.xlu0 %2070
  %v2072 = vsel %vm79, %v2050, 0.0
  %2073 = vadd.xlane.f32.xlu0 %v2072
  %v2074 = vpop.xlane.xlu0 %2073
  %v2075 = vsel %vm79, %v2051, 0.0
  %2076 = vadd.xlane.f32.xlu0 %v2075
  %v2077 = vpop.xlane.xlu0 %2076
  %v2078 = vsel %vm79, %v2052, 0.0
  %2079 = vadd.xlane.f32.xlu0 %v2078
  %v2080 = vpop.xlane.xlu0 %2079
  %v2081 = vsel %vm79, %v2053, 0.0
  %2082 = vadd.xlane.f32.xlu0 %v2081
  %v2083 = vpop.xlane.xlu0 %2082
  %v2084 = vmul.f32 %v2056, %v86
  %v2085 = vmul.f32 %v2059, %v86
  %v2086 = vmul.f32 %v2062, %v86
  %v2087 = vmul.f32 %v2065, %v86
  %v2088 = vmul.f32 %v2068, %v86
  %v2089 = vmul.f32 %v2071, %v86
  %v2090 = vmul.f32 %v2074, %v86
  %v2091 = vmul.f32 %v2077, %v86
  %v2092 = vmul.f32 %v2080, %v86
  %v2093 = vmul.f32 %v2083, %v86
  %v2094 = vadd.f32 %v2084, 1e-12
  %v2095 = vadd.f32 %v2085, 1e-12
  %v2096 = vadd.f32 %v2086, 1e-12
  %v2097 = vadd.f32 %v2087, 1e-12
  %v2098 = vadd.f32 %v2088, 1e-12
  %v2099 = vadd.f32 %v2089, 1e-12
  %v2100 = vadd.f32 %v2090, 1e-12
  %v2101 = vadd.f32 %v2091, 1e-12
  %v2102 = vadd.f32 %v2092, 1e-12
  %v2103 = vadd.f32 %v2093, 1e-12
  %v2104 = vrsqrt.pop %v2094
  %v2105 = vrsqrt.pop %v2095
  %v2106 = vrsqrt.pop %v2096
  %v2107 = vrsqrt.pop %v2097
  %v2108 = vrsqrt.pop %v2098
  %v2109 = vrsqrt.pop %v2099
  %v2110 = vrsqrt.pop %v2100
  %v2111 = vrsqrt.pop %v2101
  %v2112 = vrsqrt.pop %v2102
  %v2113 = vrsqrt.pop %v2103
  %v2114 = vmul.f32 %v2034, %v2104
  %v2115 = vmul.f32 %v2035, %v2105
  %v2116 = vmul.f32 %v2036, %v2106
  %v2117 = vmul.f32 %v2037, %v2107
  %v2118 = vmul.f32 %v2038, %v2108
  %v2119 = vmul.f32 %v2039, %v2109
  %v2120 = vmul.f32 %v2040, %v2110
  %v2121 = vmul.f32 %v2041, %v2111
  %v2122 = vmul.f32 %v2042, %v2112
  %v2123 = vmul.f32 %v2043, %v2113
  %v2124 = vlaneseq
  %v2125 = vshrl.u32 %v2124, 7
  %v2126 = vsub.s32 0, %v2125
  %v2127 = vrot.slane %v1992, %v2126
  %v2128 = vmul.f32 %v2114, %v2127
  %v2129 = vmul.f32 %v2115, %v2127
  %v2130 = vmul.f32 %v2116, %v2127
  %v2131 = vmul.f32 %v2117, %v2127
  %v2132 = vmul.f32 %v2118, %v2127
  %v2133 = vmul.f32 %v2119, %v2127
  %v2134 = vmul.f32 %v2120, %v2127
  %v2135 = vmul.f32 %v2121, %v2127
  %v2136 = vmul.f32 %v2122, %v2127
  %v2137 = vmul.f32 %v2123, %v2127
  %v2138 = vlaneseq
  %v2139 = vshrl.u32 %v2138, 7
  %v2140 = vsub.s32 0, %v2139
  %v2141 = vrot.slane %v1993, %v2140
  %v2142 = vadd.f32 %v2128, %v2141
  %v2143 = vadd.f32 %v2129, %v2141
  %v2144 = vadd.f32 %v2130, %v2141
  %v2145 = vadd.f32 %v2131, %v2141
  %v2146 = vadd.f32 %v2132, %v2141
  %v2147 = vadd.f32 %v2133, %v2141
  %v2148 = vadd.f32 %v2134, %v2141
  %v2149 = vadd.f32 %v2135, %v2141
  %v2150 = vadd.f32 %v2136, %v2141
  %v2151 = vadd.f32 %v2137, %v2141
  %v2154 = vrot.slane %v1990, 6
  %v2155 = vrot.slane %v1991, 6
  %v2156 = vsel %vm122, %v2154, %v2155
  %v2158 = vsel %vm122, %v1991, %v2154
  %v2160 = vcombine.high %v1990, %v1990
  %v2162 = vunpack.c.l.s4 1966171168
  %v2163 = vunpack.c.0.s8 %v2162
  %v2164 = vlaneseq
  %v2165 = vshrl.u32 %v2164, 7
  %v2166 = vsub.s32 %v2163, %v2165
  %v2167 = vrot.slane %v1990, %v2166
  %v2169 = vunpack.c.l.s4 1966171168
  %v2170 = vunpack.c.0.s8 %v2169
  %v2171 = vlaneseq
  %v2172 = vshrl.u32 %v2171, 7
  %v2173 = vsub.s32 %v2170, %v2172
  %v2174 = vrot.slane %v2160, %v2173
  %v2175 = vcombine.high %v2167, %v2167
  %v2176 = vcombine.high %v2174, %v2174
  %v2178 = vunpack.c.l.s4 1966171168
  %v2179 = vunpack.c.0.s8 %v2178
  %v2180 = vlaneseq
  %v2181 = vshrl.u32 %v2180, 7
  %v2182 = vsub.s32 %v2179, %v2181
  %v2183 = vrot.slane %v2167, %v2182
  %v2185 = vunpack.c.l.s4 1966171168
  %v2186 = vunpack.c.0.s8 %v2185
  %v2187 = vlaneseq
  %v2188 = vshrl.u32 %v2187, 7
  %v2189 = vsub.s32 %v2186, %v2188
  %v2190 = vrot.slane %v2174, %v2189
  %v2192 = vunpack.c.l.s4 1966171168
  %v2193 = vunpack.c.0.s8 %v2192
  %v2194 = vlaneseq
  %v2195 = vshrl.u32 %v2194, 7
  %v2196 = vsub.s32 %v2193, %v2195
  %v2197 = vrot.slane %v2175, %v2196
  %v2199 = vunpack.c.l.s4 1966171168
  %v2200 = vunpack.c.0.s8 %v2199
  %v2201 = vlaneseq
  %v2202 = vshrl.u32 %v2201, 7
  %v2203 = vsub.s32 %v2200, %v2202
  %v2204 = vrot.slane %v2176, %v2203
  %v2205 = vcombine.high %v2183, %v2183
  %v2206 = vcombine.high %v2190, %v2190
  %v2207 = vcombine.high %v2197, %v2197
  %v2208 = vcombine.high %v2204, %v2204
  %v2209 = vcombine.high %v2158, %v2158
  %v2211 = vunpack.c.l.s4 1966171168
  %v2212 = vunpack.c.0.s8 %v2211
  %v2213 = vlaneseq
  %v2214 = vshrl.u32 %v2213, 7
  %v2215 = vsub.s32 %v2212, %v2214
  %v2216 = vrot.slane %v2158, %v2215
  %v2218 = vunpack.c.l.s4 1966171168
  %v2219 = vunpack.c.0.s8 %v2218
  %v2220 = vlaneseq
  %v2221 = vshrl.u32 %v2220, 7
  %v2222 = vsub.s32 %v2219, %v2221
  %v2223 = vrot.slane %v2209, %v2222
  %v2224 = vcombine.high %v2216, %v2216
  %v2225 = vcombine.high %v2223, %v2223
  %v2227 = vunpack.c.l.s4 1966171168
  %v2228 = vunpack.c.0.s8 %v2227
  %v2229 = vlaneseq
  %v2230 = vshrl.u32 %v2229, 7
  %v2231 = vsub.s32 %v2228, %v2230
  %v2232 = vrot.slane %v2216, %v2231
  %v2234 = vunpack.c.l.s4 1966171168
  %v2235 = vunpack.c.0.s8 %v2234
  %v2236 = vlaneseq
  %v2237 = vshrl.u32 %v2236, 7
  %v2238 = vsub.s32 %v2235, %v2237
  %v2239 = vrot.slane %v2223, %v2238
  %v2241 = vunpack.c.l.s4 1966171168
  %v2242 = vunpack.c.0.s8 %v2241
  %v2243 = vlaneseq
  %v2244 = vshrl.u32 %v2243, 7
  %v2245 = vsub.s32 %v2242, %v2244
  %v2246 = vrot.slane %v2224, %v2245
  %v2248 = vunpack.c.l.s4 1966171168
  %v2249 = vunpack.c.0.s8 %v2248
  %v2250 = vlaneseq
  %v2251 = vshrl.u32 %v2250, 7
  %v2252 = vsub.s32 %v2249, %v2251
  %v2253 = vrot.slane %v2225, %v2252
  %v2254 = vcombine.high %v2232, %v2232
  %v2255 = vcombine.high %v2239, %v2239
  %v2256 = vcombine.high %v2246, %v2246
  %v2257 = vcombine.high %v2253, %v2253
  %v2259 = vunpack.c.l.s4 1966171168
  %v2260 = vunpack.c.0.s8 %v2259
  %v2261 = vlaneseq
  %v2262 = vshrl.u32 %v2261, 7
  %v2263 = vsub.s32 %v2260, %v2262
  %v2264 = vrot.slane %v2156, %v2263
  %v2265 = vcombine.high %v2264, %v2264
  %v2267 = vunpack.c.l.s4 1966171168
  %v2268 = vunpack.c.0.s8 %v2267
  %v2269 = vlaneseq
  %v2270 = vshrl.u32 %v2269, 7
  %v2271 = vsub.s32 %v2268, %v2270
  %v2272 = vrot.slane %v2264, %v2271
  %v2274 = vunpack.c.l.s4 1966171168
  %v2275 = vunpack.c.0.s8 %v2274
  %v2276 = vlaneseq
  %v2277 = vshrl.u32 %v2276, 7
  %v2278 = vsub.s32 %v2275, %v2277
  %v2279 = vrot.slane %v2265, %v2278
  %v2280 = vcombine.high %v2272, %v2272
  %v2281 = vcombine.high %v2279, %v2279
  %v2282 = vpack.c.bf16 %v2143, %v2142
  %v2283 = vpack.c.bf16 %v2145, %v2144
  %v2284 = vpack.c.bf16 %v2147, %v2146
  %v2285 = vpack.c.bf16 %v2149, %v2148
  %v2286 = vpack.c.bf16 %v2151, %v2150
  %v2287 = vld [vmem:[%s10] sm:$0xf]
  %v2288 = vld [vmem:[%s10 + $0x4] sm:$0xf]
  %v2289 = vld [vmem:[%s10 + $0x8] sm:$0xf]
  %v2290 = vld [vmem:[%s10 + $0xc] sm:$0xf]
  %v2291 = vld [vmem:[%s5 + $0x16] sm:$0x1]
  %v2292 = vlaneseq
  %v2293 = vshrl.u32 %v2292, 7
  %v2294 = vsub.s32 0, %v2293
  %v2295 = vrot.slane %v2291, %v2294
  %v2300 = vunpack.c.l.b16 %v2287
  %v2301 = vunpack.c.l.b16 %v2288
  %v2302 = vunpack.c.l.b16 %v2289
  %v2303 = vunpack.c.l.b16 %v2290
  %v2304 = vpack.c.b16 %v2301, %v2300
  %v2305 = vpack.c.b16 %v2303, %v2302
  %v2309 = vsel %vm79, %v2282, 0
  %v2312 = vsel %vm79, %v2283, 0
  %v2315 = vsel %vm79, %v2284, 0
  %v2318 = vsel %vm79, %v2285, 0
  %v2321 = vsel %vm79, %v2286, 0
  %2323 = vmatprep.subr.bf16.mxu0 0
  %2324 = vmatpush1.bf16.msra.mxu0 0
  %2325 = vmatprep.subr.bf16.mxu0 0
  %2326 = vmatpush1.bf16.msra.mxu0 0
  %2327 = vmatprep.subr.bf16.mxu0 0
  %2328 = vmatpush1.bf16.msra.mxu0 0
  %2329 = vmatprep.subr.bf16.mxu0 0
  %2330 = vmatpush1.bf16.msra.mxu0 0
  %2331 = vmatprep.subr.bf16.mxu0 0
  %2332 = vmatpush1.bf16.msra.mxu0 0
  %2333 = vmatprep.subr.bf16.mxu0 0
  %2334 = vmatpush1.bf16.msra.mxu0 0
  %2335 = vmatprep.subr.bf16.mxu0 0
  %2336 = vmatpush1.bf16.msra.mxu0 %v2305
  %2337 = vmatprep.subr.bf16.mxu0 0
  %2338 = vmatpush1.bf16.msra.mxu0 %v2304
  %2339 = vmatprep.subr.bf16.mxu0 0
  %2340 = vmatpush2.bf16.msra.mxu0 0
  %2341 = vmatprep.subr.bf16.mxu0 0
  %2342 = vmatpush2.bf16.msra.mxu0 0
  %2343 = vmatprep.subr.bf16.mxu0 0
  %2344 = vmatpush2.bf16.msra.mxu0 0
  %2345 = vmatprep.subr.bf16.mxu0 0
  %2346 = vmatpush2.bf16.msra.mxu0 0
  %2347 = vmatprep.subr.bf16.mxu0 0
  %2348 = vmatpush2.bf16.msra.mxu0 0
  %2349 = vmatprep.subr.bf16.mxu0 0
  %2350 = vmatpush2.bf16.msra.mxu0 0
  %2351 = vmatprep.subr.bf16.mxu0 0
  %2352 = vmatpush2.bf16.msra.mxu0 0
  %2353 = vmatprep.subr.bf16.mxu0 0
  %2354 = vmatpush2.bf16.msra.mxu0 0
  %2355 = vmatprep.mubr.bf16.mxu0 0
  %2356 = vmatmul.mubr.bf16.gmra.mxu0 %v2309
  %v2357 = vpop.f32.mrf.mxu0
  %v2358 = vadd.f32 %v2295, %v2357
  %v2359 = vpop.f32.mrf.mxu0
  %v2360 = vpop.f32.mrf.mxu0
  %v2361 = vadd.f32 %v2295, %v2360
  %v2362 = vpop.f32.mrf.mxu0
  %2363 = vmatprep.mubr.bf16.mxu0 0
  %2364 = vmatmul.mubr.bf16.gmra.mxu0 %v2312
  %v2365 = vpop.f32.mrf.mxu0
  %v2366 = vadd.f32 %v2295, %v2365
  %v2367 = vpop.f32.mrf.mxu0
  %v2368 = vpop.f32.mrf.mxu0
  %v2369 = vadd.f32 %v2295, %v2368
  %v2370 = vpop.f32.mrf.mxu0
  %2371 = vmatprep.mubr.bf16.mxu0 0
  %2372 = vmatmul.mubr.bf16.gmra.mxu0 %v2315
  %v2373 = vpop.f32.mrf.mxu0
  %v2374 = vadd.f32 %v2295, %v2373
  %v2375 = vpop.f32.mrf.mxu0
  %v2376 = vpop.f32.mrf.mxu0
  %v2377 = vadd.f32 %v2295, %v2376
  %v2378 = vpop.f32.mrf.mxu0
  %2379 = vmatprep.mubr.bf16.mxu0 0
  %2380 = vmatmul.mubr.bf16.gmra.mxu0 %v2318
  %v2381 = vpop.f32.mrf.mxu0
  %v2382 = vadd.f32 %v2295, %v2381
  %v2383 = vpop.f32.mrf.mxu0
  %v2384 = vpop.f32.mrf.mxu0
  %v2385 = vadd.f32 %v2295, %v2384
  %v2386 = vpop.f32.mrf.mxu0
  %2387 = vmatprep.mubr.bf16.mxu0 0
  %2388 = vmatmul.mubr.bf16.gmra.mxu0 %v2321
  %v2389 = vpop.f32.mrf.mxu0
  %v2390 = vadd.f32 %v2295, %v2389
  %v2391 = vpop.f32.mrf.mxu0
  %v2392 = vpop.f32.mrf.mxu0
  %v2393 = vadd.f32 %v2295, %v2392
  %v2394 = vpop.f32.mrf.mxu0
  %2395 = vdwg.mxu0
  %2406 = vrot.lane.b32.xlu0 %v2358, 80
  %v2407 = vpop.permute.xlu0 %2406
  %2408 = vrot.lane.b32.xlu0 %v2361, 80
  %v2409 = vpop.permute.xlu0 %2408
  %2410 = vrot.lane.b32.xlu0 %v2366, 80
  %v2411 = vpop.permute.xlu0 %2410
  %2412 = vrot.lane.b32.xlu0 %v2369, 80
  %v2413 = vpop.permute.xlu0 %2412
  %2414 = vrot.lane.b32.xlu0 %v2374, 80
  %v2415 = vpop.permute.xlu0 %2414
  %2416 = vrot.lane.b32.xlu0 %v2377, 80
  %v2417 = vpop.permute.xlu0 %2416
  %2418 = vrot.lane.b32.xlu0 %v2382, 80
  %v2419 = vpop.permute.xlu0 %2418
  %2420 = vrot.lane.b32.xlu0 %v2385, 80
  %v2421 = vpop.permute.xlu0 %2420
  %2422 = vrot.lane.b32.xlu0 %v2390, 80
  %v2423 = vpop.permute.xlu0 %2422
  %2424 = vrot.lane.b32.xlu0 %v2393, 80
  %v2425 = vpop.permute.xlu0 %2424
  %v2436 = vpack.c.bf16 %v2358, %v2358
  %v2437 = vpack.c.bf16 %v2361, %v2361
  %v2438 = vpack.c.bf16 %v2366, %v2366
  %v2439 = vpack.c.bf16 %v2369, %v2369
  %v2440 = vpack.c.bf16 %v2374, %v2374
  %v2441 = vpack.c.bf16 %v2377, %v2377
  %v2442 = vpack.c.bf16 %v2382, %v2382
  %v2443 = vpack.c.bf16 %v2385, %v2385
  %v2444 = vpack.c.bf16 %v2390, %v2390
  %v2445 = vpack.c.bf16 %v2393, %v2393
  %v2446 = vpack.c.bf16 %v2407, %v2407
  %v2447 = vpack.c.bf16 %v2409, %v2409
  %v2448 = vpack.c.bf16 %v2411, %v2411
  %v2449 = vpack.c.bf16 %v2413, %v2413
  %v2450 = vpack.c.bf16 %v2415, %v2415
  %v2451 = vpack.c.bf16 %v2417, %v2417
  %v2452 = vpack.c.bf16 %v2419, %v2419
  %v2453 = vpack.c.bf16 %v2421, %v2421
  %v2454 = vpack.c.bf16 %v2423, %v2423
  %v2455 = vpack.c.bf16 %v2425, %v2425
  %v2456 = vlaneseq
  %v2457 = vshrl.u32 %v2456, 7
  %v2458 = vsub.s32 0, %v2457
  %v2459 = vrot.slane %v2183, %v2458
  %v2460 = vlaneseq
  %v2461 = vshrl.u32 %v2460, 7
  %v2462 = vsub.s32 0, %v2461
  %v2463 = vrot.slane %v2197, %v2462
  %v2464 = vlaneseq
  %v2465 = vshrl.u32 %v2464, 7
  %v2466 = vsub.s32 0, %v2465
  %v2467 = vrot.slane %v2205, %v2466
  %v2468 = vlaneseq
  %v2469 = vshrl.u32 %v2468, 7
  %v2470 = vsub.s32 0, %v2469
  %v2471 = vrot.slane %v2207, %v2470
  %v2472 = vlaneseq
  %v2473 = vshrl.u32 %v2472, 7
  %v2474 = vsub.s32 0, %v2473
  %v2475 = vrot.slane %v2190, %v2474
  %v2476 = vlaneseq
  %v2477 = vshrl.u32 %v2476, 7
  %v2478 = vsub.s32 0, %v2477
  %v2479 = vrot.slane %v2204, %v2478
  %v2480 = vlaneseq
  %v2481 = vshrl.u32 %v2480, 7
  %v2482 = vsub.s32 0, %v2481
  %v2483 = vrot.slane %v2206, %v2482
  %v2484 = vlaneseq
  %v2485 = vshrl.u32 %v2484, 7
  %v2486 = vsub.s32 0, %v2485
  %v2487 = vrot.slane %v2208, %v2486
  %v2488 = vlaneseq
  %v2489 = vshrl.u32 %v2488, 7
  %v2490 = vsub.s32 0, %v2489
  %v2491 = vrot.slane %v2232, %v2490
  %v2492 = vlaneseq
  %v2493 = vshrl.u32 %v2492, 7
  %v2494 = vsub.s32 0, %v2493
  %v2495 = vrot.slane %v2246, %v2494
  %v2496 = vlaneseq
  %v2497 = vshrl.u32 %v2496, 7
  %v2498 = vsub.s32 0, %v2497
  %v2499 = vrot.slane %v2254, %v2498
  %v2500 = vlaneseq
  %v2501 = vshrl.u32 %v2500, 7
  %v2502 = vsub.s32 0, %v2501
  %v2503 = vrot.slane %v2256, %v2502
  %v2504 = vlaneseq
  %v2505 = vshrl.u32 %v2504, 7
  %v2506 = vsub.s32 0, %v2505
  %v2507 = vrot.slane %v2239, %v2506
  %v2508 = vlaneseq
  %v2509 = vshrl.u32 %v2508, 7
  %v2510 = vsub.s32 0, %v2509
  %v2511 = vrot.slane %v2253, %v2510
  %v2512 = vlaneseq
  %v2513 = vshrl.u32 %v2512, 7
  %v2514 = vsub.s32 0, %v2513
  %v2515 = vrot.slane %v2255, %v2514
  %v2516 = vlaneseq
  %v2517 = vshrl.u32 %v2516, 7
  %v2518 = vsub.s32 0, %v2517
  %v2519 = vrot.slane %v2257, %v2518
  %v2520 = vlaneseq
  %v2521 = vshrl.u32 %v2520, 7
  %v2522 = vsub.s32 0, %v2521
  %v2523 = vrot.slane %v2272, %v2522
  %v2524 = vlaneseq
  %v2525 = vshrl.u32 %v2524, 7
  %v2526 = vsub.s32 0, %v2525
  %v2527 = vrot.slane %v2279, %v2526
  %v2528 = vlaneseq
  %v2529 = vshrl.u32 %v2528, 7
  %v2530 = vsub.s32 0, %v2529
  %v2531 = vrot.slane %v2280, %v2530
  %v2532 = vlaneseq
  %v2533 = vshrl.u32 %v2532, 7
  %v2534 = vsub.s32 0, %v2533
  %v2535 = vrot.slane %v2281, %v2534
  %2557 = vrot.lane.b32.xlu0 %v2436, 112
  %v2558 = vpop.permute.xlu0 %2557
  %v2560 = vsel %vm250, %v2436, 0
  %v2563 = vsel %vm250, %v2558, 0
  %2565 = vmatprep.subr.bf16.mxu0 0
  %2566 = vmatpush1.bf16.xpose.msra.mxu0 0
  %2567 = vmatprep.subr.bf16.mxu0 0
  %2568 = vmatpush1.bf16.xpose.msra.mxu0 0
  %2569 = vmatprep.subr.bf16.mxu0 0
  %2570 = vmatpush1.bf16.xpose.msra.mxu0 0
  %2571 = vmatprep.subr.bf16.mxu0 0
  %2572 = vmatpush1.bf16.xpose.msra.mxu0 0
  %2573 = vmatprep.subr.bf16.mxu0 0
  %2574 = vmatpush1.bf16.xpose.msra.mxu0 0
  %2575 = vmatprep.subr.bf16.mxu0 0
  %2576 = vmatpush1.bf16.xpose.msra.mxu0 0
  %2577 = vmatprep.subr.bf16.mxu0 0
  %2578 = vmatpush1.bf16.xpose.msra.mxu0 0
  %2579 = vmatprep.subr.bf16.mxu0 0
  %2580 = vmatpush1.bf16.xpose.msra.mxu0 %v2563
  %2581 = vmatprep.subr.bf16.mxu0 0
  %2582 = vmatpush2.bf16.xpose.msra.mxu0 0
  %2583 = vmatprep.subr.bf16.mxu0 0
  %2584 = vmatpush2.bf16.xpose.msra.mxu0 0
  %2585 = vmatprep.subr.bf16.mxu0 0
  %2586 = vmatpush2.bf16.xpose.msra.mxu0 0
  %2587 = vmatprep.subr.bf16.mxu0 0
  %2588 = vmatpush2.bf16.xpose.msra.mxu0 0
  %2589 = vmatprep.subr.bf16.mxu0 0
  %2590 = vmatpush2.bf16.xpose.msra.mxu0 0
  %2591 = vmatprep.subr.bf16.mxu0 0
  %2592 = vmatpush2.bf16.xpose.msra.mxu0 0
  %2593 = vmatprep.subr.bf16.mxu0 0
  %2594 = vmatpush2.bf16.xpose.msra.mxu0 0
  %2595 = vmatprep.subr.bf16.mxu0 0
  %2596 = vmatpush2.bf16.xpose.msra.mxu0 0
  %2597 = vmatprep.mubr.bf16.mxu0 0
  %2598 = vmatmul.mubr.bf16.gmra.mxu0 %v2560
  %v2599 = vpop.f32.mrf.mxu0
  %v2600 = vadd.f32 %v2459, %v2599
  %v2601 = vpop.f32.mrf.mxu0
  %v2602 = vpop.f32.mrf.mxu0
  %v2603 = vpop.f32.mrf.mxu0
  %2604 = vdwg.mxu0
  %2606 = vrot.lane.b32.xlu0 %v2437, 112
  %v2607 = vpop.permute.xlu0 %2606
  %v2609 = vsel %vm250, %v2437, 0
  %v2612 = vsel %vm250, %v2607, 0
  %2614 = vmatprep.subr.bf16.mxu0 0
  %2615 = vmatpush1.bf16.xpose.msra.mxu0 0
  %2616 = vmatprep.subr.bf16.mxu0 0
  %2617 = vmatpush1.bf16.xpose.msra.mxu0 0
  %2618 = vmatprep.subr.bf16.mxu0 0
  %2619 = vmatpush1.bf16.xpose.msra.mxu0 0
  %2620 = vmatprep.subr.bf16.mxu0 0
  %2621 = vmatpush1.bf16.xpose.msra.mxu0 0
  %2622 = vmatprep.subr.bf16.mxu0 0
  %2623 = vmatpush1.bf16.xpose.msra.mxu0 0
  %2624 = vmatprep.subr.bf16.mxu0 0
  %2625 = vmatpush1.bf16.xpose.msra.mxu0 0
  %2626 = vmatprep.subr.bf16.mxu0 0
  %2627 = vmatpush1.bf16.xpose.msra.mxu0 0
  %2628 = vmatprep.subr.bf16.mxu0 0
  %2629 = vmatpush1.bf16.xpose.msra.mxu0 %v2612
  %2630 = vmatprep.subr.bf16.mxu0 0
  %2631 = vmatpush2.bf16.xpose.msra.mxu0 0
  %2632 = vmatprep.subr.bf16.mxu0 0
  %2633 = vmatpush2.bf16.xpose.msra.mxu0 0
  %2634 = vmatprep.subr.bf16.mxu0 0
  %2635 = vmatpush2.bf16.xpose.msra.mxu0 0
  %2636 = vmatprep.subr.bf16.mxu0 0
  %2637 = vmatpush2.bf16.xpose.msra.mxu0 0
  %2638 = vmatprep.subr.bf16.mxu0 0
  %2639 = vmatpush2.bf16.xpose.msra.mxu0 0
  %2640 = vmatprep.subr.bf16.mxu0 0
  %2641 = vmatpush2.bf16.xpose.msra.mxu0 0
  %2642 = vmatprep.subr.bf16.mxu0 0
  %2643 = vmatpush2.bf16.xpose.msra.mxu0 0
  %2644 = vmatprep.subr.bf16.mxu0 0
  %2645 = vmatpush2.bf16.xpose.msra.mxu0 0
  %2646 = vmatprep.mubr.bf16.mxu0 0
  %2647 = vmatmul.mubr.bf16.gmra.mxu0 %v2609
  %v2648 = vpop.f32.mrf.mxu0
  %v2649 = vadd.f32 %v2463, %v2648
  %v2650 = vpop.f32.mrf.mxu0
  %v2651 = vpop.f32.mrf.mxu0
  %v2652 = vpop.f32.mrf.mxu0
  %2653 = vdwg.mxu0
  %2655 = vrot.lane.b32.xlu0 %v2438, 112
  %v2656 = vpop.permute.xlu0 %2655
  %v2658 = vsel %vm250, %v2438, 0
  %v2661 = vsel %vm250, %v2656, 0
  %2663 = vmatprep.subr.bf16.mxu0 0
  %2664 = vmatpush1.bf16.xpose.msra.mxu0 0
  %2665 = vmatprep.subr.bf16.mxu0 0
  %2666 = vmatpush1.bf16.xpose.msra.mxu0 0
  %2667 = vmatprep.subr.bf16.mxu0 0
  %2668 = vmatpush1.bf16.xpose.msra.mxu0 0
  %2669 = vmatprep.subr.bf16.mxu0 0
  %2670 = vmatpush1.bf16.xpose.msra.mxu0 0
  %2671 = vmatprep.subr.bf16.mxu0 0
  %2672 = vmatpush1.bf16.xpose.msra.mxu0 0
  %2673 = vmatprep.subr.bf16.mxu0 0
  %2674 = vmatpush1.bf16.xpose.msra.mxu0 0
  %2675 = vmatprep.subr.bf16.mxu0 0
  %2676 = vmatpush1.bf16.xpose.msra.mxu0 0
  %2677 = vmatprep.subr.bf16.mxu0 0
  %2678 = vmatpush1.bf16.xpose.msra.mxu0 %v2661
  %2679 = vmatprep.subr.bf16.mxu0 0
  %2680 = vmatpush2.bf16.xpose.msra.mxu0 0
  %2681 = vmatprep.subr.bf16.mxu0 0
  %2682 = vmatpush2.bf16.xpose.msra.mxu0 0
  %2683 = vmatprep.subr.bf16.mxu0 0
  %2684 = vmatpush2.bf16.xpose.msra.mxu0 0
  %2685 = vmatprep.subr.bf16.mxu0 0
  %2686 = vmatpush2.bf16.xpose.msra.mxu0 0
  %2687 = vmatprep.subr.bf16.mxu0 0
  %2688 = vmatpush2.bf16.xpose.msra.mxu0 0
  %2689 = vmatprep.subr.bf16.mxu0 0
  %2690 = vmatpush2.bf16.xpose.msra.mxu0 0
  %2691 = vmatprep.subr.bf16.mxu0 0
  %2692 = vmatpush2.bf16.xpose.msra.mxu0 0
  %2693 = vmatprep.subr.bf16.mxu0 0
  %2694 = vmatpush2.bf16.xpose.msra.mxu0 0
  %2695 = vmatprep.mubr.bf16.mxu0 0
  %2696 = vmatmul.mubr.bf16.gmra.mxu0 %v2658
  %v2697 = vpop.f32.mrf.mxu0
  %v2698 = vadd.f32 %v2467, %v2697
  %v2699 = vpop.f32.mrf.mxu0
  %v2700 = vpop.f32.mrf.mxu0
  %v2701 = vpop.f32.mrf.mxu0
  %2702 = vdwg.mxu0
  %2704 = vrot.lane.b32.xlu0 %v2439, 112
  %v2705 = vpop.permute.xlu0 %2704
  %v2707 = vsel %vm250, %v2439, 0
  %v2710 = vsel %vm250, %v2705, 0
  %2712 = vmatprep.subr.bf16.mxu0 0
  %2713 = vmatpush1.bf16.xpose.msra.mxu0 0
  %2714 = vmatprep.subr.bf16.mxu0 0
  %2715 = vmatpush1.bf16.xpose.msra.mxu0 0
  %2716 = vmatprep.subr.bf16.mxu0 0
  %2717 = vmatpush1.bf16.xpose.msra.mxu0 0
  %2718 = vmatprep.subr.bf16.mxu0 0
  %2719 = vmatpush1.bf16.xpose.msra.mxu0 0
  %2720 = vmatprep.subr.bf16.mxu0 0
  %2721 = vmatpush1.bf16.xpose.msra.mxu0 0
  %2722 = vmatprep.subr.bf16.mxu0 0
  %2723 = vmatpush1.bf16.xpose.msra.mxu0 0
  %2724 = vmatprep.subr.bf16.mxu0 0
  %2725 = vmatpush1.bf16.xpose.msra.mxu0 0
  %2726 = vmatprep.subr.bf16.mxu0 0
  %2727 = vmatpush1.bf16.xpose.msra.mxu0 %v2710
  %2728 = vmatprep.subr.bf16.mxu0 0
  %2729 = vmatpush2.bf16.xpose.msra.mxu0 0
  %2730 = vmatprep.subr.bf16.mxu0 0
  %2731 = vmatpush2.bf16.xpose.msra.mxu0 0
  %2732 = vmatprep.subr.bf16.mxu0 0
  %2733 = vmatpush2.bf16.xpose.msra.mxu0 0
  %2734 = vmatprep.subr.bf16.mxu0 0
  %2735 = vmatpush2.bf16.xpose.msra.mxu0 0
  %2736 = vmatprep.subr.bf16.mxu0 0
  %2737 = vmatpush2.bf16.xpose.msra.mxu0 0
  %2738 = vmatprep.subr.bf16.mxu0 0
  %2739 = vmatpush2.bf16.xpose.msra.mxu0 0
  %2740 = vmatprep.subr.bf16.mxu0 0
  %2741 = vmatpush2.bf16.xpose.msra.mxu0 0
  %2742 = vmatprep.subr.bf16.mxu0 0
  %2743 = vmatpush2.bf16.xpose.msra.mxu0 0
  %2744 = vmatprep.mubr.bf16.mxu0 0
  %2745 = vmatmul.mubr.bf16.gmra.mxu0 %v2707
  %v2746 = vpop.f32.mrf.mxu0
  %v2747 = vadd.f32 %v2471, %v2746
  %v2748 = vpop.f32.mrf.mxu0
  %v2749 = vpop.f32.mrf.mxu0
  %v2750 = vpop.f32.mrf.mxu0
  %2751 = vdwg.mxu0
  %2753 = vrot.lane.b32.xlu0 %v2440, 112
  %v2754 = vpop.permute.xlu0 %2753
  %v2756 = vsel %vm250, %v2440, 0
  %v2759 = vsel %vm250, %v2754, 0
  %2761 = vmatprep.subr.bf16.mxu0 0
  %2762 = vmatpush1.bf16.xpose.msra.mxu0 0
  %2763 = vmatprep.subr.bf16.mxu0 0
  %2764 = vmatpush1.bf16.xpose.msra.mxu0 0
  %2765 = vmatprep.subr.bf16.mxu0 0
  %2766 = vmatpush1.bf16.xpose.msra.mxu0 0
  %2767 = vmatprep.subr.bf16.mxu0 0
  %2768 = vmatpush1.bf16.xpose.msra.mxu0 0
  %2769 = vmatprep.subr.bf16.mxu0 0
  %2770 = vmatpush1.bf16.xpose.msra.mxu0 0
  %2771 = vmatprep.subr.bf16.mxu0 0
  %2772 = vmatpush1.bf16.xpose.msra.mxu0 0
  %2773 = vmatprep.subr.bf16.mxu0 0
  %2774 = vmatpush1.bf16.xpose.msra.mxu0 0
  %2775 = vmatprep.subr.bf16.mxu0 0
  %2776 = vmatpush1.bf16.xpose.msra.mxu0 %v2759
  %2777 = vmatprep.subr.bf16.mxu0 0
  %2778 = vmatpush2.bf16.xpose.msra.mxu0 0
  %2779 = vmatprep.subr.bf16.mxu0 0
  %2780 = vmatpush2.bf16.xpose.msra.mxu0 0
  %2781 = vmatprep.subr.bf16.mxu0 0
  %2782 = vmatpush2.bf16.xpose.msra.mxu0 0
  %2783 = vmatprep.subr.bf16.mxu0 0
  %2784 = vmatpush2.bf16.xpose.msra.mxu0 0
  %2785 = vmatprep.subr.bf16.mxu0 0
  %2786 = vmatpush2.bf16.xpose.msra.mxu0 0
  %2787 = vmatprep.subr.bf16.mxu0 0
  %2788 = vmatpush2.bf16.xpose.msra.mxu0 0
  %2789 = vmatprep.subr.bf16.mxu0 0
  %2790 = vmatpush2.bf16.xpose.msra.mxu0 0
  %2791 = vmatprep.subr.bf16.mxu0 0
  %2792 = vmatpush2.bf16.xpose.msra.mxu0 0
  %2793 = vmatprep.mubr.bf16.mxu0 0
  %2794 = vmatmul.mubr.bf16.gmra.mxu0 %v2756
  %v2795 = vpop.f32.mrf.mxu0
  %v2796 = vadd.f32 %v2475, %v2795
  %v2797 = vpop.f32.mrf.mxu0
  %v2798 = vpop.f32.mrf.mxu0
  %v2799 = vpop.f32.mrf.mxu0
  %2800 = vdwg.mxu0
  %2802 = vrot.lane.b32.xlu0 %v2441, 112
  %v2803 = vpop.permute.xlu0 %2802
  %v2805 = vsel %vm250, %v2441, 0
  %v2808 = vsel %vm250, %v2803, 0
  %2810 = vmatprep.subr.bf16.mxu0 0
  %2811 = vmatpush1.bf16.xpose.msra.mxu0 0
  %2812 = vmatprep.subr.bf16.mxu0 0
  %2813 = vmatpush1.bf16.xpose.msra.mxu0 0
  %2814 = vmatprep.subr.bf16.mxu0 0
  %2815 = vmatpush1.bf16.xpose.msra.mxu0 0
  %2816 = vmatprep.subr.bf16.mxu0 0
  %2817 = vmatpush1.bf16.xpose.msra.mxu0 0
  %2818 = vmatprep.subr.bf16.mxu0 0
  %2819 = vmatpush1.bf16.xpose.msra.mxu0 0
  %2820 = vmatprep.subr.bf16.mxu0 0
  %2821 = vmatpush1.bf16.xpose.msra.mxu0 0
  %2822 = vmatprep.subr.bf16.mxu0 0
  %2823 = vmatpush1.bf16.xpose.msra.mxu0 0
  %2824 = vmatprep.subr.bf16.mxu0 0
  %2825 = vmatpush1.bf16.xpose.msra.mxu0 %v2808
  %2826 = vmatprep.subr.bf16.mxu0 0
  %2827 = vmatpush2.bf16.xpose.msra.mxu0 0
  %2828 = vmatprep.subr.bf16.mxu0 0
  %2829 = vmatpush2.bf16.xpose.msra.mxu0 0
  %2830 = vmatprep.subr.bf16.mxu0 0
  %2831 = vmatpush2.bf16.xpose.msra.mxu0 0
  %2832 = vmatprep.subr.bf16.mxu0 0
  %2833 = vmatpush2.bf16.xpose.msra.mxu0 0
  %2834 = vmatprep.subr.bf16.mxu0 0
  %2835 = vmatpush2.bf16.xpose.msra.mxu0 0
  %2836 = vmatprep.subr.bf16.mxu0 0
  %2837 = vmatpush2.bf16.xpose.msra.mxu0 0
  %2838 = vmatprep.subr.bf16.mxu0 0
  %2839 = vmatpush2.bf16.xpose.msra.mxu0 0
  %2840 = vmatprep.subr.bf16.mxu0 0
  %2841 = vmatpush2.bf16.xpose.msra.mxu0 0
  %2842 = vmatprep.mubr.bf16.mxu0 0
  %2843 = vmatmul.mubr.bf16.gmra.mxu0 %v2805
  %v2844 = vpop.f32.mrf.mxu0
  %v2845 = vadd.f32 %v2479, %v2844
  %v2846 = vpop.f32.mrf.mxu0
  %v2847 = vpop.f32.mrf.mxu0
  %v2848 = vpop.f32.mrf.mxu0
  %2849 = vdwg.mxu0
  %2851 = vrot.lane.b32.xlu0 %v2442, 112
  %v2852 = vpop.permute.xlu0 %2851
  %v2854 = vsel %vm250, %v2442, 0
  %v2857 = vsel %vm250, %v2852, 0
  %2859 = vmatprep.subr.bf16.mxu0 0
  %2860 = vmatpush1.bf16.xpose.msra.mxu0 0
  %2861 = vmatprep.subr.bf16.mxu0 0
  %2862 = vmatpush1.bf16.xpose.msra.mxu0 0
  %2863 = vmatprep.subr.bf16.mxu0 0
  %2864 = vmatpush1.bf16.xpose.msra.mxu0 0
  %2865 = vmatprep.subr.bf16.mxu0 0
  %2866 = vmatpush1.bf16.xpose.msra.mxu0 0
  %2867 = vmatprep.subr.bf16.mxu0 0
  %2868 = vmatpush1.bf16.xpose.msra.mxu0 0
  %2869 = vmatprep.subr.bf16.mxu0 0
  %2870 = vmatpush1.bf16.xpose.msra.mxu0 0
  %2871 = vmatprep.subr.bf16.mxu0 0
  %2872 = vmatpush1.bf16.xpose.msra.mxu0 0
  %2873 = vmatprep.subr.bf16.mxu0 0
  %2874 = vmatpush1.bf16.xpose.msra.mxu0 %v2857
  %2875 = vmatprep.subr.bf16.mxu0 0
  %2876 = vmatpush2.bf16.xpose.msra.mxu0 0
  %2877 = vmatprep.subr.bf16.mxu0 0
  %2878 = vmatpush2.bf16.xpose.msra.mxu0 0
  %2879 = vmatprep.subr.bf16.mxu0 0
  %2880 = vmatpush2.bf16.xpose.msra.mxu0 0
  %2881 = vmatprep.subr.bf16.mxu0 0
  %2882 = vmatpush2.bf16.xpose.msra.mxu0 0
  %2883 = vmatprep.subr.bf16.mxu0 0
  %2884 = vmatpush2.bf16.xpose.msra.mxu0 0
  %2885 = vmatprep.subr.bf16.mxu0 0
  %2886 = vmatpush2.bf16.xpose.msra.mxu0 0
  %2887 = vmatprep.subr.bf16.mxu0 0
  %2888 = vmatpush2.bf16.xpose.msra.mxu0 0
  %2889 = vmatprep.subr.bf16.mxu0 0
  %2890 = vmatpush2.bf16.xpose.msra.mxu0 0
  %2891 = vmatprep.mubr.bf16.mxu0 0
  %2892 = vmatmul.mubr.bf16.gmra.mxu0 %v2854
  %v2893 = vpop.f32.mrf.mxu0
  %v2894 = vadd.f32 %v2483, %v2893
  %v2895 = vpop.f32.mrf.mxu0
  %v2896 = vpop.f32.mrf.mxu0
  %v2897 = vpop.f32.mrf.mxu0
  %2898 = vdwg.mxu0
  %2900 = vrot.lane.b32.xlu0 %v2443, 112
  %v2901 = vpop.permute.xlu0 %2900
  %v2903 = vsel %vm250, %v2443, 0
  %v2906 = vsel %vm250, %v2901, 0
  %2908 = vmatprep.subr.bf16.mxu0 0
  %2909 = vmatpush1.bf16.xpose.msra.mxu0 0
  %2910 = vmatprep.subr.bf16.mxu0 0
  %2911 = vmatpush1.bf16.xpose.msra.mxu0 0
  %2912 = vmatprep.subr.bf16.mxu0 0
  %2913 = vmatpush1.bf16.xpose.msra.mxu0 0
  %2914 = vmatprep.subr.bf16.mxu0 0
  %2915 = vmatpush1.bf16.xpose.msra.mxu0 0
  %2916 = vmatprep.subr.bf16.mxu0 0
  %2917 = vmatpush1.bf16.xpose.msra.mxu0 0
  %2918 = vmatprep.subr.bf16.mxu0 0
  %2919 = vmatpush1.bf16.xpose.msra.mxu0 0
  %2920 = vmatprep.subr.bf16.mxu0 0
  %2921 = vmatpush1.bf16.xpose.msra.mxu0 0
  %2922 = vmatprep.subr.bf16.mxu0 0
  %2923 = vmatpush1.bf16.xpose.msra.mxu0 %v2906
  %2924 = vmatprep.subr.bf16.mxu0 0
  %2925 = vmatpush2.bf16.xpose.msra.mxu0 0
  %2926 = vmatprep.subr.bf16.mxu0 0
  %2927 = vmatpush2.bf16.xpose.msra.mxu0 0
  %2928 = vmatprep.subr.bf16.mxu0 0
  %2929 = vmatpush2.bf16.xpose.msra.mxu0 0
  %2930 = vmatprep.subr.bf16.mxu0 0
  %2931 = vmatpush2.bf16.xpose.msra.mxu0 0
  %2932 = vmatprep.subr.bf16.mxu0 0
  %2933 = vmatpush2.bf16.xpose.msra.mxu0 0
  %2934 = vmatprep.subr.bf16.mxu0 0
  %2935 = vmatpush2.bf16.xpose.msra.mxu0 0
  %2936 = vmatprep.subr.bf16.mxu0 0
  %2937 = vmatpush2.bf16.xpose.msra.mxu0 0
  %2938 = vmatprep.subr.bf16.mxu0 0
  %2939 = vmatpush2.bf16.xpose.msra.mxu0 0
  %2940 = vmatprep.mubr.bf16.mxu0 0
  %2941 = vmatmul.mubr.bf16.gmra.mxu0 %v2903
  %v2942 = vpop.f32.mrf.mxu0
  %v2943 = vadd.f32 %v2487, %v2942
  %v2944 = vpop.f32.mrf.mxu0
  %v2945 = vpop.f32.mrf.mxu0
  %v2946 = vpop.f32.mrf.mxu0
  %2947 = vdwg.mxu0
  %2949 = vrot.lane.b32.xlu0 %v2444, 112
  %v2950 = vpop.permute.xlu0 %2949
  %v2952 = vsel %vm250, %v2444, 0
  %v2955 = vsel %vm250, %v2950, 0
  %2957 = vmatprep.subr.bf16.mxu0 0
  %2958 = vmatpush1.bf16.xpose.msra.mxu0 0
  %2959 = vmatprep.subr.bf16.mxu0 0
  %2960 = vmatpush1.bf16.xpose.msra.mxu0 0
  %2961 = vmatprep.subr.bf16.mxu0 0
  %2962 = vmatpush1.bf16.xpose.msra.mxu0 0
  %2963 = vmatprep.subr.bf16.mxu0 0
  %2964 = vmatpush1.bf16.xpose.msra.mxu0 0
  %2965 = vmatprep.subr.bf16.mxu0 0
  %2966 = vmatpush1.bf16.xpose.msra.mxu0 0
  %2967 = vmatprep.subr.bf16.mxu0 0
  %2968 = vmatpush1.bf16.xpose.msra.mxu0 0
  %2969 = vmatprep.subr.bf16.mxu0 0
  %2970 = vmatpush1.bf16.xpose.msra.mxu0 0
  %2971 = vmatprep.subr.bf16.mxu0 0
  %2972 = vmatpush1.bf16.xpose.msra.mxu0 %v2955
  %2973 = vmatprep.subr.bf16.mxu0 0
  %2974 = vmatpush2.bf16.xpose.msra.mxu0 0
  %2975 = vmatprep.subr.bf16.mxu0 0
  %2976 = vmatpush2.bf16.xpose.msra.mxu0 0
  %2977 = vmatprep.subr.bf16.mxu0 0
  %2978 = vmatpush2.bf16.xpose.msra.mxu0 0
  %2979 = vmatprep.subr.bf16.mxu0 0
  %2980 = vmatpush2.bf16.xpose.msra.mxu0 0
  %2981 = vmatprep.subr.bf16.mxu0 0
  %2982 = vmatpush2.bf16.xpose.msra.mxu0 0
  %2983 = vmatprep.subr.bf16.mxu0 0
  %2984 = vmatpush2.bf16.xpose.msra.mxu0 0
  %2985 = vmatprep.subr.bf16.mxu0 0
  %2986 = vmatpush2.bf16.xpose.msra.mxu0 0
  %2987 = vmatprep.subr.bf16.mxu0 0
  %2988 = vmatpush2.bf16.xpose.msra.mxu0 0
  %2989 = vmatprep.mubr.bf16.mxu0 0
  %2990 = vmatmul.mubr.bf16.gmra.mxu0 %v2952
  %v2991 = vpop.f32.mrf.mxu0
  %v2992 = vadd.f32 %v2491, %v2991
  %v2993 = vpop.f32.mrf.mxu0
  %v2994 = vpop.f32.mrf.mxu0
  %v2995 = vpop.f32.mrf.mxu0
  %2996 = vdwg.mxu0
  %2998 = vrot.lane.b32.xlu0 %v2445, 112
  %v2999 = vpop.permute.xlu0 %2998
  %v3001 = vsel %vm250, %v2445, 0
  %v3004 = vsel %vm250, %v2999, 0
  %3006 = vmatprep.subr.bf16.mxu0 0
  %3007 = vmatpush1.bf16.xpose.msra.mxu0 0
  %3008 = vmatprep.subr.bf16.mxu0 0
  %3009 = vmatpush1.bf16.xpose.msra.mxu0 0
  %3010 = vmatprep.subr.bf16.mxu0 0
  %3011 = vmatpush1.bf16.xpose.msra.mxu0 0
  %3012 = vmatprep.subr.bf16.mxu0 0
  %3013 = vmatpush1.bf16.xpose.msra.mxu0 0
  %3014 = vmatprep.subr.bf16.mxu0 0
  %3015 = vmatpush1.bf16.xpose.msra.mxu0 0
  %3016 = vmatprep.subr.bf16.mxu0 0
  %3017 = vmatpush1.bf16.xpose.msra.mxu0 0
  %3018 = vmatprep.subr.bf16.mxu0 0
  %3019 = vmatpush1.bf16.xpose.msra.mxu0 0
  %3020 = vmatprep.subr.bf16.mxu0 0
  %3021 = vmatpush1.bf16.xpose.msra.mxu0 %v3004
  %3022 = vmatprep.subr.bf16.mxu0 0
  %3023 = vmatpush2.bf16.xpose.msra.mxu0 0
  %3024 = vmatprep.subr.bf16.mxu0 0
  %3025 = vmatpush2.bf16.xpose.msra.mxu0 0
  %3026 = vmatprep.subr.bf16.mxu0 0
  %3027 = vmatpush2.bf16.xpose.msra.mxu0 0
  %3028 = vmatprep.subr.bf16.mxu0 0
  %3029 = vmatpush2.bf16.xpose.msra.mxu0 0
  %3030 = vmatprep.subr.bf16.mxu0 0
  %3031 = vmatpush2.bf16.xpose.msra.mxu0 0
  %3032 = vmatprep.subr.bf16.mxu0 0
  %3033 = vmatpush2.bf16.xpose.msra.mxu0 0
  %3034 = vmatprep.subr.bf16.mxu0 0
  %3035 = vmatpush2.bf16.xpose.msra.mxu0 0
  %3036 = vmatprep.subr.bf16.mxu0 0
  %3037 = vmatpush2.bf16.xpose.msra.mxu0 0
  %3038 = vmatprep.mubr.bf16.mxu0 0
  %3039 = vmatmul.mubr.bf16.gmra.mxu0 %v3001
  %v3040 = vpop.f32.mrf.mxu0
  %v3041 = vadd.f32 %v2495, %v3040
  %v3042 = vpop.f32.mrf.mxu0
  %v3043 = vpop.f32.mrf.mxu0
  %v3044 = vpop.f32.mrf.mxu0
  %3045 = vdwg.mxu0
  %3047 = vrot.lane.b32.xlu0 %v2446, 112
  %v3048 = vpop.permute.xlu0 %3047
  %v3050 = vsel %vm250, %v2446, 0
  %v3053 = vsel %vm250, %v3048, 0
  %3055 = vmatprep.subr.bf16.mxu0 0
  %3056 = vmatpush1.bf16.xpose.msra.mxu0 0
  %3057 = vmatprep.subr.bf16.mxu0 0
  %3058 = vmatpush1.bf16.xpose.msra.mxu0 0
  %3059 = vmatprep.subr.bf16.mxu0 0
  %3060 = vmatpush1.bf16.xpose.msra.mxu0 0
  %3061 = vmatprep.subr.bf16.mxu0 0
  %3062 = vmatpush1.bf16.xpose.msra.mxu0 0
  %3063 = vmatprep.subr.bf16.mxu0 0
  %3064 = vmatpush1.bf16.xpose.msra.mxu0 0
  %3065 = vmatprep.subr.bf16.mxu0 0
  %3066 = vmatpush1.bf16.xpose.msra.mxu0 0
  %3067 = vmatprep.subr.bf16.mxu0 0
  %3068 = vmatpush1.bf16.xpose.msra.mxu0 0
  %3069 = vmatprep.subr.bf16.mxu0 0
  %3070 = vmatpush1.bf16.xpose.msra.mxu0 %v3053
  %3071 = vmatprep.subr.bf16.mxu0 0
  %3072 = vmatpush2.bf16.xpose.msra.mxu0 0
  %3073 = vmatprep.subr.bf16.mxu0 0
  %3074 = vmatpush2.bf16.xpose.msra.mxu0 0
  %3075 = vmatprep.subr.bf16.mxu0 0
  %3076 = vmatpush2.bf16.xpose.msra.mxu0 0
  %3077 = vmatprep.subr.bf16.mxu0 0
  %3078 = vmatpush2.bf16.xpose.msra.mxu0 0
  %3079 = vmatprep.subr.bf16.mxu0 0
  %3080 = vmatpush2.bf16.xpose.msra.mxu0 0
  %3081 = vmatprep.subr.bf16.mxu0 0
  %3082 = vmatpush2.bf16.xpose.msra.mxu0 0
  %3083 = vmatprep.subr.bf16.mxu0 0
  %3084 = vmatpush2.bf16.xpose.msra.mxu0 0
  %3085 = vmatprep.subr.bf16.mxu0 0
  %3086 = vmatpush2.bf16.xpose.msra.mxu0 0
  %3087 = vmatprep.mubr.bf16.mxu0 0
  %3088 = vmatmul.mubr.bf16.gmra.mxu0 %v3050
  %v3089 = vpop.f32.mrf.mxu0
  %v3090 = vadd.f32 %v2499, %v3089
  %v3091 = vpop.f32.mrf.mxu0
  %v3092 = vpop.f32.mrf.mxu0
  %v3093 = vpop.f32.mrf.mxu0
  %3094 = vdwg.mxu0
  %3096 = vrot.lane.b32.xlu0 %v2447, 112
  %v3097 = vpop.permute.xlu0 %3096
  %v3099 = vsel %vm250, %v2447, 0
  %v3102 = vsel %vm250, %v3097, 0
  %3104 = vmatprep.subr.bf16.mxu0 0
  %3105 = vmatpush1.bf16.xpose.msra.mxu0 0
  %3106 = vmatprep.subr.bf16.mxu0 0
  %3107 = vmatpush1.bf16.xpose.msra.mxu0 0
  %3108 = vmatprep.subr.bf16.mxu0 0
  %3109 = vmatpush1.bf16.xpose.msra.mxu0 0
  %3110 = vmatprep.subr.bf16.mxu0 0
  %3111 = vmatpush1.bf16.xpose.msra.mxu0 0
  %3112 = vmatprep.subr.bf16.mxu0 0
  %3113 = vmatpush1.bf16.xpose.msra.mxu0 0
  %3114 = vmatprep.subr.bf16.mxu0 0
  %3115 = vmatpush1.bf16.xpose.msra.mxu0 0
  %3116 = vmatprep.subr.bf16.mxu0 0
  %3117 = vmatpush1.bf16.xpose.msra.mxu0 0
  %3118 = vmatprep.subr.bf16.mxu0 0
  %3119 = vmatpush1.bf16.xpose.msra.mxu0 %v3102
  %3120 = vmatprep.subr.bf16.mxu0 0
  %3121 = vmatpush2.bf16.xpose.msra.mxu0 0
  %3122 = vmatprep.subr.bf16.mxu0 0
  %3123 = vmatpush2.bf16.xpose.msra.mxu0 0
  %3124 = vmatprep.subr.bf16.mxu0 0
  %3125 = vmatpush2.bf16.xpose.msra.mxu0 0
  %3126 = vmatprep.subr.bf16.mxu0 0
  %3127 = vmatpush2.bf16.xpose.msra.mxu0 0
  %3128 = vmatprep.subr.bf16.mxu0 0
  %3129 = vmatpush2.bf16.xpose.msra.mxu0 0
  %3130 = vmatprep.subr.bf16.mxu0 0
  %3131 = vmatpush2.bf16.xpose.msra.mxu0 0
  %3132 = vmatprep.subr.bf16.mxu0 0
  %3133 = vmatpush2.bf16.xpose.msra.mxu0 0
  %3134 = vmatprep.subr.bf16.mxu0 0
  %3135 = vmatpush2.bf16.xpose.msra.mxu0 0
  %3136 = vmatprep.mubr.bf16.mxu0 0
  %3137 = vmatmul.mubr.bf16.gmra.mxu0 %v3099
  %v3138 = vpop.f32.mrf.mxu0
  %v3139 = vadd.f32 %v2503, %v3138
  %v3140 = vpop.f32.mrf.mxu0
  %v3141 = vpop.f32.mrf.mxu0
  %v3142 = vpop.f32.mrf.mxu0
  %3143 = vdwg.mxu0
  %3145 = vrot.lane.b32.xlu0 %v2448, 112
  %v3146 = vpop.permute.xlu0 %3145
  %v3148 = vsel %vm250, %v2448, 0
  %v3151 = vsel %vm250, %v3146, 0
  %3153 = vmatprep.subr.bf16.mxu0 0
  %3154 = vmatpush1.bf16.xpose.msra.mxu0 0
  %3155 = vmatprep.subr.bf16.mxu0 0
  %3156 = vmatpush1.bf16.xpose.msra.mxu0 0
  %3157 = vmatprep.subr.bf16.mxu0 0
  %3158 = vmatpush1.bf16.xpose.msra.mxu0 0
  %3159 = vmatprep.subr.bf16.mxu0 0
  %3160 = vmatpush1.bf16.xpose.msra.mxu0 0
  %3161 = vmatprep.subr.bf16.mxu0 0
  %3162 = vmatpush1.bf16.xpose.msra.mxu0 0
  %3163 = vmatprep.subr.bf16.mxu0 0
  %3164 = vmatpush1.bf16.xpose.msra.mxu0 0
  %3165 = vmatprep.subr.bf16.mxu0 0
  %3166 = vmatpush1.bf16.xpose.msra.mxu0 0
  %3167 = vmatprep.subr.bf16.mxu0 0
  %3168 = vmatpush1.bf16.xpose.msra.mxu0 %v3151
  %3169 = vmatprep.subr.bf16.mxu0 0
  %3170 = vmatpush2.bf16.xpose.msra.mxu0 0
  %3171 = vmatprep.subr.bf16.mxu0 0
  %3172 = vmatpush2.bf16.xpose.msra.mxu0 0
  %3173 = vmatprep.subr.bf16.mxu0 0
  %3174 = vmatpush2.bf16.xpose.msra.mxu0 0
  %3175 = vmatprep.subr.bf16.mxu0 0
  %3176 = vmatpush2.bf16.xpose.msra.mxu0 0
  %3177 = vmatprep.subr.bf16.mxu0 0
  %3178 = vmatpush2.bf16.xpose.msra.mxu0 0
  %3179 = vmatprep.subr.bf16.mxu0 0
  %3180 = vmatpush2.bf16.xpose.msra.mxu0 0
  %3181 = vmatprep.subr.bf16.mxu0 0
  %3182 = vmatpush2.bf16.xpose.msra.mxu0 0
  %3183 = vmatprep.subr.bf16.mxu0 0
  %3184 = vmatpush2.bf16.xpose.msra.mxu0 0
  %3185 = vmatprep.mubr.bf16.mxu0 0
  %3186 = vmatmul.mubr.bf16.gmra.mxu0 %v3148
  %v3187 = vpop.f32.mrf.mxu0
  %v3188 = vadd.f32 %v2507, %v3187
  %v3189 = vpop.f32.mrf.mxu0
  %v3190 = vpop.f32.mrf.mxu0
  %v3191 = vpop.f32.mrf.mxu0
  %3192 = vdwg.mxu0
  %3194 = vrot.lane.b32.xlu0 %v2449, 112
  %v3195 = vpop.permute.xlu0 %3194
  %v3197 = vsel %vm250, %v2449, 0
  %v3200 = vsel %vm250, %v3195, 0
  %3202 = vmatprep.subr.bf16.mxu0 0
  %3203 = vmatpush1.bf16.xpose.msra.mxu0 0
  %3204 = vmatprep.subr.bf16.mxu0 0
  %3205 = vmatpush1.bf16.xpose.msra.mxu0 0
  %3206 = vmatprep.subr.bf16.mxu0 0
  %3207 = vmatpush1.bf16.xpose.msra.mxu0 0
  %3208 = vmatprep.subr.bf16.mxu0 0
  %3209 = vmatpush1.bf16.xpose.msra.mxu0 0
  %3210 = vmatprep.subr.bf16.mxu0 0
  %3211 = vmatpush1.bf16.xpose.msra.mxu0 0
  %3212 = vmatprep.subr.bf16.mxu0 0
  %3213 = vmatpush1.bf16.xpose.msra.mxu0 0
  %3214 = vmatprep.subr.bf16.mxu0 0
  %3215 = vmatpush1.bf16.xpose.msra.mxu0 0
  %3216 = vmatprep.subr.bf16.mxu0 0
  %3217 = vmatpush1.bf16.xpose.msra.mxu0 %v3200
  %3218 = vmatprep.subr.bf16.mxu0 0
  %3219 = vmatpush2.bf16.xpose.msra.mxu0 0
  %3220 = vmatprep.subr.bf16.mxu0 0
  %3221 = vmatpush2.bf16.xpose.msra.mxu0 0
  %3222 = vmatprep.subr.bf16.mxu0 0
  %3223 = vmatpush2.bf16.xpose.msra.mxu0 0
  %3224 = vmatprep.subr.bf16.mxu0 0
  %3225 = vmatpush2.bf16.xpose.msra.mxu0 0
  %3226 = vmatprep.subr.bf16.mxu0 0
  %3227 = vmatpush2.bf16.xpose.msra.mxu0 0
  %3228 = vmatprep.subr.bf16.mxu0 0
  %3229 = vmatpush2.bf16.xpose.msra.mxu0 0
  %3230 = vmatprep.subr.bf16.mxu0 0
  %3231 = vmatpush2.bf16.xpose.msra.mxu0 0
  %3232 = vmatprep.subr.bf16.mxu0 0
  %3233 = vmatpush2.bf16.xpose.msra.mxu0 0
  %3234 = vmatprep.mubr.bf16.mxu0 0
  %3235 = vmatmul.mubr.bf16.gmra.mxu0 %v3197
  %v3236 = vpop.f32.mrf.mxu0
  %v3237 = vadd.f32 %v2511, %v3236
  %v3238 = vpop.f32.mrf.mxu0
  %v3239 = vpop.f32.mrf.mxu0
  %v3240 = vpop.f32.mrf.mxu0
  %3241 = vdwg.mxu0
  %3243 = vrot.lane.b32.xlu0 %v2450, 112
  %v3244 = vpop.permute.xlu0 %3243
  %v3246 = vsel %vm250, %v2450, 0
  %v3249 = vsel %vm250, %v3244, 0
  %3251 = vmatprep.subr.bf16.mxu0 0
  %3252 = vmatpush1.bf16.xpose.msra.mxu0 0
  %3253 = vmatprep.subr.bf16.mxu0 0
  %3254 = vmatpush1.bf16.xpose.msra.mxu0 0
  %3255 = vmatprep.subr.bf16.mxu0 0
  %3256 = vmatpush1.bf16.xpose.msra.mxu0 0
  %3257 = vmatprep.subr.bf16.mxu0 0
  %3258 = vmatpush1.bf16.xpose.msra.mxu0 0
  %3259 = vmatprep.subr.bf16.mxu0 0
  %3260 = vmatpush1.bf16.xpose.msra.mxu0 0
  %3261 = vmatprep.subr.bf16.mxu0 0
  %3262 = vmatpush1.bf16.xpose.msra.mxu0 0
  %3263 = vmatprep.subr.bf16.mxu0 0
  %3264 = vmatpush1.bf16.xpose.msra.mxu0 0
  %3265 = vmatprep.subr.bf16.mxu0 0
  %3266 = vmatpush1.bf16.xpose.msra.mxu0 %v3249
  %3267 = vmatprep.subr.bf16.mxu0 0
  %3268 = vmatpush2.bf16.xpose.msra.mxu0 0
  %3269 = vmatprep.subr.bf16.mxu0 0
  %3270 = vmatpush2.bf16.xpose.msra.mxu0 0
  %3271 = vmatprep.subr.bf16.mxu0 0
  %3272 = vmatpush2.bf16.xpose.msra.mxu0 0
  %3273 = vmatprep.subr.bf16.mxu0 0
  %3274 = vmatpush2.bf16.xpose.msra.mxu0 0
  %3275 = vmatprep.subr.bf16.mxu0 0
  %3276 = vmatpush2.bf16.xpose.msra.mxu0 0
  %3277 = vmatprep.subr.bf16.mxu0 0
  %3278 = vmatpush2.bf16.xpose.msra.mxu0 0
  %3279 = vmatprep.subr.bf16.mxu0 0
  %3280 = vmatpush2.bf16.xpose.msra.mxu0 0
  %3281 = vmatprep.subr.bf16.mxu0 0
  %3282 = vmatpush2.bf16.xpose.msra.mxu0 0
  %3283 = vmatprep.mubr.bf16.mxu0 0
  %3284 = vmatmul.mubr.bf16.gmra.mxu0 %v3246
  %v3285 = vpop.f32.mrf.mxu0
  %v3286 = vadd.f32 %v2515, %v3285
  %v3287 = vpop.f32.mrf.mxu0
  %v3288 = vpop.f32.mrf.mxu0
  %v3289 = vpop.f32.mrf.mxu0
  %3290 = vdwg.mxu0
  %3292 = vrot.lane.b32.xlu0 %v2451, 112
  %v3293 = vpop.permute.xlu0 %3292
  %v3295 = vsel %vm250, %v2451, 0
  %v3298 = vsel %vm250, %v3293, 0
  %3300 = vmatprep.subr.bf16.mxu0 0
  %3301 = vmatpush1.bf16.xpose.msra.mxu0 0
  %3302 = vmatprep.subr.bf16.mxu0 0
  %3303 = vmatpush1.bf16.xpose.msra.mxu0 0
  %3304 = vmatprep.subr.bf16.mxu0 0
  %3305 = vmatpush1.bf16.xpose.msra.mxu0 0
  %3306 = vmatprep.subr.bf16.mxu0 0
  %3307 = vmatpush1.bf16.xpose.msra.mxu0 0
  %3308 = vmatprep.subr.bf16.mxu0 0
  %3309 = vmatpush1.bf16.xpose.msra.mxu0 0
  %3310 = vmatprep.subr.bf16.mxu0 0
  %3311 = vmatpush1.bf16.xpose.msra.mxu0 0
  %3312 = vmatprep.subr.bf16.mxu0 0
  %3313 = vmatpush1.bf16.xpose.msra.mxu0 0
  %3314 = vmatprep.subr.bf16.mxu0 0
  %3315 = vmatpush1.bf16.xpose.msra.mxu0 %v3298
  %3316 = vmatprep.subr.bf16.mxu0 0
  %3317 = vmatpush2.bf16.xpose.msra.mxu0 0
  %3318 = vmatprep.subr.bf16.mxu0 0
  %3319 = vmatpush2.bf16.xpose.msra.mxu0 0
  %3320 = vmatprep.subr.bf16.mxu0 0
  %3321 = vmatpush2.bf16.xpose.msra.mxu0 0
  %3322 = vmatprep.subr.bf16.mxu0 0
  %3323 = vmatpush2.bf16.xpose.msra.mxu0 0
  %3324 = vmatprep.subr.bf16.mxu0 0
  %3325 = vmatpush2.bf16.xpose.msra.mxu0 0
  %3326 = vmatprep.subr.bf16.mxu0 0
  %3327 = vmatpush2.bf16.xpose.msra.mxu0 0
  %3328 = vmatprep.subr.bf16.mxu0 0
  %3329 = vmatpush2.bf16.xpose.msra.mxu0 0
  %3330 = vmatprep.subr.bf16.mxu0 0
  %3331 = vmatpush2.bf16.xpose.msra.mxu0 0
  %3332 = vmatprep.mubr.bf16.mxu0 0
  %3333 = vmatmul.mubr.bf16.gmra.mxu0 %v3295
  %v3334 = vpop.f32.mrf.mxu0
  %v3335 = vadd.f32 %v2519, %v3334
  %v3336 = vpop.f32.mrf.mxu0
  %v3337 = vpop.f32.mrf.mxu0
  %v3338 = vpop.f32.mrf.mxu0
  %3339 = vdwg.mxu0
  %3341 = vrot.lane.b32.xlu0 %v2452, 112
  %v3342 = vpop.permute.xlu0 %3341
  %v3344 = vsel %vm250, %v2452, 0
  %v3347 = vsel %vm250, %v3342, 0
  %3349 = vmatprep.subr.bf16.mxu0 0
  %3350 = vmatpush1.bf16.xpose.msra.mxu0 0
  %3351 = vmatprep.subr.bf16.mxu0 0
  %3352 = vmatpush1.bf16.xpose.msra.mxu0 0
  %3353 = vmatprep.subr.bf16.mxu0 0
  %3354 = vmatpush1.bf16.xpose.msra.mxu0 0
  %3355 = vmatprep.subr.bf16.mxu0 0
  %3356 = vmatpush1.bf16.xpose.msra.mxu0 0
  %3357 = vmatprep.subr.bf16.mxu0 0
  %3358 = vmatpush1.bf16.xpose.msra.mxu0 0
  %3359 = vmatprep.subr.bf16.mxu0 0
  %3360 = vmatpush1.bf16.xpose.msra.mxu0 0
  %3361 = vmatprep.subr.bf16.mxu0 0
  %3362 = vmatpush1.bf16.xpose.msra.mxu0 0
  %3363 = vmatprep.subr.bf16.mxu0 0
  %3364 = vmatpush1.bf16.xpose.msra.mxu0 %v3347
  %3365 = vmatprep.subr.bf16.mxu0 0
  %3366 = vmatpush2.bf16.xpose.msra.mxu0 0
  %3367 = vmatprep.subr.bf16.mxu0 0
  %3368 = vmatpush2.bf16.xpose.msra.mxu0 0
  %3369 = vmatprep.subr.bf16.mxu0 0
  %3370 = vmatpush2.bf16.xpose.msra.mxu0 0
  %3371 = vmatprep.subr.bf16.mxu0 0
  %3372 = vmatpush2.bf16.xpose.msra.mxu0 0
  %3373 = vmatprep.subr.bf16.mxu0 0
  %3374 = vmatpush2.bf16.xpose.msra.mxu0 0
  %3375 = vmatprep.subr.bf16.mxu0 0
  %3376 = vmatpush2.bf16.xpose.msra.mxu0 0
  %3377 = vmatprep.subr.bf16.mxu0 0
  %3378 = vmatpush2.bf16.xpose.msra.mxu0 0
  %3379 = vmatprep.subr.bf16.mxu0 0
  %3380 = vmatpush2.bf16.xpose.msra.mxu0 0
  %3381 = vmatprep.mubr.bf16.mxu0 0
  %3382 = vmatmul.mubr.bf16.gmra.mxu0 %v3344
  %v3383 = vpop.f32.mrf.mxu0
  %v3384 = vadd.f32 %v2523, %v3383
  %v3385 = vpop.f32.mrf.mxu0
  %v3386 = vpop.f32.mrf.mxu0
  %v3387 = vpop.f32.mrf.mxu0
  %3388 = vdwg.mxu0
  %3390 = vrot.lane.b32.xlu0 %v2453, 112
  %v3391 = vpop.permute.xlu0 %3390
  %v3393 = vsel %vm250, %v2453, 0
  %v3396 = vsel %vm250, %v3391, 0
  %3398 = vmatprep.subr.bf16.mxu0 0
  %3399 = vmatpush1.bf16.xpose.msra.mxu0 0
  %3400 = vmatprep.subr.bf16.mxu0 0
  %3401 = vmatpush1.bf16.xpose.msra.mxu0 0
  %3402 = vmatprep.subr.bf16.mxu0 0
  %3403 = vmatpush1.bf16.xpose.msra.mxu0 0
  %3404 = vmatprep.subr.bf16.mxu0 0
  %3405 = vmatpush1.bf16.xpose.msra.mxu0 0
  %3406 = vmatprep.subr.bf16.mxu0 0
  %3407 = vmatpush1.bf16.xpose.msra.mxu0 0
  %3408 = vmatprep.subr.bf16.mxu0 0
  %3409 = vmatpush1.bf16.xpose.msra.mxu0 0
  %3410 = vmatprep.subr.bf16.mxu0 0
  %3411 = vmatpush1.bf16.xpose.msra.mxu0 0
  %3412 = vmatprep.subr.bf16.mxu0 0
  %3413 = vmatpush1.bf16.xpose.msra.mxu0 %v3396
  %3414 = vmatprep.subr.bf16.mxu0 0
  %3415 = vmatpush2.bf16.xpose.msra.mxu0 0
  %3416 = vmatprep.subr.bf16.mxu0 0
  %3417 = vmatpush2.bf16.xpose.msra.mxu0 0
  %3418 = vmatprep.subr.bf16.mxu0 0
  %3419 = vmatpush2.bf16.xpose.msra.mxu0 0
  %3420 = vmatprep.subr.bf16.mxu0 0
  %3421 = vmatpush2.bf16.xpose.msra.mxu0 0
  %3422 = vmatprep.subr.bf16.mxu0 0
  %3423 = vmatpush2.bf16.xpose.msra.mxu0 0
  %3424 = vmatprep.subr.bf16.mxu0 0
  %3425 = vmatpush2.bf16.xpose.msra.mxu0 0
  %3426 = vmatprep.subr.bf16.mxu0 0
  %3427 = vmatpush2.bf16.xpose.msra.mxu0 0
  %3428 = vmatprep.subr.bf16.mxu0 0
  %3429 = vmatpush2.bf16.xpose.msra.mxu0 0
  %3430 = vmatprep.mubr.bf16.mxu0 0
  %3431 = vmatmul.mubr.bf16.gmra.mxu0 %v3393
  %v3432 = vpop.f32.mrf.mxu0
  %v3433 = vadd.f32 %v2527, %v3432
  %v3434 = vpop.f32.mrf.mxu0
  %v3435 = vpop.f32.mrf.mxu0
  %v3436 = vpop.f32.mrf.mxu0
  %3437 = vdwg.mxu0
  %3439 = vrot.lane.b32.xlu0 %v2454, 112
  %v3440 = vpop.permute.xlu0 %3439
  %v3442 = vsel %vm250, %v2454, 0
  %v3445 = vsel %vm250, %v3440, 0
  %3447 = vmatprep.subr.bf16.mxu0 0
  %3448 = vmatpush1.bf16.xpose.msra.mxu0 0
  %3449 = vmatprep.subr.bf16.mxu0 0
  %3450 = vmatpush1.bf16.xpose.msra.mxu0 0
  %3451 = vmatprep.subr.bf16.mxu0 0
  %3452 = vmatpush1.bf16.xpose.msra.mxu0 0
  %3453 = vmatprep.subr.bf16.mxu0 0
  %3454 = vmatpush1.bf16.xpose.msra.mxu0 0
  %3455 = vmatprep.subr.bf16.mxu0 0
  %3456 = vmatpush1.bf16.xpose.msra.mxu0 0
  %3457 = vmatprep.subr.bf16.mxu0 0
  %3458 = vmatpush1.bf16.xpose.msra.mxu0 0
  %3459 = vmatprep.subr.bf16.mxu0 0
  %3460 = vmatpush1.bf16.xpose.msra.mxu0 0
  %3461 = vmatprep.subr.bf16.mxu0 0
  %3462 = vmatpush1.bf16.xpose.msra.mxu0 %v3445
  %3463 = vmatprep.subr.bf16.mxu0 0
  %3464 = vmatpush2.bf16.xpose.msra.mxu0 0
  %3465 = vmatprep.subr.bf16.mxu0 0
  %3466 = vmatpush2.bf16.xpose.msra.mxu0 0
  %3467 = vmatprep.subr.bf16.mxu0 0
  %3468 = vmatpush2.bf16.xpose.msra.mxu0 0
  %3469 = vmatprep.subr.bf16.mxu0 0
  %3470 = vmatpush2.bf16.xpose.msra.mxu0 0
  %3471 = vmatprep.subr.bf16.mxu0 0
  %3472 = vmatpush2.bf16.xpose.msra.mxu0 0
  %3473 = vmatprep.subr.bf16.mxu0 0
  %3474 = vmatpush2.bf16.xpose.msra.mxu0 0
  %3475 = vmatprep.subr.bf16.mxu0 0
  %3476 = vmatpush2.bf16.xpose.msra.mxu0 0
  %3477 = vmatprep.subr.bf16.mxu0 0
  %3478 = vmatpush2.bf16.xpose.msra.mxu0 0
  %3479 = vmatprep.mubr.bf16.mxu0 0
  %3480 = vmatmul.mubr.bf16.gmra.mxu0 %v3442
  %v3481 = vpop.f32.mrf.mxu0
  %v3482 = vadd.f32 %v2531, %v3481
  %v3483 = vpop.f32.mrf.mxu0
  %v3484 = vpop.f32.mrf.mxu0
  %v3485 = vpop.f32.mrf.mxu0
  %3486 = vdwg.mxu0
  %3488 = vrot.lane.b32.xlu0 %v2455, 112
  %v3489 = vpop.permute.xlu0 %3488
  %v3491 = vsel %vm250, %v2455, 0
  %v3494 = vsel %vm250, %v3489, 0
  %3496 = vmatprep.subr.bf16.mxu0 0
  %3497 = vmatpush1.bf16.xpose.msra.mxu0 0
  %3498 = vmatprep.subr.bf16.mxu0 0
  %3499 = vmatpush1.bf16.xpose.msra.mxu0 0
  %3500 = vmatprep.subr.bf16.mxu0 0
  %3501 = vmatpush1.bf16.xpose.msra.mxu0 0
  %3502 = vmatprep.subr.bf16.mxu0 0
  %3503 = vmatpush1.bf16.xpose.msra.mxu0 0
  %3504 = vmatprep.subr.bf16.mxu0 0
  %3505 = vmatpush1.bf16.xpose.msra.mxu0 0
  %3506 = vmatprep.subr.bf16.mxu0 0
  %3507 = vmatpush1.bf16.xpose.msra.mxu0 0
  %3508 = vmatprep.subr.bf16.mxu0 0
  %3509 = vmatpush1.bf16.xpose.msra.mxu0 0
  %3510 = vmatprep.subr.bf16.mxu0 0
  %3511 = vmatpush1.bf16.xpose.msra.mxu0 %v3494
  %3512 = vmatprep.subr.bf16.mxu0 0
  %3513 = vmatpush2.bf16.xpose.msra.mxu0 0
  %3514 = vmatprep.subr.bf16.mxu0 0
  %3515 = vmatpush2.bf16.xpose.msra.mxu0 0
  %3516 = vmatprep.subr.bf16.mxu0 0
  %3517 = vmatpush2.bf16.xpose.msra.mxu0 0
  %3518 = vmatprep.subr.bf16.mxu0 0
  %3519 = vmatpush2.bf16.xpose.msra.mxu0 0
  %3520 = vmatprep.subr.bf16.mxu0 0
  %3521 = vmatpush2.bf16.xpose.msra.mxu0 0
  %3522 = vmatprep.subr.bf16.mxu0 0
  %3523 = vmatpush2.bf16.xpose.msra.mxu0 0
  %3524 = vmatprep.subr.bf16.mxu0 0
  %3525 = vmatpush2.bf16.xpose.msra.mxu0 0
  %3526 = vmatprep.subr.bf16.mxu0 0
  %3527 = vmatpush2.bf16.xpose.msra.mxu0 0
  %3528 = vmatprep.mubr.bf16.mxu0 0
  %3529 = vmatmul.mubr.bf16.gmra.mxu0 %v3491
  %v3530 = vpop.f32.mrf.mxu0
  %v3531 = vadd.f32 %v2535, %v3530
  %v3532 = vpop.f32.mrf.mxu0
  %v3533 = vpop.f32.mrf.mxu0
  %v3534 = vpop.f32.mrf.mxu0
  %3535 = vdwg.mxu0
  %v3536 = vsel %vm444, %v2600, -inf
  %3537 = vmax.xlane.f32.xlu0 %v3536
  %v3538 = vpop.xlane.xlu0 %3537
  %v3539 = vsel %vm444, %v2649, -inf
  %3540 = vmax.xlane.f32.xlu0 %v3539
  %v3541 = vpop.xlane.xlu0 %3540
  %v3542 = vsel %vm444, %v2698, -inf
  %3543 = vmax.xlane.f32.xlu0 %v3542
  %v3544 = vpop.xlane.xlu0 %3543
  %v3545 = vsel %vm444, %v2747, -inf
  %3546 = vmax.xlane.f32.xlu0 %v3545
  %v3547 = vpop.xlane.xlu0 %3546
  %v3548 = vsel %vm444, %v2796, -inf
  %3549 = vmax.xlane.f32.xlu0 %v3548
  %v3550 = vpop.xlane.xlu0 %3549
  %v3551 = vsel %vm444, %v2845, -inf
  %3552 = vmax.xlane.f32.xlu0 %v3551
  %v3553 = vpop.xlane.xlu0 %3552
  %v3554 = vsel %vm444, %v2894, -inf
  %3555 = vmax.xlane.f32.xlu0 %v3554
  %v3556 = vpop.xlane.xlu0 %3555
  %v3557 = vsel %vm444, %v2943, -inf
  %3558 = vmax.xlane.f32.xlu0 %v3557
  %v3559 = vpop.xlane.xlu0 %3558
  %v3560 = vsel %vm444, %v2992, -inf
  %3561 = vmax.xlane.f32.xlu0 %v3560
  %v3562 = vpop.xlane.xlu0 %3561
  %v3563 = vsel %vm444, %v3041, -inf
  %3564 = vmax.xlane.f32.xlu0 %v3563
  %v3565 = vpop.xlane.xlu0 %3564
  %v3566 = vsel %vm444, %v3090, -inf
  %3567 = vmax.xlane.f32.xlu0 %v3566
  %v3568 = vpop.xlane.xlu0 %3567
  %v3569 = vsel %vm444, %v3139, -inf
  %3570 = vmax.xlane.f32.xlu0 %v3569
  %v3571 = vpop.xlane.xlu0 %3570
  %v3572 = vsel %vm444, %v3188, -inf
  %3573 = vmax.xlane.f32.xlu0 %v3572
  %v3574 = vpop.xlane.xlu0 %3573
  %v3575 = vsel %vm444, %v3237, -inf
  %3576 = vmax.xlane.f32.xlu0 %v3575
  %v3577 = vpop.xlane.xlu0 %3576
  %v3578 = vsel %vm444, %v3286, -inf
  %3579 = vmax.xlane.f32.xlu0 %v3578
  %v3580 = vpop.xlane.xlu0 %3579
  %v3581 = vsel %vm444, %v3335, -inf
  %3582 = vmax.xlane.f32.xlu0 %v3581
  %v3583 = vpop.xlane.xlu0 %3582
  %v3584 = vsel %vm444, %v3384, -inf
  %3585 = vmax.xlane.f32.xlu0 %v3584
  %v3586 = vpop.xlane.xlu0 %3585
  %v3587 = vsel %vm444, %v3433, -inf
  %3588 = vmax.xlane.f32.xlu0 %v3587
  %v3589 = vpop.xlane.xlu0 %3588
  %v3590 = vsel %vm444, %v3482, -inf
  %3591 = vmax.xlane.f32.xlu0 %v3590
  %v3592 = vpop.xlane.xlu0 %3591
  %v3593 = vsel %vm444, %v3531, -inf
  %3594 = vmax.xlane.f32.xlu0 %v3593
  %v3595 = vpop.xlane.xlu0 %3594
  %v3596 = vsub.f32 %v2600, %v3538
  %v3597 = vsub.f32 %v2649, %v3541
  %v3598 = vsub.f32 %v2698, %v3544
  %v3599 = vsub.f32 %v2747, %v3547
  %v3600 = vsub.f32 %v2796, %v3550
  %v3601 = vsub.f32 %v2845, %v3553
  %v3602 = vsub.f32 %v2894, %v3556
  %v3603 = vsub.f32 %v2943, %v3559
  %v3604 = vsub.f32 %v2992, %v3562
  %v3605 = vsub.f32 %v3041, %v3565
  %v3606 = vsub.f32 %v3090, %v3568
  %v3607 = vsub.f32 %v3139, %v3571
  %v3608 = vsub.f32 %v3188, %v3574
  %v3609 = vsub.f32 %v3237, %v3577
  %v3610 = vsub.f32 %v3286, %v3580
  %v3611 = vsub.f32 %v3335, %v3583
  %v3612 = vsub.f32 %v3384, %v3586
  %v3613 = vsub.f32 %v3433, %v3589
  %v3614 = vsub.f32 %v3482, %v3592
  %v3615 = vsub.f32 %v3531, %v3595
  %v3616 = vmul.f32 %v3596, 1.442695
  %v3617 = vpow.pop %v3616
  %v3618 = vmul.f32 %v3597, 1.442695
  %v3619 = vpow.pop %v3618
  %v3620 = vmul.f32 %v3598, 1.442695
  %v3621 = vpow.pop %v3620
  %v3622 = vmul.f32 %v3599, 1.442695
  %v3623 = vpow.pop %v3622
  %v3624 = vmul.f32 %v3600, 1.442695
  %v3625 = vpow.pop %v3624
  %v3626 = vmul.f32 %v3601, 1.442695
  %v3627 = vpow.pop %v3626
  %v3628 = vmul.f32 %v3602, 1.442695
  %v3629 = vpow.pop %v3628
  %v3630 = vmul.f32 %v3603, 1.442695
  %v3631 = vpow.pop %v3630
  %v3632 = vmul.f32 %v3604, 1.442695
  %v3633 = vpow.pop %v3632
  %v3634 = vmul.f32 %v3605, 1.442695
  %v3635 = vpow.pop %v3634
  %v3636 = vmul.f32 %v3606, 1.442695
  %v3637 = vpow.pop %v3636
  %v3638 = vmul.f32 %v3607, 1.442695
  %v3639 = vpow.pop %v3638
  %v3640 = vmul.f32 %v3608, 1.442695
  %v3641 = vpow.pop %v3640
  %v3642 = vmul.f32 %v3609, 1.442695
  %v3643 = vpow.pop %v3642
  %v3644 = vmul.f32 %v3610, 1.442695
  %v3645 = vpow.pop %v3644
  %v3646 = vmul.f32 %v3611, 1.442695
  %v3647 = vpow.pop %v3646
  %v3648 = vmul.f32 %v3612, 1.442695
  %v3649 = vpow.pop %v3648
  %v3650 = vmul.f32 %v3613, 1.442695
  %v3651 = vpow.pop %v3650
  %v3652 = vmul.f32 %v3614, 1.442695
  %v3653 = vpow.pop %v3652
  %v3654 = vmul.f32 %v3615, 1.442695
  %v3655 = vpow.pop %v3654
  %v3656 = vsel %vm444, %v3617, 0.0
  %3657 = vadd.xlane.f32.xlu0 %v3656
  %v3658 = vpop.xlane.xlu0 %3657
  %v3659 = vsel %vm444, %v3619, 0.0
  %3660 = vadd.xlane.f32.xlu0 %v3659
  %v3661 = vpop.xlane.xlu0 %3660
  %v3662 = vsel %vm444, %v3621, 0.0
  %3663 = vadd.xlane.f32.xlu0 %v3662
  %v3664 = vpop.xlane.xlu0 %3663
  %v3665 = vsel %vm444, %v3623, 0.0
  %3666 = vadd.xlane.f32.xlu0 %v3665
  %v3667 = vpop.xlane.xlu0 %3666
  %v3668 = vsel %vm444, %v3625, 0.0
  %3669 = vadd.xlane.f32.xlu0 %v3668
  %v3670 = vpop.xlane.xlu0 %3669
  %v3671 = vsel %vm444, %v3627, 0.0
  %3672 = vadd.xlane.f32.xlu0 %v3671
  %v3673 = vpop.xlane.xlu0 %3672
  %v3674 = vsel %vm444, %v3629, 0.0
  %3675 = vadd.xlane.f32.xlu0 %v3674
  %v3676 = vpop.xlane.xlu0 %3675
  %v3677 = vsel %vm444, %v3631, 0.0
  %3678 = vadd.xlane.f32.xlu0 %v3677
  %v3679 = vpop.xlane.xlu0 %3678
  %v3680 = vsel %vm444, %v3633, 0.0
  %3681 = vadd.xlane.f32.xlu0 %v3680
  %v3682 = vpop.xlane.xlu0 %3681
  %v3683 = vsel %vm444, %v3635, 0.0
  %3684 = vadd.xlane.f32.xlu0 %v3683
  %v3685 = vpop.xlane.xlu0 %3684
  %v3686 = vsel %vm444, %v3637, 0.0
  %3687 = vadd.xlane.f32.xlu0 %v3686
  %v3688 = vpop.xlane.xlu0 %3687
  %v3689 = vsel %vm444, %v3639, 0.0
  %3690 = vadd.xlane.f32.xlu0 %v3689
  %v3691 = vpop.xlane.xlu0 %3690
  %v3692 = vsel %vm444, %v3641, 0.0
  %3693 = vadd.xlane.f32.xlu0 %v3692
  %v3694 = vpop.xlane.xlu0 %3693
  %v3695 = vsel %vm444, %v3643, 0.0
  %3696 = vadd.xlane.f32.xlu0 %v3695
  %v3697 = vpop.xlane.xlu0 %3696
  %v3698 = vsel %vm444, %v3645, 0.0
  %3699 = vadd.xlane.f32.xlu0 %v3698
  %v3700 = vpop.xlane.xlu0 %3699
  %v3701 = vsel %vm444, %v3647, 0.0
  %3702 = vadd.xlane.f32.xlu0 %v3701
  %v3703 = vpop.xlane.xlu0 %3702
  %v3704 = vsel %vm444, %v3649, 0.0
  %3705 = vadd.xlane.f32.xlu0 %v3704
  %v3706 = vpop.xlane.xlu0 %3705
  %v3707 = vsel %vm444, %v3651, 0.0
  %3708 = vadd.xlane.f32.xlu0 %v3707
  %v3709 = vpop.xlane.xlu0 %3708
  %v3710 = vsel %vm444, %v3653, 0.0
  %3711 = vadd.xlane.f32.xlu0 %v3710
  %v3712 = vpop.xlane.xlu0 %3711
  %v3713 = vsel %vm444, %v3655, 0.0
  %3714 = vadd.xlane.f32.xlu0 %v3713
  %v3715 = vpop.xlane.xlu0 %3714
  %v3716 = vrcp.pop %v3658
  %v3717 = vrcp.pop %v3661
  %v3718 = vrcp.pop %v3664
  %v3719 = vrcp.pop %v3667
  %v3720 = vrcp.pop %v3670
  %v3721 = vrcp.pop %v3673
  %v3722 = vrcp.pop %v3676
  %v3723 = vrcp.pop %v3679
  %v3724 = vrcp.pop %v3682
  %v3725 = vrcp.pop %v3685
  %v3726 = vrcp.pop %v3688
  %v3727 = vrcp.pop %v3691
  %v3728 = vrcp.pop %v3694
  %v3729 = vrcp.pop %v3697
  %v3730 = vrcp.pop %v3700
  %v3731 = vrcp.pop %v3703
  %v3732 = vrcp.pop %v3706
  %v3733 = vrcp.pop %v3709
  %v3734 = vrcp.pop %v3712
  %v3735 = vrcp.pop %v3715
  %v3736 = vmul.f32 %v3617, %v3716
  %v3737 = vmul.f32 %v3619, %v3717
  %v3738 = vmul.f32 %v3621, %v3718
  %v3739 = vmul.f32 %v3623, %v3719
  %v3740 = vmul.f32 %v3625, %v3720
  %v3741 = vmul.f32 %v3627, %v3721
  %v3742 = vmul.f32 %v3629, %v3722
  %v3743 = vmul.f32 %v3631, %v3723
  %v3744 = vmul.f32 %v3633, %v3724
  %v3745 = vmul.f32 %v3635, %v3725
  %v3746 = vmul.f32 %v3637, %v3726
  %v3747 = vmul.f32 %v3639, %v3727
  %v3748 = vmul.f32 %v3641, %v3728
  %v3749 = vmul.f32 %v3643, %v3729
  %v3750 = vmul.f32 %v3645, %v3730
  %v3751 = vmul.f32 %v3647, %v3731
  %v3752 = vmul.f32 %v3649, %v3732
  %v3753 = vmul.f32 %v3651, %v3733
  %v3754 = vmul.f32 %v3653, %v3734
  %v3755 = vmul.f32 %v3655, %v3735
  %v3756 = vpack.c.bf16 %v3736, %v3736
  %v3757 = vpack.c.bf16 %v3737, %v3737
  %v3758 = vpack.c.bf16 %v3738, %v3738
  %v3759 = vpack.c.bf16 %v3739, %v3739
  %v3760 = vpack.c.bf16 %v3740, %v3740
  %v3761 = vpack.c.bf16 %v3741, %v3741
  %v3762 = vpack.c.bf16 %v3742, %v3742
  %v3763 = vpack.c.bf16 %v3743, %v3743
  %v3764 = vpack.c.bf16 %v3744, %v3744
  %v3765 = vpack.c.bf16 %v3745, %v3745
  %v3766 = vpack.c.bf16 %v3746, %v3746
  %v3767 = vpack.c.bf16 %v3747, %v3747
  %v3768 = vpack.c.bf16 %v3748, %v3748
  %v3769 = vpack.c.bf16 %v3749, %v3749
  %v3770 = vpack.c.bf16 %v3750, %v3750
  %v3771 = vpack.c.bf16 %v3751, %v3751
  %v3772 = vpack.c.bf16 %v3752, %v3752
  %v3773 = vpack.c.bf16 %v3753, %v3753
  %v3774 = vpack.c.bf16 %v3754, %v3754
  %v3775 = vpack.c.bf16 %v3755, %v3755
  %3776 = vrot.lane.b32.xlu0 %v2436, 96
  %v3777 = vpop.permute.xlu0 %3776
  %v3779 = vsel %vm444, %v3756, 0
  %v3782 = vsel %vm498, %v3777, 0
  %3784 = vmatprep.subr.bf16.mxu0 0
  %3785 = vmatpush1.bf16.msra.mxu0 0
  %3786 = vmatprep.subr.bf16.mxu0 0
  %3787 = vmatpush1.bf16.msra.mxu0 0
  %3788 = vmatprep.subr.bf16.mxu0 0
  %3789 = vmatpush1.bf16.msra.mxu0 0
  %3790 = vmatprep.subr.bf16.mxu0 0
  %3791 = vmatpush1.bf16.msra.mxu0 0
  %3792 = vmatprep.subr.bf16.mxu0 0
  %3793 = vmatpush1.bf16.msra.mxu0 0
  %3794 = vmatprep.subr.bf16.mxu0 0
  %3795 = vmatpush1.bf16.msra.mxu0 0
  %3796 = vmatprep.subr.bf16.mxu0 0
  %3797 = vmatpush1.bf16.msra.mxu0 0
  %3798 = vmatprep.subr.bf16.mxu0 0
  %3799 = vmatpush1.bf16.msra.mxu0 %v3782
  %3800 = vmatprep.subr.bf16.mxu0 0
  %3801 = vmatpush2.bf16.msra.mxu0 0
  %3802 = vmatprep.subr.bf16.mxu0 0
  %3803 = vmatpush2.bf16.msra.mxu0 0
  %3804 = vmatprep.subr.bf16.mxu0 0
  %3805 = vmatpush2.bf16.msra.mxu0 0
  %3806 = vmatprep.subr.bf16.mxu0 0
  %3807 = vmatpush2.bf16.msra.mxu0 0
  %3808 = vmatprep.subr.bf16.mxu0 0
  %3809 = vmatpush2.bf16.msra.mxu0 0
  %3810 = vmatprep.subr.bf16.mxu0 0
  %3811 = vmatpush2.bf16.msra.mxu0 0
  %3812 = vmatprep.subr.bf16.mxu0 0
  %3813 = vmatpush2.bf16.msra.mxu0 0
  %3814 = vmatprep.subr.bf16.mxu0 0
  %3815 = vmatpush2.bf16.msra.mxu0 0
  %3816 = vmatprep.mubr.bf16.mxu0 0
  %3817 = vmatmul.mubr.bf16.gmra.mxu0 %v3779
  %v3818 = vpop.f32.mrf.mxu0
  %v3819 = vadd.f32 0.0, %v3818
  %v3820 = vpop.f32.mrf.mxu0
  %v3821 = vpop.f32.mrf.mxu0
  %v3822 = vpop.f32.mrf.mxu0
  %3823 = vdwg.mxu0
  %3824 = vrot.lane.b32.xlu0 %v2437, 96
  %v3825 = vpop.permute.xlu0 %3824
  %v3827 = vsel %vm444, %v3757, 0
  %v3830 = vsel %vm498, %v3825, 0
  %3832 = vmatprep.subr.bf16.mxu0 0
  %3833 = vmatpush1.bf16.msra.mxu0 0
  %3834 = vmatprep.subr.bf16.mxu0 0
  %3835 = vmatpush1.bf16.msra.mxu0 0
  %3836 = vmatprep.subr.bf16.mxu0 0
  %3837 = vmatpush1.bf16.msra.mxu0 0
  %3838 = vmatprep.subr.bf16.mxu0 0
  %3839 = vmatpush1.bf16.msra.mxu0 0
  %3840 = vmatprep.subr.bf16.mxu0 0
  %3841 = vmatpush1.bf16.msra.mxu0 0
  %3842 = vmatprep.subr.bf16.mxu0 0
  %3843 = vmatpush1.bf16.msra.mxu0 0
  %3844 = vmatprep.subr.bf16.mxu0 0
  %3845 = vmatpush1.bf16.msra.mxu0 0
  %3846 = vmatprep.subr.bf16.mxu0 0
  %3847 = vmatpush1.bf16.msra.mxu0 %v3830
  %3848 = vmatprep.subr.bf16.mxu0 0
  %3849 = vmatpush2.bf16.msra.mxu0 0
  %3850 = vmatprep.subr.bf16.mxu0 0
  %3851 = vmatpush2.bf16.msra.mxu0 0
  %3852 = vmatprep.subr.bf16.mxu0 0
  %3853 = vmatpush2.bf16.msra.mxu0 0
  %3854 = vmatprep.subr.bf16.mxu0 0
  %3855 = vmatpush2.bf16.msra.mxu0 0
  %3856 = vmatprep.subr.bf16.mxu0 0
  %3857 = vmatpush2.bf16.msra.mxu0 0
  %3858 = vmatprep.subr.bf16.mxu0 0
  %3859 = vmatpush2.bf16.msra.mxu0 0
  %3860 = vmatprep.subr.bf16.mxu0 0
  %3861 = vmatpush2.bf16.msra.mxu0 0
  %3862 = vmatprep.subr.bf16.mxu0 0
  %3863 = vmatpush2.bf16.msra.mxu0 0
  %3864 = vmatprep.mubr.bf16.mxu0 0
  %3865 = vmatmul.mubr.bf16.gmra.mxu0 %v3827
  %v3866 = vpop.f32.mrf.mxu0
  %v3867 = vadd.f32 0.0, %v3866
  %v3868 = vpop.f32.mrf.mxu0
  %v3869 = vpop.f32.mrf.mxu0
  %v3870 = vpop.f32.mrf.mxu0
  %3871 = vdwg.mxu0
  %3872 = vrot.lane.b32.xlu0 %v2438, 96
  %v3873 = vpop.permute.xlu0 %3872
  %v3875 = vsel %vm444, %v3758, 0
  %v3878 = vsel %vm498, %v3873, 0
  %3880 = vmatprep.subr.bf16.mxu0 0
  %3881 = vmatpush1.bf16.msra.mxu0 0
  %3882 = vmatprep.subr.bf16.mxu0 0
  %3883 = vmatpush1.bf16.msra.mxu0 0
  %3884 = vmatprep.subr.bf16.mxu0 0
  %3885 = vmatpush1.bf16.msra.mxu0 0
  %3886 = vmatprep.subr.bf16.mxu0 0
  %3887 = vmatpush1.bf16.msra.mxu0 0
  %3888 = vmatprep.subr.bf16.mxu0 0
  %3889 = vmatpush1.bf16.msra.mxu0 0
  %3890 = vmatprep.subr.bf16.mxu0 0
  %3891 = vmatpush1.bf16.msra.mxu0 0
  %3892 = vmatprep.subr.bf16.mxu0 0
  %3893 = vmatpush1.bf16.msra.mxu0 0
  %3894 = vmatprep.subr.bf16.mxu0 0
  %3895 = vmatpush1.bf16.msra.mxu0 %v3878
  %3896 = vmatprep.subr.bf16.mxu0 0
  %3897 = vmatpush2.bf16.msra.mxu0 0
  %3898 = vmatprep.subr.bf16.mxu0 0
  %3899 = vmatpush2.bf16.msra.mxu0 0
  %3900 = vmatprep.subr.bf16.mxu0 0
  %3901 = vmatpush2.bf16.msra.mxu0 0
  %3902 = vmatprep.subr.bf16.mxu0 0
  %3903 = vmatpush2.bf16.msra.mxu0 0
  %3904 = vmatprep.subr.bf16.mxu0 0
  %3905 = vmatpush2.bf16.msra.mxu0 0
  %3906 = vmatprep.subr.bf16.mxu0 0
  %3907 = vmatpush2.bf16.msra.mxu0 0
  %3908 = vmatprep.subr.bf16.mxu0 0
  %3909 = vmatpush2.bf16.msra.mxu0 0
  %3910 = vmatprep.subr.bf16.mxu0 0
  %3911 = vmatpush2.bf16.msra.mxu0 0
  %3912 = vmatprep.mubr.bf16.mxu0 0
  %3913 = vmatmul.mubr.bf16.gmra.mxu0 %v3875
  %v3914 = vpop.f32.mrf.mxu0
  %v3915 = vadd.f32 0.0, %v3914
  %v3916 = vpop.f32.mrf.mxu0
  %v3917 = vpop.f32.mrf.mxu0
  %v3918 = vpop.f32.mrf.mxu0
  %3919 = vdwg.mxu0
  %3920 = vrot.lane.b32.xlu0 %v2439, 96
  %v3921 = vpop.permute.xlu0 %3920
  %v3923 = vsel %vm444, %v3759, 0
  %v3926 = vsel %vm498, %v3921, 0
  %3928 = vmatprep.subr.bf16.mxu0 0
  %3929 = vmatpush1.bf16.msra.mxu0 0
  %3930 = vmatprep.subr.bf16.mxu0 0
  %3931 = vmatpush1.bf16.msra.mxu0 0
  %3932 = vmatprep.subr.bf16.mxu0 0
  %3933 = vmatpush1.bf16.msra.mxu0 0
  %3934 = vmatprep.subr.bf16.mxu0 0
  %3935 = vmatpush1.bf16.msra.mxu0 0
  %3936 = vmatprep.subr.bf16.mxu0 0
  %3937 = vmatpush1.bf16.msra.mxu0 0
  %3938 = vmatprep.subr.bf16.mxu0 0
  %3939 = vmatpush1.bf16.msra.mxu0 0
  %3940 = vmatprep.subr.bf16.mxu0 0
  %3941 = vmatpush1.bf16.msra.mxu0 0
  %3942 = vmatprep.subr.bf16.mxu0 0
  %3943 = vmatpush1.bf16.msra.mxu0 %v3926
  %3944 = vmatprep.subr.bf16.mxu0 0
  %3945 = vmatpush2.bf16.msra.mxu0 0
  %3946 = vmatprep.subr.bf16.mxu0 0
  %3947 = vmatpush2.bf16.msra.mxu0 0
  %3948 = vmatprep.subr.bf16.mxu0 0
  %3949 = vmatpush2.bf16.msra.mxu0 0
  %3950 = vmatprep.subr.bf16.mxu0 0
  %3951 = vmatpush2.bf16.msra.mxu0 0
  %3952 = vmatprep.subr.bf16.mxu0 0
  %3953 = vmatpush2.bf16.msra.mxu0 0
  %3954 = vmatprep.subr.bf16.mxu0 0
  %3955 = vmatpush2.bf16.msra.mxu0 0
  %3956 = vmatprep.subr.bf16.mxu0 0
  %3957 = vmatpush2.bf16.msra.mxu0 0
  %3958 = vmatprep.subr.bf16.mxu0 0
  %3959 = vmatpush2.bf16.msra.mxu0 0
  %3960 = vmatprep.mubr.bf16.mxu0 0
  %3961 = vmatmul.mubr.bf16.gmra.mxu0 %v3923
  %v3962 = vpop.f32.mrf.mxu0
  %v3963 = vadd.f32 0.0, %v3962
  %v3964 = vpop.f32.mrf.mxu0
  %v3965 = vpop.f32.mrf.mxu0
  %v3966 = vpop.f32.mrf.mxu0
  %3967 = vdwg.mxu0
  %3968 = vrot.lane.b32.xlu0 %v2440, 96
  %v3969 = vpop.permute.xlu0 %3968
  %v3971 = vsel %vm444, %v3760, 0
  %v3974 = vsel %vm498, %v3969, 0
  %3976 = vmatprep.subr.bf16.mxu0 0
  %3977 = vmatpush1.bf16.msra.mxu0 0
  %3978 = vmatprep.subr.bf16.mxu0 0
  %3979 = vmatpush1.bf16.msra.mxu0 0
  %3980 = vmatprep.subr.bf16.mxu0 0
  %3981 = vmatpush1.bf16.msra.mxu0 0
  %3982 = vmatprep.subr.bf16.mxu0 0
  %3983 = vmatpush1.bf16.msra.mxu0 0
  %3984 = vmatprep.subr.bf16.mxu0 0
  %3985 = vmatpush1.bf16.msra.mxu0 0
  %3986 = vmatprep.subr.bf16.mxu0 0
  %3987 = vmatpush1.bf16.msra.mxu0 0
  %3988 = vmatprep.subr.bf16.mxu0 0
  %3989 = vmatpush1.bf16.msra.mxu0 0
  %3990 = vmatprep.subr.bf16.mxu0 0
  %3991 = vmatpush1.bf16.msra.mxu0 %v3974
  %3992 = vmatprep.subr.bf16.mxu0 0
  %3993 = vmatpush2.bf16.msra.mxu0 0
  %3994 = vmatprep.subr.bf16.mxu0 0
  %3995 = vmatpush2.bf16.msra.mxu0 0
  %3996 = vmatprep.subr.bf16.mxu0 0
  %3997 = vmatpush2.bf16.msra.mxu0 0
  %3998 = vmatprep.subr.bf16.mxu0 0
  %3999 = vmatpush2.bf16.msra.mxu0 0
  %4000 = vmatprep.subr.bf16.mxu0 0
  %4001 = vmatpush2.bf16.msra.mxu0 0
  %4002 = vmatprep.subr.bf16.mxu0 0
  %4003 = vmatpush2.bf16.msra.mxu0 0
  %4004 = vmatprep.subr.bf16.mxu0 0
  %4005 = vmatpush2.bf16.msra.mxu0 0
  %4006 = vmatprep.subr.bf16.mxu0 0
  %4007 = vmatpush2.bf16.msra.mxu0 0
  %4008 = vmatprep.mubr.bf16.mxu0 0
  %4009 = vmatmul.mubr.bf16.gmra.mxu0 %v3971
  %v4010 = vpop.f32.mrf.mxu0
  %v4011 = vadd.f32 0.0, %v4010
  %v4012 = vpop.f32.mrf.mxu0
  %v4013 = vpop.f32.mrf.mxu0
  %v4014 = vpop.f32.mrf.mxu0
  %4015 = vdwg.mxu0
  %4016 = vrot.lane.b32.xlu0 %v2441, 96
  %v4017 = vpop.permute.xlu0 %4016
  %v4019 = vsel %vm444, %v3761, 0
  %v4022 = vsel %vm498, %v4017, 0
  %4024 = vmatprep.subr.bf16.mxu0 0
  %4025 = vmatpush1.bf16.msra.mxu0 0
  %4026 = vmatprep.subr.bf16.mxu0 0
  %4027 = vmatpush1.bf16.msra.mxu0 0
  %4028 = vmatprep.subr.bf16.mxu0 0
  %4029 = vmatpush1.bf16.msra.mxu0 0
  %4030 = vmatprep.subr.bf16.mxu0 0
  %4031 = vmatpush1.bf16.msra.mxu0 0
  %4032 = vmatprep.subr.bf16.mxu0 0
  %4033 = vmatpush1.bf16.msra.mxu0 0
  %4034 = vmatprep.subr.bf16.mxu0 0
  %4035 = vmatpush1.bf16.msra.mxu0 0
  %4036 = vmatprep.subr.bf16.mxu0 0
  %4037 = vmatpush1.bf16.msra.mxu0 0
  %4038 = vmatprep.subr.bf16.mxu0 0
  %4039 = vmatpush1.bf16.msra.mxu0 %v4022
  %4040 = vmatprep.subr.bf16.mxu0 0
  %4041 = vmatpush2.bf16.msra.mxu0 0
  %4042 = vmatprep.subr.bf16.mxu0 0
  %4043 = vmatpush2.bf16.msra.mxu0 0
  %4044 = vmatprep.subr.bf16.mxu0 0
  %4045 = vmatpush2.bf16.msra.mxu0 0
  %4046 = vmatprep.subr.bf16.mxu0 0
  %4047 = vmatpush2.bf16.msra.mxu0 0
  %4048 = vmatprep.subr.bf16.mxu0 0
  %4049 = vmatpush2.bf16.msra.mxu0 0
  %4050 = vmatprep.subr.bf16.mxu0 0
  %4051 = vmatpush2.bf16.msra.mxu0 0
  %4052 = vmatprep.subr.bf16.mxu0 0
  %4053 = vmatpush2.bf16.msra.mxu0 0
  %4054 = vmatprep.subr.bf16.mxu0 0
  %4055 = vmatpush2.bf16.msra.mxu0 0
  %4056 = vmatprep.mubr.bf16.mxu0 0
  %4057 = vmatmul.mubr.bf16.gmra.mxu0 %v4019
  %v4058 = vpop.f32.mrf.mxu0
  %v4059 = vadd.f32 0.0, %v4058
  %v4060 = vpop.f32.mrf.mxu0
  %v4061 = vpop.f32.mrf.mxu0
  %v4062 = vpop.f32.mrf.mxu0
  %4063 = vdwg.mxu0
  %4064 = vrot.lane.b32.xlu0 %v2442, 96
  %v4065 = vpop.permute.xlu0 %4064
  %v4067 = vsel %vm444, %v3762, 0
  %v4070 = vsel %vm498, %v4065, 0
  %4072 = vmatprep.subr.bf16.mxu0 0
  %4073 = vmatpush1.bf16.msra.mxu0 0
  %4074 = vmatprep.subr.bf16.mxu0 0
  %4075 = vmatpush1.bf16.msra.mxu0 0
  %4076 = vmatprep.subr.bf16.mxu0 0
  %4077 = vmatpush1.bf16.msra.mxu0 0
  %4078 = vmatprep.subr.bf16.mxu0 0
  %4079 = vmatpush1.bf16.msra.mxu0 0
  %4080 = vmatprep.subr.bf16.mxu0 0
  %4081 = vmatpush1.bf16.msra.mxu0 0
  %4082 = vmatprep.subr.bf16.mxu0 0
  %4083 = vmatpush1.bf16.msra.mxu0 0
  %4084 = vmatprep.subr.bf16.mxu0 0
  %4085 = vmatpush1.bf16.msra.mxu0 0
  %4086 = vmatprep.subr.bf16.mxu0 0
  %4087 = vmatpush1.bf16.msra.mxu0 %v4070
  %4088 = vmatprep.subr.bf16.mxu0 0
  %4089 = vmatpush2.bf16.msra.mxu0 0
  %4090 = vmatprep.subr.bf16.mxu0 0
  %4091 = vmatpush2.bf16.msra.mxu0 0
  %4092 = vmatprep.subr.bf16.mxu0 0
  %4093 = vmatpush2.bf16.msra.mxu0 0
  %4094 = vmatprep.subr.bf16.mxu0 0
  %4095 = vmatpush2.bf16.msra.mxu0 0
  %4096 = vmatprep.subr.bf16.mxu0 0
  %4097 = vmatpush2.bf16.msra.mxu0 0
  %4098 = vmatprep.subr.bf16.mxu0 0
  %4099 = vmatpush2.bf16.msra.mxu0 0
  %4100 = vmatprep.subr.bf16.mxu0 0
  %4101 = vmatpush2.bf16.msra.mxu0 0
  %4102 = vmatprep.subr.bf16.mxu0 0
  %4103 = vmatpush2.bf16.msra.mxu0 0
  %4104 = vmatprep.mubr.bf16.mxu0 0
  %4105 = vmatmul.mubr.bf16.gmra.mxu0 %v4067
  %v4106 = vpop.f32.mrf.mxu0
  %v4107 = vadd.f32 0.0, %v4106
  %v4108 = vpop.f32.mrf.mxu0
  %v4109 = vpop.f32.mrf.mxu0
  %v4110 = vpop.f32.mrf.mxu0
  %4111 = vdwg.mxu0
  %4112 = vrot.lane.b32.xlu0 %v2443, 96
  %v4113 = vpop.permute.xlu0 %4112
  %v4115 = vsel %vm444, %v3763, 0
  %v4118 = vsel %vm498, %v4113, 0
  %4120 = vmatprep.subr.bf16.mxu0 0
  %4121 = vmatpush1.bf16.msra.mxu0 0
  %4122 = vmatprep.subr.bf16.mxu0 0
  %4123 = vmatpush1.bf16.msra.mxu0 0
  %4124 = vmatprep.subr.bf16.mxu0 0
  %4125 = vmatpush1.bf16.msra.mxu0 0
  %4126 = vmatprep.subr.bf16.mxu0 0
  %4127 = vmatpush1.bf16.msra.mxu0 0
  %4128 = vmatprep.subr.bf16.mxu0 0
  %4129 = vmatpush1.bf16.msra.mxu0 0
  %4130 = vmatprep.subr.bf16.mxu0 0
  %4131 = vmatpush1.bf16.msra.mxu0 0
  %4132 = vmatprep.subr.bf16.mxu0 0
  %4133 = vmatpush1.bf16.msra.mxu0 0
  %4134 = vmatprep.subr.bf16.mxu0 0
  %4135 = vmatpush1.bf16.msra.mxu0 %v4118
  %4136 = vmatprep.subr.bf16.mxu0 0
  %4137 = vmatpush2.bf16.msra.mxu0 0
  %4138 = vmatprep.subr.bf16.mxu0 0
  %4139 = vmatpush2.bf16.msra.mxu0 0
  %4140 = vmatprep.subr.bf16.mxu0 0
  %4141 = vmatpush2.bf16.msra.mxu0 0
  %4142 = vmatprep.subr.bf16.mxu0 0
  %4143 = vmatpush2.bf16.msra.mxu0 0
  %4144 = vmatprep.subr.bf16.mxu0 0
  %4145 = vmatpush2.bf16.msra.mxu0 0
  %4146 = vmatprep.subr.bf16.mxu0 0
  %4147 = vmatpush2.bf16.msra.mxu0 0
  %4148 = vmatprep.subr.bf16.mxu0 0
  %4149 = vmatpush2.bf16.msra.mxu0 0
  %4150 = vmatprep.subr.bf16.mxu0 0
  %4151 = vmatpush2.bf16.msra.mxu0 0
  %4152 = vmatprep.mubr.bf16.mxu0 0
  %4153 = vmatmul.mubr.bf16.gmra.mxu0 %v4115
  %v4154 = vpop.f32.mrf.mxu0
  %v4155 = vadd.f32 0.0, %v4154
  %v4156 = vpop.f32.mrf.mxu0
  %v4157 = vpop.f32.mrf.mxu0
  %v4158 = vpop.f32.mrf.mxu0
  %4159 = vdwg.mxu0
  %4160 = vrot.lane.b32.xlu0 %v2444, 96
  %v4161 = vpop.permute.xlu0 %4160
  %v4163 = vsel %vm444, %v3764, 0
  %v4166 = vsel %vm498, %v4161, 0
  %4168 = vmatprep.subr.bf16.mxu0 0
  %4169 = vmatpush1.bf16.msra.mxu0 0
  %4170 = vmatprep.subr.bf16.mxu0 0
  %4171 = vmatpush1.bf16.msra.mxu0 0
  %4172 = vmatprep.subr.bf16.mxu0 0
  %4173 = vmatpush1.bf16.msra.mxu0 0
  %4174 = vmatprep.subr.bf16.mxu0 0
  %4175 = vmatpush1.bf16.msra.mxu0 0
  %4176 = vmatprep.subr.bf16.mxu0 0
  %4177 = vmatpush1.bf16.msra.mxu0 0
  %4178 = vmatprep.subr.bf16.mxu0 0
  %4179 = vmatpush1.bf16.msra.mxu0 0
  %4180 = vmatprep.subr.bf16.mxu0 0
  %4181 = vmatpush1.bf16.msra.mxu0 0
  %4182 = vmatprep.subr.bf16.mxu0 0
  %4183 = vmatpush1.bf16.msra.mxu0 %v4166
  %4184 = vmatprep.subr.bf16.mxu0 0
  %4185 = vmatpush2.bf16.msra.mxu0 0
  %4186 = vmatprep.subr.bf16.mxu0 0
  %4187 = vmatpush2.bf16.msra.mxu0 0
  %4188 = vmatprep.subr.bf16.mxu0 0
  %4189 = vmatpush2.bf16.msra.mxu0 0
  %4190 = vmatprep.subr.bf16.mxu0 0
  %4191 = vmatpush2.bf16.msra.mxu0 0
  %4192 = vmatprep.subr.bf16.mxu0 0
  %4193 = vmatpush2.bf16.msra.mxu0 0
  %4194 = vmatprep.subr.bf16.mxu0 0
  %4195 = vmatpush2.bf16.msra.mxu0 0
  %4196 = vmatprep.subr.bf16.mxu0 0
  %4197 = vmatpush2.bf16.msra.mxu0 0
  %4198 = vmatprep.subr.bf16.mxu0 0
  %4199 = vmatpush2.bf16.msra.mxu0 0
  %4200 = vmatprep.mubr.bf16.mxu0 0
  %4201 = vmatmul.mubr.bf16.gmra.mxu0 %v4163
  %v4202 = vpop.f32.mrf.mxu0
  %v4203 = vadd.f32 0.0, %v4202
  %v4204 = vpop.f32.mrf.mxu0
  %v4205 = vpop.f32.mrf.mxu0
  %v4206 = vpop.f32.mrf.mxu0
  %4207 = vdwg.mxu0
  %4208 = vrot.lane.b32.xlu0 %v2445, 96
  %v4209 = vpop.permute.xlu0 %4208
  %v4211 = vsel %vm444, %v3765, 0
  %v4214 = vsel %vm498, %v4209, 0
  %4216 = vmatprep.subr.bf16.mxu0 0
  %4217 = vmatpush1.bf16.msra.mxu0 0
  %4218 = vmatprep.subr.bf16.mxu0 0
  %4219 = vmatpush1.bf16.msra.mxu0 0
  %4220 = vmatprep.subr.bf16.mxu0 0
  %4221 = vmatpush1.bf16.msra.mxu0 0
  %4222 = vmatprep.subr.bf16.mxu0 0
  %4223 = vmatpush1.bf16.msra.mxu0 0
  %4224 = vmatprep.subr.bf16.mxu0 0
  %4225 = vmatpush1.bf16.msra.mxu0 0
  %4226 = vmatprep.subr.bf16.mxu0 0
  %4227 = vmatpush1.bf16.msra.mxu0 0
  %4228 = vmatprep.subr.bf16.mxu0 0
  %4229 = vmatpush1.bf16.msra.mxu0 0
  %4230 = vmatprep.subr.bf16.mxu0 0
  %4231 = vmatpush1.bf16.msra.mxu0 %v4214
  %4232 = vmatprep.subr.bf16.mxu0 0
  %4233 = vmatpush2.bf16.msra.mxu0 0
  %4234 = vmatprep.subr.bf16.mxu0 0
  %4235 = vmatpush2.bf16.msra.mxu0 0
  %4236 = vmatprep.subr.bf16.mxu0 0
  %4237 = vmatpush2.bf16.msra.mxu0 0
  %4238 = vmatprep.subr.bf16.mxu0 0
  %4239 = vmatpush2.bf16.msra.mxu0 0
  %4240 = vmatprep.subr.bf16.mxu0 0
  %4241 = vmatpush2.bf16.msra.mxu0 0
  %4242 = vmatprep.subr.bf16.mxu0 0
  %4243 = vmatpush2.bf16.msra.mxu0 0
  %4244 = vmatprep.subr.bf16.mxu0 0
  %4245 = vmatpush2.bf16.msra.mxu0 0
  %4246 = vmatprep.subr.bf16.mxu0 0
  %4247 = vmatpush2.bf16.msra.mxu0 0
  %4248 = vmatprep.mubr.bf16.mxu0 0
  %4249 = vmatmul.mubr.bf16.gmra.mxu0 %v4211
  %v4250 = vpop.f32.mrf.mxu0
  %v4251 = vadd.f32 0.0, %v4250
  %v4252 = vpop.f32.mrf.mxu0
  %v4253 = vpop.f32.mrf.mxu0
  %v4254 = vpop.f32.mrf.mxu0
  %4255 = vdwg.mxu0
  %4256 = vrot.lane.b32.xlu0 %v2446, 96
  %v4257 = vpop.permute.xlu0 %4256
  %v4259 = vsel %vm444, %v3766, 0
  %v4262 = vsel %vm498, %v4257, 0
  %4264 = vmatprep.subr.bf16.mxu0 0
  %4265 = vmatpush1.bf16.msra.mxu0 0
  %4266 = vmatprep.subr.bf16.mxu0 0
  %4267 = vmatpush1.bf16.msra.mxu0 0
  %4268 = vmatprep.subr.bf16.mxu0 0
  %4269 = vmatpush1.bf16.msra.mxu0 0
  %4270 = vmatprep.subr.bf16.mxu0 0
  %4271 = vmatpush1.bf16.msra.mxu0 0
  %4272 = vmatprep.subr.bf16.mxu0 0
  %4273 = vmatpush1.bf16.msra.mxu0 0
  %4274 = vmatprep.subr.bf16.mxu0 0
  %4275 = vmatpush1.bf16.msra.mxu0 0
  %4276 = vmatprep.subr.bf16.mxu0 0
  %4277 = vmatpush1.bf16.msra.mxu0 0
  %4278 = vmatprep.subr.bf16.mxu0 0
  %4279 = vmatpush1.bf16.msra.mxu0 %v4262
  %4280 = vmatprep.subr.bf16.mxu0 0
  %4281 = vmatpush2.bf16.msra.mxu0 0
  %4282 = vmatprep.subr.bf16.mxu0 0
  %4283 = vmatpush2.bf16.msra.mxu0 0
  %4284 = vmatprep.subr.bf16.mxu0 0
  %4285 = vmatpush2.bf16.msra.mxu0 0
  %4286 = vmatprep.subr.bf16.mxu0 0
  %4287 = vmatpush2.bf16.msra.mxu0 0
  %4288 = vmatprep.subr.bf16.mxu0 0
  %4289 = vmatpush2.bf16.msra.mxu0 0
  %4290 = vmatprep.subr.bf16.mxu0 0
  %4291 = vmatpush2.bf16.msra.mxu0 0
  %4292 = vmatprep.subr.bf16.mxu0 0
  %4293 = vmatpush2.bf16.msra.mxu0 0
  %4294 = vmatprep.subr.bf16.mxu0 0
  %4295 = vmatpush2.bf16.msra.mxu0 0
  %4296 = vmatprep.mubr.bf16.mxu0 0
  %4297 = vmatmul.mubr.bf16.gmra.mxu0 %v4259
  %v4298 = vpop.f32.mrf.mxu0
  %v4299 = vadd.f32 0.0, %v4298
  %v4300 = vpop.f32.mrf.mxu0
  %v4301 = vpop.f32.mrf.mxu0
  %v4302 = vpop.f32.mrf.mxu0
  %4303 = vdwg.mxu0
  %4304 = vrot.lane.b32.xlu0 %v2447, 96
  %v4305 = vpop.permute.xlu0 %4304
  %v4307 = vsel %vm444, %v3767, 0
  %v4310 = vsel %vm498, %v4305, 0
  %4312 = vmatprep.subr.bf16.mxu0 0
  %4313 = vmatpush1.bf16.msra.mxu0 0
  %4314 = vmatprep.subr.bf16.mxu0 0
  %4315 = vmatpush1.bf16.msra.mxu0 0
  %4316 = vmatprep.subr.bf16.mxu0 0
  %4317 = vmatpush1.bf16.msra.mxu0 0
  %4318 = vmatprep.subr.bf16.mxu0 0
  %4319 = vmatpush1.bf16.msra.mxu0 0
  %4320 = vmatprep.subr.bf16.mxu0 0
  %4321 = vmatpush1.bf16.msra.mxu0 0
  %4322 = vmatprep.subr.bf16.mxu0 0
  %4323 = vmatpush1.bf16.msra.mxu0 0
  %4324 = vmatprep.subr.bf16.mxu0 0
  %4325 = vmatpush1.bf16.msra.mxu0 0
  %4326 = vmatprep.subr.bf16.mxu0 0
  %4327 = vmatpush1.bf16.msra.mxu0 %v4310
  %4328 = vmatprep.subr.bf16.mxu0 0
  %4329 = vmatpush2.bf16.msra.mxu0 0
  %4330 = vmatprep.subr.bf16.mxu0 0
  %4331 = vmatpush2.bf16.msra.mxu0 0
  %4332 = vmatprep.subr.bf16.mxu0 0
  %4333 = vmatpush2.bf16.msra.mxu0 0
  %4334 = vmatprep.subr.bf16.mxu0 0
  %4335 = vmatpush2.bf16.msra.mxu0 0
  %4336 = vmatprep.subr.bf16.mxu0 0
  %4337 = vmatpush2.bf16.msra.mxu0 0
  %4338 = vmatprep.subr.bf16.mxu0 0
  %4339 = vmatpush2.bf16.msra.mxu0 0
  %4340 = vmatprep.subr.bf16.mxu0 0
  %4341 = vmatpush2.bf16.msra.mxu0 0
  %4342 = vmatprep.subr.bf16.mxu0 0
  %4343 = vmatpush2.bf16.msra.mxu0 0
  %4344 = vmatprep.mubr.bf16.mxu0 0
  %4345 = vmatmul.mubr.bf16.gmra.mxu0 %v4307
  %v4346 = vpop.f32.mrf.mxu0
  %v4347 = vadd.f32 0.0, %v4346
  %v4348 = vpop.f32.mrf.mxu0
  %v4349 = vpop.f32.mrf.mxu0
  %v4350 = vpop.f32.mrf.mxu0
  %4351 = vdwg.mxu0
  %4352 = vrot.lane.b32.xlu0 %v2448, 96
  %v4353 = vpop.permute.xlu0 %4352
  %v4355 = vsel %vm444, %v3768, 0
  %v4358 = vsel %vm498, %v4353, 0
  %4360 = vmatprep.subr.bf16.mxu0 0
  %4361 = vmatpush1.bf16.msra.mxu0 0
  %4362 = vmatprep.subr.bf16.mxu0 0
  %4363 = vmatpush1.bf16.msra.mxu0 0
  %4364 = vmatprep.subr.bf16.mxu0 0
  %4365 = vmatpush1.bf16.msra.mxu0 0
  %4366 = vmatprep.subr.bf16.mxu0 0
  %4367 = vmatpush1.bf16.msra.mxu0 0
  %4368 = vmatprep.subr.bf16.mxu0 0
  %4369 = vmatpush1.bf16.msra.mxu0 0
  %4370 = vmatprep.subr.bf16.mxu0 0
  %4371 = vmatpush1.bf16.msra.mxu0 0
  %4372 = vmatprep.subr.bf16.mxu0 0
  %4373 = vmatpush1.bf16.msra.mxu0 0
  %4374 = vmatprep.subr.bf16.mxu0 0
  %4375 = vmatpush1.bf16.msra.mxu0 %v4358
  %4376 = vmatprep.subr.bf16.mxu0 0
  %4377 = vmatpush2.bf16.msra.mxu0 0
  %4378 = vmatprep.subr.bf16.mxu0 0
  %4379 = vmatpush2.bf16.msra.mxu0 0
  %4380 = vmatprep.subr.bf16.mxu0 0
  %4381 = vmatpush2.bf16.msra.mxu0 0
  %4382 = vmatprep.subr.bf16.mxu0 0
  %4383 = vmatpush2.bf16.msra.mxu0 0
  %4384 = vmatprep.subr.bf16.mxu0 0
  %4385 = vmatpush2.bf16.msra.mxu0 0
  %4386 = vmatprep.subr.bf16.mxu0 0
  %4387 = vmatpush2.bf16.msra.mxu0 0
  %4388 = vmatprep.subr.bf16.mxu0 0
  %4389 = vmatpush2.bf16.msra.mxu0 0
  %4390 = vmatprep.subr.bf16.mxu0 0
  %4391 = vmatpush2.bf16.msra.mxu0 0
  %4392 = vmatprep.mubr.bf16.mxu0 0
  %4393 = vmatmul.mubr.bf16.gmra.mxu0 %v4355
  %v4394 = vpop.f32.mrf.mxu0
  %v4395 = vadd.f32 0.0, %v4394
  %v4396 = vpop.f32.mrf.mxu0
  %v4397 = vpop.f32.mrf.mxu0
  %v4398 = vpop.f32.mrf.mxu0
  %4399 = vdwg.mxu0
  %4400 = vrot.lane.b32.xlu0 %v2449, 96
  %v4401 = vpop.permute.xlu0 %4400
  %v4403 = vsel %vm444, %v3769, 0
  %v4406 = vsel %vm498, %v4401, 0
  %4408 = vmatprep.subr.bf16.mxu0 0
  %4409 = vmatpush1.bf16.msra.mxu0 0
  %4410 = vmatprep.subr.bf16.mxu0 0
  %4411 = vmatpush1.bf16.msra.mxu0 0
  %4412 = vmatprep.subr.bf16.mxu0 0
  %4413 = vmatpush1.bf16.msra.mxu0 0
  %4414 = vmatprep.subr.bf16.mxu0 0
  %4415 = vmatpush1.bf16.msra.mxu0 0
  %4416 = vmatprep.subr.bf16.mxu0 0
  %4417 = vmatpush1.bf16.msra.mxu0 0
  %4418 = vmatprep.subr.bf16.mxu0 0
  %4419 = vmatpush1.bf16.msra.mxu0 0
  %4420 = vmatprep.subr.bf16.mxu0 0
  %4421 = vmatpush1.bf16.msra.mxu0 0
  %4422 = vmatprep.subr.bf16.mxu0 0
  %4423 = vmatpush1.bf16.msra.mxu0 %v4406
  %4424 = vmatprep.subr.bf16.mxu0 0
  %4425 = vmatpush2.bf16.msra.mxu0 0
  %4426 = vmatprep.subr.bf16.mxu0 0
  %4427 = vmatpush2.bf16.msra.mxu0 0
  %4428 = vmatprep.subr.bf16.mxu0 0
  %4429 = vmatpush2.bf16.msra.mxu0 0
  %4430 = vmatprep.subr.bf16.mxu0 0
  %4431 = vmatpush2.bf16.msra.mxu0 0
  %4432 = vmatprep.subr.bf16.mxu0 0
  %4433 = vmatpush2.bf16.msra.mxu0 0
  %4434 = vmatprep.subr.bf16.mxu0 0
  %4435 = vmatpush2.bf16.msra.mxu0 0
  %4436 = vmatprep.subr.bf16.mxu0 0
  %4437 = vmatpush2.bf16.msra.mxu0 0
  %4438 = vmatprep.subr.bf16.mxu0 0
  %4439 = vmatpush2.bf16.msra.mxu0 0
  %4440 = vmatprep.mubr.bf16.mxu0 0
  %4441 = vmatmul.mubr.bf16.gmra.mxu0 %v4403
  %v4442 = vpop.f32.mrf.mxu0
  %v4443 = vadd.f32 0.0, %v4442
  %v4444 = vpop.f32.mrf.mxu0
  %v4445 = vpop.f32.mrf.mxu0
  %v4446 = vpop.f32.mrf.mxu0
  %4447 = vdwg.mxu0
  %4448 = vrot.lane.b32.xlu0 %v2450, 96
  %v4449 = vpop.permute.xlu0 %4448
  %v4451 = vsel %vm444, %v3770, 0
  %v4454 = vsel %vm498, %v4449, 0
  %4456 = vmatprep.subr.bf16.mxu0 0
  %4457 = vmatpush1.bf16.msra.mxu0 0
  %4458 = vmatprep.subr.bf16.mxu0 0
  %4459 = vmatpush1.bf16.msra.mxu0 0
  %4460 = vmatprep.subr.bf16.mxu0 0
  %4461 = vmatpush1.bf16.msra.mxu0 0
  %4462 = vmatprep.subr.bf16.mxu0 0
  %4463 = vmatpush1.bf16.msra.mxu0 0
  %4464 = vmatprep.subr.bf16.mxu0 0
  %4465 = vmatpush1.bf16.msra.mxu0 0
  %4466 = vmatprep.subr.bf16.mxu0 0
  %4467 = vmatpush1.bf16.msra.mxu0 0
  %4468 = vmatprep.subr.bf16.mxu0 0
  %4469 = vmatpush1.bf16.msra.mxu0 0
  %4470 = vmatprep.subr.bf16.mxu0 0
  %4471 = vmatpush1.bf16.msra.mxu0 %v4454
  %4472 = vmatprep.subr.bf16.mxu0 0
  %4473 = vmatpush2.bf16.msra.mxu0 0
  %4474 = vmatprep.subr.bf16.mxu0 0
  %4475 = vmatpush2.bf16.msra.mxu0 0
  %4476 = vmatprep.subr.bf16.mxu0 0
  %4477 = vmatpush2.bf16.msra.mxu0 0
  %4478 = vmatprep.subr.bf16.mxu0 0
  %4479 = vmatpush2.bf16.msra.mxu0 0
  %4480 = vmatprep.subr.bf16.mxu0 0
  %4481 = vmatpush2.bf16.msra.mxu0 0
  %4482 = vmatprep.subr.bf16.mxu0 0
  %4483 = vmatpush2.bf16.msra.mxu0 0
  %4484 = vmatprep.subr.bf16.mxu0 0
  %4485 = vmatpush2.bf16.msra.mxu0 0
  %4486 = vmatprep.subr.bf16.mxu0 0
  %4487 = vmatpush2.bf16.msra.mxu0 0
  %4488 = vmatprep.mubr.bf16.mxu0 0
  %4489 = vmatmul.mubr.bf16.gmra.mxu0 %v4451
  %v4490 = vpop.f32.mrf.mxu0
  %v4491 = vadd.f32 0.0, %v4490
  %v4492 = vpop.f32.mrf.mxu0
  %v4493 = vpop.f32.mrf.mxu0
  %v4494 = vpop.f32.mrf.mxu0
  %4495 = vdwg.mxu0
  %4496 = vrot.lane.b32.xlu0 %v2451, 96
  %v4497 = vpop.permute.xlu0 %4496
  %v4499 = vsel %vm444, %v3771, 0
  %v4502 = vsel %vm498, %v4497, 0
  %4504 = vmatprep.subr.bf16.mxu0 0
  %4505 = vmatpush1.bf16.msra.mxu0 0
  %4506 = vmatprep.subr.bf16.mxu0 0
  %4507 = vmatpush1.bf16.msra.mxu0 0
  %4508 = vmatprep.subr.bf16.mxu0 0
  %4509 = vmatpush1.bf16.msra.mxu0 0
  %4510 = vmatprep.subr.bf16.mxu0 0
  %4511 = vmatpush1.bf16.msra.mxu0 0
  %4512 = vmatprep.subr.bf16.mxu0 0
  %4513 = vmatpush1.bf16.msra.mxu0 0
  %4514 = vmatprep.subr.bf16.mxu0 0
  %4515 = vmatpush1.bf16.msra.mxu0 0
  %4516 = vmatprep.subr.bf16.mxu0 0
  %4517 = vmatpush1.bf16.msra.mxu0 0
  %4518 = vmatprep.subr.bf16.mxu0 0
  %4519 = vmatpush1.bf16.msra.mxu0 %v4502
  %4520 = vmatprep.subr.bf16.mxu0 0
  %4521 = vmatpush2.bf16.msra.mxu0 0
  %4522 = vmatprep.subr.bf16.mxu0 0
  %4523 = vmatpush2.bf16.msra.mxu0 0
  %4524 = vmatprep.subr.bf16.mxu0 0
  %4525 = vmatpush2.bf16.msra.mxu0 0
  %4526 = vmatprep.subr.bf16.mxu0 0
  %4527 = vmatpush2.bf16.msra.mxu0 0
  %4528 = vmatprep.subr.bf16.mxu0 0
  %4529 = vmatpush2.bf16.msra.mxu0 0
  %4530 = vmatprep.subr.bf16.mxu0 0
  %4531 = vmatpush2.bf16.msra.mxu0 0
  %4532 = vmatprep.subr.bf16.mxu0 0
  %4533 = vmatpush2.bf16.msra.mxu0 0
  %4534 = vmatprep.subr.bf16.mxu0 0
  %4535 = vmatpush2.bf16.msra.mxu0 0
  %4536 = vmatprep.mubr.bf16.mxu0 0
  %4537 = vmatmul.mubr.bf16.gmra.mxu0 %v4499
  %v4538 = vpop.f32.mrf.mxu0
  %v4539 = vadd.f32 0.0, %v4538
  %v4540 = vpop.f32.mrf.mxu0
  %v4541 = vpop.f32.mrf.mxu0
  %v4542 = vpop.f32.mrf.mxu0
  %4543 = vdwg.mxu0
  %4544 = vrot.lane.b32.xlu0 %v2452, 96
  %v4545 = vpop.permute.xlu0 %4544
  %v4547 = vsel %vm444, %v3772, 0
  %v4550 = vsel %vm498, %v4545, 0
  %4552 = vmatprep.subr.bf16.mxu0 0
  %4553 = vmatpush1.bf16.msra.mxu0 0
  %4554 = vmatprep.subr.bf16.mxu0 0
  %4555 = vmatpush1.bf16.msra.mxu0 0
  %4556 = vmatprep.subr.bf16.mxu0 0
  %4557 = vmatpush1.bf16.msra.mxu0 0
  %4558 = vmatprep.subr.bf16.mxu0 0
  %4559 = vmatpush1.bf16.msra.mxu0 0
  %4560 = vmatprep.subr.bf16.mxu0 0
  %4561 = vmatpush1.bf16.msra.mxu0 0
  %4562 = vmatprep.subr.bf16.mxu0 0
  %4563 = vmatpush1.bf16.msra.mxu0 0
  %4564 = vmatprep.subr.bf16.mxu0 0
  %4565 = vmatpush1.bf16.msra.mxu0 0
  %4566 = vmatprep.subr.bf16.mxu0 0
  %4567 = vmatpush1.bf16.msra.mxu0 %v4550
  %4568 = vmatprep.subr.bf16.mxu0 0
  %4569 = vmatpush2.bf16.msra.mxu0 0
  %4570 = vmatprep.subr.bf16.mxu0 0
  %4571 = vmatpush2.bf16.msra.mxu0 0
  %4572 = vmatprep.subr.bf16.mxu0 0
  %4573 = vmatpush2.bf16.msra.mxu0 0
  %4574 = vmatprep.subr.bf16.mxu0 0
  %4575 = vmatpush2.bf16.msra.mxu0 0
  %4576 = vmatprep.subr.bf16.mxu0 0
  %4577 = vmatpush2.bf16.msra.mxu0 0
  %4578 = vmatprep.subr.bf16.mxu0 0
  %4579 = vmatpush2.bf16.msra.mxu0 0
  %4580 = vmatprep.subr.bf16.mxu0 0
  %4581 = vmatpush2.bf16.msra.mxu0 0
  %4582 = vmatprep.subr.bf16.mxu0 0
  %4583 = vmatpush2.bf16.msra.mxu0 0
  %4584 = vmatprep.mubr.bf16.mxu0 0
  %4585 = vmatmul.mubr.bf16.gmra.mxu0 %v4547
  %v4586 = vpop.f32.mrf.mxu0
  %v4587 = vadd.f32 0.0, %v4586
  %v4588 = vpop.f32.mrf.mxu0
  %v4589 = vpop.f32.mrf.mxu0
  %v4590 = vpop.f32.mrf.mxu0
  %4591 = vdwg.mxu0
  %4592 = vrot.lane.b32.xlu0 %v2453, 96
  %v4593 = vpop.permute.xlu0 %4592
  %v4595 = vsel %vm444, %v3773, 0
  %v4598 = vsel %vm498, %v4593, 0
  %4600 = vmatprep.subr.bf16.mxu0 0
  %4601 = vmatpush1.bf16.msra.mxu0 0
  %4602 = vmatprep.subr.bf16.mxu0 0
  %4603 = vmatpush1.bf16.msra.mxu0 0
  %4604 = vmatprep.subr.bf16.mxu0 0
  %4605 = vmatpush1.bf16.msra.mxu0 0
  %4606 = vmatprep.subr.bf16.mxu0 0
  %4607 = vmatpush1.bf16.msra.mxu0 0
  %4608 = vmatprep.subr.bf16.mxu0 0
  %4609 = vmatpush1.bf16.msra.mxu0 0
  %4610 = vmatprep.subr.bf16.mxu0 0
  %4611 = vmatpush1.bf16.msra.mxu0 0
  %4612 = vmatprep.subr.bf16.mxu0 0
  %4613 = vmatpush1.bf16.msra.mxu0 0
  %4614 = vmatprep.subr.bf16.mxu0 0
  %4615 = vmatpush1.bf16.msra.mxu0 %v4598
  %4616 = vmatprep.subr.bf16.mxu0 0
  %4617 = vmatpush2.bf16.msra.mxu0 0
  %4618 = vmatprep.subr.bf16.mxu0 0
  %4619 = vmatpush2.bf16.msra.mxu0 0
  %4620 = vmatprep.subr.bf16.mxu0 0
  %4621 = vmatpush2.bf16.msra.mxu0 0
  %4622 = vmatprep.subr.bf16.mxu0 0
  %4623 = vmatpush2.bf16.msra.mxu0 0
  %4624 = vmatprep.subr.bf16.mxu0 0
  %4625 = vmatpush2.bf16.msra.mxu0 0
  %4626 = vmatprep.subr.bf16.mxu0 0
  %4627 = vmatpush2.bf16.msra.mxu0 0
  %4628 = vmatprep.subr.bf16.mxu0 0
  %4629 = vmatpush2.bf16.msra.mxu0 0
  %4630 = vmatprep.subr.bf16.mxu0 0
  %4631 = vmatpush2.bf16.msra.mxu0 0
  %4632 = vmatprep.mubr.bf16.mxu0 0
  %4633 = vmatmul.mubr.bf16.gmra.mxu0 %v4595
  %v4634 = vpop.f32.mrf.mxu0
  %v4635 = vadd.f32 0.0, %v4634
  %v4636 = vpop.f32.mrf.mxu0
  %v4637 = vpop.f32.mrf.mxu0
  %v4638 = vpop.f32.mrf.mxu0
  %4639 = vdwg.mxu0
  %4640 = vrot.lane.b32.xlu0 %v2454, 96
  %v4641 = vpop.permute.xlu0 %4640
  %v4643 = vsel %vm444, %v3774, 0
  %v4646 = vsel %vm498, %v4641, 0
  %4648 = vmatprep.subr.bf16.mxu0 0
  %4649 = vmatpush1.bf16.msra.mxu0 0
  %4650 = vmatprep.subr.bf16.mxu0 0
  %4651 = vmatpush1.bf16.msra.mxu0 0
  %4652 = vmatprep.subr.bf16.mxu0 0
  %4653 = vmatpush1.bf16.msra.mxu0 0
  %4654 = vmatprep.subr.bf16.mxu0 0
  %4655 = vmatpush1.bf16.msra.mxu0 0
  %4656 = vmatprep.subr.bf16.mxu0 0
  %4657 = vmatpush1.bf16.msra.mxu0 0
  %4658 = vmatprep.subr.bf16.mxu0 0
  %4659 = vmatpush1.bf16.msra.mxu0 0
  %4660 = vmatprep.subr.bf16.mxu0 0
  %4661 = vmatpush1.bf16.msra.mxu0 0
  %4662 = vmatprep.subr.bf16.mxu0 0
  %4663 = vmatpush1.bf16.msra.mxu0 %v4646
  %4664 = vmatprep.subr.bf16.mxu0 0
  %4665 = vmatpush2.bf16.msra.mxu0 0
  %4666 = vmatprep.subr.bf16.mxu0 0
  %4667 = vmatpush2.bf16.msra.mxu0 0
  %4668 = vmatprep.subr.bf16.mxu0 0
  %4669 = vmatpush2.bf16.msra.mxu0 0
  %4670 = vmatprep.subr.bf16.mxu0 0
  %4671 = vmatpush2.bf16.msra.mxu0 0
  %4672 = vmatprep.subr.bf16.mxu0 0
  %4673 = vmatpush2.bf16.msra.mxu0 0
  %4674 = vmatprep.subr.bf16.mxu0 0
  %4675 = vmatpush2.bf16.msra.mxu0 0
  %4676 = vmatprep.subr.bf16.mxu0 0
  %4677 = vmatpush2.bf16.msra.mxu0 0
  %4678 = vmatprep.subr.bf16.mxu0 0
  %4679 = vmatpush2.bf16.msra.mxu0 0
  %4680 = vmatprep.mubr.bf16.mxu0 0
  %4681 = vmatmul.mubr.bf16.gmra.mxu0 %v4643
  %v4682 = vpop.f32.mrf.mxu0
  %v4683 = vadd.f32 0.0, %v4682
  %v4684 = vpop.f32.mrf.mxu0
  %v4685 = vpop.f32.mrf.mxu0
  %v4686 = vpop.f32.mrf.mxu0
  %4687 = vdwg.mxu0
  %4688 = vrot.lane.b32.xlu0 %v2455, 96
  %v4689 = vpop.permute.xlu0 %4688
  %v4691 = vsel %vm444, %v3775, 0
  %v4694 = vsel %vm498, %v4689, 0
  %4696 = vmatprep.subr.bf16.mxu0 0
  %4697 = vmatpush1.bf16.msra.mxu0 0
  %4698 = vmatprep.subr.bf16.mxu0 0
  %4699 = vmatpush1.bf16.msra.mxu0 0
  %4700 = vmatprep.subr.bf16.mxu0 0
  %4701 = vmatpush1.bf16.msra.mxu0 0
  %4702 = vmatprep.subr.bf16.mxu0 0
  %4703 = vmatpush1.bf16.msra.mxu0 0
  %4704 = vmatprep.subr.bf16.mxu0 0
  %4705 = vmatpush1.bf16.msra.mxu0 0
  %4706 = vmatprep.subr.bf16.mxu0 0
  %4707 = vmatpush1.bf16.msra.mxu0 0
  %4708 = vmatprep.subr.bf16.mxu0 0
  %4709 = vmatpush1.bf16.msra.mxu0 0
  %4710 = vmatprep.subr.bf16.mxu0 0
  %4711 = vmatpush1.bf16.msra.mxu0 %v4694
  %4712 = vmatprep.subr.bf16.mxu0 0
  %4713 = vmatpush2.bf16.msra.mxu0 0
  %4714 = vmatprep.subr.bf16.mxu0 0
  %4715 = vmatpush2.bf16.msra.mxu0 0
  %4716 = vmatprep.subr.bf16.mxu0 0
  %4717 = vmatpush2.bf16.msra.mxu0 0
  %4718 = vmatprep.subr.bf16.mxu0 0
  %4719 = vmatpush2.bf16.msra.mxu0 0
  %4720 = vmatprep.subr.bf16.mxu0 0
  %4721 = vmatpush2.bf16.msra.mxu0 0
  %4722 = vmatprep.subr.bf16.mxu0 0
  %4723 = vmatpush2.bf16.msra.mxu0 0
  %4724 = vmatprep.subr.bf16.mxu0 0
  %4725 = vmatpush2.bf16.msra.mxu0 0
  %4726 = vmatprep.subr.bf16.mxu0 0
  %4727 = vmatpush2.bf16.msra.mxu0 0
  %4728 = vmatprep.mubr.bf16.mxu0 0
  %4729 = vmatmul.mubr.bf16.gmra.mxu0 %v4691
  %v4730 = vpop.f32.mrf.mxu0
  %v4731 = vadd.f32 0.0, %v4730
  %v4732 = vpop.f32.mrf.mxu0
  %v4733 = vpop.f32.mrf.mxu0
  %v4734 = vpop.f32.mrf.mxu0
  %4735 = vdwg.mxu0
  %4746 = vrot.lane.b32.xlu0 %v4299, 16
  %v4747 = vpop.permute.xlu0 %4746
  %4748 = vrot.lane.b32.xlu0 %v4347, 16
  %v4749 = vpop.permute.xlu0 %4748
  %4750 = vrot.lane.b32.xlu0 %v4395, 16
  %v4751 = vpop.permute.xlu0 %4750
  %4752 = vrot.lane.b32.xlu0 %v4443, 16
  %v4753 = vpop.permute.xlu0 %4752
  %4754 = vrot.lane.b32.xlu0 %v4491, 16
  %v4755 = vpop.permute.xlu0 %4754
  %4756 = vrot.lane.b32.xlu0 %v4539, 16
  %v4757 = vpop.permute.xlu0 %4756
  %4758 = vrot.lane.b32.xlu0 %v4587, 16
  %v4759 = vpop.permute.xlu0 %4758
  %4760 = vrot.lane.b32.xlu0 %v4635, 16
  %v4761 = vpop.permute.xlu0 %4760
  %4762 = vrot.lane.b32.xlu0 %v4683, 16
  %v4763 = vpop.permute.xlu0 %4762
  %4764 = vrot.lane.b32.xlu0 %v4731, 16
  %v4765 = vpop.permute.xlu0 %4764
  %v4776 = vsel %vm250, %v3819, %v4747
  %v4777 = vsel %vm250, %v3867, %v4749
  %v4778 = vsel %vm250, %v3915, %v4751
  %v4779 = vsel %vm250, %v3963, %v4753
  %v4780 = vsel %vm250, %v4011, %v4755
  %v4781 = vsel %vm250, %v4059, %v4757
  %v4782 = vsel %vm250, %v4107, %v4759
  %v4783 = vsel %vm250, %v4155, %v4761
  %v4784 = vsel %vm250, %v4203, %v4763
  %v4785 = vsel %vm250, %v4251, %v4765
  %v4786 = vpack.c.bf16 %v4777, %v4776
  %v4787 = vpack.c.bf16 %v4779, %v4778
  %v4788 = vpack.c.bf16 %v4781, %v4780
  %v4789 = vpack.c.bf16 %v4783, %v4782
  %v4790 = vpack.c.bf16 %v4785, %v4784
  %v4791 = vld [vmem:[%s11] sm:$0xf]
  %v4792 = vld [vmem:[%s11 + $0x4] sm:$0xf]
  %v4793 = vld [vmem:[%s11 + $0x8] sm:$0xf]
  %v4794 = vld [vmem:[%s11 + $0xc] sm:$0xf]
  %v4795 = vld [vmem:[%s5 + $0x17] sm:$0x1]
  %v4796 = vlaneseq
  %v4797 = vshrl.u32 %v4796, 7
  %v4798 = vsub.s32 0, %v4797
  %v4799 = vrot.slane %v4795, %v4798
  %v4804 = vunpack.c.l.b16 %v4791
  %v4805 = vunpack.c.l.b16 %v4792
  %v4806 = vunpack.c.l.b16 %v4793
  %v4807 = vunpack.c.l.b16 %v4794
  %v4808 = vpack.c.b16 %v4805, %v4804
  %v4809 = vpack.c.b16 %v4807, %v4806
  %v4813 = vsel %vm79, %v4786, 0
  %v4816 = vsel %vm79, %v4787, 0
  %v4819 = vsel %vm79, %v4788, 0
  %v4822 = vsel %vm79, %v4789, 0
  %v4825 = vsel %vm79, %v4790, 0
  %4827 = vmatprep.subr.bf16.mxu0 0
  %4828 = vmatpush1.bf16.msra.mxu0 0
  %4829 = vmatprep.subr.bf16.mxu0 0
  %4830 = vmatpush1.bf16.msra.mxu0 0
  %4831 = vmatprep.subr.bf16.mxu0 0
  %4832 = vmatpush1.bf16.msra.mxu0 0
  %4833 = vmatprep.subr.bf16.mxu0 0
  %4834 = vmatpush1.bf16.msra.mxu0 0
  %4835 = vmatprep.subr.bf16.mxu0 0
  %4836 = vmatpush1.bf16.msra.mxu0 0
  %4837 = vmatprep.subr.bf16.mxu0 0
  %4838 = vmatpush1.bf16.msra.mxu0 0
  %4839 = vmatprep.subr.bf16.mxu0 0
  %4840 = vmatpush1.bf16.msra.mxu0 %v4809
  %4841 = vmatprep.subr.bf16.mxu0 0
  %4842 = vmatpush1.bf16.msra.mxu0 %v4808
  %4843 = vmatprep.subr.bf16.mxu0 0
  %4844 = vmatpush2.bf16.msra.mxu0 0
  %4845 = vmatprep.subr.bf16.mxu0 0
  %4846 = vmatpush2.bf16.msra.mxu0 0
  %4847 = vmatprep.subr.bf16.mxu0 0
  %4848 = vmatpush2.bf16.msra.mxu0 0
  %4849 = vmatprep.subr.bf16.mxu0 0
  %4850 = vmatpush2.bf16.msra.mxu0 0
  %4851 = vmatprep.subr.bf16.mxu0 0
  %4852 = vmatpush2.bf16.msra.mxu0 0
  %4853 = vmatprep.subr.bf16.mxu0 0
  %4854 = vmatpush2.bf16.msra.mxu0 0
  %4855 = vmatprep.subr.bf16.mxu0 0
  %4856 = vmatpush2.bf16.msra.mxu0 0
  %4857 = vmatprep.subr.bf16.mxu0 0
  %4858 = vmatpush2.bf16.msra.mxu0 0
  %4859 = vmatprep.mubr.bf16.mxu0 0
  %4860 = vmatmul.mubr.bf16.gmra.mxu0 %v4813
  %v4861 = vpop.f32.mrf.mxu0
  %v4862 = vadd.f32 %v4799, %v4861
  %v4863 = vpop.f32.mrf.mxu0
  %v4864 = vpop.f32.mrf.mxu0
  %v4865 = vadd.f32 %v4799, %v4864
  %v4866 = vpop.f32.mrf.mxu0
  %4867 = vmatprep.mubr.bf16.mxu0 0
  %4868 = vmatmul.mubr.bf16.gmra.mxu0 %v4816
  %v4869 = vpop.f32.mrf.mxu0
  %v4870 = vadd.f32 %v4799, %v4869
  %v4871 = vpop.f32.mrf.mxu0
  %v4872 = vpop.f32.mrf.mxu0
  %v4873 = vadd.f32 %v4799, %v4872
  %v4874 = vpop.f32.mrf.mxu0
  %4875 = vmatprep.mubr.bf16.mxu0 0
  %4876 = vmatmul.mubr.bf16.gmra.mxu0 %v4819
  %v4877 = vpop.f32.mrf.mxu0
  %v4878 = vadd.f32 %v4799, %v4877
  %v4879 = vpop.f32.mrf.mxu0
  %v4880 = vpop.f32.mrf.mxu0
  %v4881 = vadd.f32 %v4799, %v4880
  %v4882 = vpop.f32.mrf.mxu0
  %4883 = vmatprep.mubr.bf16.mxu0 0
  %4884 = vmatmul.mubr.bf16.gmra.mxu0 %v4822
  %v4885 = vpop.f32.mrf.mxu0
  %v4886 = vadd.f32 %v4799, %v4885
  %v4887 = vpop.f32.mrf.mxu0
  %v4888 = vpop.f32.mrf.mxu0
  %v4889 = vadd.f32 %v4799, %v4888
  %v4890 = vpop.f32.mrf.mxu0
  %4891 = vmatprep.mubr.bf16.mxu0 0
  %4892 = vmatmul.mubr.bf16.gmra.mxu0 %v4825
  %v4893 = vpop.f32.mrf.mxu0
  %v4894 = vadd.f32 %v4799, %v4893
  %v4895 = vpop.f32.mrf.mxu0
  %v4896 = vpop.f32.mrf.mxu0
  %v4897 = vadd.f32 %v4799, %v4896
  %v4898 = vpop.f32.mrf.mxu0
  %4899 = vdwg.mxu0
  %v4900 = vadd.f32 %v4862, %v2142
  %v4901 = vadd.f32 %v4865, %v2143
  %v4902 = vadd.f32 %v4870, %v2144
  %v4903 = vadd.f32 %v4873, %v2145
  %v4904 = vadd.f32 %v4878, %v2146
  %v4905 = vadd.f32 %v4881, %v2147
  %v4906 = vadd.f32 %v4886, %v2148
  %v4907 = vadd.f32 %v4889, %v2149
  %v4908 = vadd.f32 %v4894, %v2150
  %v4909 = vadd.f32 %v4897, %v2151
  %v4910 = vld [vmem:[%s5 + $0x18] sm:$0x1]
  %v4911 = vld [vmem:[%s5 + $0x19] sm:$0x1]
  %v4912 = vsel %vm79, %v4900, 0.0
  %4913 = vadd.xlane.f32.xlu0 %v4912
  %v4914 = vpop.xlane.xlu0 %4913
  %v4915 = vsel %vm79, %v4901, 0.0
  %4916 = vadd.xlane.f32.xlu0 %v4915
  %v4917 = vpop.xlane.xlu0 %4916
  %v4918 = vsel %vm79, %v4902, 0.0
  %4919 = vadd.xlane.f32.xlu0 %v4918
  %v4920 = vpop.xlane.xlu0 %4919
  %v4921 = vsel %vm79, %v4903, 0.0
  %4922 = vadd.xlane.f32.xlu0 %v4921
  %v4923 = vpop.xlane.xlu0 %4922
  %v4924 = vsel %vm79, %v4904, 0.0
  %4925 = vadd.xlane.f32.xlu0 %v4924
  %v4926 = vpop.xlane.xlu0 %4925
  %v4927 = vsel %vm79, %v4905, 0.0
  %4928 = vadd.xlane.f32.xlu0 %v4927
  %v4929 = vpop.xlane.xlu0 %4928
  %v4930 = vsel %vm79, %v4906, 0.0
  %4931 = vadd.xlane.f32.xlu0 %v4930
  %v4932 = vpop.xlane.xlu0 %4931
  %v4933 = vsel %vm79, %v4907, 0.0
  %4934 = vadd.xlane.f32.xlu0 %v4933
  %v4935 = vpop.xlane.xlu0 %4934
  %v4936 = vsel %vm79, %v4908, 0.0
  %4937 = vadd.xlane.f32.xlu0 %v4936
  %v4938 = vpop.xlane.xlu0 %4937
  %v4939 = vsel %vm79, %v4909, 0.0
  %4940 = vadd.xlane.f32.xlu0 %v4939
  %v4941 = vpop.xlane.xlu0 %4940
  %v4942 = vmul.f32 %v4914, %v86
  %v4943 = vmul.f32 %v4917, %v86
  %v4944 = vmul.f32 %v4920, %v86
  %v4945 = vmul.f32 %v4923, %v86
  %v4946 = vmul.f32 %v4926, %v86
  %v4947 = vmul.f32 %v4929, %v86
  %v4948 = vmul.f32 %v4932, %v86
  %v4949 = vmul.f32 %v4935, %v86
  %v4950 = vmul.f32 %v4938, %v86
  %v4951 = vmul.f32 %v4941, %v86
  %v4952 = vsub.f32 %v4900, %v4942
  %v4953 = vsub.f32 %v4901, %v4943
  %v4954 = vsub.f32 %v4902, %v4944
  %v4955 = vsub.f32 %v4903, %v4945
  %v4956 = vsub.f32 %v4904, %v4946
  %v4957 = vsub.f32 %v4905, %v4947
  %v4958 = vsub.f32 %v4906, %v4948
  %v4959 = vsub.f32 %v4907, %v4949
  %v4960 = vsub.f32 %v4908, %v4950
  %v4961 = vsub.f32 %v4909, %v4951
  %v4962 = vmul.f32 %v4952, %v4952
  %v4963 = vmul.f32 %v4953, %v4953
  %v4964 = vmul.f32 %v4954, %v4954
  %v4965 = vmul.f32 %v4955, %v4955
  %v4966 = vmul.f32 %v4956, %v4956
  %v4967 = vmul.f32 %v4957, %v4957
  %v4968 = vmul.f32 %v4958, %v4958
  %v4969 = vmul.f32 %v4959, %v4959
  %v4970 = vmul.f32 %v4960, %v4960
  %v4971 = vmul.f32 %v4961, %v4961
  %v4972 = vsel %vm79, %v4962, 0.0
  %4973 = vadd.xlane.f32.xlu0 %v4972
  %v4974 = vpop.xlane.xlu0 %4973
  %v4975 = vsel %vm79, %v4963, 0.0
  %4976 = vadd.xlane.f32.xlu0 %v4975
  %v4977 = vpop.xlane.xlu0 %4976
  %v4978 = vsel %vm79, %v4964, 0.0
  %4979 = vadd.xlane.f32.xlu0 %v4978
  %v4980 = vpop.xlane.xlu0 %4979
  %v4981 = vsel %vm79, %v4965, 0.0
  %4982 = vadd.xlane.f32.xlu0 %v4981
  %v4983 = vpop.xlane.xlu0 %4982
  %v4984 = vsel %vm79, %v4966, 0.0
  %4985 = vadd.xlane.f32.xlu0 %v4984
  %v4986 = vpop.xlane.xlu0 %4985
  %v4987 = vsel %vm79, %v4967, 0.0
  %4988 = vadd.xlane.f32.xlu0 %v4987
  %v4989 = vpop.xlane.xlu0 %4988
  %v4990 = vsel %vm79, %v4968, 0.0
  %4991 = vadd.xlane.f32.xlu0 %v4990
  %v4992 = vpop.xlane.xlu0 %4991
  %v4993 = vsel %vm79, %v4969, 0.0
  %4994 = vadd.xlane.f32.xlu0 %v4993
  %v4995 = vpop.xlane.xlu0 %4994
  %v4996 = vsel %vm79, %v4970, 0.0
  %4997 = vadd.xlane.f32.xlu0 %v4996
  %v4998 = vpop.xlane.xlu0 %4997
  %v4999 = vsel %vm79, %v4971, 0.0
  %5000 = vadd.xlane.f32.xlu0 %v4999
  %v5001 = vpop.xlane.xlu0 %5000
  %v5002 = vmul.f32 %v4974, %v86
  %v5003 = vmul.f32 %v4977, %v86
  %v5004 = vmul.f32 %v4980, %v86
  %v5005 = vmul.f32 %v4983, %v86
  %v5006 = vmul.f32 %v4986, %v86
  %v5007 = vmul.f32 %v4989, %v86
  %v5008 = vmul.f32 %v4992, %v86
  %v5009 = vmul.f32 %v4995, %v86
  %v5010 = vmul.f32 %v4998, %v86
  %v5011 = vmul.f32 %v5001, %v86
  %v5012 = vadd.f32 %v5002, 1e-12
  %v5013 = vadd.f32 %v5003, 1e-12
  %v5014 = vadd.f32 %v5004, 1e-12
  %v5015 = vadd.f32 %v5005, 1e-12
  %v5016 = vadd.f32 %v5006, 1e-12
  %v5017 = vadd.f32 %v5007, 1e-12
  %v5018 = vadd.f32 %v5008, 1e-12
  %v5019 = vadd.f32 %v5009, 1e-12
  %v5020 = vadd.f32 %v5010, 1e-12
  %v5021 = vadd.f32 %v5011, 1e-12
  %v5022 = vrsqrt.pop %v5012
  %v5023 = vrsqrt.pop %v5013
  %v5024 = vrsqrt.pop %v5014
  %v5025 = vrsqrt.pop %v5015
  %v5026 = vrsqrt.pop %v5016
  %v5027 = vrsqrt.pop %v5017
  %v5028 = vrsqrt.pop %v5018
  %v5029 = vrsqrt.pop %v5019
  %v5030 = vrsqrt.pop %v5020
  %v5031 = vrsqrt.pop %v5021
  %v5032 = vmul.f32 %v4952, %v5022
  %v5033 = vmul.f32 %v4953, %v5023
  %v5034 = vmul.f32 %v4954, %v5024
  %v5035 = vmul.f32 %v4955, %v5025
  %v5036 = vmul.f32 %v4956, %v5026
  %v5037 = vmul.f32 %v4957, %v5027
  %v5038 = vmul.f32 %v4958, %v5028
  %v5039 = vmul.f32 %v4959, %v5029
  %v5040 = vmul.f32 %v4960, %v5030
  %v5041 = vmul.f32 %v4961, %v5031
  %v5042 = vlaneseq
  %v5043 = vshrl.u32 %v5042, 7
  %v5044 = vsub.s32 0, %v5043
  %v5045 = vrot.slane %v4910, %v5044
  %v5046 = vmul.f32 %v5032, %v5045
  %v5047 = vmul.f32 %v5033, %v5045
  %v5048 = vmul.f32 %v5034, %v5045
  %v5049 = vmul.f32 %v5035, %v5045
  %v5050 = vmul.f32 %v5036, %v5045
  %v5051 = vmul.f32 %v5037, %v5045
  %v5052 = vmul.f32 %v5038, %v5045
  %v5053 = vmul.f32 %v5039, %v5045
  %v5054 = vmul.f32 %v5040, %v5045
  %v5055 = vmul.f32 %v5041, %v5045
  %v5056 = vlaneseq
  %v5057 = vshrl.u32 %v5056, 7
  %v5058 = vsub.s32 0, %v5057
  %v5059 = vrot.slane %v4911, %v5058
  %v5060 = vadd.f32 %v5046, %v5059
  %v5061 = vadd.f32 %v5047, %v5059
  %v5062 = vadd.f32 %v5048, %v5059
  %v5063 = vadd.f32 %v5049, %v5059
  %v5064 = vadd.f32 %v5050, %v5059
  %v5065 = vadd.f32 %v5051, %v5059
  %v5066 = vadd.f32 %v5052, %v5059
  %v5067 = vadd.f32 %v5053, %v5059
  %v5068 = vadd.f32 %v5054, %v5059
  %v5069 = vadd.f32 %v5055, %v5059
  %v5070 = vpack.c.bf16 %v5061, %v5060
  %v5071 = vpack.c.bf16 %v5063, %v5062
  %v5072 = vpack.c.bf16 %v5065, %v5064
  %v5073 = vpack.c.bf16 %v5067, %v5066
  %v5074 = vpack.c.bf16 %v5069, %v5068
  %v5075 = vld [vmem:[%s12] sm:$0xf]
  %v5076 = vld [vmem:[%s12 + $0x4] sm:$0xf]
  %v5077 = vld [vmem:[%s12 + $0x8] sm:$0xf]
  %v5078 = vld [vmem:[%s12 + $0xc] sm:$0xf]
  %v5079 = vld [vmem:[%s5 + $0x1a] sm:$0x1]
  %v5080 = vlaneseq
  %v5081 = vshrl.u32 %v5080, 7
  %v5082 = vsub.s32 0, %v5081
  %v5083 = vrot.slane %v5079, %v5082
  %v5088 = vunpack.c.l.b16 %v5075
  %v5089 = vunpack.c.l.b16 %v5076
  %v5090 = vunpack.c.l.b16 %v5077
  %v5091 = vunpack.c.l.b16 %v5078
  %v5092 = vpack.c.b16 %v5089, %v5088
  %v5093 = vpack.c.b16 %v5091, %v5090
  %v5097 = vsel %vm79, %v5070, 0
  %v5100 = vsel %vm79, %v5071, 0
  %v5103 = vsel %vm79, %v5072, 0
  %v5106 = vsel %vm79, %v5073, 0
  %v5109 = vsel %vm79, %v5074, 0
  %5111 = vmatprep.subr.bf16.mxu0 0
  %5112 = vmatpush1.bf16.msra.mxu0 0
  %5113 = vmatprep.subr.bf16.mxu0 0
  %5114 = vmatpush1.bf16.msra.mxu0 0
  %5115 = vmatprep.subr.bf16.mxu0 0
  %5116 = vmatpush1.bf16.msra.mxu0 0
  %5117 = vmatprep.subr.bf16.mxu0 0
  %5118 = vmatpush1.bf16.msra.mxu0 0
  %5119 = vmatprep.subr.bf16.mxu0 0
  %5120 = vmatpush1.bf16.msra.mxu0 0
  %5121 = vmatprep.subr.bf16.mxu0 0
  %5122 = vmatpush1.bf16.msra.mxu0 0
  %5123 = vmatprep.subr.bf16.mxu0 0
  %5124 = vmatpush1.bf16.msra.mxu0 %v5093
  %5125 = vmatprep.subr.bf16.mxu0 0
  %5126 = vmatpush1.bf16.msra.mxu0 %v5092
  %5127 = vmatprep.subr.bf16.mxu0 0
  %5128 = vmatpush2.bf16.msra.mxu0 0
  %5129 = vmatprep.subr.bf16.mxu0 0
  %5130 = vmatpush2.bf16.msra.mxu0 0
  %5131 = vmatprep.subr.bf16.mxu0 0
  %5132 = vmatpush2.bf16.msra.mxu0 0
  %5133 = vmatprep.subr.bf16.mxu0 0
  %5134 = vmatpush2.bf16.msra.mxu0 0
  %5135 = vmatprep.subr.bf16.mxu0 0
  %5136 = vmatpush2.bf16.msra.mxu0 0
  %5137 = vmatprep.subr.bf16.mxu0 0
  %5138 = vmatpush2.bf16.msra.mxu0 0
  %5139 = vmatprep.subr.bf16.mxu0 0
  %5140 = vmatpush2.bf16.msra.mxu0 0
  %5141 = vmatprep.subr.bf16.mxu0 0
  %5142 = vmatpush2.bf16.msra.mxu0 0
  %5143 = vmatprep.mubr.bf16.mxu0 0
  %5144 = vmatmul.mubr.bf16.gmra.mxu0 %v5097
  %v5145 = vpop.f32.mrf.mxu0
  %v5146 = vadd.f32 %v5083, %v5145
  %v5147 = vpop.f32.mrf.mxu0
  %v5148 = vpop.f32.mrf.mxu0
  %v5149 = vadd.f32 %v5083, %v5148
  %v5150 = vpop.f32.mrf.mxu0
  %5151 = vmatprep.mubr.bf16.mxu0 0
  %5152 = vmatmul.mubr.bf16.gmra.mxu0 %v5100
  %v5153 = vpop.f32.mrf.mxu0
  %v5154 = vadd.f32 %v5083, %v5153
  %v5155 = vpop.f32.mrf.mxu0
  %v5156 = vpop.f32.mrf.mxu0
  %v5157 = vadd.f32 %v5083, %v5156
  %v5158 = vpop.f32.mrf.mxu0
  %5159 = vmatprep.mubr.bf16.mxu0 0
  %5160 = vmatmul.mubr.bf16.gmra.mxu0 %v5103
  %v5161 = vpop.f32.mrf.mxu0
  %v5162 = vadd.f32 %v5083, %v5161
  %v5163 = vpop.f32.mrf.mxu0
  %v5164 = vpop.f32.mrf.mxu0
  %v5165 = vadd.f32 %v5083, %v5164
  %v5166 = vpop.f32.mrf.mxu0
  %5167 = vmatprep.mubr.bf16.mxu0 0
  %5168 = vmatmul.mubr.bf16.gmra.mxu0 %v5106
  %v5169 = vpop.f32.mrf.mxu0
  %v5170 = vadd.f32 %v5083, %v5169
  %v5171 = vpop.f32.mrf.mxu0
  %v5172 = vpop.f32.mrf.mxu0
  %v5173 = vadd.f32 %v5083, %v5172
  %v5174 = vpop.f32.mrf.mxu0
  %5175 = vmatprep.mubr.bf16.mxu0 0
  %5176 = vmatmul.mubr.bf16.gmra.mxu0 %v5109
  %v5177 = vpop.f32.mrf.mxu0
  %v5178 = vadd.f32 %v5083, %v5177
  %v5179 = vpop.f32.mrf.mxu0
  %v5180 = vpop.f32.mrf.mxu0
  %v5181 = vadd.f32 %v5083, %v5180
  %v5182 = vpop.f32.mrf.mxu0
  %5183 = vdwg.mxu0
  %v5184 = vmul.f32 %v5146, %v5146
  %v5185 = vmul.f32 %v5149, %v5149
  %v5186 = vmul.f32 %v5154, %v5154
  %v5187 = vmul.f32 %v5157, %v5157
  %v5188 = vmul.f32 %v5162, %v5162
  %v5189 = vmul.f32 %v5165, %v5165
  %v5190 = vmul.f32 %v5170, %v5170
  %v5191 = vmul.f32 %v5173, %v5173
  %v5192 = vmul.f32 %v5178, %v5178
  %v5193 = vmul.f32 %v5181, %v5181
  %v5194 = vmul.f32 %v5146, %v5184
  %v5195 = vmul.f32 %v5149, %v5185
  %v5196 = vmul.f32 %v5154, %v5186
  %v5197 = vmul.f32 %v5157, %v5187
  %v5198 = vmul.f32 %v5162, %v5188
  %v5199 = vmul.f32 %v5165, %v5189
  %v5200 = vmul.f32 %v5170, %v5190
  %v5201 = vmul.f32 %v5173, %v5191
  %v5202 = vmul.f32 %v5178, %v5192
  %v5203 = vmul.f32 %v5181, %v5193
  %v5204 = vmul.f32 %v5194, 0.044715
  %v5205 = vmul.f32 %v5195, 0.044715
  %v5206 = vmul.f32 %v5196, 0.044715
  %v5207 = vmul.f32 %v5197, 0.044715
  %v5208 = vmul.f32 %v5198, 0.044715
  %v5209 = vmul.f32 %v5199, 0.044715
  %v5210 = vmul.f32 %v5200, 0.044715
  %v5211 = vmul.f32 %v5201, 0.044715
  %v5212 = vmul.f32 %v5202, 0.044715
  %v5213 = vmul.f32 %v5203, 0.044715
  %v5214 = vadd.f32 %v5146, %v5204
  %v5215 = vadd.f32 %v5149, %v5205
  %v5216 = vadd.f32 %v5154, %v5206
  %v5217 = vadd.f32 %v5157, %v5207
  %v5218 = vadd.f32 %v5162, %v5208
  %v5219 = vadd.f32 %v5165, %v5209
  %v5220 = vadd.f32 %v5170, %v5210
  %v5221 = vadd.f32 %v5173, %v5211
  %v5222 = vadd.f32 %v5178, %v5212
  %v5223 = vadd.f32 %v5181, %v5213
  %v5224 = vmul.f32 %v5214, 0.7978846
  %v5225 = vmul.f32 %v5215, 0.7978846
  %v5226 = vmul.f32 %v5216, 0.7978846
  %v5227 = vmul.f32 %v5217, 0.7978846
  %v5228 = vmul.f32 %v5218, 0.7978846
  %v5229 = vmul.f32 %v5219, 0.7978846
  %v5230 = vmul.f32 %v5220, 0.7978846
  %v5231 = vmul.f32 %v5221, 0.7978846
  %v5232 = vmul.f32 %v5222, 0.7978846
  %v5233 = vmul.f32 %v5223, 0.7978846
  %v5234 = vtanh.pop %v5224
  %v5235 = vtanh.pop %v5225
  %v5236 = vtanh.pop %v5226
  %v5237 = vtanh.pop %v5227
  %v5238 = vtanh.pop %v5228
  %v5239 = vtanh.pop %v5229
  %v5240 = vtanh.pop %v5230
  %v5241 = vtanh.pop %v5231
  %v5242 = vtanh.pop %v5232
  %v5243 = vtanh.pop %v5233
  %v5244 = vadd.f32 %v5234, 1.0
  %v5245 = vadd.f32 %v5235, 1.0
  %v5246 = vadd.f32 %v5236, 1.0
  %v5247 = vadd.f32 %v5237, 1.0
  %v5248 = vadd.f32 %v5238, 1.0
  %v5249 = vadd.f32 %v5239, 1.0
  %v5250 = vadd.f32 %v5240, 1.0
  %v5251 = vadd.f32 %v5241, 1.0
  %v5252 = vadd.f32 %v5242, 1.0
  %v5253 = vadd.f32 %v5243, 1.0
  %v5254 = vmul.f32 %v5244, 0.5
  %v5255 = vmul.f32 %v5245, 0.5
  %v5256 = vmul.f32 %v5246, 0.5
  %v5257 = vmul.f32 %v5247, 0.5
  %v5258 = vmul.f32 %v5248, 0.5
  %v5259 = vmul.f32 %v5249, 0.5
  %v5260 = vmul.f32 %v5250, 0.5
  %v5261 = vmul.f32 %v5251, 0.5
  %v5262 = vmul.f32 %v5252, 0.5
  %v5263 = vmul.f32 %v5253, 0.5
  %v5264 = vmul.f32 %v5146, %v5254
  %v5265 = vmul.f32 %v5149, %v5255
  %v5266 = vmul.f32 %v5154, %v5256
  %v5267 = vmul.f32 %v5157, %v5257
  %v5268 = vmul.f32 %v5162, %v5258
  %v5269 = vmul.f32 %v5165, %v5259
  %v5270 = vmul.f32 %v5170, %v5260
  %v5271 = vmul.f32 %v5173, %v5261
  %v5272 = vmul.f32 %v5178, %v5262
  %v5273 = vmul.f32 %v5181, %v5263
  %v5274 = vpack.c.bf16 %v5265, %v5264
  %v5275 = vpack.c.bf16 %v5267, %v5266
  %v5276 = vpack.c.bf16 %v5269, %v5268
  %v5277 = vpack.c.bf16 %v5271, %v5270
  %v5278 = vpack.c.bf16 %v5273, %v5272
  %v5279 = vld [vmem:[%s13] sm:$0xf]
  %v5280 = vld [vmem:[%s13 + $0x4] sm:$0xf]
  %v5281 = vld [vmem:[%s13 + $0x8] sm:$0xf]
  %v5282 = vld [vmem:[%s13 + $0xc] sm:$0xf]
  %v5283 = vld [vmem:[%s13 + $0x10] sm:$0xf]
  %v5284 = vld [vmem:[%s13 + $0x14] sm:$0xf]
  %v5285 = vld [vmem:[%s13 + $0x18] sm:$0xf]
  %v5286 = vld [vmem:[%s13 + $0x1c] sm:$0xf]
  %v5287 = vld [vmem:[%s5 + $0x1b] sm:$0x1]
  %v5288 = vlaneseq
  %v5289 = vshrl.u32 %v5288, 7
  %v5290 = vsub.s32 0, %v5289
  %v5291 = vrot.slane %v5287, %v5290
  %v5300 = vunpack.c.l.b16 %v5279
  %v5301 = vunpack.c.l.b16 %v5280
  %v5302 = vunpack.c.l.b16 %v5281
  %v5303 = vunpack.c.l.b16 %v5282
  %v5304 = vunpack.c.l.b16 %v5283
  %v5305 = vunpack.c.l.b16 %v5284
  %v5306 = vunpack.c.l.b16 %v5285
  %v5307 = vunpack.c.l.b16 %v5286
  %v5308 = vpack.c.b16 %v5301, %v5300
  %v5309 = vpack.c.b16 %v5303, %v5302
  %v5310 = vpack.c.b16 %v5305, %v5304
  %v5311 = vpack.c.b16 %v5307, %v5306
  %v5317 = vsel %vm926, %v5274, 0
  %v5320 = vsel %vm926, %v5275, 0
  %v5323 = vsel %vm926, %v5276, 0
  %v5326 = vsel %vm926, %v5277, 0
  %v5329 = vsel %vm926, %v5278, 0
  %5331 = vmatprep.subr.bf16.mxu0 0
  %5332 = vmatpush1.bf16.msra.mxu0 0
  %5333 = vmatprep.subr.bf16.mxu0 0
  %5334 = vmatpush1.bf16.msra.mxu0 0
  %5335 = vmatprep.subr.bf16.mxu0 0
  %5336 = vmatpush1.bf16.msra.mxu0 0
  %5337 = vmatprep.subr.bf16.mxu0 0
  %5338 = vmatpush1.bf16.msra.mxu0 0
  %5339 = vmatprep.subr.bf16.mxu0 0
  %5340 = vmatpush1.bf16.msra.mxu0 %v5311
  %5341 = vmatprep.subr.bf16.mxu0 0
  %5342 = vmatpush1.bf16.msra.mxu0 %v5310
  %5343 = vmatprep.subr.bf16.mxu0 0
  %5344 = vmatpush1.bf16.msra.mxu0 %v5309
  %5345 = vmatprep.subr.bf16.mxu0 0
  %5346 = vmatpush1.bf16.msra.mxu0 %v5308
  %5347 = vmatprep.subr.bf16.mxu0 0
  %5348 = vmatpush2.bf16.msra.mxu0 0
  %5349 = vmatprep.subr.bf16.mxu0 0
  %5350 = vmatpush2.bf16.msra.mxu0 0
  %5351 = vmatprep.subr.bf16.mxu0 0
  %5352 = vmatpush2.bf16.msra.mxu0 0
  %5353 = vmatprep.subr.bf16.mxu0 0
  %5354 = vmatpush2.bf16.msra.mxu0 0
  %5355 = vmatprep.subr.bf16.mxu0 0
  %5356 = vmatpush2.bf16.msra.mxu0 0
  %5357 = vmatprep.subr.bf16.mxu0 0
  %5358 = vmatpush2.bf16.msra.mxu0 0
  %5359 = vmatprep.subr.bf16.mxu0 0
  %5360 = vmatpush2.bf16.msra.mxu0 0
  %5361 = vmatprep.subr.bf16.mxu0 0
  %5362 = vmatpush2.bf16.msra.mxu0 0
  %5363 = vmatprep.mubr.bf16.mxu0 0
  %5364 = vmatmul.mubr.bf16.gmra.mxu0 %v5317
  %v5365 = vpop.f32.mrf.mxu0
  %v5366 = vadd.f32 %v5291, %v5365
  %v5367 = vpop.f32.mrf.mxu0
  %v5368 = vpop.f32.mrf.mxu0
  %v5369 = vadd.f32 %v5291, %v5368
  %v5370 = vpop.f32.mrf.mxu0
  %5371 = vmatprep.mubr.bf16.mxu0 0
  %5372 = vmatmul.mubr.bf16.gmra.mxu0 %v5320
  %v5373 = vpop.f32.mrf.mxu0
  %v5374 = vadd.f32 %v5291, %v5373
  %v5375 = vpop.f32.mrf.mxu0
  %v5376 = vpop.f32.mrf.mxu0
  %v5377 = vadd.f32 %v5291, %v5376
  %v5378 = vpop.f32.mrf.mxu0
  %5379 = vmatprep.mubr.bf16.mxu0 0
  %5380 = vmatmul.mubr.bf16.gmra.mxu0 %v5323
  %v5381 = vpop.f32.mrf.mxu0
  %v5382 = vadd.f32 %v5291, %v5381
  %v5383 = vpop.f32.mrf.mxu0
  %v5384 = vpop.f32.mrf.mxu0
  %v5385 = vadd.f32 %v5291, %v5384
  %v5386 = vpop.f32.mrf.mxu0
  %5387 = vmatprep.mubr.bf16.mxu0 0
  %5388 = vmatmul.mubr.bf16.gmra.mxu0 %v5326
  %v5389 = vpop.f32.mrf.mxu0
  %v5390 = vadd.f32 %v5291, %v5389
  %v5391 = vpop.f32.mrf.mxu0
  %v5392 = vpop.f32.mrf.mxu0
  %v5393 = vadd.f32 %v5291, %v5392
  %v5394 = vpop.f32.mrf.mxu0
  %5395 = vmatprep.mubr.bf16.mxu0 0
  %5396 = vmatmul.mubr.bf16.gmra.mxu0 %v5329
  %v5397 = vpop.f32.mrf.mxu0
  %v5398 = vadd.f32 %v5291, %v5397
  %v5399 = vpop.f32.mrf.mxu0
  %v5400 = vpop.f32.mrf.mxu0
  %v5401 = vadd.f32 %v5291, %v5400
  %v5402 = vpop.f32.mrf.mxu0
  %5403 = vdwg.mxu0
  %v5404 = vadd.f32 %v5366, %v5060
  %v5405 = vadd.f32 %v5369, %v5061
  %v5406 = vadd.f32 %v5374, %v5062
  %v5407 = vadd.f32 %v5377, %v5063
  %v5408 = vadd.f32 %v5382, %v5064
  %v5409 = vadd.f32 %v5385, %v5065
  %v5410 = vadd.f32 %v5390, %v5066
  %v5411 = vadd.f32 %v5393, %v5067
  %v5412 = vadd.f32 %v5398, %v5068
  %v5413 = vadd.f32 %v5401, %v5069
  %v5414 = vld [vmem:[%s5 + $0x1c] sm:$0x1]
  %v5415 = vld [vmem:[%s5 + $0x1d] sm:$0x1]
  %v5416 = vsel %vm79, %v5404, 0.0
  %5417 = vadd.xlane.f32.xlu0 %v5416
  %v5418 = vpop.xlane.xlu0 %5417
  %v5419 = vsel %vm79, %v5405, 0.0
  %5420 = vadd.xlane.f32.xlu0 %v5419
  %v5421 = vpop.xlane.xlu0 %5420
  %v5422 = vsel %vm79, %v5406, 0.0
  %5423 = vadd.xlane.f32.xlu0 %v5422
  %v5424 = vpop.xlane.xlu0 %5423
  %v5425 = vsel %vm79, %v5407, 0.0
  %5426 = vadd.xlane.f32.xlu0 %v5425
  %v5427 = vpop.xlane.xlu0 %5426
  %v5428 = vsel %vm79, %v5408, 0.0
  %5429 = vadd.xlane.f32.xlu0 %v5428
  %v5430 = vpop.xlane.xlu0 %5429
  %v5431 = vsel %vm79, %v5409, 0.0
  %5432 = vadd.xlane.f32.xlu0 %v5431
  %v5433 = vpop.xlane.xlu0 %5432
  %v5434 = vsel %vm79, %v5410, 0.0
  %5435 = vadd.xlane.f32.xlu0 %v5434
  %v5436 = vpop.xlane.xlu0 %5435
  %v5437 = vsel %vm79, %v5411, 0.0
  %5438 = vadd.xlane.f32.xlu0 %v5437
  %v5439 = vpop.xlane.xlu0 %5438
  %v5440 = vsel %vm79, %v5412, 0.0
  %5441 = vadd.xlane.f32.xlu0 %v5440
  %v5442 = vpop.xlane.xlu0 %5441
  %v5443 = vsel %vm79, %v5413, 0.0
  %5444 = vadd.xlane.f32.xlu0 %v5443
  %v5445 = vpop.xlane.xlu0 %5444
  %v5446 = vmul.f32 %v5418, %v86
  %v5447 = vmul.f32 %v5421, %v86
  %v5448 = vmul.f32 %v5424, %v86
  %v5449 = vmul.f32 %v5427, %v86
  %v5450 = vmul.f32 %v5430, %v86
  %v5451 = vmul.f32 %v5433, %v86
  %v5452 = vmul.f32 %v5436, %v86
  %v5453 = vmul.f32 %v5439, %v86
  %v5454 = vmul.f32 %v5442, %v86
  %v5455 = vmul.f32 %v5445, %v86
  %v5456 = vsub.f32 %v5404, %v5446
  %v5457 = vsub.f32 %v5405, %v5447
  %v5458 = vsub.f32 %v5406, %v5448
  %v5459 = vsub.f32 %v5407, %v5449
  %v5460 = vsub.f32 %v5408, %v5450
  %v5461 = vsub.f32 %v5409, %v5451
  %v5462 = vsub.f32 %v5410, %v5452
  %v5463 = vsub.f32 %v5411, %v5453
  %v5464 = vsub.f32 %v5412, %v5454
  %v5465 = vsub.f32 %v5413, %v5455
  %v5466 = vmul.f32 %v5456, %v5456
  %v5467 = vmul.f32 %v5457, %v5457
  %v5468 = vmul.f32 %v5458, %v5458
  %v5469 = vmul.f32 %v5459, %v5459
  %v5470 = vmul.f32 %v5460, %v5460
  %v5471 = vmul.f32 %v5461, %v5461
  %v5472 = vmul.f32 %v5462, %v5462
  %v5473 = vmul.f32 %v5463, %v5463
  %v5474 = vmul.f32 %v5464, %v5464
  %v5475 = vmul.f32 %v5465, %v5465
  %v5476 = vsel %vm79, %v5466, 0.0
  %5477 = vadd.xlane.f32.xlu0 %v5476
  %v5478 = vpop.xlane.xlu0 %5477
  %v5479 = vsel %vm79, %v5467, 0.0
  %5480 = vadd.xlane.f32.xlu0 %v5479
  %v5481 = vpop.xlane.xlu0 %5480
  %v5482 = vsel %vm79, %v5468, 0.0
  %5483 = vadd.xlane.f32.xlu0 %v5482
  %v5484 = vpop.xlane.xlu0 %5483
  %v5485 = vsel %vm79, %v5469, 0.0
  %5486 = vadd.xlane.f32.xlu0 %v5485
  %v5487 = vpop.xlane.xlu0 %5486
  %v5488 = vsel %vm79, %v5470, 0.0
  %5489 = vadd.xlane.f32.xlu0 %v5488
  %v5490 = vpop.xlane.xlu0 %5489
  %v5491 = vsel %vm79, %v5471, 0.0
  %5492 = vadd.xlane.f32.xlu0 %v5491
  %v5493 = vpop.xlane.xlu0 %5492
  %v5494 = vsel %vm79, %v5472, 0.0
  %5495 = vadd.xlane.f32.xlu0 %v5494
  %v5496 = vpop.xlane.xlu0 %5495
  %v5497 = vsel %vm79, %v5473, 0.0
  %5498 = vadd.xlane.f32.xlu0 %v5497
  %v5499 = vpop.xlane.xlu0 %5498
  %v5500 = vsel %vm79, %v5474, 0.0
  %5501 = vadd.xlane.f32.xlu0 %v5500
  %v5502 = vpop.xlane.xlu0 %5501
  %v5503 = vsel %vm79, %v5475, 0.0
  %5504 = vadd.xlane.f32.xlu0 %v5503
  %v5505 = vpop.xlane.xlu0 %5504
  %v5506 = vmul.f32 %v5478, %v86
  %v5507 = vmul.f32 %v5481, %v86
  %v5508 = vmul.f32 %v5484, %v86
  %v5509 = vmul.f32 %v5487, %v86
  %v5510 = vmul.f32 %v5490, %v86
  %v5511 = vmul.f32 %v5493, %v86
  %v5512 = vmul.f32 %v5496, %v86
  %v5513 = vmul.f32 %v5499, %v86
  %v5514 = vmul.f32 %v5502, %v86
  %v5515 = vmul.f32 %v5505, %v86
  %v5516 = vadd.f32 %v5506, 1e-12
  %v5517 = vadd.f32 %v5507, 1e-12
  %v5518 = vadd.f32 %v5508, 1e-12
  %v5519 = vadd.f32 %v5509, 1e-12
  %v5520 = vadd.f32 %v5510, 1e-12
  %v5521 = vadd.f32 %v5511, 1e-12
  %v5522 = vadd.f32 %v5512, 1e-12
  %v5523 = vadd.f32 %v5513, 1e-12
  %v5524 = vadd.f32 %v5514, 1e-12
  %v5525 = vadd.f32 %v5515, 1e-12
  %v5526 = vrsqrt.pop %v5516
  %v5527 = vrsqrt.pop %v5517
  %v5528 = vrsqrt.pop %v5518
  %v5529 = vrsqrt.pop %v5519
  %v5530 = vrsqrt.pop %v5520
  %v5531 = vrsqrt.pop %v5521
  %v5532 = vrsqrt.pop %v5522
  %v5533 = vrsqrt.pop %v5523
  %v5534 = vrsqrt.pop %v5524
  %v5535 = vrsqrt.pop %v5525
  %v5536 = vmul.f32 %v5456, %v5526
  %v5537 = vmul.f32 %v5457, %v5527
  %v5538 = vmul.f32 %v5458, %v5528
  %v5539 = vmul.f32 %v5459, %v5529
  %v5540 = vmul.f32 %v5460, %v5530
  %v5541 = vmul.f32 %v5461, %v5531
  %v5542 = vmul.f32 %v5462, %v5532
  %v5543 = vmul.f32 %v5463, %v5533
  %v5544 = vmul.f32 %v5464, %v5534
  %v5545 = vmul.f32 %v5465, %v5535
  %v5546 = vlaneseq
  %v5547 = vshrl.u32 %v5546, 7
  %v5548 = vsub.s32 0, %v5547
  %v5549 = vrot.slane %v5414, %v5548
  %v5550 = vmul.f32 %v5536, %v5549
  %v5551 = vmul.f32 %v5537, %v5549
  %v5552 = vmul.f32 %v5538, %v5549
  %v5553 = vmul.f32 %v5539, %v5549
  %v5554 = vmul.f32 %v5540, %v5549
  %v5555 = vmul.f32 %v5541, %v5549
  %v5556 = vmul.f32 %v5542, %v5549
  %v5557 = vmul.f32 %v5543, %v5549
  %v5558 = vmul.f32 %v5544, %v5549
  %v5559 = vmul.f32 %v5545, %v5549
  %v5560 = vlaneseq
  %v5561 = vshrl.u32 %v5560, 7
  %v5562 = vsub.s32 0, %v5561
  %v5563 = vrot.slane %v5415, %v5562
  %v5564 = vadd.f32 %v5550, %v5563
  %v5565 = vadd.f32 %v5551, %v5563
  %v5566 = vadd.f32 %v5552, %v5563
  %v5567 = vadd.f32 %v5553, %v5563
  %v5568 = vadd.f32 %v5554, %v5563
  %v5569 = vadd.f32 %v5555, %v5563
  %v5570 = vadd.f32 %v5556, %v5563
  %v5571 = vadd.f32 %v5557, %v5563
  %v5572 = vadd.f32 %v5558, %v5563
  %v5573 = vadd.f32 %v5559, %v5563
  %v5574 = vpack.c.bf16 %v5565, %v5564
  %v5575 = vpack.c.bf16 %v5567, %v5566
  %v5576 = vpack.c.bf16 %v5569, %v5568
  %v5577 = vpack.c.bf16 %v5571, %v5570
  %v5578 = vpack.c.bf16 %v5573, %v5572
  %s5579 = scalar_lea.vmem %s10, 16
  %v5580 = vld [vmem:[%s5579] sm:$0xf]
  %v5581 = vld [vmem:[%s5579 + $0x4] sm:$0xf]
  %v5582 = vld [vmem:[%s5579 + $0x8] sm:$0xf]
  %v5583 = vld [vmem:[%s5579 + $0xc] sm:$0xf]
  %v5584 = vld [vmem:[%s5 + $0x1e] sm:$0x1]
  %v5585 = vlaneseq
  %v5586 = vshrl.u32 %v5585, 7
  %v5587 = vsub.s32 0, %v5586
  %v5588 = vrot.slane %v5584, %v5587
  %v5593 = vunpack.c.l.b16 %v5580
  %v5594 = vunpack.c.l.b16 %v5581
  %v5595 = vunpack.c.l.b16 %v5582
  %v5596 = vunpack.c.l.b16 %v5583
  %v5597 = vpack.c.b16 %v5594, %v5593
  %v5598 = vpack.c.b16 %v5596, %v5595
  %v5602 = vsel %vm79, %v5574, 0
  %v5605 = vsel %vm79, %v5575, 0
  %v5608 = vsel %vm79, %v5576, 0
  %v5611 = vsel %vm79, %v5577, 0
  %v5614 = vsel %vm79, %v5578, 0
  %5616 = vmatprep.subr.bf16.mxu0 0
  %5617 = vmatpush1.bf16.msra.mxu0 0
  %5618 = vmatprep.subr.bf16.mxu0 0
  %5619 = vmatpush1.bf16.msra.mxu0 0
  %5620 = vmatprep.subr.bf16.mxu0 0
  %5621 = vmatpush1.bf16.msra.mxu0 0
  %5622 = vmatprep.subr.bf16.mxu0 0
  %5623 = vmatpush1.bf16.msra.mxu0 0
  %5624 = vmatprep.subr.bf16.mxu0 0
  %5625 = vmatpush1.bf16.msra.mxu0 0
  %5626 = vmatprep.subr.bf16.mxu0 0
  %5627 = vmatpush1.bf16.msra.mxu0 0
  %5628 = vmatprep.subr.bf16.mxu0 0
  %5629 = vmatpush1.bf16.msra.mxu0 %v5598
  %5630 = vmatprep.subr.bf16.mxu0 0
  %5631 = vmatpush1.bf16.msra.mxu0 %v5597
  %5632 = vmatprep.subr.bf16.mxu0 0
  %5633 = vmatpush2.bf16.msra.mxu0 0
  %5634 = vmatprep.subr.bf16.mxu0 0
  %5635 = vmatpush2.bf16.msra.mxu0 0
  %5636 = vmatprep.subr.bf16.mxu0 0
  %5637 = vmatpush2.bf16.msra.mxu0 0
  %5638 = vmatprep.subr.bf16.mxu0 0
  %5639 = vmatpush2.bf16.msra.mxu0 0
  %5640 = vmatprep.subr.bf16.mxu0 0
  %5641 = vmatpush2.bf16.msra.mxu0 0
  %5642 = vmatprep.subr.bf16.mxu0 0
  %5643 = vmatpush2.bf16.msra.mxu0 0
  %5644 = vmatprep.subr.bf16.mxu0 0
  %5645 = vmatpush2.bf16.msra.mxu0 0
  %5646 = vmatprep.subr.bf16.mxu0 0
  %5647 = vmatpush2.bf16.msra.mxu0 0
  %5648 = vmatprep.mubr.bf16.mxu0 0
  %5649 = vmatmul.mubr.bf16.gmra.mxu0 %v5602
  %v5650 = vpop.f32.mrf.mxu0
  %v5651 = vadd.f32 %v5588, %v5650
  %v5652 = vpop.f32.mrf.mxu0
  %v5653 = vpop.f32.mrf.mxu0
  %v5654 = vadd.f32 %v5588, %v5653
  %v5655 = vpop.f32.mrf.mxu0
  %5656 = vmatprep.mubr.bf16.mxu0 0
  %5657 = vmatmul.mubr.bf16.gmra.mxu0 %v5605
  %v5658 = vpop.f32.mrf.mxu0
  %v5659 = vadd.f32 %v5588, %v5658
  %v5660 = vpop.f32.mrf.mxu0
  %v5661 = vpop.f32.mrf.mxu0
  %v5662 = vadd.f32 %v5588, %v5661
  %v5663 = vpop.f32.mrf.mxu0
  %5664 = vmatprep.mubr.bf16.mxu0 0
  %5665 = vmatmul.mubr.bf16.gmra.mxu0 %v5608
  %v5666 = vpop.f32.mrf.mxu0
  %v5667 = vadd.f32 %v5588, %v5666
  %v5668 = vpop.f32.mrf.mxu0
  %v5669 = vpop.f32.mrf.mxu0
  %v5670 = vadd.f32 %v5588, %v5669
  %v5671 = vpop.f32.mrf.mxu0
  %5672 = vmatprep.mubr.bf16.mxu0 0
  %5673 = vmatmul.mubr.bf16.gmra.mxu0 %v5611
  %v5674 = vpop.f32.mrf.mxu0
  %v5675 = vadd.f32 %v5588, %v5674
  %v5676 = vpop.f32.mrf.mxu0
  %v5677 = vpop.f32.mrf.mxu0
  %v5678 = vadd.f32 %v5588, %v5677
  %v5679 = vpop.f32.mrf.mxu0
  %5680 = vmatprep.mubr.bf16.mxu0 0
  %5681 = vmatmul.mubr.bf16.gmra.mxu0 %v5614
  %v5682 = vpop.f32.mrf.mxu0
  %v5683 = vadd.f32 %v5588, %v5682
  %v5684 = vpop.f32.mrf.mxu0
  %v5685 = vpop.f32.mrf.mxu0
  %v5686 = vadd.f32 %v5588, %v5685
  %v5687 = vpop.f32.mrf.mxu0
  %5688 = vdwg.mxu0
  %5699 = vrot.lane.b32.xlu0 %v5651, 80
  %v5700 = vpop.permute.xlu0 %5699
  %5701 = vrot.lane.b32.xlu0 %v5654, 80
  %v5702 = vpop.permute.xlu0 %5701
  %5703 = vrot.lane.b32.xlu0 %v5659, 80
  %v5704 = vpop.permute.xlu0 %5703
  %5705 = vrot.lane.b32.xlu0 %v5662, 80
  %v5706 = vpop.permute.xlu0 %5705
  %5707 = vrot.lane.b32.xlu0 %v5667, 80
  %v5708 = vpop.permute.xlu0 %5707
  %5709 = vrot.lane.b32.xlu0 %v5670, 80
  %v5710 = vpop.permute.xlu0 %5709
  %5711 = vrot.lane.b32.xlu0 %v5675, 80
  %v5712 = vpop.permute.xlu0 %5711
  %5713 = vrot.lane.b32.xlu0 %v5678, 80
  %v5714 = vpop.permute.xlu0 %5713
  %5715 = vrot.lane.b32.xlu0 %v5683, 80
  %v5716 = vpop.permute.xlu0 %5715
  %5717 = vrot.lane.b32.xlu0 %v5686, 80
  %v5718 = vpop.permute.xlu0 %5717
  %v5729 = vpack.c.bf16 %v5651, %v5651
  %v5730 = vpack.c.bf16 %v5654, %v5654
  %v5731 = vpack.c.bf16 %v5659, %v5659
  %v5732 = vpack.c.bf16 %v5662, %v5662
  %v5733 = vpack.c.bf16 %v5667, %v5667
  %v5734 = vpack.c.bf16 %v5670, %v5670
  %v5735 = vpack.c.bf16 %v5675, %v5675
  %v5736 = vpack.c.bf16 %v5678, %v5678
  %v5737 = vpack.c.bf16 %v5683, %v5683
  %v5738 = vpack.c.bf16 %v5686, %v5686
  %v5739 = vpack.c.bf16 %v5700, %v5700
  %v5740 = vpack.c.bf16 %v5702, %v5702
  %v5741 = vpack.c.bf16 %v5704, %v5704
  %v5742 = vpack.c.bf16 %v5706, %v5706
  %v5743 = vpack.c.bf16 %v5708, %v5708
  %v5744 = vpack.c.bf16 %v5710, %v5710
  %v5745 = vpack.c.bf16 %v5712, %v5712
  %v5746 = vpack.c.bf16 %v5714, %v5714
  %v5747 = vpack.c.bf16 %v5716, %v5716
  %v5748 = vpack.c.bf16 %v5718, %v5718
  %5750 = vrot.lane.b32.xlu0 %v5729, 112
  %v5751 = vpop.permute.xlu0 %5750
  %v5753 = vsel %vm250, %v5729, 0
  %v5756 = vsel %vm250, %v5751, 0
  %5758 = vmatprep.subr.bf16.mxu0 0
  %5759 = vmatpush1.bf16.xpose.msra.mxu0 0
  %5760 = vmatprep.subr.bf16.mxu0 0
  %5761 = vmatpush1.bf16.xpose.msra.mxu0 0
  %5762 = vmatprep.subr.bf16.mxu0 0
  %5763 = vmatpush1.bf16.xpose.msra.mxu0 0
  %5764 = vmatprep.subr.bf16.mxu0 0
  %5765 = vmatpush1.bf16.xpose.msra.mxu0 0
  %5766 = vmatprep.subr.bf16.mxu0 0
  %5767 = vmatpush1.bf16.xpose.msra.mxu0 0
  %5768 = vmatprep.subr.bf16.mxu0 0
  %5769 = vmatpush1.bf16.xpose.msra.mxu0 0
  %5770 = vmatprep.subr.bf16.mxu0 0
  %5771 = vmatpush1.bf16.xpose.msra.mxu0 0
  %5772 = vmatprep.subr.bf16.mxu0 0
  %5773 = vmatpush1.bf16.xpose.msra.mxu0 %v5756
  %5774 = vmatprep.subr.bf16.mxu0 0
  %5775 = vmatpush2.bf16.xpose.msra.mxu0 0
  %5776 = vmatprep.subr.bf16.mxu0 0
  %5777 = vmatpush2.bf16.xpose.msra.mxu0 0
  %5778 = vmatprep.subr.bf16.mxu0 0
  %5779 = vmatpush2.bf16.xpose.msra.mxu0 0
  %5780 = vmatprep.subr.bf16.mxu0 0
  %5781 = vmatpush2.bf16.xpose.msra.mxu0 0
  %5782 = vmatprep.subr.bf16.mxu0 0
  %5783 = vmatpush2.bf16.xpose.msra.mxu0 0
  %5784 = vmatprep.subr.bf16.mxu0 0
  %5785 = vmatpush2.bf16.xpose.msra.mxu0 0
  %5786 = vmatprep.subr.bf16.mxu0 0
  %5787 = vmatpush2.bf16.xpose.msra.mxu0 0
  %5788 = vmatprep.subr.bf16.mxu0 0
  %5789 = vmatpush2.bf16.xpose.msra.mxu0 0
  %5790 = vmatprep.mubr.bf16.mxu0 0
  %5791 = vmatmul.mubr.bf16.gmra.mxu0 %v5753
  %v5792 = vpop.f32.mrf.mxu0
  %v5793 = vadd.f32 %v2459, %v5792
  %v5794 = vpop.f32.mrf.mxu0
  %v5795 = vpop.f32.mrf.mxu0
  %v5796 = vpop.f32.mrf.mxu0
  %5797 = vdwg.mxu0
  %5799 = vrot.lane.b32.xlu0 %v5730, 112
  %v5800 = vpop.permute.xlu0 %5799
  %v5802 = vsel %vm250, %v5730, 0
  %v5805 = vsel %vm250, %v5800, 0
  %5807 = vmatprep.subr.bf16.mxu0 0
  %5808 = vmatpush1.bf16.xpose.msra.mxu0 0
  %5809 = vmatprep.subr.bf16.mxu0 0
  %5810 = vmatpush1.bf16.xpose.msra.mxu0 0
  %5811 = vmatprep.subr.bf16.mxu0 0
  %5812 = vmatpush1.bf16.xpose.msra.mxu0 0
  %5813 = vmatprep.subr.bf16.mxu0 0
  %5814 = vmatpush1.bf16.xpose.msra.mxu0 0
  %5815 = vmatprep.subr.bf16.mxu0 0
  %5816 = vmatpush1.bf16.xpose.msra.mxu0 0
  %5817 = vmatprep.subr.bf16.mxu0 0
  %5818 = vmatpush1.bf16.xpose.msra.mxu0 0
  %5819 = vmatprep.subr.bf16.mxu0 0
  %5820 = vmatpush1.bf16.xpose.msra.mxu0 0
  %5821 = vmatprep.subr.bf16.mxu0 0
  %5822 = vmatpush1.bf16.xpose.msra.mxu0 %v5805
  %5823 = vmatprep.subr.bf16.mxu0 0
  %5824 = vmatpush2.bf16.xpose.msra.mxu0 0
  %5825 = vmatprep.subr.bf16.mxu0 0
  %5826 = vmatpush2.bf16.xpose.msra.mxu0 0
  %5827 = vmatprep.subr.bf16.mxu0 0
  %5828 = vmatpush2.bf16.xpose.msra.mxu0 0
  %5829 = vmatprep.subr.bf16.mxu0 0
  %5830 = vmatpush2.bf16.xpose.msra.mxu0 0
  %5831 = vmatprep.subr.bf16.mxu0 0
  %5832 = vmatpush2.bf16.xpose.msra.mxu0 0
  %5833 = vmatprep.subr.bf16.mxu0 0
  %5834 = vmatpush2.bf16.xpose.msra.mxu0 0
  %5835 = vmatprep.subr.bf16.mxu0 0
  %5836 = vmatpush2.bf16.xpose.msra.mxu0 0
  %5837 = vmatprep.subr.bf16.mxu0 0
  %5838 = vmatpush2.bf16.xpose.msra.mxu0 0
  %5839 = vmatprep.mubr.bf16.mxu0 0
  %5840 = vmatmul.mubr.bf16.gmra.mxu0 %v5802
  %v5841 = vpop.f32.mrf.mxu0
  %v5842 = vadd.f32 %v2463, %v5841
  %v5843 = vpop.f32.mrf.mxu0
  %v5844 = vpop.f32.mrf.mxu0
  %v5845 = vpop.f32.mrf.mxu0
  %5846 = vdwg.mxu0
  %5848 = vrot.lane.b32.xlu0 %v5731, 112
  %v5849 = vpop.permute.xlu0 %5848
  %v5851 = vsel %vm250, %v5731, 0
  %v5854 = vsel %vm250, %v5849, 0
  %5856 = vmatprep.subr.bf16.mxu0 0
  %5857 = vmatpush1.bf16.xpose.msra.mxu0 0
  %5858 = vmatprep.subr.bf16.mxu0 0
  %5859 = vmatpush1.bf16.xpose.msra.mxu0 0
  %5860 = vmatprep.subr.bf16.mxu0 0
  %5861 = vmatpush1.bf16.xpose.msra.mxu0 0
  %5862 = vmatprep.subr.bf16.mxu0 0
  %5863 = vmatpush1.bf16.xpose.msra.mxu0 0
  %5864 = vmatprep.subr.bf16.mxu0 0
  %5865 = vmatpush1.bf16.xpose.msra.mxu0 0
  %5866 = vmatprep.subr.bf16.mxu0 0
  %5867 = vmatpush1.bf16.xpose.msra.mxu0 0
  %5868 = vmatprep.subr.bf16.mxu0 0
  %5869 = vmatpush1.bf16.xpose.msra.mxu0 0
  %5870 = vmatprep.subr.bf16.mxu0 0
  %5871 = vmatpush1.bf16.xpose.msra.mxu0 %v5854
  %5872 = vmatprep.subr.bf16.mxu0 0
  %5873 = vmatpush2.bf16.xpose.msra.mxu0 0
  %5874 = vmatprep.subr.bf16.mxu0 0
  %5875 = vmatpush2.bf16.xpose.msra.mxu0 0
  %5876 = vmatprep.subr.bf16.mxu0 0
  %5877 = vmatpush2.bf16.xpose.msra.mxu0 0
  %5878 = vmatprep.subr.bf16.mxu0 0
  %5879 = vmatpush2.bf16.xpose.msra.mxu0 0
  %5880 = vmatprep.subr.bf16.mxu0 0
  %5881 = vmatpush2.bf16.xpose.msra.mxu0 0
  %5882 = vmatprep.subr.bf16.mxu0 0
  %5883 = vmatpush2.bf16.xpose.msra.mxu0 0
  %5884 = vmatprep.subr.bf16.mxu0 0
  %5885 = vmatpush2.bf16.xpose.msra.mxu0 0
  %5886 = vmatprep.subr.bf16.mxu0 0
  %5887 = vmatpush2.bf16.xpose.msra.mxu0 0
  %5888 = vmatprep.mubr.bf16.mxu0 0
  %5889 = vmatmul.mubr.bf16.gmra.mxu0 %v5851
  %v5890 = vpop.f32.mrf.mxu0
  %v5891 = vadd.f32 %v2467, %v5890
  %v5892 = vpop.f32.mrf.mxu0
  %v5893 = vpop.f32.mrf.mxu0
  %v5894 = vpop.f32.mrf.mxu0
  %5895 = vdwg.mxu0
  %5897 = vrot.lane.b32.xlu0 %v5732, 112
  %v5898 = vpop.permute.xlu0 %5897
  %v5900 = vsel %vm250, %v5732, 0
  %v5903 = vsel %vm250, %v5898, 0
  %5905 = vmatprep.subr.bf16.mxu0 0
  %5906 = vmatpush1.bf16.xpose.msra.mxu0 0
  %5907 = vmatprep.subr.bf16.mxu0 0
  %5908 = vmatpush1.bf16.xpose.msra.mxu0 0
  %5909 = vmatprep.subr.bf16.mxu0 0
  %5910 = vmatpush1.bf16.xpose.msra.mxu0 0
  %5911 = vmatprep.subr.bf16.mxu0 0
  %5912 = vmatpush1.bf16.xpose.msra.mxu0 0
  %5913 = vmatprep.subr.bf16.mxu0 0
  %5914 = vmatpush1.bf16.xpose.msra.mxu0 0
  %5915 = vmatprep.subr.bf16.mxu0 0
  %5916 = vmatpush1.bf16.xpose.msra.mxu0 0
  %5917 = vmatprep.subr.bf16.mxu0 0
  %5918 = vmatpush1.bf16.xpose.msra.mxu0 0
  %5919 = vmatprep.subr.bf16.mxu0 0
  %5920 = vmatpush1.bf16.xpose.msra.mxu0 %v5903
  %5921 = vmatprep.subr.bf16.mxu0 0
  %5922 = vmatpush2.bf16.xpose.msra.mxu0 0
  %5923 = vmatprep.subr.bf16.mxu0 0
  %5924 = vmatpush2.bf16.xpose.msra.mxu0 0
  %5925 = vmatprep.subr.bf16.mxu0 0
  %5926 = vmatpush2.bf16.xpose.msra.mxu0 0
  %5927 = vmatprep.subr.bf16.mxu0 0
  %5928 = vmatpush2.bf16.xpose.msra.mxu0 0
  %5929 = vmatprep.subr.bf16.mxu0 0
  %5930 = vmatpush2.bf16.xpose.msra.mxu0 0
  %5931 = vmatprep.subr.bf16.mxu0 0
  %5932 = vmatpush2.bf16.xpose.msra.mxu0 0
  %5933 = vmatprep.subr.bf16.mxu0 0
  %5934 = vmatpush2.bf16.xpose.msra.mxu0 0
  %5935 = vmatprep.subr.bf16.mxu0 0
  %5936 = vmatpush2.bf16.xpose.msra.mxu0 0
  %5937 = vmatprep.mubr.bf16.mxu0 0
  %5938 = vmatmul.mubr.bf16.gmra.mxu0 %v5900
  %v5939 = vpop.f32.mrf.mxu0
  %v5940 = vadd.f32 %v2471, %v5939
  %v5941 = vpop.f32.mrf.mxu0
  %v5942 = vpop.f32.mrf.mxu0
  %v5943 = vpop.f32.mrf.mxu0
  %5944 = vdwg.mxu0
  %5946 = vrot.lane.b32.xlu0 %v5733, 112
  %v5947 = vpop.permute.xlu0 %5946
  %v5949 = vsel %vm250, %v5733, 0
  %v5952 = vsel %vm250, %v5947, 0
  %5954 = vmatprep.subr.bf16.mxu0 0
  %5955 = vmatpush1.bf16.xpose.msra.mxu0 0
  %5956 = vmatprep.subr.bf16.mxu0 0
  %5957 = vmatpush1.bf16.xpose.msra.mxu0 0
  %5958 = vmatprep.subr.bf16.mxu0 0
  %5959 = vmatpush1.bf16.xpose.msra.mxu0 0
  %5960 = vmatprep.subr.bf16.mxu0 0
  %5961 = vmatpush1.bf16.xpose.msra.mxu0 0
  %5962 = vmatprep.subr.bf16.mxu0 0
  %5963 = vmatpush1.bf16.xpose.msra.mxu0 0
  %5964 = vmatprep.subr.bf16.mxu0 0
  %5965 = vmatpush1.bf16.xpose.msra.mxu0 0
  %5966 = vmatprep.subr.bf16.mxu0 0
  %5967 = vmatpush1.bf16.xpose.msra.mxu0 0
  %5968 = vmatprep.subr.bf16.mxu0 0
  %5969 = vmatpush1.bf16.xpose.msra.mxu0 %v5952
  %5970 = vmatprep.subr.bf16.mxu0 0
  %5971 = vmatpush2.bf16.xpose.msra.mxu0 0
  %5972 = vmatprep.subr.bf16.mxu0 0
  %5973 = vmatpush2.bf16.xpose.msra.mxu0 0
  %5974 = vmatprep.subr.bf16.mxu0 0
  %5975 = vmatpush2.bf16.xpose.msra.mxu0 0
  %5976 = vmatprep.subr.bf16.mxu0 0
  %5977 = vmatpush2.bf16.xpose.msra.mxu0 0
  %5978 = vmatprep.subr.bf16.mxu0 0
  %5979 = vmatpush2.bf16.xpose.msra.mxu0 0
  %5980 = vmatprep.subr.bf16.mxu0 0
  %5981 = vmatpush2.bf16.xpose.msra.mxu0 0
  %5982 = vmatprep.subr.bf16.mxu0 0
  %5983 = vmatpush2.bf16.xpose.msra.mxu0 0
  %5984 = vmatprep.subr.bf16.mxu0 0
  %5985 = vmatpush2.bf16.xpose.msra.mxu0 0
  %5986 = vmatprep.mubr.bf16.mxu0 0
  %5987 = vmatmul.mubr.bf16.gmra.mxu0 %v5949
  %v5988 = vpop.f32.mrf.mxu0
  %v5989 = vadd.f32 %v2475, %v5988
  %v5990 = vpop.f32.mrf.mxu0
  %v5991 = vpop.f32.mrf.mxu0
  %v5992 = vpop.f32.mrf.mxu0
  %5993 = vdwg.mxu0
  %5995 = vrot.lane.b32.xlu0 %v5734, 112
  %v5996 = vpop.permute.xlu0 %5995
  %v5998 = vsel %vm250, %v5734, 0
  %v6001 = vsel %vm250, %v5996, 0
  %6003 = vmatprep.subr.bf16.mxu0 0
  %6004 = vmatpush1.bf16.xpose.msra.mxu0 0
  %6005 = vmatprep.subr.bf16.mxu0 0
  %6006 = vmatpush1.bf16.xpose.msra.mxu0 0
  %6007 = vmatprep.subr.bf16.mxu0 0
  %6008 = vmatpush1.bf16.xpose.msra.mxu0 0
  %6009 = vmatprep.subr.bf16.mxu0 0
  %6010 = vmatpush1.bf16.xpose.msra.mxu0 0
  %6011 = vmatprep.subr.bf16.mxu0 0
  %6012 = vmatpush1.bf16.xpose.msra.mxu0 0
  %6013 = vmatprep.subr.bf16.mxu0 0
  %6014 = vmatpush1.bf16.xpose.msra.mxu0 0
  %6015 = vmatprep.subr.bf16.mxu0 0
  %6016 = vmatpush1.bf16.xpose.msra.mxu0 0
  %6017 = vmatprep.subr.bf16.mxu0 0
  %6018 = vmatpush1.bf16.xpose.msra.mxu0 %v6001
  %6019 = vmatprep.subr.bf16.mxu0 0
  %6020 = vmatpush2.bf16.xpose.msra.mxu0 0
  %6021 = vmatprep.subr.bf16.mxu0 0
  %6022 = vmatpush2.bf16.xpose.msra.mxu0 0
  %6023 = vmatprep.subr.bf16.mxu0 0
  %6024 = vmatpush2.bf16.xpose.msra.mxu0 0
  %6025 = vmatprep.subr.bf16.mxu0 0
  %6026 = vmatpush2.bf16.xpose.msra.mxu0 0
  %6027 = vmatprep.subr.bf16.mxu0 0
  %6028 = vmatpush2.bf16.xpose.msra.mxu0 0
  %6029 = vmatprep.subr.bf16.mxu0 0
  %6030 = vmatpush2.bf16.xpose.msra.mxu0 0
  %6031 = vmatprep.subr.bf16.mxu0 0
  %6032 = vmatpush2.bf16.xpose.msra.mxu0 0
  %6033 = vmatprep.subr.bf16.mxu0 0
  %6034 = vmatpush2.bf16.xpose.msra.mxu0 0
  %6035 = vmatprep.mubr.bf16.mxu0 0
  %6036 = vmatmul.mubr.bf16.gmra.mxu0 %v5998
  %v6037 = vpop.f32.mrf.mxu0
  %v6038 = vadd.f32 %v2479, %v6037
  %v6039 = vpop.f32.mrf.mxu0
  %v6040 = vpop.f32.mrf.mxu0
  %v6041 = vpop.f32.mrf.mxu0
  %6042 = vdwg.mxu0
  %6044 = vrot.lane.b32.xlu0 %v5735, 112
  %v6045 = vpop.permute.xlu0 %6044
  %v6047 = vsel %vm250, %v5735, 0
  %v6050 = vsel %vm250, %v6045, 0
  %6052 = vmatprep.subr.bf16.mxu0 0
  %6053 = vmatpush1.bf16.xpose.msra.mxu0 0
  %6054 = vmatprep.subr.bf16.mxu0 0
  %6055 = vmatpush1.bf16.xpose.msra.mxu0 0
  %6056 = vmatprep.subr.bf16.mxu0 0
  %6057 = vmatpush1.bf16.xpose.msra.mxu0 0
  %6058 = vmatprep.subr.bf16.mxu0 0
  %6059 = vmatpush1.bf16.xpose.msra.mxu0 0
  %6060 = vmatprep.subr.bf16.mxu0 0
  %6061 = vmatpush1.bf16.xpose.msra.mxu0 0
  %6062 = vmatprep.subr.bf16.mxu0 0
  %6063 = vmatpush1.bf16.xpose.msra.mxu0 0
  %6064 = vmatprep.subr.bf16.mxu0 0
  %6065 = vmatpush1.bf16.xpose.msra.mxu0 0
  %6066 = vmatprep.subr.bf16.mxu0 0
  %6067 = vmatpush1.bf16.xpose.msra.mxu0 %v6050
  %6068 = vmatprep.subr.bf16.mxu0 0
  %6069 = vmatpush2.bf16.xpose.msra.mxu0 0
  %6070 = vmatprep.subr.bf16.mxu0 0
  %6071 = vmatpush2.bf16.xpose.msra.mxu0 0
  %6072 = vmatprep.subr.bf16.mxu0 0
  %6073 = vmatpush2.bf16.xpose.msra.mxu0 0
  %6074 = vmatprep.subr.bf16.mxu0 0
  %6075 = vmatpush2.bf16.xpose.msra.mxu0 0
  %6076 = vmatprep.subr.bf16.mxu0 0
  %6077 = vmatpush2.bf16.xpose.msra.mxu0 0
  %6078 = vmatprep.subr.bf16.mxu0 0
  %6079 = vmatpush2.bf16.xpose.msra.mxu0 0
  %6080 = vmatprep.subr.bf16.mxu0 0
  %6081 = vmatpush2.bf16.xpose.msra.mxu0 0
  %6082 = vmatprep.subr.bf16.mxu0 0
  %6083 = vmatpush2.bf16.xpose.msra.mxu0 0
  %6084 = vmatprep.mubr.bf16.mxu0 0
  %6085 = vmatmul.mubr.bf16.gmra.mxu0 %v6047
  %v6086 = vpop.f32.mrf.mxu0
  %v6087 = vadd.f32 %v2483, %v6086
  %v6088 = vpop.f32.mrf.mxu0
  %v6089 = vpop.f32.mrf.mxu0
  %v6090 = vpop.f32.mrf.mxu0
  %6091 = vdwg.mxu0
  %6093 = vrot.lane.b32.xlu0 %v5736, 112
  %v6094 = vpop.permute.xlu0 %6093
  %v6096 = vsel %vm250, %v5736, 0
  %v6099 = vsel %vm250, %v6094, 0
  %6101 = vmatprep.subr.bf16.mxu0 0
  %6102 = vmatpush1.bf16.xpose.msra.mxu0 0
  %6103 = vmatprep.subr.bf16.mxu0 0
  %6104 = vmatpush1.bf16.xpose.msra.mxu0 0
  %6105 = vmatprep.subr.bf16.mxu0 0
  %6106 = vmatpush1.bf16.xpose.msra.mxu0 0
  %6107 = vmatprep.subr.bf16.mxu0 0
  %6108 = vmatpush1.bf16.xpose.msra.mxu0 0
  %6109 = vmatprep.subr.bf16.mxu0 0
  %6110 = vmatpush1.bf16.xpose.msra.mxu0 0
  %6111 = vmatprep.subr.bf16.mxu0 0
  %6112 = vmatpush1.bf16.xpose.msra.mxu0 0
  %6113 = vmatprep.subr.bf16.mxu0 0
  %6114 = vmatpush1.bf16.xpose.msra.mxu0 0
  %6115 = vmatprep.subr.bf16.mxu0 0
  %6116 = vmatpush1.bf16.xpose.msra.mxu0 %v6099
  %6117 = vmatprep.subr.bf16.mxu0 0
  %6118 = vmatpush2.bf16.xpose.msra.mxu0 0
  %6119 = vmatprep.subr.bf16.mxu0 0
  %6120 = vmatpush2.bf16.xpose.msra.mxu0 0
  %6121 = vmatprep.subr.bf16.mxu0 0
  %6122 = vmatpush2.bf16.xpose.msra.mxu0 0
  %6123 = vmatprep.subr.bf16.mxu0 0
  %6124 = vmatpush2.bf16.xpose.msra.mxu0 0
  %6125 = vmatprep.subr.bf16.mxu0 0
  %6126 = vmatpush2.bf16.xpose.msra.mxu0 0
  %6127 = vmatprep.subr.bf16.mxu0 0
  %6128 = vmatpush2.bf16.xpose.msra.mxu0 0
  %6129 = vmatprep.subr.bf16.mxu0 0
  %6130 = vmatpush2.bf16.xpose.msra.mxu0 0
  %6131 = vmatprep.subr.bf16.mxu0 0
  %6132 = vmatpush2.bf16.xpose.msra.mxu0 0
  %6133 = vmatprep.mubr.bf16.mxu0 0
  %6134 = vmatmul.mubr.bf16.gmra.mxu0 %v6096
  %v6135 = vpop.f32.mrf.mxu0
  %v6136 = vadd.f32 %v2487, %v6135
  %v6137 = vpop.f32.mrf.mxu0
  %v6138 = vpop.f32.mrf.mxu0
  %v6139 = vpop.f32.mrf.mxu0
  %6140 = vdwg.mxu0
  %6142 = vrot.lane.b32.xlu0 %v5737, 112
  %v6143 = vpop.permute.xlu0 %6142
  %v6145 = vsel %vm250, %v5737, 0
  %v6148 = vsel %vm250, %v6143, 0
  %6150 = vmatprep.subr.bf16.mxu0 0
  %6151 = vmatpush1.bf16.xpose.msra.mxu0 0
  %6152 = vmatprep.subr.bf16.mxu0 0
  %6153 = vmatpush1.bf16.xpose.msra.mxu0 0
  %6154 = vmatprep.subr.bf16.mxu0 0
  %6155 = vmatpush1.bf16.xpose.msra.mxu0 0
  %6156 = vmatprep.subr.bf16.mxu0 0
  %6157 = vmatpush1.bf16.xpose.msra.mxu0 0
  %6158 = vmatprep.subr.bf16.mxu0 0
  %6159 = vmatpush1.bf16.xpose.msra.mxu0 0
  %6160 = vmatprep.subr.bf16.mxu0 0
  %6161 = vmatpush1.bf16.xpose.msra.mxu0 0
  %6162 = vmatprep.subr.bf16.mxu0 0
  %6163 = vmatpush1.bf16.xpose.msra.mxu0 0
  %6164 = vmatprep.subr.bf16.mxu0 0
  %6165 = vmatpush1.bf16.xpose.msra.mxu0 %v6148
  %6166 = vmatprep.subr.bf16.mxu0 0
  %6167 = vmatpush2.bf16.xpose.msra.mxu0 0
  %6168 = vmatprep.subr.bf16.mxu0 0
  %6169 = vmatpush2.bf16.xpose.msra.mxu0 0
  %6170 = vmatprep.subr.bf16.mxu0 0
  %6171 = vmatpush2.bf16.xpose.msra.mxu0 0
  %6172 = vmatprep.subr.bf16.mxu0 0
  %6173 = vmatpush2.bf16.xpose.msra.mxu0 0
  %6174 = vmatprep.subr.bf16.mxu0 0
  %6175 = vmatpush2.bf16.xpose.msra.mxu0 0
  %6176 = vmatprep.subr.bf16.mxu0 0
  %6177 = vmatpush2.bf16.xpose.msra.mxu0 0
  %6178 = vmatprep.subr.bf16.mxu0 0
  %6179 = vmatpush2.bf16.xpose.msra.mxu0 0
  %6180 = vmatprep.subr.bf16.mxu0 0
  %6181 = vmatpush2.bf16.xpose.msra.mxu0 0
  %6182 = vmatprep.mubr.bf16.mxu0 0
  %6183 = vmatmul.mubr.bf16.gmra.mxu0 %v6145
  %v6184 = vpop.f32.mrf.mxu0
  %v6185 = vadd.f32 %v2491, %v6184
  %v6186 = vpop.f32.mrf.mxu0
  %v6187 = vpop.f32.mrf.mxu0
  %v6188 = vpop.f32.mrf.mxu0
  %6189 = vdwg.mxu0
  %6191 = vrot.lane.b32.xlu0 %v5738, 112
  %v6192 = vpop.permute.xlu0 %6191
  %v6194 = vsel %vm250, %v5738, 0
  %v6197 = vsel %vm250, %v6192, 0
  %6199 = vmatprep.subr.bf16.mxu0 0
  %6200 = vmatpush1.bf16.xpose.msra.mxu0 0
  %6201 = vmatprep.subr.bf16.mxu0 0
  %6202 = vmatpush1.bf16.xpose.msra.mxu0 0
  %6203 = vmatprep.subr.bf16.mxu0 0
  %6204 = vmatpush1.bf16.xpose.msra.mxu0 0
  %6205 = vmatprep.subr.bf16.mxu0 0
  %6206 = vmatpush1.bf16.xpose.msra.mxu0 0
  %6207 = vmatprep.subr.bf16.mxu0 0
  %6208 = vmatpush1.bf16.xpose.msra.mxu0 0
  %6209 = vmatprep.subr.bf16.mxu0 0
  %6210 = vmatpush1.bf16.xpose.msra.mxu0 0
  %6211 = vmatprep.subr.bf16.mxu0 0
  %6212 = vmatpush1.bf16.xpose.msra.mxu0 0
  %6213 = vmatprep.subr.bf16.mxu0 0
  %6214 = vmatpush1.bf16.xpose.msra.mxu0 %v6197
  %6215 = vmatprep.subr.bf16.mxu0 0
  %6216 = vmatpush2.bf16.xpose.msra.mxu0 0
  %6217 = vmatprep.subr.bf16.mxu0 0
  %6218 = vmatpush2.bf16.xpose.msra.mxu0 0
  %6219 = vmatprep.subr.bf16.mxu0 0
  %6220 = vmatpush2.bf16.xpose.msra.mxu0 0
  %6221 = vmatprep.subr.bf16.mxu0 0
  %6222 = vmatpush2.bf16.xpose.msra.mxu0 0
  %6223 = vmatprep.subr.bf16.mxu0 0
  %6224 = vmatpush2.bf16.xpose.msra.mxu0 0
  %6225 = vmatprep.subr.bf16.mxu0 0
  %6226 = vmatpush2.bf16.xpose.msra.mxu0 0
  %6227 = vmatprep.subr.bf16.mxu0 0
  %6228 = vmatpush2.bf16.xpose.msra.mxu0 0
  %6229 = vmatprep.subr.bf16.mxu0 0
  %6230 = vmatpush2.bf16.xpose.msra.mxu0 0
  %6231 = vmatprep.mubr.bf16.mxu0 0
  %6232 = vmatmul.mubr.bf16.gmra.mxu0 %v6194
  %v6233 = vpop.f32.mrf.mxu0
  %v6234 = vadd.f32 %v2495, %v6233
  %v6235 = vpop.f32.mrf.mxu0
  %v6236 = vpop.f32.mrf.mxu0
  %v6237 = vpop.f32.mrf.mxu0
  %6238 = vdwg.mxu0
  %6240 = vrot.lane.b32.xlu0 %v5739, 112
  %v6241 = vpop.permute.xlu0 %6240
  %v6243 = vsel %vm250, %v5739, 0
  %v6246 = vsel %vm250, %v6241, 0
  %6248 = vmatprep.subr.bf16.mxu0 0
  %6249 = vmatpush1.bf16.xpose.msra.mxu0 0
  %6250 = vmatprep.subr.bf16.mxu0 0
  %6251 = vmatpush1.bf16.xpose.msra.mxu0 0
  %6252 = vmatprep.subr.bf16.mxu0 0
  %6253 = vmatpush1.bf16.xpose.msra.mxu0 0
  %6254 = vmatprep.subr.bf16.mxu0 0
  %6255 = vmatpush1.bf16.xpose.msra.mxu0 0
  %6256 = vmatprep.subr.bf16.mxu0 0
  %6257 = vmatpush1.bf16.xpose.msra.mxu0 0
  %6258 = vmatprep.subr.bf16.mxu0 0
  %6259 = vmatpush1.bf16.xpose.msra.mxu0 0
  %6260 = vmatprep.subr.bf16.mxu0 0
  %6261 = vmatpush1.bf16.xpose.msra.mxu0 0
  %6262 = vmatprep.subr.bf16.mxu0 0
  %6263 = vmatpush1.bf16.xpose.msra.mxu0 %v6246
  %6264 = vmatprep.subr.bf16.mxu0 0
  %6265 = vmatpush2.bf16.xpose.msra.mxu0 0
  %6266 = vmatprep.subr.bf16.mxu0 0
  %6267 = vmatpush2.bf16.xpose.msra.mxu0 0
  %6268 = vmatprep.subr.bf16.mxu0 0
  %6269 = vmatpush2.bf16.xpose.msra.mxu0 0
  %6270 = vmatprep.subr.bf16.mxu0 0
  %6271 = vmatpush2.bf16.xpose.msra.mxu0 0
  %6272 = vmatprep.subr.bf16.mxu0 0
  %6273 = vmatpush2.bf16.xpose.msra.mxu0 0
  %6274 = vmatprep.subr.bf16.mxu0 0
  %6275 = vmatpush2.bf16.xpose.msra.mxu0 0
  %6276 = vmatprep.subr.bf16.mxu0 0
  %6277 = vmatpush2.bf16.xpose.msra.mxu0 0
  %6278 = vmatprep.subr.bf16.mxu0 0
  %6279 = vmatpush2.bf16.xpose.msra.mxu0 0
  %6280 = vmatprep.mubr.bf16.mxu0 0
  %6281 = vmatmul.mubr.bf16.gmra.mxu0 %v6243
  %v6282 = vpop.f32.mrf.mxu0
  %v6283 = vadd.f32 %v2499, %v6282
  %v6284 = vpop.f32.mrf.mxu0
  %v6285 = vpop.f32.mrf.mxu0
  %v6286 = vpop.f32.mrf.mxu0
  %6287 = vdwg.mxu0
  %6289 = vrot.lane.b32.xlu0 %v5740, 112
  %v6290 = vpop.permute.xlu0 %6289
  %v6292 = vsel %vm250, %v5740, 0
  %v6295 = vsel %vm250, %v6290, 0
  %6297 = vmatprep.subr.bf16.mxu0 0
  %6298 = vmatpush1.bf16.xpose.msra.mxu0 0
  %6299 = vmatprep.subr.bf16.mxu0 0
  %6300 = vmatpush1.bf16.xpose.msra.mxu0 0
  %6301 = vmatprep.subr.bf16.mxu0 0
  %6302 = vmatpush1.bf16.xpose.msra.mxu0 0
  %6303 = vmatprep.subr.bf16.mxu0 0
  %6304 = vmatpush1.bf16.xpose.msra.mxu0 0
  %6305 = vmatprep.subr.bf16.mxu0 0
  %6306 = vmatpush1.bf16.xpose.msra.mxu0 0
  %6307 = vmatprep.subr.bf16.mxu0 0
  %6308 = vmatpush1.bf16.xpose.msra.mxu0 0
  %6309 = vmatprep.subr.bf16.mxu0 0
  %6310 = vmatpush1.bf16.xpose.msra.mxu0 0
  %6311 = vmatprep.subr.bf16.mxu0 0
  %6312 = vmatpush1.bf16.xpose.msra.mxu0 %v6295
  %6313 = vmatprep.subr.bf16.mxu0 0
  %6314 = vmatpush2.bf16.xpose.msra.mxu0 0
  %6315 = vmatprep.subr.bf16.mxu0 0
  %6316 = vmatpush2.bf16.xpose.msra.mxu0 0
  %6317 = vmatprep.subr.bf16.mxu0 0
  %6318 = vmatpush2.bf16.xpose.msra.mxu0 0
  %6319 = vmatprep.subr.bf16.mxu0 0
  %6320 = vmatpush2.bf16.xpose.msra.mxu0 0
  %6321 = vmatprep.subr.bf16.mxu0 0
  %6322 = vmatpush2.bf16.xpose.msra.mxu0 0
  %6323 = vmatprep.subr.bf16.mxu0 0
  %6324 = vmatpush2.bf16.xpose.msra.mxu0 0
  %6325 = vmatprep.subr.bf16.mxu0 0
  %6326 = vmatpush2.bf16.xpose.msra.mxu0 0
  %6327 = vmatprep.subr.bf16.mxu0 0
  %6328 = vmatpush2.bf16.xpose.msra.mxu0 0
  %6329 = vmatprep.mubr.bf16.mxu0 0
  %6330 = vmatmul.mubr.bf16.gmra.mxu0 %v6292
  %v6331 = vpop.f32.mrf.mxu0
  %v6332 = vadd.f32 %v2503, %v6331
  %v6333 = vpop.f32.mrf.mxu0
  %v6334 = vpop.f32.mrf.mxu0
  %v6335 = vpop.f32.mrf.mxu0
  %6336 = vdwg.mxu0
  %6338 = vrot.lane.b32.xlu0 %v5741, 112
  %v6339 = vpop.permute.xlu0 %6338
  %v6341 = vsel %vm250, %v5741, 0
  %v6344 = vsel %vm250, %v6339, 0
  %6346 = vmatprep.subr.bf16.mxu0 0
  %6347 = vmatpush1.bf16.xpose.msra.mxu0 0
  %6348 = vmatprep.subr.bf16.mxu0 0
  %6349 = vmatpush1.bf16.xpose.msra.mxu0 0
  %6350 = vmatprep.subr.bf16.mxu0 0
  %6351 = vmatpush1.bf16.xpose.msra.mxu0 0
  %6352 = vmatprep.subr.bf16.mxu0 0
  %6353 = vmatpush1.bf16.xpose.msra.mxu0 0
  %6354 = vmatprep.subr.bf16.mxu0 0
  %6355 = vmatpush1.bf16.xpose.msra.mxu0 0
  %6356 = vmatprep.subr.bf16.mxu0 0
  %6357 = vmatpush1.bf16.xpose.msra.mxu0 0
  %6358 = vmatprep.subr.bf16.mxu0 0
  %6359 = vmatpush1.bf16.xpose.msra.mxu0 0
  %6360 = vmatprep.subr.bf16.mxu0 0
  %6361 = vmatpush1.bf16.xpose.msra.mxu0 %v6344
  %6362 = vmatprep.subr.bf16.mxu0 0
  %6363 = vmatpush2.bf16.xpose.msra.mxu0 0
  %6364 = vmatprep.subr.bf16.mxu0 0
  %6365 = vmatpush2.bf16.xpose.msra.mxu0 0
  %6366 = vmatprep.subr.bf16.mxu0 0
  %6367 = vmatpush2.bf16.xpose.msra.mxu0 0
  %6368 = vmatprep.subr.bf16.mxu0 0
  %6369 = vmatpush2.bf16.xpose.msra.mxu0 0
  %6370 = vmatprep.subr.bf16.mxu0 0
  %6371 = vmatpush2.bf16.xpose.msra.mxu0 0
  %6372 = vmatprep.subr.bf16.mxu0 0
  %6373 = vmatpush2.bf16.xpose.msra.mxu0 0
  %6374 = vmatprep.subr.bf16.mxu0 0
  %6375 = vmatpush2.bf16.xpose.msra.mxu0 0
  %6376 = vmatprep.subr.bf16.mxu0 0
  %6377 = vmatpush2.bf16.xpose.msra.mxu0 0
  %6378 = vmatprep.mubr.bf16.mxu0 0
  %6379 = vmatmul.mubr.bf16.gmra.mxu0 %v6341
  %v6380 = vpop.f32.mrf.mxu0
  %v6381 = vadd.f32 %v2507, %v6380
  %v6382 = vpop.f32.mrf.mxu0
  %v6383 = vpop.f32.mrf.mxu0
  %v6384 = vpop.f32.mrf.mxu0
  %6385 = vdwg.mxu0
  %6387 = vrot.lane.b32.xlu0 %v5742, 112
  %v6388 = vpop.permute.xlu0 %6387
  %v6390 = vsel %vm250, %v5742, 0
  %v6393 = vsel %vm250, %v6388, 0
  %6395 = vmatprep.subr.bf16.mxu0 0
  %6396 = vmatpush1.bf16.xpose.msra.mxu0 0
  %6397 = vmatprep.subr.bf16.mxu0 0
  %6398 = vmatpush1.bf16.xpose.msra.mxu0 0
  %6399 = vmatprep.subr.bf16.mxu0 0
  %6400 = vmatpush1.bf16.xpose.msra.mxu0 0
  %6401 = vmatprep.subr.bf16.mxu0 0
  %6402 = vmatpush1.bf16.xpose.msra.mxu0 0
  %6403 = vmatprep.subr.bf16.mxu0 0
  %6404 = vmatpush1.bf16.xpose.msra.mxu0 0
  %6405 = vmatprep.subr.bf16.mxu0 0
  %6406 = vmatpush1.bf16.xpose.msra.mxu0 0
  %6407 = vmatprep.subr.bf16.mxu0 0
  %6408 = vmatpush1.bf16.xpose.msra.mxu0 0
  %6409 = vmatprep.subr.bf16.mxu0 0
  %6410 = vmatpush1.bf16.xpose.msra.mxu0 %v6393
  %6411 = vmatprep.subr.bf16.mxu0 0
  %6412 = vmatpush2.bf16.xpose.msra.mxu0 0
  %6413 = vmatprep.subr.bf16.mxu0 0
  %6414 = vmatpush2.bf16.xpose.msra.mxu0 0
  %6415 = vmatprep.subr.bf16.mxu0 0
  %6416 = vmatpush2.bf16.xpose.msra.mxu0 0
  %6417 = vmatprep.subr.bf16.mxu0 0
  %6418 = vmatpush2.bf16.xpose.msra.mxu0 0
  %6419 = vmatprep.subr.bf16.mxu0 0
  %6420 = vmatpush2.bf16.xpose.msra.mxu0 0
  %6421 = vmatprep.subr.bf16.mxu0 0
  %6422 = vmatpush2.bf16.xpose.msra.mxu0 0
  %6423 = vmatprep.subr.bf16.mxu0 0
  %6424 = vmatpush2.bf16.xpose.msra.mxu0 0
  %6425 = vmatprep.subr.bf16.mxu0 0
  %6426 = vmatpush2.bf16.xpose.msra.mxu0 0
  %6427 = vmatprep.mubr.bf16.mxu0 0
  %6428 = vmatmul.mubr.bf16.gmra.mxu0 %v6390
  %v6429 = vpop.f32.mrf.mxu0
  %v6430 = vadd.f32 %v2511, %v6429
  %v6431 = vpop.f32.mrf.mxu0
  %v6432 = vpop.f32.mrf.mxu0
  %v6433 = vpop.f32.mrf.mxu0
  %6434 = vdwg.mxu0
  %6436 = vrot.lane.b32.xlu0 %v5743, 112
  %v6437 = vpop.permute.xlu0 %6436
  %v6439 = vsel %vm250, %v5743, 0
  %v6442 = vsel %vm250, %v6437, 0
  %6444 = vmatprep.subr.bf16.mxu0 0
  %6445 = vmatpush1.bf16.xpose.msra.mxu0 0
  %6446 = vmatprep.subr.bf16.mxu0 0
  %6447 = vmatpush1.bf16.xpose.msra.mxu0 0
  %6448 = vmatprep.subr.bf16.mxu0 0
  %6449 = vmatpush1.bf16.xpose.msra.mxu0 0
  %6450 = vmatprep.subr.bf16.mxu0 0
  %6451 = vmatpush1.bf16.xpose.msra.mxu0 0
  %6452 = vmatprep.subr.bf16.mxu0 0
  %6453 = vmatpush1.bf16.xpose.msra.mxu0 0
  %6454 = vmatprep.subr.bf16.mxu0 0
  %6455 = vmatpush1.bf16.xpose.msra.mxu0 0
  %6456 = vmatprep.subr.bf16.mxu0 0
  %6457 = vmatpush1.bf16.xpose.msra.mxu0 0
  %6458 = vmatprep.subr.bf16.mxu0 0
  %6459 = vmatpush1.bf16.xpose.msra.mxu0 %v6442
  %6460 = vmatprep.subr.bf16.mxu0 0
  %6461 = vmatpush2.bf16.xpose.msra.mxu0 0
  %6462 = vmatprep.subr.bf16.mxu0 0
  %6463 = vmatpush2.bf16.xpose.msra.mxu0 0
  %6464 = vmatprep.subr.bf16.mxu0 0
  %6465 = vmatpush2.bf16.xpose.msra.mxu0 0
  %6466 = vmatprep.subr.bf16.mxu0 0
  %6467 = vmatpush2.bf16.xpose.msra.mxu0 0
  %6468 = vmatprep.subr.bf16.mxu0 0
  %6469 = vmatpush2.bf16.xpose.msra.mxu0 0
  %6470 = vmatprep.subr.bf16.mxu0 0
  %6471 = vmatpush2.bf16.xpose.msra.mxu0 0
  %6472 = vmatprep.subr.bf16.mxu0 0
  %6473 = vmatpush2.bf16.xpose.msra.mxu0 0
  %6474 = vmatprep.subr.bf16.mxu0 0
  %6475 = vmatpush2.bf16.xpose.msra.mxu0 0
  %6476 = vmatprep.mubr.bf16.mxu0 0
  %6477 = vmatmul.mubr.bf16.gmra.mxu0 %v6439
  %v6478 = vpop.f32.mrf.mxu0
  %v6479 = vadd.f32 %v2515, %v6478
  %v6480 = vpop.f32.mrf.mxu0
  %v6481 = vpop.f32.mrf.mxu0
  %v6482 = vpop.f32.mrf.mxu0
  %6483 = vdwg.mxu0
  %6485 = vrot.lane.b32.xlu0 %v5744, 112
  %v6486 = vpop.permute.xlu0 %6485
  %v6488 = vsel %vm250, %v5744, 0
  %v6491 = vsel %vm250, %v6486, 0
  %6493 = vmatprep.subr.bf16.mxu0 0
  %6494 = vmatpush1.bf16.xpose.msra.mxu0 0
  %6495 = vmatprep.subr.bf16.mxu0 0
  %6496 = vmatpush1.bf16.xpose.msra.mxu0 0
  %6497 = vmatprep.subr.bf16.mxu0 0
  %6498 = vmatpush1.bf16.xpose.msra.mxu0 0
  %6499 = vmatprep.subr.bf16.mxu0 0
  %6500 = vmatpush1.bf16.xpose.msra.mxu0 0
  %6501 = vmatprep.subr.bf16.mxu0 0
  %6502 = vmatpush1.bf16.xpose.msra.mxu0 0
  %6503 = vmatprep.subr.bf16.mxu0 0
  %6504 = vmatpush1.bf16.xpose.msra.mxu0 0
  %6505 = vmatprep.subr.bf16.mxu0 0
  %6506 = vmatpush1.bf16.xpose.msra.mxu0 0
  %6507 = vmatprep.subr.bf16.mxu0 0
  %6508 = vmatpush1.bf16.xpose.msra.mxu0 %v6491
  %6509 = vmatprep.subr.bf16.mxu0 0
  %6510 = vmatpush2.bf16.xpose.msra.mxu0 0
  %6511 = vmatprep.subr.bf16.mxu0 0
  %6512 = vmatpush2.bf16.xpose.msra.mxu0 0
  %6513 = vmatprep.subr.bf16.mxu0 0
  %6514 = vmatpush2.bf16.xpose.msra.mxu0 0
  %6515 = vmatprep.subr.bf16.mxu0 0
  %6516 = vmatpush2.bf16.xpose.msra.mxu0 0
  %6517 = vmatprep.subr.bf16.mxu0 0
  %6518 = vmatpush2.bf16.xpose.msra.mxu0 0
  %6519 = vmatprep.subr.bf16.mxu0 0
  %6520 = vmatpush2.bf16.xpose.msra.mxu0 0
  %6521 = vmatprep.subr.bf16.mxu0 0
  %6522 = vmatpush2.bf16.xpose.msra.mxu0 0
  %6523 = vmatprep.subr.bf16.mxu0 0
  %6524 = vmatpush2.bf16.xpose.msra.mxu0 0
  %6525 = vmatprep.mubr.bf16.mxu0 0
  %6526 = vmatmul.mubr.bf16.gmra.mxu0 %v6488
  %v6527 = vpop.f32.mrf.mxu0
  %v6528 = vadd.f32 %v2519, %v6527
  %v6529 = vpop.f32.mrf.mxu0
  %v6530 = vpop.f32.mrf.mxu0
  %v6531 = vpop.f32.mrf.mxu0
  %6532 = vdwg.mxu0
  %6534 = vrot.lane.b32.xlu0 %v5745, 112
  %v6535 = vpop.permute.xlu0 %6534
  %v6537 = vsel %vm250, %v5745, 0
  %v6540 = vsel %vm250, %v6535, 0
  %6542 = vmatprep.subr.bf16.mxu0 0
  %6543 = vmatpush1.bf16.xpose.msra.mxu0 0
  %6544 = vmatprep.subr.bf16.mxu0 0
  %6545 = vmatpush1.bf16.xpose.msra.mxu0 0
  %6546 = vmatprep.subr.bf16.mxu0 0
  %6547 = vmatpush1.bf16.xpose.msra.mxu0 0
  %6548 = vmatprep.subr.bf16.mxu0 0
  %6549 = vmatpush1.bf16.xpose.msra.mxu0 0
  %6550 = vmatprep.subr.bf16.mxu0 0
  %6551 = vmatpush1.bf16.xpose.msra.mxu0 0
  %6552 = vmatprep.subr.bf16.mxu0 0
  %6553 = vmatpush1.bf16.xpose.msra.mxu0 0
  %6554 = vmatprep.subr.bf16.mxu0 0
  %6555 = vmatpush1.bf16.xpose.msra.mxu0 0
  %6556 = vmatprep.subr.bf16.mxu0 0
  %6557 = vmatpush1.bf16.xpose.msra.mxu0 %v6540
  %6558 = vmatprep.subr.bf16.mxu0 0
  %6559 = vmatpush2.bf16.xpose.msra.mxu0 0
  %6560 = vmatprep.subr.bf16.mxu0 0
  %6561 = vmatpush2.bf16.xpose.msra.mxu0 0
  %6562 = vmatprep.subr.bf16.mxu0 0
  %6563 = vmatpush2.bf16.xpose.msra.mxu0 0
  %6564 = vmatprep.subr.bf16.mxu0 0
  %6565 = vmatpush2.bf16.xpose.msra.mxu0 0
  %6566 = vmatprep.subr.bf16.mxu0 0
  %6567 = vmatpush2.bf16.xpose.msra.mxu0 0
  %6568 = vmatprep.subr.bf16.mxu0 0
  %6569 = vmatpush2.bf16.xpose.msra.mxu0 0
  %6570 = vmatprep.subr.bf16.mxu0 0
  %6571 = vmatpush2.bf16.xpose.msra.mxu0 0
  %6572 = vmatprep.subr.bf16.mxu0 0
  %6573 = vmatpush2.bf16.xpose.msra.mxu0 0
  %6574 = vmatprep.mubr.bf16.mxu0 0
  %6575 = vmatmul.mubr.bf16.gmra.mxu0 %v6537
  %v6576 = vpop.f32.mrf.mxu0
  %v6577 = vadd.f32 %v2523, %v6576
  %v6578 = vpop.f32.mrf.mxu0
  %v6579 = vpop.f32.mrf.mxu0
  %v6580 = vpop.f32.mrf.mxu0
  %6581 = vdwg.mxu0
  %6583 = vrot.lane.b32.xlu0 %v5746, 112
  %v6584 = vpop.permute.xlu0 %6583
  %v6586 = vsel %vm250, %v5746, 0
  %v6589 = vsel %vm250, %v6584, 0
  %6591 = vmatprep.subr.bf16.mxu0 0
  %6592 = vmatpush1.bf16.xpose.msra.mxu0 0
  %6593 = vmatprep.subr.bf16.mxu0 0
  %6594 = vmatpush1.bf16.xpose.msra.mxu0 0
  %6595 = vmatprep.subr.bf16.mxu0 0
  %6596 = vmatpush1.bf16.xpose.msra.mxu0 0
  %6597 = vmatprep.subr.bf16.mxu0 0
  %6598 = vmatpush1.bf16.xpose.msra.mxu0 0
  %6599 = vmatprep.subr.bf16.mxu0 0
  %6600 = vmatpush1.bf16.xpose.msra.mxu0 0
  %6601 = vmatprep.subr.bf16.mxu0 0
  %6602 = vmatpush1.bf16.xpose.msra.mxu0 0
  %6603 = vmatprep.subr.bf16.mxu0 0
  %6604 = vmatpush1.bf16.xpose.msra.mxu0 0
  %6605 = vmatprep.subr.bf16.mxu0 0
  %6606 = vmatpush1.bf16.xpose.msra.mxu0 %v6589
  %6607 = vmatprep.subr.bf16.mxu0 0
  %6608 = vmatpush2.bf16.xpose.msra.mxu0 0
  %6609 = vmatprep.subr.bf16.mxu0 0
  %6610 = vmatpush2.bf16.xpose.msra.mxu0 0
  %6611 = vmatprep.subr.bf16.mxu0 0
  %6612 = vmatpush2.bf16.xpose.msra.mxu0 0
  %6613 = vmatprep.subr.bf16.mxu0 0
  %6614 = vmatpush2.bf16.xpose.msra.mxu0 0
  %6615 = vmatprep.subr.bf16.mxu0 0
  %6616 = vmatpush2.bf16.xpose.msra.mxu0 0
  %6617 = vmatprep.subr.bf16.mxu0 0
  %6618 = vmatpush2.bf16.xpose.msra.mxu0 0
  %6619 = vmatprep.subr.bf16.mxu0 0
  %6620 = vmatpush2.bf16.xpose.msra.mxu0 0
  %6621 = vmatprep.subr.bf16.mxu0 0
  %6622 = vmatpush2.bf16.xpose.msra.mxu0 0
  %6623 = vmatprep.mubr.bf16.mxu0 0
  %6624 = vmatmul.mubr.bf16.gmra.mxu0 %v6586
  %v6625 = vpop.f32.mrf.mxu0
  %v6626 = vadd.f32 %v2527, %v6625
  %v6627 = vpop.f32.mrf.mxu0
  %v6628 = vpop.f32.mrf.mxu0
  %v6629 = vpop.f32.mrf.mxu0
  %6630 = vdwg.mxu0
  %6632 = vrot.lane.b32.xlu0 %v5747, 112
  %v6633 = vpop.permute.xlu0 %6632
  %v6635 = vsel %vm250, %v5747, 0
  %v6638 = vsel %vm250, %v6633, 0
  %6640 = vmatprep.subr.bf16.mxu0 0
  %6641 = vmatpush1.bf16.xpose.msra.mxu0 0
  %6642 = vmatprep.subr.bf16.mxu0 0
  %6643 = vmatpush1.bf16.xpose.msra.mxu0 0
  %6644 = vmatprep.subr.bf16.mxu0 0
  %6645 = vmatpush1.bf16.xpose.msra.mxu0 0
  %6646 = vmatprep.subr.bf16.mxu0 0
  %6647 = vmatpush1.bf16.xpose.msra.mxu0 0
  %6648 = vmatprep.subr.bf16.mxu0 0
  %6649 = vmatpush1.bf16.xpose.msra.mxu0 0
  %6650 = vmatprep.subr.bf16.mxu0 0
  %6651 = vmatpush1.bf16.xpose.msra.mxu0 0
  %6652 = vmatprep.subr.bf16.mxu0 0
  %6653 = vmatpush1.bf16.xpose.msra.mxu0 0
  %6654 = vmatprep.subr.bf16.mxu0 0
  %6655 = vmatpush1.bf16.xpose.msra.mxu0 %v6638
  %6656 = vmatprep.subr.bf16.mxu0 0
  %6657 = vmatpush2.bf16.xpose.msra.mxu0 0
  %6658 = vmatprep.subr.bf16.mxu0 0
  %6659 = vmatpush2.bf16.xpose.msra.mxu0 0
  %6660 = vmatprep.subr.bf16.mxu0 0
  %6661 = vmatpush2.bf16.xpose.msra.mxu0 0
  %6662 = vmatprep.subr.bf16.mxu0 0
  %6663 = vmatpush2.bf16.xpose.msra.mxu0 0
  %6664 = vmatprep.subr.bf16.mxu0 0
  %6665 = vmatpush2.bf16.xpose.msra.mxu0 0
  %6666 = vmatprep.subr.bf16.mxu0 0
  %6667 = vmatpush2.bf16.xpose.msra.mxu0 0
  %6668 = vmatprep.subr.bf16.mxu0 0
  %6669 = vmatpush2.bf16.xpose.msra.mxu0 0
  %6670 = vmatprep.subr.bf16.mxu0 0
  %6671 = vmatpush2.bf16.xpose.msra.mxu0 0
  %6672 = vmatprep.mubr.bf16.mxu0 0
  %6673 = vmatmul.mubr.bf16.gmra.mxu0 %v6635
  %v6674 = vpop.f32.mrf.mxu0
  %v6675 = vadd.f32 %v2531, %v6674
  %v6676 = vpop.f32.mrf.mxu0
  %v6677 = vpop.f32.mrf.mxu0
  %v6678 = vpop.f32.mrf.mxu0
  %6679 = vdwg.mxu0
  %6681 = vrot.lane.b32.xlu0 %v5748, 112
  %v6682 = vpop.permute.xlu0 %6681
  %v6684 = vsel %vm250, %v5748, 0
  %v6687 = vsel %vm250, %v6682, 0
  %6689 = vmatprep.subr.bf16.mxu0 0
  %6690 = vmatpush1.bf16.xpose.msra.mxu0 0
  %6691 = vmatprep.subr.bf16.mxu0 0
  %6692 = vmatpush1.bf16.xpose.msra.mxu0 0
  %6693 = vmatprep.subr.bf16.mxu0 0
  %6694 = vmatpush1.bf16.xpose.msra.mxu0 0
  %6695 = vmatprep.subr.bf16.mxu0 0
  %6696 = vmatpush1.bf16.xpose.msra.mxu0 0
  %6697 = vmatprep.subr.bf16.mxu0 0
  %6698 = vmatpush1.bf16.xpose.msra.mxu0 0
  %6699 = vmatprep.subr.bf16.mxu0 0
  %6700 = vmatpush1.bf16.xpose.msra.mxu0 0
  %6701 = vmatprep.subr.bf16.mxu0 0
  %6702 = vmatpush1.bf16.xpose.msra.mxu0 0
  %6703 = vmatprep.subr.bf16.mxu0 0
  %6704 = vmatpush1.bf16.xpose.msra.mxu0 %v6687
  %6705 = vmatprep.subr.bf16.mxu0 0
  %6706 = vmatpush2.bf16.xpose.msra.mxu0 0
  %6707 = vmatprep.subr.bf16.mxu0 0
  %6708 = vmatpush2.bf16.xpose.msra.mxu0 0
  %6709 = vmatprep.subr.bf16.mxu0 0
  %6710 = vmatpush2.bf16.xpose.msra.mxu0 0
  %6711 = vmatprep.subr.bf16.mxu0 0
  %6712 = vmatpush2.bf16.xpose.msra.mxu0 0
  %6713 = vmatprep.subr.bf16.mxu0 0
  %6714 = vmatpush2.bf16.xpose.msra.mxu0 0
  %6715 = vmatprep.subr.bf16.mxu0 0
  %6716 = vmatpush2.bf16.xpose.msra.mxu0 0
  %6717 = vmatprep.subr.bf16.mxu0 0
  %6718 = vmatpush2.bf16.xpose.msra.mxu0 0
  %6719 = vmatprep.subr.bf16.mxu0 0
  %6720 = vmatpush2.bf16.xpose.msra.mxu0 0
  %6721 = vmatprep.mubr.bf16.mxu0 0
  %6722 = vmatmul.mubr.bf16.gmra.mxu0 %v6684
  %v6723 = vpop.f32.mrf.mxu0
  %v6724 = vadd.f32 %v2535, %v6723
  %v6725 = vpop.f32.mrf.mxu0
  %v6726 = vpop.f32.mrf.mxu0
  %v6727 = vpop.f32.mrf.mxu0
  %6728 = vdwg.mxu0
  %v6729 = vsel %vm444, %v5793, -inf
  %6730 = vmax.xlane.f32.xlu0 %v6729
  %v6731 = vpop.xlane.xlu0 %6730
  %v6732 = vsel %vm444, %v5842, -inf
  %6733 = vmax.xlane.f32.xlu0 %v6732
  %v6734 = vpop.xlane.xlu0 %6733
  %v6735 = vsel %vm444, %v5891, -inf
  %6736 = vmax.xlane.f32.xlu0 %v6735
  %v6737 = vpop.xlane.xlu0 %6736
  %v6738 = vsel %vm444, %v5940, -inf
  %6739 = vmax.xlane.f32.xlu0 %v6738
  %v6740 = vpop.xlane.xlu0 %6739
  %v6741 = vsel %vm444, %v5989, -inf
  %6742 = vmax.xlane.f32.xlu0 %v6741
  %v6743 = vpop.xlane.xlu0 %6742
  %v6744 = vsel %vm444, %v6038, -inf
  %6745 = vmax.xlane.f32.xlu0 %v6744
  %v6746 = vpop.xlane.xlu0 %6745
  %v6747 = vsel %vm444, %v6087, -inf
  %6748 = vmax.xlane.f32.xlu0 %v6747
  %v6749 = vpop.xlane.xlu0 %6748
  %v6750 = vsel %vm444, %v6136, -inf
  %6751 = vmax.xlane.f32.xlu0 %v6750
  %v6752 = vpop.xlane.xlu0 %6751
  %v6753 = vsel %vm444, %v6185, -inf
  %6754 = vmax.xlane.f32.xlu0 %v6753
  %v6755 = vpop.xlane.xlu0 %6754
  %v6756 = vsel %vm444, %v6234, -inf
  %6757 = vmax.xlane.f32.xlu0 %v6756
  %v6758 = vpop.xlane.xlu0 %6757
  %v6759 = vsel %vm444, %v6283, -inf
  %6760 = vmax.xlane.f32.xlu0 %v6759
  %v6761 = vpop.xlane.xlu0 %6760
  %v6762 = vsel %vm444, %v6332, -inf
  %6763 = vmax.xlane.f32.xlu0 %v6762
  %v6764 = vpop.xlane.xlu0 %6763
  %v6765 = vsel %vm444, %v6381, -inf
  %6766 = vmax.xlane.f32.xlu0 %v6765
  %v6767 = vpop.xlane.xlu0 %6766
  %v6768 = vsel %vm444, %v6430, -inf
  %6769 = vmax.xlane.f32.xlu0 %v6768
  %v6770 = vpop.xlane.xlu0 %6769
  %v6771 = vsel %vm444, %v6479, -inf
  %6772 = vmax.xlane.f32.xlu0 %v6771
  %v6773 = vpop.xlane.xlu0 %6772
  %v6774 = vsel %vm444, %v6528, -inf
  %6775 = vmax.xlane.f32.xlu0 %v6774
  %v6776 = vpop.xlane.xlu0 %6775
  %v6777 = vsel %vm444, %v6577, -inf
  %6778 = vmax.xlane.f32.xlu0 %v6777
  %v6779 = vpop.xlane.xlu0 %6778
  %v6780 = vsel %vm444, %v6626, -inf
  %6781 = vmax.xlane.f32.xlu0 %v6780
  %v6782 = vpop.xlane.xlu0 %6781
  %v6783 = vsel %vm444, %v6675, -inf
  %6784 = vmax.xlane.f32.xlu0 %v6783
  %v6785 = vpop.xlane.xlu0 %6784
  %v6786 = vsel %vm444, %v6724, -inf
  %6787 = vmax.xlane.f32.xlu0 %v6786
  %v6788 = vpop.xlane.xlu0 %6787
  %v6789 = vsub.f32 %v5793, %v6731
  %v6790 = vsub.f32 %v5842, %v6734
  %v6791 = vsub.f32 %v5891, %v6737
  %v6792 = vsub.f32 %v5940, %v6740
  %v6793 = vsub.f32 %v5989, %v6743
  %v6794 = vsub.f32 %v6038, %v6746
  %v6795 = vsub.f32 %v6087, %v6749
  %v6796 = vsub.f32 %v6136, %v6752
  %v6797 = vsub.f32 %v6185, %v6755
  %v6798 = vsub.f32 %v6234, %v6758
  %v6799 = vsub.f32 %v6283, %v6761
  %v6800 = vsub.f32 %v6332, %v6764
  %v6801 = vsub.f32 %v6381, %v6767
  %v6802 = vsub.f32 %v6430, %v6770
  %v6803 = vsub.f32 %v6479, %v6773
  %v6804 = vsub.f32 %v6528, %v6776
  %v6805 = vsub.f32 %v6577, %v6779
  %v6806 = vsub.f32 %v6626, %v6782
  %v6807 = vsub.f32 %v6675, %v6785
  %v6808 = vsub.f32 %v6724, %v6788
  %v6809 = vmul.f32 %v6789, 1.442695
  %v6810 = vpow.pop %v6809
  %v6811 = vmul.f32 %v6790, 1.442695
  %v6812 = vpow.pop %v6811
  %v6813 = vmul.f32 %v6791, 1.442695
  %v6814 = vpow.pop %v6813
  %v6815 = vmul.f32 %v6792, 1.442695
  %v6816 = vpow.pop %v6815
  %v6817 = vmul.f32 %v6793, 1.442695
  %v6818 = vpow.pop %v6817
  %v6819 = vmul.f32 %v6794, 1.442695
  %v6820 = vpow.pop %v6819
  %v6821 = vmul.f32 %v6795, 1.442695
  %v6822 = vpow.pop %v6821
  %v6823 = vmul.f32 %v6796, 1.442695
  %v6824 = vpow.pop %v6823
  %v6825 = vmul.f32 %v6797, 1.442695
  %v6826 = vpow.pop %v6825
  %v6827 = vmul.f32 %v6798, 1.442695
  %v6828 = vpow.pop %v6827
  %v6829 = vmul.f32 %v6799, 1.442695
  %v6830 = vpow.pop %v6829
  %v6831 = vmul.f32 %v6800, 1.442695
  %v6832 = vpow.pop %v6831
  %v6833 = vmul.f32 %v6801, 1.442695
  %v6834 = vpow.pop %v6833
  %v6835 = vmul.f32 %v6802, 1.442695
  %v6836 = vpow.pop %v6835
  %v6837 = vmul.f32 %v6803, 1.442695
  %v6838 = vpow.pop %v6837
  %v6839 = vmul.f32 %v6804, 1.442695
  %v6840 = vpow.pop %v6839
  %v6841 = vmul.f32 %v6805, 1.442695
  %v6842 = vpow.pop %v6841
  %v6843 = vmul.f32 %v6806, 1.442695
  %v6844 = vpow.pop %v6843
  %v6845 = vmul.f32 %v6807, 1.442695
  %v6846 = vpow.pop %v6845
  %v6847 = vmul.f32 %v6808, 1.442695
  %v6848 = vpow.pop %v6847
  %v6849 = vsel %vm444, %v6810, 0.0
  %6850 = vadd.xlane.f32.xlu0 %v6849
  %v6851 = vpop.xlane.xlu0 %6850
  %v6852 = vsel %vm444, %v6812, 0.0
  %6853 = vadd.xlane.f32.xlu0 %v6852
  %v6854 = vpop.xlane.xlu0 %6853
  %v6855 = vsel %vm444, %v6814, 0.0
  %6856 = vadd.xlane.f32.xlu0 %v6855
  %v6857 = vpop.xlane.xlu0 %6856
  %v6858 = vsel %vm444, %v6816, 0.0
  %6859 = vadd.xlane.f32.xlu0 %v6858
  %v6860 = vpop.xlane.xlu0 %6859
  %v6861 = vsel %vm444, %v6818, 0.0
  %6862 = vadd.xlane.f32.xlu0 %v6861
  %v6863 = vpop.xlane.xlu0 %6862
  %v6864 = vsel %vm444, %v6820, 0.0
  %6865 = vadd.xlane.f32.xlu0 %v6864
  %v6866 = vpop.xlane.xlu0 %6865
  %v6867 = vsel %vm444, %v6822, 0.0
  %6868 = vadd.xlane.f32.xlu0 %v6867
  %v6869 = vpop.xlane.xlu0 %6868
  %v6870 = vsel %vm444, %v6824, 0.0
  %6871 = vadd.xlane.f32.xlu0 %v6870
  %v6872 = vpop.xlane.xlu0 %6871
  %v6873 = vsel %vm444, %v6826, 0.0
  %6874 = vadd.xlane.f32.xlu0 %v6873
  %v6875 = vpop.xlane.xlu0 %6874
  %v6876 = vsel %vm444, %v6828, 0.0
  %6877 = vadd.xlane.f32.xlu0 %v6876
  %v6878 = vpop.xlane.xlu0 %6877
  %v6879 = vsel %vm444, %v6830, 0.0
  %6880 = vadd.xlane.f32.xlu0 %v6879
  %v6881 = vpop.xlane.xlu0 %6880
  %v6882 = vsel %vm444, %v6832, 0.0
  %6883 = vadd.xlane.f32.xlu0 %v6882
  %v6884 = vpop.xlane.xlu0 %6883
  %v6885 = vsel %vm444, %v6834, 0.0
  %6886 = vadd.xlane.f32.xlu0 %v6885
  %v6887 = vpop.xlane.xlu0 %6886
  %v6888 = vsel %vm444, %v6836, 0.0
  %6889 = vadd.xlane.f32.xlu0 %v6888
  %v6890 = vpop.xlane.xlu0 %6889
  %v6891 = vsel %vm444, %v6838, 0.0
  %6892 = vadd.xlane.f32.xlu0 %v6891
  %v6893 = vpop.xlane.xlu0 %6892
  %v6894 = vsel %vm444, %v6840, 0.0
  %6895 = vadd.xlane.f32.xlu0 %v6894
  %v6896 = vpop.xlane.xlu0 %6895
  %v6897 = vsel %vm444, %v6842, 0.0
  %6898 = vadd.xlane.f32.xlu0 %v6897
  %v6899 = vpop.xlane.xlu0 %6898
  %v6900 = vsel %vm444, %v6844, 0.0
  %6901 = vadd.xlane.f32.xlu0 %v6900
  %v6902 = vpop.xlane.xlu0 %6901
  %v6903 = vsel %vm444, %v6846, 0.0
  %6904 = vadd.xlane.f32.xlu0 %v6903
  %v6905 = vpop.xlane.xlu0 %6904
  %v6906 = vsel %vm444, %v6848, 0.0
  %6907 = vadd.xlane.f32.xlu0 %v6906
  %v6908 = vpop.xlane.xlu0 %6907
  %v6909 = vrcp.pop %v6851
  %v6910 = vrcp.pop %v6854
  %v6911 = vrcp.pop %v6857
  %v6912 = vrcp.pop %v6860
  %v6913 = vrcp.pop %v6863
  %v6914 = vrcp.pop %v6866
  %v6915 = vrcp.pop %v6869
  %v6916 = vrcp.pop %v6872
  %v6917 = vrcp.pop %v6875
  %v6918 = vrcp.pop %v6878
  %v6919 = vrcp.pop %v6881
  %v6920 = vrcp.pop %v6884
  %v6921 = vrcp.pop %v6887
  %v6922 = vrcp.pop %v6890
  %v6923 = vrcp.pop %v6893
  %v6924 = vrcp.pop %v6896
  %v6925 = vrcp.pop %v6899
  %v6926 = vrcp.pop %v6902
  %v6927 = vrcp.pop %v6905
  %v6928 = vrcp.pop %v6908
  %v6929 = vmul.f32 %v6810, %v6909
  %v6930 = vmul.f32 %v6812, %v6910
  %v6931 = vmul.f32 %v6814, %v6911
  %v6932 = vmul.f32 %v6816, %v6912
  %v6933 = vmul.f32 %v6818, %v6913
  %v6934 = vmul.f32 %v6820, %v6914
  %v6935 = vmul.f32 %v6822, %v6915
  %v6936 = vmul.f32 %v6824, %v6916
  %v6937 = vmul.f32 %v6826, %v6917
  %v6938 = vmul.f32 %v6828, %v6918
  %v6939 = vmul.f32 %v6830, %v6919
  %v6940 = vmul.f32 %v6832, %v6920
  %v6941 = vmul.f32 %v6834, %v6921
  %v6942 = vmul.f32 %v6836, %v6922
  %v6943 = vmul.f32 %v6838, %v6923
  %v6944 = vmul.f32 %v6840, %v6924
  %v6945 = vmul.f32 %v6842, %v6925
  %v6946 = vmul.f32 %v6844, %v6926
  %v6947 = vmul.f32 %v6846, %v6927
  %v6948 = vmul.f32 %v6848, %v6928
  %v6949 = vpack.c.bf16 %v6929, %v6929
  %v6950 = vpack.c.bf16 %v6930, %v6930
  %v6951 = vpack.c.bf16 %v6931, %v6931
  %v6952 = vpack.c.bf16 %v6932, %v6932
  %v6953 = vpack.c.bf16 %v6933, %v6933
  %v6954 = vpack.c.bf16 %v6934, %v6934
  %v6955 = vpack.c.bf16 %v6935, %v6935
  %v6956 = vpack.c.bf16 %v6936, %v6936
  %v6957 = vpack.c.bf16 %v6937, %v6937
  %v6958 = vpack.c.bf16 %v6938, %v6938
  %v6959 = vpack.c.bf16 %v6939, %v6939
  %v6960 = vpack.c.bf16 %v6940, %v6940
  %v6961 = vpack.c.bf16 %v6941, %v6941
  %v6962 = vpack.c.bf16 %v6942, %v6942
  %v6963 = vpack.c.bf16 %v6943, %v6943
  %v6964 = vpack.c.bf16 %v6944, %v6944
  %v6965 = vpack.c.bf16 %v6945, %v6945
  %v6966 = vpack.c.bf16 %v6946, %v6946
  %v6967 = vpack.c.bf16 %v6947, %v6947
  %v6968 = vpack.c.bf16 %v6948, %v6948
  %6969 = vrot.lane.b32.xlu0 %v5729, 96
  %v6970 = vpop.permute.xlu0 %6969
  %v6972 = vsel %vm444, %v6949, 0
  %v6975 = vsel %vm498, %v6970, 0
  %6977 = vmatprep.subr.bf16.mxu0 0
  %6978 = vmatpush1.bf16.msra.mxu0 0
  %6979 = vmatprep.subr.bf16.mxu0 0
  %6980 = vmatpush1.bf16.msra.mxu0 0
  %6981 = vmatprep.subr.bf16.mxu0 0
  %6982 = vmatpush1.bf16.msra.mxu0 0
  %6983 = vmatprep.subr.bf16.mxu0 0
  %6984 = vmatpush1.bf16.msra.mxu0 0
  %6985 = vmatprep.subr.bf16.mxu0 0
  %6986 = vmatpush1.bf16.msra.mxu0 0
  %6987 = vmatprep.subr.bf16.mxu0 0
  %6988 = vmatpush1.bf16.msra.mxu0 0
  %6989 = vmatprep.subr.bf16.mxu0 0
  %6990 = vmatpush1.bf16.msra.mxu0 0
  %6991 = vmatprep.subr.bf16.mxu0 0
  %6992 = vmatpush1.bf16.msra.mxu0 %v6975
  %6993 = vmatprep.subr.bf16.mxu0 0
  %6994 = vmatpush2.bf16.msra.mxu0 0
  %6995 = vmatprep.subr.bf16.mxu0 0
  %6996 = vmatpush2.bf16.msra.mxu0 0
  %6997 = vmatprep.subr.bf16.mxu0 0
  %6998 = vmatpush2.bf16.msra.mxu0 0
  %6999 = vmatprep.subr.bf16.mxu0 0
  %7000 = vmatpush2.bf16.msra.mxu0 0
  %7001 = vmatprep.subr.bf16.mxu0 0
  %7002 = vmatpush2.bf16.msra.mxu0 0
  %7003 = vmatprep.subr.bf16.mxu0 0
  %7004 = vmatpush2.bf16.msra.mxu0 0
  %7005 = vmatprep.subr.bf16.mxu0 0
  %7006 = vmatpush2.bf16.msra.mxu0 0
  %7007 = vmatprep.subr.bf16.mxu0 0
  %7008 = vmatpush2.bf16.msra.mxu0 0
  %7009 = vmatprep.mubr.bf16.mxu0 0
  %7010 = vmatmul.mubr.bf16.gmra.mxu0 %v6972
  %v7011 = vpop.f32.mrf.mxu0
  %v7012 = vadd.f32 0.0, %v7011
  %v7013 = vpop.f32.mrf.mxu0
  %v7014 = vpop.f32.mrf.mxu0
  %v7015 = vpop.f32.mrf.mxu0
  %7016 = vdwg.mxu0
  %7017 = vrot.lane.b32.xlu0 %v5730, 96
  %v7018 = vpop.permute.xlu0 %7017
  %v7020 = vsel %vm444, %v6950, 0
  %v7023 = vsel %vm498, %v7018, 0
  %7025 = vmatprep.subr.bf16.mxu0 0
  %7026 = vmatpush1.bf16.msra.mxu0 0
  %7027 = vmatprep.subr.bf16.mxu0 0
  %7028 = vmatpush1.bf16.msra.mxu0 0
  %7029 = vmatprep.subr.bf16.mxu0 0
  %7030 = vmatpush1.bf16.msra.mxu0 0
  %7031 = vmatprep.subr.bf16.mxu0 0
  %7032 = vmatpush1.bf16.msra.mxu0 0
  %7033 = vmatprep.subr.bf16.mxu0 0
  %7034 = vmatpush1.bf16.msra.mxu0 0
  %7035 = vmatprep.subr.bf16.mxu0 0
  %7036 = vmatpush1.bf16.msra.mxu0 0
  %7037 = vmatprep.subr.bf16.mxu0 0
  %7038 = vmatpush1.bf16.msra.mxu0 0
  %7039 = vmatprep.subr.bf16.mxu0 0
  %7040 = vmatpush1.bf16.msra.mxu0 %v7023
  %7041 = vmatprep.subr.bf16.mxu0 0
  %7042 = vmatpush2.bf16.msra.mxu0 0
  %7043 = vmatprep.subr.bf16.mxu0 0
  %7044 = vmatpush2.bf16.msra.mxu0 0
  %7045 = vmatprep.subr.bf16.mxu0 0
  %7046 = vmatpush2.bf16.msra.mxu0 0
  %7047 = vmatprep.subr.bf16.mxu0 0
  %7048 = vmatpush2.bf16.msra.mxu0 0
  %7049 = vmatprep.subr.bf16.mxu0 0
  %7050 = vmatpush2.bf16.msra.mxu0 0
  %7051 = vmatprep.subr.bf16.mxu0 0
  %7052 = vmatpush2.bf16.msra.mxu0 0
  %7053 = vmatprep.subr.bf16.mxu0 0
  %7054 = vmatpush2.bf16.msra.mxu0 0
  %7055 = vmatprep.subr.bf16.mxu0 0
  %7056 = vmatpush2.bf16.msra.mxu0 0
  %7057 = vmatprep.mubr.bf16.mxu0 0
  %7058 = vmatmul.mubr.bf16.gmra.mxu0 %v7020
  %v7059 = vpop.f32.mrf.mxu0
  %v7060 = vadd.f32 0.0, %v7059
  %v7061 = vpop.f32.mrf.mxu0
  %v7062 = vpop.f32.mrf.mxu0
  %v7063 = vpop.f32.mrf.mxu0
  %7064 = vdwg.mxu0
  %7065 = vrot.lane.b32.xlu0 %v5731, 96
  %v7066 = vpop.permute.xlu0 %7065
  %v7068 = vsel %vm444, %v6951, 0
  %v7071 = vsel %vm498, %v7066, 0
  %7073 = vmatprep.subr.bf16.mxu0 0
  %7074 = vmatpush1.bf16.msra.mxu0 0
  %7075 = vmatprep.subr.bf16.mxu0 0
  %7076 = vmatpush1.bf16.msra.mxu0 0
  %7077 = vmatprep.subr.bf16.mxu0 0
  %7078 = vmatpush1.bf16.msra.mxu0 0
  %7079 = vmatprep.subr.bf16.mxu0 0
  %7080 = vmatpush1.bf16.msra.mxu0 0
  %7081 = vmatprep.subr.bf16.mxu0 0
  %7082 = vmatpush1.bf16.msra.mxu0 0
  %7083 = vmatprep.subr.bf16.mxu0 0
  %7084 = vmatpush1.bf16.msra.mxu0 0
  %7085 = vmatprep.subr.bf16.mxu0 0
  %7086 = vmatpush1.bf16.msra.mxu0 0
  %7087 = vmatprep.subr.bf16.mxu0 0
  %7088 = vmatpush1.bf16.msra.mxu0 %v7071
  %7089 = vmatprep.subr.bf16.mxu0 0
  %7090 = vmatpush2.bf16.msra.mxu0 0
  %7091 = vmatprep.subr.bf16.mxu0 0
  %7092 = vmatpush2.bf16.msra.mxu0 0
  %7093 = vmatprep.subr.bf16.mxu0 0
  %7094 = vmatpush2.bf16.msra.mxu0 0
  %7095 = vmatprep.subr.bf16.mxu0 0
  %7096 = vmatpush2.bf16.msra.mxu0 0
  %7097 = vmatprep.subr.bf16.mxu0 0
  %7098 = vmatpush2.bf16.msra.mxu0 0
  %7099 = vmatprep.subr.bf16.mxu0 0
  %7100 = vmatpush2.bf16.msra.mxu0 0
  %7101 = vmatprep.subr.bf16.mxu0 0
  %7102 = vmatpush2.bf16.msra.mxu0 0
  %7103 = vmatprep.subr.bf16.mxu0 0
  %7104 = vmatpush2.bf16.msra.mxu0 0
  %7105 = vmatprep.mubr.bf16.mxu0 0
  %7106 = vmatmul.mubr.bf16.gmra.mxu0 %v7068
  %v7107 = vpop.f32.mrf.mxu0
  %v7108 = vadd.f32 0.0, %v7107
  %v7109 = vpop.f32.mrf.mxu0
  %v7110 = vpop.f32.mrf.mxu0
  %v7111 = vpop.f32.mrf.mxu0
  %7112 = vdwg.mxu0
  %7113 = vrot.lane.b32.xlu0 %v5732, 96
  %v7114 = vpop.permute.xlu0 %7113
  %v7116 = vsel %vm444, %v6952, 0
  %v7119 = vsel %vm498, %v7114, 0
  %7121 = vmatprep.subr.bf16.mxu0 0
  %7122 = vmatpush1.bf16.msra.mxu0 0
  %7123 = vmatprep.subr.bf16.mxu0 0
  %7124 = vmatpush1.bf16.msra.mxu0 0
  %7125 = vmatprep.subr.bf16.mxu0 0
  %7126 = vmatpush1.bf16.msra.mxu0 0
  %7127 = vmatprep.subr.bf16.mxu0 0
  %7128 = vmatpush1.bf16.msra.mxu0 0
  %7129 = vmatprep.subr.bf16.mxu0 0
  %7130 = vmatpush1.bf16.msra.mxu0 0
  %7131 = vmatprep.subr.bf16.mxu0 0
  %7132 = vmatpush1.bf16.msra.mxu0 0
  %7133 = vmatprep.subr.bf16.mxu0 0
  %7134 = vmatpush1.bf16.msra.mxu0 0
  %7135 = vmatprep.subr.bf16.mxu0 0
  %7136 = vmatpush1.bf16.msra.mxu0 %v7119
  %7137 = vmatprep.subr.bf16.mxu0 0
  %7138 = vmatpush2.bf16.msra.mxu0 0
  %7139 = vmatprep.subr.bf16.mxu0 0
  %7140 = vmatpush2.bf16.msra.mxu0 0
  %7141 = vmatprep.subr.bf16.mxu0 0
  %7142 = vmatpush2.bf16.msra.mxu0 0
  %7143 = vmatprep.subr.bf16.mxu0 0
  %7144 = vmatpush2.bf16.msra.mxu0 0
  %7145 = vmatprep.subr.bf16.mxu0 0
  %7146 = vmatpush2.bf16.msra.mxu0 0
  %7147 = vmatprep.subr.bf16.mxu0 0
  %7148 = vmatpush2.bf16.msra.mxu0 0
  %7149 = vmatprep.subr.bf16.mxu0 0
  %7150 = vmatpush2.bf16.msra.mxu0 0
  %7151 = vmatprep.subr.bf16.mxu0 0
  %7152 = vmatpush2.bf16.msra.mxu0 0
  %7153 = vmatprep.mubr.bf16.mxu0 0
  %7154 = vmatmul.mubr.bf16.gmra.mxu0 %v7116
  %v7155 = vpop.f32.mrf.mxu0
  %v7156 = vadd.f32 0.0, %v7155
  %v7157 = vpop.f32.mrf.mxu0
  %v7158 = vpop.f32.mrf.mxu0
  %v7159 = vpop.f32.mrf.mxu0
  %7160 = vdwg.mxu0
  %7161 = vrot.lane.b32.xlu0 %v5733, 96
  %v7162 = vpop.permute.xlu0 %7161
  %v7164 = vsel %vm444, %v6953, 0
  %v7167 = vsel %vm498, %v7162, 0
  %7169 = vmatprep.subr.bf16.mxu0 0
  %7170 = vmatpush1.bf16.msra.mxu0 0
  %7171 = vmatprep.subr.bf16.mxu0 0
  %7172 = vmatpush1.bf16.msra.mxu0 0
  %7173 = vmatprep.subr.bf16.mxu0 0
  %7174 = vmatpush1.bf16.msra.mxu0 0
  %7175 = vmatprep.subr.bf16.mxu0 0
  %7176 = vmatpush1.bf16.msra.mxu0 0
  %7177 = vmatprep.subr.bf16.mxu0 0
  %7178 = vmatpush1.bf16.msra.mxu0 0
  %7179 = vmatprep.subr.bf16.mxu0 0
  %7180 = vmatpush1.bf16.msra.mxu0 0
  %7181 = vmatprep.subr.bf16.mxu0 0
  %7182 = vmatpush1.bf16.msra.mxu0 0
  %7183 = vmatprep.subr.bf16.mxu0 0
  %7184 = vmatpush1.bf16.msra.mxu0 %v7167
  %7185 = vmatprep.subr.bf16.mxu0 0
  %7186 = vmatpush2.bf16.msra.mxu0 0
  %7187 = vmatprep.subr.bf16.mxu0 0
  %7188 = vmatpush2.bf16.msra.mxu0 0
  %7189 = vmatprep.subr.bf16.mxu0 0
  %7190 = vmatpush2.bf16.msra.mxu0 0
  %7191 = vmatprep.subr.bf16.mxu0 0
  %7192 = vmatpush2.bf16.msra.mxu0 0
  %7193 = vmatprep.subr.bf16.mxu0 0
  %7194 = vmatpush2.bf16.msra.mxu0 0
  %7195 = vmatprep.subr.bf16.mxu0 0
  %7196 = vmatpush2.bf16.msra.mxu0 0
  %7197 = vmatprep.subr.bf16.mxu0 0
  %7198 = vmatpush2.bf16.msra.mxu0 0
  %7199 = vmatprep.subr.bf16.mxu0 0
  %7200 = vmatpush2.bf16.msra.mxu0 0
  %7201 = vmatprep.mubr.bf16.mxu0 0
  %7202 = vmatmul.mubr.bf16.gmra.mxu0 %v7164
  %v7203 = vpop.f32.mrf.mxu0
  %v7204 = vadd.f32 0.0, %v7203
  %v7205 = vpop.f32.mrf.mxu0
  %v7206 = vpop.f32.mrf.mxu0
  %v7207 = vpop.f32.mrf.mxu0
  %7208 = vdwg.mxu0
  %7209 = vrot.lane.b32.xlu0 %v5734, 96
  %v7210 = vpop.permute.xlu0 %7209
  %v7212 = vsel %vm444, %v6954, 0
  %v7215 = vsel %vm498, %v7210, 0
  %7217 = vmatprep.subr.bf16.mxu0 0
  %7218 = vmatpush1.bf16.msra.mxu0 0
  %7219 = vmatprep.subr.bf16.mxu0 0
  %7220 = vmatpush1.bf16.msra.mxu0 0
  %7221 = vmatprep.subr.bf16.mxu0 0
  %7222 = vmatpush1.bf16.msra.mxu0 0
  %7223 = vmatprep.subr.bf16.mxu0 0
  %7224 = vmatpush1.bf16.msra.mxu0 0
  %7225 = vmatprep.subr.bf16.mxu0 0
  %7226 = vmatpush1.bf16.msra.mxu0 0
  %7227 = vmatprep.subr.bf16.mxu0 0
  %7228 = vmatpush1.bf16.msra.mxu0 0
  %7229 = vmatprep.subr.bf16.mxu0 0
  %7230 = vmatpush1.bf16.msra.mxu0 0
  %7231 = vmatprep.subr.bf16.mxu0 0
  %7232 = vmatpush1.bf16.msra.mxu0 %v7215
  %7233 = vmatprep.subr.bf16.mxu0 0
  %7234 = vmatpush2.bf16.msra.mxu0 0
  %7235 = vmatprep.subr.bf16.mxu0 0
  %7236 = vmatpush2.bf16.msra.mxu0 0
  %7237 = vmatprep.subr.bf16.mxu0 0
  %7238 = vmatpush2.bf16.msra.mxu0 0
  %7239 = vmatprep.subr.bf16.mxu0 0
  %7240 = vmatpush2.bf16.msra.mxu0 0
  %7241 = vmatprep.subr.bf16.mxu0 0
  %7242 = vmatpush2.bf16.msra.mxu0 0
  %7243 = vmatprep.subr.bf16.mxu0 0
  %7244 = vmatpush2.bf16.msra.mxu0 0
  %7245 = vmatprep.subr.bf16.mxu0 0
  %7246 = vmatpush2.bf16.msra.mxu0 0
  %7247 = vmatprep.subr.bf16.mxu0 0
  %7248 = vmatpush2.bf16.msra.mxu0 0
  %7249 = vmatprep.mubr.bf16.mxu0 0
  %7250 = vmatmul.mubr.bf16.gmra.mxu0 %v7212
  %v7251 = vpop.f32.mrf.mxu0
  %v7252 = vadd.f32 0.0, %v7251
  %v7253 = vpop.f32.mrf.mxu0
  %v7254 = vpop.f32.mrf.mxu0
  %v7255 = vpop.f32.mrf.mxu0
  %7256 = vdwg.mxu0
  %7257 = vrot.lane.b32.xlu0 %v5735, 96
  %v7258 = vpop.permute.xlu0 %7257
  %v7260 = vsel %vm444, %v6955, 0
  %v7263 = vsel %vm498, %v7258, 0
  %7265 = vmatprep.subr.bf16.mxu0 0
  %7266 = vmatpush1.bf16.msra.mxu0 0
  %7267 = vmatprep.subr.bf16.mxu0 0
  %7268 = vmatpush1.bf16.msra.mxu0 0
  %7269 = vmatprep.subr.bf16.mxu0 0
  %7270 = vmatpush1.bf16.msra.mxu0 0
  %7271 = vmatprep.subr.bf16.mxu0 0
  %7272 = vmatpush1.bf16.msra.mxu0 0
  %7273 = vmatprep.subr.bf16.mxu0 0
  %7274 = vmatpush1.bf16.msra.mxu0 0
  %7275 = vmatprep.subr.bf16.mxu0 0
  %7276 = vmatpush1.bf16.msra.mxu0 0
  %7277 = vmatprep.subr.bf16.mxu0 0
  %7278 = vmatpush1.bf16.msra.mxu0 0
  %7279 = vmatprep.subr.bf16.mxu0 0
  %7280 = vmatpush1.bf16.msra.mxu0 %v7263
  %7281 = vmatprep.subr.bf16.mxu0 0
  %7282 = vmatpush2.bf16.msra.mxu0 0
  %7283 = vmatprep.subr.bf16.mxu0 0
  %7284 = vmatpush2.bf16.msra.mxu0 0
  %7285 = vmatprep.subr.bf16.mxu0 0
  %7286 = vmatpush2.bf16.msra.mxu0 0
  %7287 = vmatprep.subr.bf16.mxu0 0
  %7288 = vmatpush2.bf16.msra.mxu0 0
  %7289 = vmatprep.subr.bf16.mxu0 0
  %7290 = vmatpush2.bf16.msra.mxu0 0
  %7291 = vmatprep.subr.bf16.mxu0 0
  %7292 = vmatpush2.bf16.msra.mxu0 0
  %7293 = vmatprep.subr.bf16.mxu0 0
  %7294 = vmatpush2.bf16.msra.mxu0 0
  %7295 = vmatprep.subr.bf16.mxu0 0
  %7296 = vmatpush2.bf16.msra.mxu0 0
  %7297 = vmatprep.mubr.bf16.mxu0 0
  %7298 = vmatmul.mubr.bf16.gmra.mxu0 %v7260
  %v7299 = vpop.f32.mrf.mxu0
  %v7300 = vadd.f32 0.0, %v7299
  %v7301 = vpop.f32.mrf.mxu0
  %v7302 = vpop.f32.mrf.mxu0
  %v7303 = vpop.f32.mrf.mxu0
  %7304 = vdwg.mxu0
  %7305 = vrot.lane.b32.xlu0 %v5736, 96
  %v7306 = vpop.permute.xlu0 %7305
  %v7308 = vsel %vm444, %v6956, 0
  %v7311 = vsel %vm498, %v7306, 0
  %7313 = vmatprep.subr.bf16.mxu0 0
  %7314 = vmatpush1.bf16.msra.mxu0 0
  %7315 = vmatprep.subr.bf16.mxu0 0
  %7316 = vmatpush1.bf16.msra.mxu0 0
  %7317 = vmatprep.subr.bf16.mxu0 0
  %7318 = vmatpush1.bf16.msra.mxu0 0
  %7319 = vmatprep.subr.bf16.mxu0 0
  %7320 = vmatpush1.bf16.msra.mxu0 0
  %7321 = vmatprep.subr.bf16.mxu0 0
  %7322 = vmatpush1.bf16.msra.mxu0 0
  %7323 = vmatprep.subr.bf16.mxu0 0
  %7324 = vmatpush1.bf16.msra.mxu0 0
  %7325 = vmatprep.subr.bf16.mxu0 0
  %7326 = vmatpush1.bf16.msra.mxu0 0
  %7327 = vmatprep.subr.bf16.mxu0 0
  %7328 = vmatpush1.bf16.msra.mxu0 %v7311
  %7329 = vmatprep.subr.bf16.mxu0 0
  %7330 = vmatpush2.bf16.msra.mxu0 0
  %7331 = vmatprep.subr.bf16.mxu0 0
  %7332 = vmatpush2.bf16.msra.mxu0 0
  %7333 = vmatprep.subr.bf16.mxu0 0
  %7334 = vmatpush2.bf16.msra.mxu0 0
  %7335 = vmatprep.subr.bf16.mxu0 0
  %7336 = vmatpush2.bf16.msra.mxu0 0
  %7337 = vmatprep.subr.bf16.mxu0 0
  %7338 = vmatpush2.bf16.msra.mxu0 0
  %7339 = vmatprep.subr.bf16.mxu0 0
  %7340 = vmatpush2.bf16.msra.mxu0 0
  %7341 = vmatprep.subr.bf16.mxu0 0
  %7342 = vmatpush2.bf16.msra.mxu0 0
  %7343 = vmatprep.subr.bf16.mxu0 0
  %7344 = vmatpush2.bf16.msra.mxu0 0
  %7345 = vmatprep.mubr.bf16.mxu0 0
  %7346 = vmatmul.mubr.bf16.gmra.mxu0 %v7308
  %v7347 = vpop.f32.mrf.mxu0
  %v7348 = vadd.f32 0.0, %v7347
  %v7349 = vpop.f32.mrf.mxu0
  %v7350 = vpop.f32.mrf.mxu0
  %v7351 = vpop.f32.mrf.mxu0
  %7352 = vdwg.mxu0
  %7353 = vrot.lane.b32.xlu0 %v5737, 96
  %v7354 = vpop.permute.xlu0 %7353
  %v7356 = vsel %vm444, %v6957, 0
  %v7359 = vsel %vm498, %v7354, 0
  %7361 = vmatprep.subr.bf16.mxu0 0
  %7362 = vmatpush1.bf16.msra.mxu0 0
  %7363 = vmatprep.subr.bf16.mxu0 0
  %7364 = vmatpush1.bf16.msra.mxu0 0
  %7365 = vmatprep.subr.bf16.mxu0 0
  %7366 = vmatpush1.bf16.msra.mxu0 0
  %7367 = vmatprep.subr.bf16.mxu0 0
  %7368 = vmatpush1.bf16.msra.mxu0 0
  %7369 = vmatprep.subr.bf16.mxu0 0
  %7370 = vmatpush1.bf16.msra.mxu0 0
  %7371 = vmatprep.subr.bf16.mxu0 0
  %7372 = vmatpush1.bf16.msra.mxu0 0
  %7373 = vmatprep.subr.bf16.mxu0 0
  %7374 = vmatpush1.bf16.msra.mxu0 0
  %7375 = vmatprep.subr.bf16.mxu0 0
  %7376 = vmatpush1.bf16.msra.mxu0 %v7359
  %7377 = vmatprep.subr.bf16.mxu0 0
  %7378 = vmatpush2.bf16.msra.mxu0 0
  %7379 = vmatprep.subr.bf16.mxu0 0
  %7380 = vmatpush2.bf16.msra.mxu0 0
  %7381 = vmatprep.subr.bf16.mxu0 0
  %7382 = vmatpush2.bf16.msra.mxu0 0
  %7383 = vmatprep.subr.bf16.mxu0 0
  %7384 = vmatpush2.bf16.msra.mxu0 0
  %7385 = vmatprep.subr.bf16.mxu0 0
  %7386 = vmatpush2.bf16.msra.mxu0 0
  %7387 = vmatprep.subr.bf16.mxu0 0
  %7388 = vmatpush2.bf16.msra.mxu0 0
  %7389 = vmatprep.subr.bf16.mxu0 0
  %7390 = vmatpush2.bf16.msra.mxu0 0
  %7391 = vmatprep.subr.bf16.mxu0 0
  %7392 = vmatpush2.bf16.msra.mxu0 0
  %7393 = vmatprep.mubr.bf16.mxu0 0
  %7394 = vmatmul.mubr.bf16.gmra.mxu0 %v7356
  %v7395 = vpop.f32.mrf.mxu0
  %v7396 = vadd.f32 0.0, %v7395
  %v7397 = vpop.f32.mrf.mxu0
  %v7398 = vpop.f32.mrf.mxu0
  %v7399 = vpop.f32.mrf.mxu0
  %7400 = vdwg.mxu0
  %7401 = vrot.lane.b32.xlu0 %v5738, 96
  %v7402 = vpop.permute.xlu0 %7401
  %v7404 = vsel %vm444, %v6958, 0
  %v7407 = vsel %vm498, %v7402, 0
  %7409 = vmatprep.subr.bf16.mxu0 0
  %7410 = vmatpush1.bf16.msra.mxu0 0
  %7411 = vmatprep.subr.bf16.mxu0 0
  %7412 = vmatpush1.bf16.msra.mxu0 0
  %7413 = vmatprep.subr.bf16.mxu0 0
  %7414 = vmatpush1.bf16.msra.mxu0 0
  %7415 = vmatprep.subr.bf16.mxu0 0
  %7416 = vmatpush1.bf16.msra.mxu0 0
  %7417 = vmatprep.subr.bf16.mxu0 0
  %7418 = vmatpush1.bf16.msra.mxu0 0
  %7419 = vmatprep.subr.bf16.mxu0 0
  %7420 = vmatpush1.bf16.msra.mxu0 0
  %7421 = vmatprep.subr.bf16.mxu0 0
  %7422 = vmatpush1.bf16.msra.mxu0 0
  %7423 = vmatprep.subr.bf16.mxu0 0
  %7424 = vmatpush1.bf16.msra.mxu0 %v7407
  %7425 = vmatprep.subr.bf16.mxu0 0
  %7426 = vmatpush2.bf16.msra.mxu0 0
  %7427 = vmatprep.subr.bf16.mxu0 0
  %7428 = vmatpush2.bf16.msra.mxu0 0
  %7429 = vmatprep.subr.bf16.mxu0 0
  %7430 = vmatpush2.bf16.msra.mxu0 0
  %7431 = vmatprep.subr.bf16.mxu0 0
  %7432 = vmatpush2.bf16.msra.mxu0 0
  %7433 = vmatprep.subr.bf16.mxu0 0
  %7434 = vmatpush2.bf16.msra.mxu0 0
  %7435 = vmatprep.subr.bf16.mxu0 0
  %7436 = vmatpush2.bf16.msra.mxu0 0
  %7437 = vmatprep.subr.bf16.mxu0 0
  %7438 = vmatpush2.bf16.msra.mxu0 0
  %7439 = vmatprep.subr.bf16.mxu0 0
  %7440 = vmatpush2.bf16.msra.mxu0 0
  %7441 = vmatprep.mubr.bf16.mxu0 0
  %7442 = vmatmul.mubr.bf16.gmra.mxu0 %v7404
  %v7443 = vpop.f32.mrf.mxu0
  %v7444 = vadd.f32 0.0, %v7443
  %v7445 = vpop.f32.mrf.mxu0
  %v7446 = vpop.f32.mrf.mxu0
  %v7447 = vpop.f32.mrf.mxu0
  %7448 = vdwg.mxu0
  %7449 = vrot.lane.b32.xlu0 %v5739, 96
  %v7450 = vpop.permute.xlu0 %7449
  %v7452 = vsel %vm444, %v6959, 0
  %v7455 = vsel %vm498, %v7450, 0
  %7457 = vmatprep.subr.bf16.mxu0 0
  %7458 = vmatpush1.bf16.msra.mxu0 0
  %7459 = vmatprep.subr.bf16.mxu0 0
  %7460 = vmatpush1.bf16.msra.mxu0 0
  %7461 = vmatprep.subr.bf16.mxu0 0
  %7462 = vmatpush1.bf16.msra.mxu0 0
  %7463 = vmatprep.subr.bf16.mxu0 0
  %7464 = vmatpush1.bf16.msra.mxu0 0
  %7465 = vmatprep.subr.bf16.mxu0 0
  %7466 = vmatpush1.bf16.msra.mxu0 0
  %7467 = vmatprep.subr.bf16.mxu0 0
  %7468 = vmatpush1.bf16.msra.mxu0 0
  %7469 = vmatprep.subr.bf16.mxu0 0
  %7470 = vmatpush1.bf16.msra.mxu0 0
  %7471 = vmatprep.subr.bf16.mxu0 0
  %7472 = vmatpush1.bf16.msra.mxu0 %v7455
  %7473 = vmatprep.subr.bf16.mxu0 0
  %7474 = vmatpush2.bf16.msra.mxu0 0
  %7475 = vmatprep.subr.bf16.mxu0 0
  %7476 = vmatpush2.bf16.msra.mxu0 0
  %7477 = vmatprep.subr.bf16.mxu0 0
  %7478 = vmatpush2.bf16.msra.mxu0 0
  %7479 = vmatprep.subr.bf16.mxu0 0
  %7480 = vmatpush2.bf16.msra.mxu0 0
  %7481 = vmatprep.subr.bf16.mxu0 0
  %7482 = vmatpush2.bf16.msra.mxu0 0
  %7483 = vmatprep.subr.bf16.mxu0 0
  %7484 = vmatpush2.bf16.msra.mxu0 0
  %7485 = vmatprep.subr.bf16.mxu0 0
  %7486 = vmatpush2.bf16.msra.mxu0 0
  %7487 = vmatprep.subr.bf16.mxu0 0
  %7488 = vmatpush2.bf16.msra.mxu0 0
  %7489 = vmatprep.mubr.bf16.mxu0 0
  %7490 = vmatmul.mubr.bf16.gmra.mxu0 %v7452
  %v7491 = vpop.f32.mrf.mxu0
  %v7492 = vadd.f32 0.0, %v7491
  %v7493 = vpop.f32.mrf.mxu0
  %v7494 = vpop.f32.mrf.mxu0
  %v7495 = vpop.f32.mrf.mxu0
  %7496 = vdwg.mxu0
  %7497 = vrot.lane.b32.xlu0 %v5740, 96
  %v7498 = vpop.permute.xlu0 %7497
  %v7500 = vsel %vm444, %v6960, 0
  %v7503 = vsel %vm498, %v7498, 0
  %7505 = vmatprep.subr.bf16.mxu0 0
  %7506 = vmatpush1.bf16.msra.mxu0 0
  %7507 = vmatprep.subr.bf16.mxu0 0
  %7508 = vmatpush1.bf16.msra.mxu0 0
  %7509 = vmatprep.subr.bf16.mxu0 0
  %7510 = vmatpush1.bf16.msra.mxu0 0
  %7511 = vmatprep.subr.bf16.mxu0 0
  %7512 = vmatpush1.bf16.msra.mxu0 0
  %7513 = vmatprep.subr.bf16.mxu0 0
  %7514 = vmatpush1.bf16.msra.mxu0 0
  %7515 = vmatprep.subr.bf16.mxu0 0
  %7516 = vmatpush1.bf16.msra.mxu0 0
  %7517 = vmatprep.subr.bf16.mxu0 0
  %7518 = vmatpush1.bf16.msra.mxu0 0
  %7519 = vmatprep.subr.bf16.mxu0 0
  %7520 = vmatpush1.bf16.msra.mxu0 %v7503
  %7521 = vmatprep.subr.bf16.mxu0 0
  %7522 = vmatpush2.bf16.msra.mxu0 0
  %7523 = vmatprep.subr.bf16.mxu0 0
  %7524 = vmatpush2.bf16.msra.mxu0 0
  %7525 = vmatprep.subr.bf16.mxu0 0
  %7526 = vmatpush2.bf16.msra.mxu0 0
  %7527 = vmatprep.subr.bf16.mxu0 0
  %7528 = vmatpush2.bf16.msra.mxu0 0
  %7529 = vmatprep.subr.bf16.mxu0 0
  %7530 = vmatpush2.bf16.msra.mxu0 0
  %7531 = vmatprep.subr.bf16.mxu0 0
  %7532 = vmatpush2.bf16.msra.mxu0 0
  %7533 = vmatprep.subr.bf16.mxu0 0
  %7534 = vmatpush2.bf16.msra.mxu0 0
  %7535 = vmatprep.subr.bf16.mxu0 0
  %7536 = vmatpush2.bf16.msra.mxu0 0
  %7537 = vmatprep.mubr.bf16.mxu0 0
  %7538 = vmatmul.mubr.bf16.gmra.mxu0 %v7500
  %v7539 = vpop.f32.mrf.mxu0
  %v7540 = vadd.f32 0.0, %v7539
  %v7541 = vpop.f32.mrf.mxu0
  %v7542 = vpop.f32.mrf.mxu0
  %v7543 = vpop.f32.mrf.mxu0
  %7544 = vdwg.mxu0
  %7545 = vrot.lane.b32.xlu0 %v5741, 96
  %v7546 = vpop.permute.xlu0 %7545
  %v7548 = vsel %vm444, %v6961, 0
  %v7551 = vsel %vm498, %v7546, 0
  %7553 = vmatprep.subr.bf16.mxu0 0
  %7554 = vmatpush1.bf16.msra.mxu0 0
  %7555 = vmatprep.subr.bf16.mxu0 0
  %7556 = vmatpush1.bf16.msra.mxu0 0
  %7557 = vmatprep.subr.bf16.mxu0 0
  %7558 = vmatpush1.bf16.msra.mxu0 0
  %7559 = vmatprep.subr.bf16.mxu0 0
  %7560 = vmatpush1.bf16.msra.mxu0 0
  %7561 = vmatprep.subr.bf16.mxu0 0
  %7562 = vmatpush1.bf16.msra.mxu0 0
  %7563 = vmatprep.subr.bf16.mxu0 0
  %7564 = vmatpush1.bf16.msra.mxu0 0
  %7565 = vmatprep.subr.bf16.mxu0 0
  %7566 = vmatpush1.bf16.msra.mxu0 0
  %7567 = vmatprep.subr.bf16.mxu0 0
  %7568 = vmatpush1.bf16.msra.mxu0 %v7551
  %7569 = vmatprep.subr.bf16.mxu0 0
  %7570 = vmatpush2.bf16.msra.mxu0 0
  %7571 = vmatprep.subr.bf16.mxu0 0
  %7572 = vmatpush2.bf16.msra.mxu0 0
  %7573 = vmatprep.subr.bf16.mxu0 0
  %7574 = vmatpush2.bf16.msra.mxu0 0
  %7575 = vmatprep.subr.bf16.mxu0 0
  %7576 = vmatpush2.bf16.msra.mxu0 0
  %7577 = vmatprep.subr.bf16.mxu0 0
  %7578 = vmatpush2.bf16.msra.mxu0 0
  %7579 = vmatprep.subr.bf16.mxu0 0
  %7580 = vmatpush2.bf16.msra.mxu0 0
  %7581 = vmatprep.subr.bf16.mxu0 0
  %7582 = vmatpush2.bf16.msra.mxu0 0
  %7583 = vmatprep.subr.bf16.mxu0 0
  %7584 = vmatpush2.bf16.msra.mxu0 0
  %7585 = vmatprep.mubr.bf16.mxu0 0
  %7586 = vmatmul.mubr.bf16.gmra.mxu0 %v7548
  %v7587 = vpop.f32.mrf.mxu0
  %v7588 = vadd.f32 0.0, %v7587
  %v7589 = vpop.f32.mrf.mxu0
  %v7590 = vpop.f32.mrf.mxu0
  %v7591 = vpop.f32.mrf.mxu0
  %7592 = vdwg.mxu0
  %7593 = vrot.lane.b32.xlu0 %v5742, 96
  %v7594 = vpop.permute.xlu0 %7593
  %v7596 = vsel %vm444, %v6962, 0
  %v7599 = vsel %vm498, %v7594, 0
  %7601 = vmatprep.subr.bf16.mxu0 0
  %7602 = vmatpush1.bf16.msra.mxu0 0
  %7603 = vmatprep.subr.bf16.mxu0 0
  %7604 = vmatpush1.bf16.msra.mxu0 0
  %7605 = vmatprep.subr.bf16.mxu0 0
  %7606 = vmatpush1.bf16.msra.mxu0 0
  %7607 = vmatprep.subr.bf16.mxu0 0
  %7608 = vmatpush1.bf16.msra.mxu0 0
  %7609 = vmatprep.subr.bf16.mxu0 0
  %7610 = vmatpush1.bf16.msra.mxu0 0
  %7611 = vmatprep.subr.bf16.mxu0 0
  %7612 = vmatpush1.bf16.msra.mxu0 0
  %7613 = vmatprep.subr.bf16.mxu0 0
  %7614 = vmatpush1.bf16.msra.mxu0 0
  %7615 = vmatprep.subr.bf16.mxu0 0
  %7616 = vmatpush1.bf16.msra.mxu0 %v7599
  %7617 = vmatprep.subr.bf16.mxu0 0
  %7618 = vmatpush2.bf16.msra.mxu0 0
  %7619 = vmatprep.subr.bf16.mxu0 0
  %7620 = vmatpush2.bf16.msra.mxu0 0
  %7621 = vmatprep.subr.bf16.mxu0 0
  %7622 = vmatpush2.bf16.msra.mxu0 0
  %7623 = vmatprep.subr.bf16.mxu0 0
  %7624 = vmatpush2.bf16.msra.mxu0 0
  %7625 = vmatprep.subr.bf16.mxu0 0
  %7626 = vmatpush2.bf16.msra.mxu0 0
  %7627 = vmatprep.subr.bf16.mxu0 0
  %7628 = vmatpush2.bf16.msra.mxu0 0
  %7629 = vmatprep.subr.bf16.mxu0 0
  %7630 = vmatpush2.bf16.msra.mxu0 0
  %7631 = vmatprep.subr.bf16.mxu0 0
  %7632 = vmatpush2.bf16.msra.mxu0 0
  %7633 = vmatprep.mubr.bf16.mxu0 0
  %7634 = vmatmul.mubr.bf16.gmra.mxu0 %v7596
  %v7635 = vpop.f32.mrf.mxu0
  %v7636 = vadd.f32 0.0, %v7635
  %v7637 = vpop.f32.mrf.mxu0
  %v7638 = vpop.f32.mrf.mxu0
  %v7639 = vpop.f32.mrf.mxu0
  %7640 = vdwg.mxu0
  %7641 = vrot.lane.b32.xlu0 %v5743, 96
  %v7642 = vpop.permute.xlu0 %7641
  %v7644 = vsel %vm444, %v6963, 0
  %v7647 = vsel %vm498, %v7642, 0
  %7649 = vmatprep.subr.bf16.mxu0 0
  %7650 = vmatpush1.bf16.msra.mxu0 0
  %7651 = vmatprep.subr.bf16.mxu0 0
  %7652 = vmatpush1.bf16.msra.mxu0 0
  %7653 = vmatprep.subr.bf16.mxu0 0
  %7654 = vmatpush1.bf16.msra.mxu0 0
  %7655 = vmatprep.subr.bf16.mxu0 0
  %7656 = vmatpush1.bf16.msra.mxu0 0
  %7657 = vmatprep.subr.bf16.mxu0 0
  %7658 = vmatpush1.bf16.msra.mxu0 0
  %7659 = vmatprep.subr.bf16.mxu0 0
  %7660 = vmatpush1.bf16.msra.mxu0 0
  %7661 = vmatprep.subr.bf16.mxu0 0
  %7662 = vmatpush1.bf16.msra.mxu0 0
  %7663 = vmatprep.subr.bf16.mxu0 0
  %7664 = vmatpush1.bf16.msra.mxu0 %v7647
  %7665 = vmatprep.subr.bf16.mxu0 0
  %7666 = vmatpush2.bf16.msra.mxu0 0
  %7667 = vmatprep.subr.bf16.mxu0 0
  %7668 = vmatpush2.bf16.msra.mxu0 0
  %7669 = vmatprep.subr.bf16.mxu0 0
  %7670 = vmatpush2.bf16.msra.mxu0 0
  %7671 = vmatprep.subr.bf16.mxu0 0
  %7672 = vmatpush2.bf16.msra.mxu0 0
  %7673 = vmatprep.subr.bf16.mxu0 0
  %7674 = vmatpush2.bf16.msra.mxu0 0
  %7675 = vmatprep.subr.bf16.mxu0 0
  %7676 = vmatpush2.bf16.msra.mxu0 0
  %7677 = vmatprep.subr.bf16.mxu0 0
  %7678 = vmatpush2.bf16.msra.mxu0 0
  %7679 = vmatprep.subr.bf16.mxu0 0
  %7680 = vmatpush2.bf16.msra.mxu0 0
  %7681 = vmatprep.mubr.bf16.mxu0 0
  %7682 = vmatmul.mubr.bf16.gmra.mxu0 %v7644
  %v7683 = vpop.f32.mrf.mxu0
  %v7684 = vadd.f32 0.0, %v7683
  %v7685 = vpop.f32.mrf.mxu0
  %v7686 = vpop.f32.mrf.mxu0
  %v7687 = vpop.f32.mrf.mxu0
  %7688 = vdwg.mxu0
  %7689 = vrot.lane.b32.xlu0 %v5744, 96
  %v7690 = vpop.permute.xlu0 %7689
  %v7692 = vsel %vm444, %v6964, 0
  %v7695 = vsel %vm498, %v7690, 0
  %7697 = vmatprep.subr.bf16.mxu0 0
  %7698 = vmatpush1.bf16.msra.mxu0 0
  %7699 = vmatprep.subr.bf16.mxu0 0
  %7700 = vmatpush1.bf16.msra.mxu0 0
  %7701 = vmatprep.subr.bf16.mxu0 0
  %7702 = vmatpush1.bf16.msra.mxu0 0
  %7703 = vmatprep.subr.bf16.mxu0 0
  %7704 = vmatpush1.bf16.msra.mxu0 0
  %7705 = vmatprep.subr.bf16.mxu0 0
  %7706 = vmatpush1.bf16.msra.mxu0 0
  %7707 = vmatprep.subr.bf16.mxu0 0
  %7708 = vmatpush1.bf16.msra.mxu0 0
  %7709 = vmatprep.subr.bf16.mxu0 0
  %7710 = vmatpush1.bf16.msra.mxu0 0
  %7711 = vmatprep.subr.bf16.mxu0 0
  %7712 = vmatpush1.bf16.msra.mxu0 %v7695
  %7713 = vmatprep.subr.bf16.mxu0 0
  %7714 = vmatpush2.bf16.msra.mxu0 0
  %7715 = vmatprep.subr.bf16.mxu0 0
  %7716 = vmatpush2.bf16.msra.mxu0 0
  %7717 = vmatprep.subr.bf16.mxu0 0
  %7718 = vmatpush2.bf16.msra.mxu0 0
  %7719 = vmatprep.subr.bf16.mxu0 0
  %7720 = vmatpush2.bf16.msra.mxu0 0
  %7721 = vmatprep.subr.bf16.mxu0 0
  %7722 = vmatpush2.bf16.msra.mxu0 0
  %7723 = vmatprep.subr.bf16.mxu0 0
  %7724 = vmatpush2.bf16.msra.mxu0 0
  %7725 = vmatprep.subr.bf16.mxu0 0
  %7726 = vmatpush2.bf16.msra.mxu0 0
  %7727 = vmatprep.subr.bf16.mxu0 0
  %7728 = vmatpush2.bf16.msra.mxu0 0
  %7729 = vmatprep.mubr.bf16.mxu0 0
  %7730 = vmatmul.mubr.bf16.gmra.mxu0 %v7692
  %v7731 = vpop.f32.mrf.mxu0
  %v7732 = vadd.f32 0.0, %v7731
  %v7733 = vpop.f32.mrf.mxu0
  %v7734 = vpop.f32.mrf.mxu0
  %v7735 = vpop.f32.mrf.mxu0
  %7736 = vdwg.mxu0
  %7737 = vrot.lane.b32.xlu0 %v5745, 96
  %v7738 = vpop.permute.xlu0 %7737
  %v7740 = vsel %vm444, %v6965, 0
  %v7743 = vsel %vm498, %v7738, 0
  %7745 = vmatprep.subr.bf16.mxu0 0
  %7746 = vmatpush1.bf16.msra.mxu0 0
  %7747 = vmatprep.subr.bf16.mxu0 0
  %7748 = vmatpush1.bf16.msra.mxu0 0
  %7749 = vmatprep.subr.bf16.mxu0 0
  %7750 = vmatpush1.bf16.msra.mxu0 0
  %7751 = vmatprep.subr.bf16.mxu0 0
  %7752 = vmatpush1.bf16.msra.mxu0 0
  %7753 = vmatprep.subr.bf16.mxu0 0
  %7754 = vmatpush1.bf16.msra.mxu0 0
  %7755 = vmatprep.subr.bf16.mxu0 0
  %7756 = vmatpush1.bf16.msra.mxu0 0
  %7757 = vmatprep.subr.bf16.mxu0 0
  %7758 = vmatpush1.bf16.msra.mxu0 0
  %7759 = vmatprep.subr.bf16.mxu0 0
  %7760 = vmatpush1.bf16.msra.mxu0 %v7743
  %7761 = vmatprep.subr.bf16.mxu0 0
  %7762 = vmatpush2.bf16.msra.mxu0 0
  %7763 = vmatprep.subr.bf16.mxu0 0
  %7764 = vmatpush2.bf16.msra.mxu0 0
  %7765 = vmatprep.subr.bf16.mxu0 0
  %7766 = vmatpush2.bf16.msra.mxu0 0
  %7767 = vmatprep.subr.bf16.mxu0 0
  %7768 = vmatpush2.bf16.msra.mxu0 0
  %7769 = vmatprep.subr.bf16.mxu0 0
  %7770 = vmatpush2.bf16.msra.mxu0 0
  %7771 = vmatprep.subr.bf16.mxu0 0
  %7772 = vmatpush2.bf16.msra.mxu0 0
  %7773 = vmatprep.subr.bf16.mxu0 0
  %7774 = vmatpush2.bf16.msra.mxu0 0
  %7775 = vmatprep.subr.bf16.mxu0 0
  %7776 = vmatpush2.bf16.msra.mxu0 0
  %7777 = vmatprep.mubr.bf16.mxu0 0
  %7778 = vmatmul.mubr.bf16.gmra.mxu0 %v7740
  %v7779 = vpop.f32.mrf.mxu0
  %v7780 = vadd.f32 0.0, %v7779
  %v7781 = vpop.f32.mrf.mxu0
  %v7782 = vpop.f32.mrf.mxu0
  %v7783 = vpop.f32.mrf.mxu0
  %7784 = vdwg.mxu0
  %7785 = vrot.lane.b32.xlu0 %v5746, 96
  %v7786 = vpop.permute.xlu0 %7785
  %v7788 = vsel %vm444, %v6966, 0
  %v7791 = vsel %vm498, %v7786, 0
  %7793 = vmatprep.subr.bf16.mxu0 0
  %7794 = vmatpush1.bf16.msra.mxu0 0
  %7795 = vmatprep.subr.bf16.mxu0 0
  %7796 = vmatpush1.bf16.msra.mxu0 0
  %7797 = vmatprep.subr.bf16.mxu0 0
  %7798 = vmatpush1.bf16.msra.mxu0 0
  %7799 = vmatprep.subr.bf16.mxu0 0
  %7800 = vmatpush1.bf16.msra.mxu0 0
  %7801 = vmatprep.subr.bf16.mxu0 0
  %7802 = vmatpush1.bf16.msra.mxu0 0
  %7803 = vmatprep.subr.bf16.mxu0 0
  %7804 = vmatpush1.bf16.msra.mxu0 0
  %7805 = vmatprep.subr.bf16.mxu0 0
  %7806 = vmatpush1.bf16.msra.mxu0 0
  %7807 = vmatprep.subr.bf16.mxu0 0
  %7808 = vmatpush1.bf16.msra.mxu0 %v7791
  %7809 = vmatprep.subr.bf16.mxu0 0
  %7810 = vmatpush2.bf16.msra.mxu0 0
  %7811 = vmatprep.subr.bf16.mxu0 0
  %7812 = vmatpush2.bf16.msra.mxu0 0
  %7813 = vmatprep.subr.bf16.mxu0 0
  %7814 = vmatpush2.bf16.msra.mxu0 0
  %7815 = vmatprep.subr.bf16.mxu0 0
  %7816 = vmatpush2.bf16.msra.mxu0 0
  %7817 = vmatprep.subr.bf16.mxu0 0
  %7818 = vmatpush2.bf16.msra.mxu0 0
  %7819 = vmatprep.subr.bf16.mxu0 0
  %7820 = vmatpush2.bf16.msra.mxu0 0
  %7821 = vmatprep.subr.bf16.mxu0 0
  %7822 = vmatpush2.bf16.msra.mxu0 0
  %7823 = vmatprep.subr.bf16.mxu0 0
  %7824 = vmatpush2.bf16.msra.mxu0 0
  %7825 = vmatprep.mubr.bf16.mxu0 0
  %7826 = vmatmul.mubr.bf16.gmra.mxu0 %v7788
  %v7827 = vpop.f32.mrf.mxu0
  %v7828 = vadd.f32 0.0, %v7827
  %v7829 = vpop.f32.mrf.mxu0
  %v7830 = vpop.f32.mrf.mxu0
  %v7831 = vpop.f32.mrf.mxu0
  %7832 = vdwg.mxu0
  %7833 = vrot.lane.b32.xlu0 %v5747, 96
  %v7834 = vpop.permute.xlu0 %7833
  %v7836 = vsel %vm444, %v6967, 0
  %v7839 = vsel %vm498, %v7834, 0
  %7841 = vmatprep.subr.bf16.mxu0 0
  %7842 = vmatpush1.bf16.msra.mxu0 0
  %7843 = vmatprep.subr.bf16.mxu0 0
  %7844 = vmatpush1.bf16.msra.mxu0 0
  %7845 = vmatprep.subr.bf16.mxu0 0
  %7846 = vmatpush1.bf16.msra.mxu0 0
  %7847 = vmatprep.subr.bf16.mxu0 0
  %7848 = vmatpush1.bf16.msra.mxu0 0
  %7849 = vmatprep.subr.bf16.mxu0 0
  %7850 = vmatpush1.bf16.msra.mxu0 0
  %7851 = vmatprep.subr.bf16.mxu0 0
  %7852 = vmatpush1.bf16.msra.mxu0 0
  %7853 = vmatprep.subr.bf16.mxu0 0
  %7854 = vmatpush1.bf16.msra.mxu0 0
  %7855 = vmatprep.subr.bf16.mxu0 0
  %7856 = vmatpush1.bf16.msra.mxu0 %v7839
  %7857 = vmatprep.subr.bf16.mxu0 0
  %7858 = vmatpush2.bf16.msra.mxu0 0
  %7859 = vmatprep.subr.bf16.mxu0 0
  %7860 = vmatpush2.bf16.msra.mxu0 0
  %7861 = vmatprep.subr.bf16.mxu0 0
  %7862 = vmatpush2.bf16.msra.mxu0 0
  %7863 = vmatprep.subr.bf16.mxu0 0
  %7864 = vmatpush2.bf16.msra.mxu0 0
  %7865 = vmatprep.subr.bf16.mxu0 0
  %7866 = vmatpush2.bf16.msra.mxu0 0
  %7867 = vmatprep.subr.bf16.mxu0 0
  %7868 = vmatpush2.bf16.msra.mxu0 0
  %7869 = vmatprep.subr.bf16.mxu0 0
  %7870 = vmatpush2.bf16.msra.mxu0 0
  %7871 = vmatprep.subr.bf16.mxu0 0
  %7872 = vmatpush2.bf16.msra.mxu0 0
  %7873 = vmatprep.mubr.bf16.mxu0 0
  %7874 = vmatmul.mubr.bf16.gmra.mxu0 %v7836
  %v7875 = vpop.f32.mrf.mxu0
  %v7876 = vadd.f32 0.0, %v7875
  %v7877 = vpop.f32.mrf.mxu0
  %v7878 = vpop.f32.mrf.mxu0
  %v7879 = vpop.f32.mrf.mxu0
  %7880 = vdwg.mxu0
  %7881 = vrot.lane.b32.xlu0 %v5748, 96
  %v7882 = vpop.permute.xlu0 %7881
  %v7884 = vsel %vm444, %v6968, 0
  %v7887 = vsel %vm498, %v7882, 0
  %7889 = vmatprep.subr.bf16.mxu0 0
  %7890 = vmatpush1.bf16.msra.mxu0 0
  %7891 = vmatprep.subr.bf16.mxu0 0
  %7892 = vmatpush1.bf16.msra.mxu0 0
  %7893 = vmatprep.subr.bf16.mxu0 0
  %7894 = vmatpush1.bf16.msra.mxu0 0
  %7895 = vmatprep.subr.bf16.mxu0 0
  %7896 = vmatpush1.bf16.msra.mxu0 0
  %7897 = vmatprep.subr.bf16.mxu0 0
  %7898 = vmatpush1.bf16.msra.mxu0 0
  %7899 = vmatprep.subr.bf16.mxu0 0
  %7900 = vmatpush1.bf16.msra.mxu0 0
  %7901 = vmatprep.subr.bf16.mxu0 0
  %7902 = vmatpush1.bf16.msra.mxu0 0
  %7903 = vmatprep.subr.bf16.mxu0 0
  %7904 = vmatpush1.bf16.msra.mxu0 %v7887
  %7905 = vmatprep.subr.bf16.mxu0 0
  %7906 = vmatpush2.bf16.msra.mxu0 0
  %7907 = vmatprep.subr.bf16.mxu0 0
  %7908 = vmatpush2.bf16.msra.mxu0 0
  %7909 = vmatprep.subr.bf16.mxu0 0
  %7910 = vmatpush2.bf16.msra.mxu0 0
  %7911 = vmatprep.subr.bf16.mxu0 0
  %7912 = vmatpush2.bf16.msra.mxu0 0
  %7913 = vmatprep.subr.bf16.mxu0 0
  %7914 = vmatpush2.bf16.msra.mxu0 0
  %7915 = vmatprep.subr.bf16.mxu0 0
  %7916 = vmatpush2.bf16.msra.mxu0 0
  %7917 = vmatprep.subr.bf16.mxu0 0
  %7918 = vmatpush2.bf16.msra.mxu0 0
  %7919 = vmatprep.subr.bf16.mxu0 0
  %7920 = vmatpush2.bf16.msra.mxu0 0
  %7921 = vmatprep.mubr.bf16.mxu0 0
  %7922 = vmatmul.mubr.bf16.gmra.mxu0 %v7884
  %v7923 = vpop.f32.mrf.mxu0
  %v7924 = vadd.f32 0.0, %v7923
  %v7925 = vpop.f32.mrf.mxu0
  %v7926 = vpop.f32.mrf.mxu0
  %v7927 = vpop.f32.mrf.mxu0
  %7928 = vdwg.mxu0
  %7939 = vrot.lane.b32.xlu0 %v7492, 16
  %v7940 = vpop.permute.xlu0 %7939
  %7941 = vrot.lane.b32.xlu0 %v7540, 16
  %v7942 = vpop.permute.xlu0 %7941
  %7943 = vrot.lane.b32.xlu0 %v7588, 16
  %v7944 = vpop.permute.xlu0 %7943
  %7945 = vrot.lane.b32.xlu0 %v7636, 16
  %v7946 = vpop.permute.xlu0 %7945
  %7947 = vrot.lane.b32.xlu0 %v7684, 16
  %v7948 = vpop.permute.xlu0 %7947
  %7949 = vrot.lane.b32.xlu0 %v7732, 16
  %v7950 = vpop.permute.xlu0 %7949
  %7951 = vrot.lane.b32.xlu0 %v7780, 16
  %v7952 = vpop.permute.xlu0 %7951
  %7953 = vrot.lane.b32.xlu0 %v7828, 16
  %v7954 = vpop.permute.xlu0 %7953
  %7955 = vrot.lane.b32.xlu0 %v7876, 16
  %v7956 = vpop.permute.xlu0 %7955
  %7957 = vrot.lane.b32.xlu0 %v7924, 16
  %v7958 = vpop.permute.xlu0 %7957
  %v7969 = vsel %vm250, %v7012, %v7940
  %v7970 = vsel %vm250, %v7060, %v7942
  %v7971 = vsel %vm250, %v7108, %v7944
  %v7972 = vsel %vm250, %v7156, %v7946
  %v7973 = vsel %vm250, %v7204, %v7948
  %v7974 = vsel %vm250, %v7252, %v7950
  %v7975 = vsel %vm250, %v7300, %v7952
  %v7976 = vsel %vm250, %v7348, %v7954
  %v7977 = vsel %vm250, %v7396, %v7956
  %v7978 = vsel %vm250, %v7444, %v7958
  %v7979 = vpack.c.bf16 %v7970, %v7969
  %v7980 = vpack.c.bf16 %v7972, %v7971
  %v7981 = vpack.c.bf16 %v7974, %v7973
  %v7982 = vpack.c.bf16 %v7976, %v7975
  %v7983 = vpack.c.bf16 %v7978, %v7977
  %s7984 = scalar_lea.vmem %s11, 16
  %v7985 = vld [vmem:[%s7984] sm:$0xf]
  %v7986 = vld [vmem:[%s7984 + $0x4] sm:$0xf]
  %v7987 = vld [vmem:[%s7984 + $0x8] sm:$0xf]
  %v7988 = vld [vmem:[%s7984 + $0xc] sm:$0xf]
  %v7989 = vld [vmem:[%s5 + $0x1f] sm:$0x1]
  %v7990 = vlaneseq
  %v7991 = vshrl.u32 %v7990, 7
  %v7992 = vsub.s32 0, %v7991
  %v7993 = vrot.slane %v7989, %v7992
  %v7998 = vunpack.c.l.b16 %v7985
  %v7999 = vunpack.c.l.b16 %v7986
  %v8000 = vunpack.c.l.b16 %v7987
  %v8001 = vunpack.c.l.b16 %v7988
  %v8002 = vpack.c.b16 %v7999, %v7998
  %v8003 = vpack.c.b16 %v8001, %v8000
  %v8007 = vsel %vm79, %v7979, 0
  %v8010 = vsel %vm79, %v7980, 0
  %v8013 = vsel %vm79, %v7981, 0
  %v8016 = vsel %vm79, %v7982, 0
  %v8019 = vsel %vm79, %v7983, 0
  %8021 = vmatprep.subr.bf16.mxu0 0
  %8022 = vmatpush1.bf16.msra.mxu0 0
  %8023 = vmatprep.subr.bf16.mxu0 0
  %8024 = vmatpush1.bf16.msra.mxu0 0
  %8025 = vmatprep.subr.bf16.mxu0 0
  %8026 = vmatpush1.bf16.msra.mxu0 0
  %8027 = vmatprep.subr.bf16.mxu0 0
  %8028 = vmatpush1.bf16.msra.mxu0 0
  %8029 = vmatprep.subr.bf16.mxu0 0
  %8030 = vmatpush1.bf16.msra.mxu0 0
  %8031 = vmatprep.subr.bf16.mxu0 0
  %8032 = vmatpush1.bf16.msra.mxu0 0
  %8033 = vmatprep.subr.bf16.mxu0 0
  %8034 = vmatpush1.bf16.msra.mxu0 %v8003
  %8035 = vmatprep.subr.bf16.mxu0 0
  %8036 = vmatpush1.bf16.msra.mxu0 %v8002
  %8037 = vmatprep.subr.bf16.mxu0 0
  %8038 = vmatpush2.bf16.msra.mxu0 0
  %8039 = vmatprep.subr.bf16.mxu0 0
  %8040 = vmatpush2.bf16.msra.mxu0 0
  %8041 = vmatprep.subr.bf16.mxu0 0
  %8042 = vmatpush2.bf16.msra.mxu0 0
  %8043 = vmatprep.subr.bf16.mxu0 0
  %8044 = vmatpush2.bf16.msra.mxu0 0
  %8045 = vmatprep.subr.bf16.mxu0 0
  %8046 = vmatpush2.bf16.msra.mxu0 0
  %8047 = vmatprep.subr.bf16.mxu0 0
  %8048 = vmatpush2.bf16.msra.mxu0 0
  %8049 = vmatprep.subr.bf16.mxu0 0
  %8050 = vmatpush2.bf16.msra.mxu0 0
  %8051 = vmatprep.subr.bf16.mxu0 0
  %8052 = vmatpush2.bf16.msra.mxu0 0
  %8053 = vmatprep.mubr.bf16.mxu0 0
  %8054 = vmatmul.mubr.bf16.gmra.mxu0 %v8007
  %v8055 = vpop.f32.mrf.mxu0
  %v8056 = vadd.f32 %v7993, %v8055
  %v8057 = vpop.f32.mrf.mxu0
  %v8058 = vpop.f32.mrf.mxu0
  %v8059 = vadd.f32 %v7993, %v8058
  %v8060 = vpop.f32.mrf.mxu0
  %8061 = vmatprep.mubr.bf16.mxu0 0
  %8062 = vmatmul.mubr.bf16.gmra.mxu0 %v8010
  %v8063 = vpop.f32.mrf.mxu0
  %v8064 = vadd.f32 %v7993, %v8063
  %v8065 = vpop.f32.mrf.mxu0
  %v8066 = vpop.f32.mrf.mxu0
  %v8067 = vadd.f32 %v7993, %v8066
  %v8068 = vpop.f32.mrf.mxu0
  %8069 = vmatprep.mubr.bf16.mxu0 0
  %8070 = vmatmul.mubr.bf16.gmra.mxu0 %v8013
  %v8071 = vpop.f32.mrf.mxu0
  %v8072 = vadd.f32 %v7993, %v8071
  %v8073 = vpop.f32.mrf.mxu0
  %v8074 = vpop.f32.mrf.mxu0
  %v8075 = vadd.f32 %v7993, %v8074
  %v8076 = vpop.f32.mrf.mxu0
  %8077 = vmatprep.mubr.bf16.mxu0 0
  %8078 = vmatmul.mubr.bf16.gmra.mxu0 %v8016
  %v8079 = vpop.f32.mrf.mxu0
  %v8080 = vadd.f32 %v7993, %v8079
  %v8081 = vpop.f32.mrf.mxu0
  %v8082 = vpop.f32.mrf.mxu0
  %v8083 = vadd.f32 %v7993, %v8082
  %v8084 = vpop.f32.mrf.mxu0
  %8085 = vmatprep.mubr.bf16.mxu0 0
  %8086 = vmatmul.mubr.bf16.gmra.mxu0 %v8019
  %v8087 = vpop.f32.mrf.mxu0
  %v8088 = vadd.f32 %v7993, %v8087
  %v8089 = vpop.f32.mrf.mxu0
  %v8090 = vpop.f32.mrf.mxu0
  %v8091 = vadd.f32 %v7993, %v8090
  %v8092 = vpop.f32.mrf.mxu0
  %8093 = vdwg.mxu0
  %v8094 = vadd.f32 %v8056, %v5564
  %v8095 = vadd.f32 %v8059, %v5565
  %v8096 = vadd.f32 %v8064, %v5566
  %v8097 = vadd.f32 %v8067, %v5567
  %v8098 = vadd.f32 %v8072, %v5568
  %v8099 = vadd.f32 %v8075, %v5569
  %v8100 = vadd.f32 %v8080, %v5570
  %v8101 = vadd.f32 %v8083, %v5571
  %v8102 = vadd.f32 %v8088, %v5572
  %v8103 = vadd.f32 %v8091, %v5573
  %v8104 = vld [vmem:[%s5 + $0x20] sm:$0x1]
  %v8105 = vld [vmem:[%s5 + $0x21] sm:$0x1]
  %v8106 = vsel %vm79, %v8094, 0.0
  %8107 = vadd.xlane.f32.xlu0 %v8106
  %v8108 = vpop.xlane.xlu0 %8107
  %v8109 = vsel %vm79, %v8095, 0.0
  %8110 = vadd.xlane.f32.xlu0 %v8109
  %v8111 = vpop.xlane.xlu0 %8110
  %v8112 = vsel %vm79, %v8096, 0.0
  %8113 = vadd.xlane.f32.xlu0 %v8112
  %v8114 = vpop.xlane.xlu0 %8113
  %v8115 = vsel %vm79, %v8097, 0.0
  %8116 = vadd.xlane.f32.xlu0 %v8115
  %v8117 = vpop.xlane.xlu0 %8116
  %v8118 = vsel %vm79, %v8098, 0.0
  %8119 = vadd.xlane.f32.xlu0 %v8118
  %v8120 = vpop.xlane.xlu0 %8119
  %v8121 = vsel %vm79, %v8099, 0.0
  %8122 = vadd.xlane.f32.xlu0 %v8121
  %v8123 = vpop.xlane.xlu0 %8122
  %v8124 = vsel %vm79, %v8100, 0.0
  %8125 = vadd.xlane.f32.xlu0 %v8124
  %v8126 = vpop.xlane.xlu0 %8125
  %v8127 = vsel %vm79, %v8101, 0.0
  %8128 = vadd.xlane.f32.xlu0 %v8127
  %v8129 = vpop.xlane.xlu0 %8128
  %v8130 = vsel %vm79, %v8102, 0.0
  %8131 = vadd.xlane.f32.xlu0 %v8130
  %v8132 = vpop.xlane.xlu0 %8131
  %v8133 = vsel %vm79, %v8103, 0.0
  %8134 = vadd.xlane.f32.xlu0 %v8133
  %v8135 = vpop.xlane.xlu0 %8134
  %v8136 = vmul.f32 %v8108, %v86
  %v8137 = vmul.f32 %v8111, %v86
  %v8138 = vmul.f32 %v8114, %v86
  %v8139 = vmul.f32 %v8117, %v86
  %v8140 = vmul.f32 %v8120, %v86
  %v8141 = vmul.f32 %v8123, %v86
  %v8142 = vmul.f32 %v8126, %v86
  %v8143 = vmul.f32 %v8129, %v86
  %v8144 = vmul.f32 %v8132, %v86
  %v8145 = vmul.f32 %v8135, %v86
  %v8146 = vsub.f32 %v8094, %v8136
  %v8147 = vsub.f32 %v8095, %v8137
  %v8148 = vsub.f32 %v8096, %v8138
  %v8149 = vsub.f32 %v8097, %v8139
  %v8150 = vsub.f32 %v8098, %v8140
  %v8151 = vsub.f32 %v8099, %v8141
  %v8152 = vsub.f32 %v8100, %v8142
  %v8153 = vsub.f32 %v8101, %v8143
  %v8154 = vsub.f32 %v8102, %v8144
  %v8155 = vsub.f32 %v8103, %v8145
  %v8156 = vmul.f32 %v8146, %v8146
  %v8157 = vmul.f32 %v8147, %v8147
  %v8158 = vmul.f32 %v8148, %v8148
  %v8159 = vmul.f32 %v8149, %v8149
  %v8160 = vmul.f32 %v8150, %v8150
  %v8161 = vmul.f32 %v8151, %v8151
  %v8162 = vmul.f32 %v8152, %v8152
  %v8163 = vmul.f32 %v8153, %v8153
  %v8164 = vmul.f32 %v8154, %v8154
  %v8165 = vmul.f32 %v8155, %v8155
  %v8166 = vsel %vm79, %v8156, 0.0
  %8167 = vadd.xlane.f32.xlu0 %v8166
  %v8168 = vpop.xlane.xlu0 %8167
  %v8169 = vsel %vm79, %v8157, 0.0
  %8170 = vadd.xlane.f32.xlu0 %v8169
  %v8171 = vpop.xlane.xlu0 %8170
  %v8172 = vsel %vm79, %v8158, 0.0
  %8173 = vadd.xlane.f32.xlu0 %v8172
  %v8174 = vpop.xlane.xlu0 %8173
  %v8175 = vsel %vm79, %v8159, 0.0
  %8176 = vadd.xlane.f32.xlu0 %v8175
  %v8177 = vpop.xlane.xlu0 %8176
  %v8178 = vsel %vm79, %v8160, 0.0
  %8179 = vadd.xlane.f32.xlu0 %v8178
  %v8180 = vpop.xlane.xlu0 %8179
  %v8181 = vsel %vm79, %v8161, 0.0
  %8182 = vadd.xlane.f32.xlu0 %v8181
  %v8183 = vpop.xlane.xlu0 %8182
  %v8184 = vsel %vm79, %v8162, 0.0
  %8185 = vadd.xlane.f32.xlu0 %v8184
  %v8186 = vpop.xlane.xlu0 %8185
  %v8187 = vsel %vm79, %v8163, 0.0
  %8188 = vadd.xlane.f32.xlu0 %v8187
  %v8189 = vpop.xlane.xlu0 %8188
  %v8190 = vsel %vm79, %v8164, 0.0
  %8191 = vadd.xlane.f32.xlu0 %v8190
  %v8192 = vpop.xlane.xlu0 %8191
  %v8193 = vsel %vm79, %v8165, 0.0
  %8194 = vadd.xlane.f32.xlu0 %v8193
  %v8195 = vpop.xlane.xlu0 %8194
  %v8196 = vmul.f32 %v8168, %v86
  %v8197 = vmul.f32 %v8171, %v86
  %v8198 = vmul.f32 %v8174, %v86
  %v8199 = vmul.f32 %v8177, %v86
  %v8200 = vmul.f32 %v8180, %v86
  %v8201 = vmul.f32 %v8183, %v86
  %v8202 = vmul.f32 %v8186, %v86
  %v8203 = vmul.f32 %v8189, %v86
  %v8204 = vmul.f32 %v8192, %v86
  %v8205 = vmul.f32 %v8195, %v86
  %v8206 = vadd.f32 %v8196, 1e-12
  %v8207 = vadd.f32 %v8197, 1e-12
  %v8208 = vadd.f32 %v8198, 1e-12
  %v8209 = vadd.f32 %v8199, 1e-12
  %v8210 = vadd.f32 %v8200, 1e-12
  %v8211 = vadd.f32 %v8201, 1e-12
  %v8212 = vadd.f32 %v8202, 1e-12
  %v8213 = vadd.f32 %v8203, 1e-12
  %v8214 = vadd.f32 %v8204, 1e-12
  %v8215 = vadd.f32 %v8205, 1e-12
  %v8216 = vrsqrt.pop %v8206
  %v8217 = vrsqrt.pop %v8207
  %v8218 = vrsqrt.pop %v8208
  %v8219 = vrsqrt.pop %v8209
  %v8220 = vrsqrt.pop %v8210
  %v8221 = vrsqrt.pop %v8211
  %v8222 = vrsqrt.pop %v8212
  %v8223 = vrsqrt.pop %v8213
  %v8224 = vrsqrt.pop %v8214
  %v8225 = vrsqrt.pop %v8215
  %v8226 = vmul.f32 %v8146, %v8216
  %v8227 = vmul.f32 %v8147, %v8217
  %v8228 = vmul.f32 %v8148, %v8218
  %v8229 = vmul.f32 %v8149, %v8219
  %v8230 = vmul.f32 %v8150, %v8220
  %v8231 = vmul.f32 %v8151, %v8221
  %v8232 = vmul.f32 %v8152, %v8222
  %v8233 = vmul.f32 %v8153, %v8223
  %v8234 = vmul.f32 %v8154, %v8224
  %v8235 = vmul.f32 %v8155, %v8225
  %v8236 = vlaneseq
  %v8237 = vshrl.u32 %v8236, 7
  %v8238 = vsub.s32 0, %v8237
  %v8239 = vrot.slane %v8104, %v8238
  %v8240 = vmul.f32 %v8226, %v8239
  %v8241 = vmul.f32 %v8227, %v8239
  %v8242 = vmul.f32 %v8228, %v8239
  %v8243 = vmul.f32 %v8229, %v8239
  %v8244 = vmul.f32 %v8230, %v8239
  %v8245 = vmul.f32 %v8231, %v8239
  %v8246 = vmul.f32 %v8232, %v8239
  %v8247 = vmul.f32 %v8233, %v8239
  %v8248 = vmul.f32 %v8234, %v8239
  %v8249 = vmul.f32 %v8235, %v8239
  %v8250 = vlaneseq
  %v8251 = vshrl.u32 %v8250, 7
  %v8252 = vsub.s32 0, %v8251
  %v8253 = vrot.slane %v8105, %v8252
  %v8254 = vadd.f32 %v8240, %v8253
  %v8255 = vadd.f32 %v8241, %v8253
  %v8256 = vadd.f32 %v8242, %v8253
  %v8257 = vadd.f32 %v8243, %v8253
  %v8258 = vadd.f32 %v8244, %v8253
  %v8259 = vadd.f32 %v8245, %v8253
  %v8260 = vadd.f32 %v8246, %v8253
  %v8261 = vadd.f32 %v8247, %v8253
  %v8262 = vadd.f32 %v8248, %v8253
  %v8263 = vadd.f32 %v8249, %v8253
  %v8264 = vpack.c.bf16 %v8255, %v8254
  %v8265 = vpack.c.bf16 %v8257, %v8256
  %v8266 = vpack.c.bf16 %v8259, %v8258
  %v8267 = vpack.c.bf16 %v8261, %v8260
  %v8268 = vpack.c.bf16 %v8263, %v8262
  %s8269 = scalar_lea.vmem %s12, 16
  %v8270 = vld [vmem:[%s8269] sm:$0xf]
  %v8271 = vld [vmem:[%s8269 + $0x4] sm:$0xf]
  %v8272 = vld [vmem:[%s8269 + $0x8] sm:$0xf]
  %v8273 = vld [vmem:[%s8269 + $0xc] sm:$0xf]
  %v8274 = vld [vmem:[%s5 + $0x22] sm:$0x1]
  %v8275 = vlaneseq
  %v8276 = vshrl.u32 %v8275, 7
  %v8277 = vsub.s32 0, %v8276
  %v8278 = vrot.slane %v8274, %v8277
  %v8283 = vunpack.c.l.b16 %v8270
  %v8284 = vunpack.c.l.b16 %v8271
  %v8285 = vunpack.c.l.b16 %v8272
  %v8286 = vunpack.c.l.b16 %v8273
  %v8287 = vpack.c.b16 %v8284, %v8283
  %v8288 = vpack.c.b16 %v8286, %v8285
  %v8292 = vsel %vm79, %v8264, 0
  %v8295 = vsel %vm79, %v8265, 0
  %v8298 = vsel %vm79, %v8266, 0
  %v8301 = vsel %vm79, %v8267, 0
  %v8304 = vsel %vm79, %v8268, 0
  %8306 = vmatprep.subr.bf16.mxu0 0
  %8307 = vmatpush1.bf16.msra.mxu0 0
  %8308 = vmatprep.subr.bf16.mxu0 0
  %8309 = vmatpush1.bf16.msra.mxu0 0
  %8310 = vmatprep.subr.bf16.mxu0 0
  %8311 = vmatpush1.bf16.msra.mxu0 0
  %8312 = vmatprep.subr.bf16.mxu0 0
  %8313 = vmatpush1.bf16.msra.mxu0 0
  %8314 = vmatprep.subr.bf16.mxu0 0
  %8315 = vmatpush1.bf16.msra.mxu0 0
  %8316 = vmatprep.subr.bf16.mxu0 0
  %8317 = vmatpush1.bf16.msra.mxu0 0
  %8318 = vmatprep.subr.bf16.mxu0 0
  %8319 = vmatpush1.bf16.msra.mxu0 %v8288
  %8320 = vmatprep.subr.bf16.mxu0 0
  %8321 = vmatpush1.bf16.msra.mxu0 %v8287
  %8322 = vmatprep.subr.bf16.mxu0 0
  %8323 = vmatpush2.bf16.msra.mxu0 0
  %8324 = vmatprep.subr.bf16.mxu0 0
  %8325 = vmatpush2.bf16.msra.mxu0 0
  %8326 = vmatprep.subr.bf16.mxu0 0
  %8327 = vmatpush2.bf16.msra.mxu0 0
  %8328 = vmatprep.subr.bf16.mxu0 0
  %8329 = vmatpush2.bf16.msra.mxu0 0
  %8330 = vmatprep.subr.bf16.mxu0 0
  %8331 = vmatpush2.bf16.msra.mxu0 0
  %8332 = vmatprep.subr.bf16.mxu0 0
  %8333 = vmatpush2.bf16.msra.mxu0 0
  %8334 = vmatprep.subr.bf16.mxu0 0
  %8335 = vmatpush2.bf16.msra.mxu0 0
  %8336 = vmatprep.subr.bf16.mxu0 0
  %8337 = vmatpush2.bf16.msra.mxu0 0
  %8338 = vmatprep.mubr.bf16.mxu0 0
  %8339 = vmatmul.mubr.bf16.gmra.mxu0 %v8292
  %v8340 = vpop.f32.mrf.mxu0
  %v8341 = vadd.f32 %v8278, %v8340
  %v8342 = vpop.f32.mrf.mxu0
  %v8343 = vpop.f32.mrf.mxu0
  %v8344 = vadd.f32 %v8278, %v8343
  %v8345 = vpop.f32.mrf.mxu0
  %8346 = vmatprep.mubr.bf16.mxu0 0
  %8347 = vmatmul.mubr.bf16.gmra.mxu0 %v8295
  %v8348 = vpop.f32.mrf.mxu0
  %v8349 = vadd.f32 %v8278, %v8348
  %v8350 = vpop.f32.mrf.mxu0
  %v8351 = vpop.f32.mrf.mxu0
  %v8352 = vadd.f32 %v8278, %v8351
  %v8353 = vpop.f32.mrf.mxu0
  %8354 = vmatprep.mubr.bf16.mxu0 0
  %8355 = vmatmul.mubr.bf16.gmra.mxu0 %v8298
  %v8356 = vpop.f32.mrf.mxu0
  %v8357 = vadd.f32 %v8278, %v8356
  %v8358 = vpop.f32.mrf.mxu0
  %v8359 = vpop.f32.mrf.mxu0
  %v8360 = vadd.f32 %v8278, %v8359
  %v8361 = vpop.f32.mrf.mxu0
  %8362 = vmatprep.mubr.bf16.mxu0 0
  %8363 = vmatmul.mubr.bf16.gmra.mxu0 %v8301
  %v8364 = vpop.f32.mrf.mxu0
  %v8365 = vadd.f32 %v8278, %v8364
  %v8366 = vpop.f32.mrf.mxu0
  %v8367 = vpop.f32.mrf.mxu0
  %v8368 = vadd.f32 %v8278, %v8367
  %v8369 = vpop.f32.mrf.mxu0
  %8370 = vmatprep.mubr.bf16.mxu0 0
  %8371 = vmatmul.mubr.bf16.gmra.mxu0 %v8304
  %v8372 = vpop.f32.mrf.mxu0
  %v8373 = vadd.f32 %v8278, %v8372
  %v8374 = vpop.f32.mrf.mxu0
  %v8375 = vpop.f32.mrf.mxu0
  %v8376 = vadd.f32 %v8278, %v8375
  %v8377 = vpop.f32.mrf.mxu0
  %8378 = vdwg.mxu0
  %v8379 = vmul.f32 %v8341, %v8341
  %v8380 = vmul.f32 %v8344, %v8344
  %v8381 = vmul.f32 %v8349, %v8349
  %v8382 = vmul.f32 %v8352, %v8352
  %v8383 = vmul.f32 %v8357, %v8357
  %v8384 = vmul.f32 %v8360, %v8360
  %v8385 = vmul.f32 %v8365, %v8365
  %v8386 = vmul.f32 %v8368, %v8368
  %v8387 = vmul.f32 %v8373, %v8373
  %v8388 = vmul.f32 %v8376, %v8376
  %v8389 = vmul.f32 %v8341, %v8379
  %v8390 = vmul.f32 %v8344, %v8380
  %v8391 = vmul.f32 %v8349, %v8381
  %v8392 = vmul.f32 %v8352, %v8382
  %v8393 = vmul.f32 %v8357, %v8383
  %v8394 = vmul.f32 %v8360, %v8384
  %v8395 = vmul.f32 %v8365, %v8385
  %v8396 = vmul.f32 %v8368, %v8386
  %v8397 = vmul.f32 %v8373, %v8387
  %v8398 = vmul.f32 %v8376, %v8388
  %v8399 = vmul.f32 %v8389, 0.044715
  %v8400 = vmul.f32 %v8390, 0.044715
  %v8401 = vmul.f32 %v8391, 0.044715
  %v8402 = vmul.f32 %v8392, 0.044715
  %v8403 = vmul.f32 %v8393, 0.044715
  %v8404 = vmul.f32 %v8394, 0.044715
  %v8405 = vmul.f32 %v8395, 0.044715
  %v8406 = vmul.f32 %v8396, 0.044715
  %v8407 = vmul.f32 %v8397, 0.044715
  %v8408 = vmul.f32 %v8398, 0.044715
  %v8409 = vadd.f32 %v8341, %v8399
  %v8410 = vadd.f32 %v8344, %v8400
  %v8411 = vadd.f32 %v8349, %v8401
  %v8412 = vadd.f32 %v8352, %v8402
  %v8413 = vadd.f32 %v8357, %v8403
  %v8414 = vadd.f32 %v8360, %v8404
  %v8415 = vadd.f32 %v8365, %v8405
  %v8416 = vadd.f32 %v8368, %v8406
  %v8417 = vadd.f32 %v8373, %v8407
  %v8418 = vadd.f32 %v8376, %v8408
  %v8419 = vmul.f32 %v8409, 0.7978846
  %v8420 = vmul.f32 %v8410, 0.7978846
  %v8421 = vmul.f32 %v8411, 0.7978846
  %v8422 = vmul.f32 %v8412, 0.7978846
  %v8423 = vmul.f32 %v8413, 0.7978846
  %v8424 = vmul.f32 %v8414, 0.7978846
  %v8425 = vmul.f32 %v8415, 0.7978846
  %v8426 = vmul.f32 %v8416, 0.7978846
  %v8427 = vmul.f32 %v8417, 0.7978846
  %v8428 = vmul.f32 %v8418, 0.7978846
  %v8429 = vtanh.pop %v8419
  %v8430 = vtanh.pop %v8420
  %v8431 = vtanh.pop %v8421
  %v8432 = vtanh.pop %v8422
  %v8433 = vtanh.pop %v8423
  %v8434 = vtanh.pop %v8424
  %v8435 = vtanh.pop %v8425
  %v8436 = vtanh.pop %v8426
  %v8437 = vtanh.pop %v8427
  %v8438 = vtanh.pop %v8428
  %v8439 = vadd.f32 %v8429, 1.0
  %v8440 = vadd.f32 %v8430, 1.0
  %v8441 = vadd.f32 %v8431, 1.0
  %v8442 = vadd.f32 %v8432, 1.0
  %v8443 = vadd.f32 %v8433, 1.0
  %v8444 = vadd.f32 %v8434, 1.0
  %v8445 = vadd.f32 %v8435, 1.0
  %v8446 = vadd.f32 %v8436, 1.0
  %v8447 = vadd.f32 %v8437, 1.0
  %v8448 = vadd.f32 %v8438, 1.0
  %v8449 = vmul.f32 %v8439, 0.5
  %v8450 = vmul.f32 %v8440, 0.5
  %v8451 = vmul.f32 %v8441, 0.5
  %v8452 = vmul.f32 %v8442, 0.5
  %v8453 = vmul.f32 %v8443, 0.5
  %v8454 = vmul.f32 %v8444, 0.5
  %v8455 = vmul.f32 %v8445, 0.5
  %v8456 = vmul.f32 %v8446, 0.5
  %v8457 = vmul.f32 %v8447, 0.5
  %v8458 = vmul.f32 %v8448, 0.5
  %v8459 = vmul.f32 %v8341, %v8449
  %v8460 = vmul.f32 %v8344, %v8450
  %v8461 = vmul.f32 %v8349, %v8451
  %v8462 = vmul.f32 %v8352, %v8452
  %v8463 = vmul.f32 %v8357, %v8453
  %v8464 = vmul.f32 %v8360, %v8454
  %v8465 = vmul.f32 %v8365, %v8455
  %v8466 = vmul.f32 %v8368, %v8456
  %v8467 = vmul.f32 %v8373, %v8457
  %v8468 = vmul.f32 %v8376, %v8458
  %v8469 = vpack.c.bf16 %v8460, %v8459
  %v8470 = vpack.c.bf16 %v8462, %v8461
  %v8471 = vpack.c.bf16 %v8464, %v8463
  %v8472 = vpack.c.bf16 %v8466, %v8465
  %v8473 = vpack.c.bf16 %v8468, %v8467
  %s8474 = scalar_lea.vmem %s13, 32
  %v8475 = vld [vmem:[%s8474] sm:$0xf]
  %v8476 = vld [vmem:[%s8474 + $0x4] sm:$0xf]
  %v8477 = vld [vmem:[%s8474 + $0x8] sm:$0xf]
  %v8478 = vld [vmem:[%s8474 + $0xc] sm:$0xf]
  %v8479 = vld [vmem:[%s8474 + $0x10] sm:$0xf]
  %v8480 = vld [vmem:[%s8474 + $0x14] sm:$0xf]
  %v8481 = vld [vmem:[%s8474 + $0x18] sm:$0xf]
  %v8482 = vld [vmem:[%s8474 + $0x1c] sm:$0xf]
  %v8483 = vld [vmem:[%s5 + $0x23] sm:$0x1]
  %v8484 = vlaneseq
  %v8485 = vshrl.u32 %v8484, 7
  %v8486 = vsub.s32 0, %v8485
  %v8487 = vrot.slane %v8483, %v8486
  %v8496 = vunpack.c.l.b16 %v8475
  %v8497 = vunpack.c.l.b16 %v8476
  %v8498 = vunpack.c.l.b16 %v8477
  %v8499 = vunpack.c.l.b16 %v8478
  %v8500 = vunpack.c.l.b16 %v8479
  %v8501 = vunpack.c.l.b16 %v8480
  %v8502 = vunpack.c.l.b16 %v8481
  %v8503 = vunpack.c.l.b16 %v8482
  %v8504 = vpack.c.b16 %v8497, %v8496
  %v8505 = vpack.c.b16 %v8499, %v8498
  %v8506 = vpack.c.b16 %v8501, %v8500
  %v8507 = vpack.c.b16 %v8503, %v8502
  %v8513 = vsel %vm926, %v8469, 0
  %v8516 = vsel %vm926, %v8470, 0
  %v8519 = vsel %vm926, %v8471, 0
  %v8522 = vsel %vm926, %v8472, 0
  %v8525 = vsel %vm926, %v8473, 0
  %8527 = vmatprep.subr.bf16.mxu0 0
  %8528 = vmatpush1.bf16.msra.mxu0 0
  %8529 = vmatprep.subr.bf16.mxu0 0
  %8530 = vmatpush1.bf16.msra.mxu0 0
  %8531 = vmatprep.subr.bf16.mxu0 0
  %8532 = vmatpush1.bf16.msra.mxu0 0
  %8533 = vmatprep.subr.bf16.mxu0 0
  %8534 = vmatpush1.bf16.msra.mxu0 0
  %8535 = vmatprep.subr.bf16.mxu0 0
  %8536 = vmatpush1.bf16.msra.mxu0 %v8507
  %8537 = vmatprep.subr.bf16.mxu0 0
  %8538 = vmatpush1.bf16.msra.mxu0 %v8506
  %8539 = vmatprep.subr.bf16.mxu0 0
  %8540 = vmatpush1.bf16.msra.mxu0 %v8505
  %8541 = vmatprep.subr.bf16.mxu0 0
  %8542 = vmatpush1.bf16.msra.mxu0 %v8504
  %8543 = vmatprep.subr.bf16.mxu0 0
  %8544 = vmatpush2.bf16.msra.mxu0 0
  %8545 = vmatprep.subr.bf16.mxu0 0
  %8546 = vmatpush2.bf16.msra.mxu0 0
  %8547 = vmatprep.subr.bf16.mxu0 0
  %8548 = vmatpush2.bf16.msra.mxu0 0
  %8549 = vmatprep.subr.bf16.mxu0 0
  %8550 = vmatpush2.bf16.msra.mxu0 0
  %8551 = vmatprep.subr.bf16.mxu0 0
  %8552 = vmatpush2.bf16.msra.mxu0 0
  %8553 = vmatprep.subr.bf16.mxu0 0
  %8554 = vmatpush2.bf16.msra.mxu0 0
  %8555 = vmatprep.subr.bf16.mxu0 0
  %8556 = vmatpush2.bf16.msra.mxu0 0
  %8557 = vmatprep.subr.bf16.mxu0 0
  %8558 = vmatpush2.bf16.msra.mxu0 0
  %8559 = vmatprep.mubr.bf16.mxu0 0
  %8560 = vmatmul.mubr.bf16.gmra.mxu0 %v8513
  %v8561 = vpop.f32.mrf.mxu0
  %v8562 = vadd.f32 %v8487, %v8561
  %v8563 = vpop.f32.mrf.mxu0
  %v8564 = vpop.f32.mrf.mxu0
  %v8565 = vadd.f32 %v8487, %v8564
  %v8566 = vpop.f32.mrf.mxu0
  %8567 = vmatprep.mubr.bf16.mxu0 0
  %8568 = vmatmul.mubr.bf16.gmra.mxu0 %v8516
  %v8569 = vpop.f32.mrf.mxu0
  %v8570 = vadd.f32 %v8487, %v8569
  %v8571 = vpop.f32.mrf.mxu0
  %v8572 = vpop.f32.mrf.mxu0
  %v8573 = vadd.f32 %v8487, %v8572
  %v8574 = vpop.f32.mrf.mxu0
  %8575 = vmatprep.mubr.bf16.mxu0 0
  %8576 = vmatmul.mubr.bf16.gmra.mxu0 %v8519
  %v8577 = vpop.f32.mrf.mxu0
  %v8578 = vadd.f32 %v8487, %v8577
  %v8579 = vpop.f32.mrf.mxu0
  %v8580 = vpop.f32.mrf.mxu0
  %v8581 = vadd.f32 %v8487, %v8580
  %v8582 = vpop.f32.mrf.mxu0
  %8583 = vmatprep.mubr.bf16.mxu0 0
  %8584 = vmatmul.mubr.bf16.gmra.mxu0 %v8522
  %v8585 = vpop.f32.mrf.mxu0
  %v8586 = vadd.f32 %v8487, %v8585
  %v8587 = vpop.f32.mrf.mxu0
  %v8588 = vpop.f32.mrf.mxu0
  %v8589 = vadd.f32 %v8487, %v8588
  %v8590 = vpop.f32.mrf.mxu0
  %8591 = vmatprep.mubr.bf16.mxu0 0
  %8592 = vmatmul.mubr.bf16.gmra.mxu0 %v8525
  %v8593 = vpop.f32.mrf.mxu0
  %v8594 = vadd.f32 %v8487, %v8593
  %v8595 = vpop.f32.mrf.mxu0
  %v8596 = vpop.f32.mrf.mxu0
  %v8597 = vadd.f32 %v8487, %v8596
  %v8598 = vpop.f32.mrf.mxu0
  %8599 = vdwg.mxu0
  %v8600 = vadd.f32 %v8562, %v8254
  %v8601 = vadd.f32 %v8565, %v8255
  %v8602 = vadd.f32 %v8570, %v8256
  %v8603 = vadd.f32 %v8573, %v8257
  %v8604 = vadd.f32 %v8578, %v8258
  %v8605 = vadd.f32 %v8581, %v8259
  %v8606 = vadd.f32 %v8586, %v8260
  %v8607 = vadd.f32 %v8589, %v8261
  %v8608 = vadd.f32 %v8594, %v8262
  %v8609 = vadd.f32 %v8597, %v8263
  %v8610 = vld [vmem:[%s5 + $0x24] sm:$0x1]
  %v8611 = vld [vmem:[%s5 + $0x25] sm:$0x1]
  %v8612 = vsel %vm79, %v8600, 0.0
  %8613 = vadd.xlane.f32.xlu0 %v8612
  %v8614 = vpop.xlane.xlu0 %8613
  %v8615 = vsel %vm79, %v8601, 0.0
  %8616 = vadd.xlane.f32.xlu0 %v8615
  %v8617 = vpop.xlane.xlu0 %8616
  %v8618 = vsel %vm79, %v8602, 0.0
  %8619 = vadd.xlane.f32.xlu0 %v8618
  %v8620 = vpop.xlane.xlu0 %8619
  %v8621 = vsel %vm79, %v8603, 0.0
  %8622 = vadd.xlane.f32.xlu0 %v8621
  %v8623 = vpop.xlane.xlu0 %8622
  %v8624 = vsel %vm79, %v8604, 0.0
  %8625 = vadd.xlane.f32.xlu0 %v8624
  %v8626 = vpop.xlane.xlu0 %8625
  %v8627 = vsel %vm79, %v8605, 0.0
  %8628 = vadd.xlane.f32.xlu0 %v8627
  %v8629 = vpop.xlane.xlu0 %8628
  %v8630 = vsel %vm79, %v8606, 0.0
  %8631 = vadd.xlane.f32.xlu0 %v8630
  %v8632 = vpop.xlane.xlu0 %8631
  %v8633 = vsel %vm79, %v8607, 0.0
  %8634 = vadd.xlane.f32.xlu0 %v8633
  %v8635 = vpop.xlane.xlu0 %8634
  %v8636 = vsel %vm79, %v8608, 0.0
  %8637 = vadd.xlane.f32.xlu0 %v8636
  %v8638 = vpop.xlane.xlu0 %8637
  %v8639 = vsel %vm79, %v8609, 0.0
  %8640 = vadd.xlane.f32.xlu0 %v8639
  %v8641 = vpop.xlane.xlu0 %8640
  %v8642 = vmul.f32 %v8614, %v86
  %v8643 = vmul.f32 %v8617, %v86
  %v8644 = vmul.f32 %v8620, %v86
  %v8645 = vmul.f32 %v8623, %v86
  %v8646 = vmul.f32 %v8626, %v86
  %v8647 = vmul.f32 %v8629, %v86
  %v8648 = vmul.f32 %v8632, %v86
  %v8649 = vmul.f32 %v8635, %v86
  %v8650 = vmul.f32 %v8638, %v86
  %v8651 = vmul.f32 %v8641, %v86
  %v8652 = vsub.f32 %v8600, %v8642
  %v8653 = vsub.f32 %v8601, %v8643
  %v8654 = vsub.f32 %v8602, %v8644
  %v8655 = vsub.f32 %v8603, %v8645
  %v8656 = vsub.f32 %v8604, %v8646
  %v8657 = vsub.f32 %v8605, %v8647
  %v8658 = vsub.f32 %v8606, %v8648
  %v8659 = vsub.f32 %v8607, %v8649
  %v8660 = vsub.f32 %v8608, %v8650
  %v8661 = vsub.f32 %v8609, %v8651
  %v8662 = vmul.f32 %v8652, %v8652
  %v8663 = vmul.f32 %v8653, %v8653
  %v8664 = vmul.f32 %v8654, %v8654
  %v8665 = vmul.f32 %v8655, %v8655
  %v8666 = vmul.f32 %v8656, %v8656
  %v8667 = vmul.f32 %v8657, %v8657
  %v8668 = vmul.f32 %v8658, %v8658
  %v8669 = vmul.f32 %v8659, %v8659
  %v8670 = vmul.f32 %v8660, %v8660
  %v8671 = vmul.f32 %v8661, %v8661
  %v8672 = vsel %vm79, %v8662, 0.0
  %8673 = vadd.xlane.f32.xlu0 %v8672
  %v8674 = vpop.xlane.xlu0 %8673
  %v8675 = vsel %vm79, %v8663, 0.0
  %8676 = vadd.xlane.f32.xlu0 %v8675
  %v8677 = vpop.xlane.xlu0 %8676
  %v8678 = vsel %vm79, %v8664, 0.0
  %8679 = vadd.xlane.f32.xlu0 %v8678
  %v8680 = vpop.xlane.xlu0 %8679
  %v8681 = vsel %vm79, %v8665, 0.0
  %8682 = vadd.xlane.f32.xlu0 %v8681
  %v8683 = vpop.xlane.xlu0 %8682
  %v8684 = vsel %vm79, %v8666, 0.0
  %8685 = vadd.xlane.f32.xlu0 %v8684
  %v8686 = vpop.xlane.xlu0 %8685
  %v8687 = vsel %vm79, %v8667, 0.0
  %8688 = vadd.xlane.f32.xlu0 %v8687
  %v8689 = vpop.xlane.xlu0 %8688
  %v8690 = vsel %vm79, %v8668, 0.0
  %8691 = vadd.xlane.f32.xlu0 %v8690
  %v8692 = vpop.xlane.xlu0 %8691
  %v8693 = vsel %vm79, %v8669, 0.0
  %8694 = vadd.xlane.f32.xlu0 %v8693
  %v8695 = vpop.xlane.xlu0 %8694
  %v8696 = vsel %vm79, %v8670, 0.0
  %8697 = vadd.xlane.f32.xlu0 %v8696
  %v8698 = vpop.xlane.xlu0 %8697
  %v8699 = vsel %vm79, %v8671, 0.0
  %8700 = vadd.xlane.f32.xlu0 %v8699
  %v8701 = vpop.xlane.xlu0 %8700
  %v8702 = vmul.f32 %v8674, %v86
  %v8703 = vmul.f32 %v8677, %v86
  %v8704 = vmul.f32 %v8680, %v86
  %v8705 = vmul.f32 %v8683, %v86
  %v8706 = vmul.f32 %v8686, %v86
  %v8707 = vmul.f32 %v8689, %v86
  %v8708 = vmul.f32 %v8692, %v86
  %v8709 = vmul.f32 %v8695, %v86
  %v8710 = vmul.f32 %v8698, %v86
  %v8711 = vmul.f32 %v8701, %v86
  %v8712 = vadd.f32 %v8702, 1e-12
  %v8713 = vadd.f32 %v8703, 1e-12
  %v8714 = vadd.f32 %v8704, 1e-12
  %v8715 = vadd.f32 %v8705, 1e-12
  %v8716 = vadd.f32 %v8706, 1e-12
  %v8717 = vadd.f32 %v8707, 1e-12
  %v8718 = vadd.f32 %v8708, 1e-12
  %v8719 = vadd.f32 %v8709, 1e-12
  %v8720 = vadd.f32 %v8710, 1e-12
  %v8721 = vadd.f32 %v8711, 1e-12
  %v8722 = vrsqrt.pop %v8712
  %v8723 = vrsqrt.pop %v8713
  %v8724 = vrsqrt.pop %v8714
  %v8725 = vrsqrt.pop %v8715
  %v8726 = vrsqrt.pop %v8716
  %v8727 = vrsqrt.pop %v8717
  %v8728 = vrsqrt.pop %v8718
  %v8729 = vrsqrt.pop %v8719
  %v8730 = vrsqrt.pop %v8720
  %v8731 = vrsqrt.pop %v8721
  %v8732 = vmul.f32 %v8652, %v8722
  %v8733 = vmul.f32 %v8653, %v8723
  %v8734 = vmul.f32 %v8654, %v8724
  %v8735 = vmul.f32 %v8655, %v8725
  %v8736 = vmul.f32 %v8656, %v8726
  %v8737 = vmul.f32 %v8657, %v8727
  %v8738 = vmul.f32 %v8658, %v8728
  %v8739 = vmul.f32 %v8659, %v8729
  %v8740 = vmul.f32 %v8660, %v8730
  %v8741 = vmul.f32 %v8661, %v8731
  %v8742 = vlaneseq
  %v8743 = vshrl.u32 %v8742, 7
  %v8744 = vsub.s32 0, %v8743
  %v8745 = vrot.slane %v8610, %v8744
  %v8746 = vmul.f32 %v8732, %v8745
  %v8747 = vmul.f32 %v8733, %v8745
  %v8748 = vmul.f32 %v8734, %v8745
  %v8749 = vmul.f32 %v8735, %v8745
  %v8750 = vmul.f32 %v8736, %v8745
  %v8751 = vmul.f32 %v8737, %v8745
  %v8752 = vmul.f32 %v8738, %v8745
  %v8753 = vmul.f32 %v8739, %v8745
  %v8754 = vmul.f32 %v8740, %v8745
  %v8755 = vmul.f32 %v8741, %v8745
  %v8756 = vlaneseq
  %v8757 = vshrl.u32 %v8756, 7
  %v8758 = vsub.s32 0, %v8757
  %v8759 = vrot.slane %v8611, %v8758
  %v8760 = vadd.f32 %v8746, %v8759
  %v8761 = vadd.f32 %v8747, %v8759
  %v8762 = vadd.f32 %v8748, %v8759
  %v8763 = vadd.f32 %v8749, %v8759
  %v8764 = vadd.f32 %v8750, %v8759
  %v8765 = vadd.f32 %v8751, %v8759
  %v8766 = vadd.f32 %v8752, %v8759
  %v8767 = vadd.f32 %v8753, %v8759
  %v8768 = vadd.f32 %v8754, %v8759
  %v8769 = vadd.f32 %v8755, %v8759
  %v8770 = vpack.c.bf16 %v8760, %v8760
  %v8771 = vpack.c.bf16 %v8761, %v8761
  %v8772 = vpack.c.bf16 %v8762, %v8762
  %v8773 = vpack.c.bf16 %v8763, %v8763
  %v8774 = vpack.c.bf16 %v8764, %v8764
  %v8775 = vpack.c.bf16 %v8765, %v8765
  %v8776 = vpack.c.bf16 %v8766, %v8766
  %v8777 = vpack.c.bf16 %v8767, %v8767
  %v8778 = vpack.c.bf16 %v8768, %v8768
  %v8779 = vpack.c.bf16 %v8769, %v8769
  %v8780 = vld [vmem:[%s5 + $0x15] sm:$0x1]
  %v8781 = vlaneseq
  %v8782 = vshrl.u32 %v8781, 7
  %v8783 = vsub.s32 0, %v8782
  %v8784 = vrot.slane %v8780, %v8783
  %v8795 = vunpack.c.l.b16 %v8770
  %v8796 = vunpack.c.l.b16 %v8771
  %v8797 = vunpack.c.l.b16 %v8772
  %v8798 = vunpack.c.l.b16 %v8773
  %v8799 = vunpack.c.l.b16 %v8774
  %v8800 = vunpack.c.l.b16 %v8775
  %v8801 = vunpack.c.l.b16 %v8776
  %v8802 = vunpack.c.l.b16 %v8777
  %v8803 = vunpack.c.l.b16 %v8778
  %v8804 = vunpack.c.l.b16 %v8779
  %v8805 = vrot.slane %v8796, 7
  %v8806 = vsel %vm1869, %v8805, %v8795
  %v8807 = vrot.slane %v8797, 6
  %vm8808 = vcmask 1042434
  %v8809 = vsel %vm8808, %v8807, %v8806
  %v8810 = vrot.slane %v8798, 5
  %vm8811 = vcmask 1043459
  %v8812 = vsel %vm8811, %v8810, %v8809
  %v8813 = vrot.slane %v8799, 4
  %vm8814 = vcmask 1044484
  %v8815 = vsel %vm8814, %v8813, %v8812
  %v8816 = vrot.slane %v8800, 3
  %vm8817 = vcmask 1045509
  %v8818 = vsel %vm8817, %v8816, %v8815
  %v8819 = vrot.slane %v8801, 2
  %vm8820 = vcmask 1046534
  %v8821 = vsel %vm8820, %v8819, %v8818
  %v8822 = vrot.slane %v8802, 1
  %vm8823 = vcmask 1047559
  %v8824 = vsel %vm8823, %v8822, %v8821
  %v8825 = vrot.slane %v8804, 7
  %v8826 = vsel %vm1869, %v8825, %v8803
  %v8827 = vpack.c.b16 %v8826, %v8824
  %v8832 = vunpack.c.l.b16 %v58
  %v8833 = vunpack.c.l.b16 %v59
  %v8834 = vunpack.c.l.b16 %v60
  %v8835 = vunpack.c.l.b16 %v61
  %v8836 = vpack.c.b16 %v8833, %v8832
  %v8837 = vpack.c.b16 %v8835, %v8834
  %v8841 = vsel %vm79, %v8827, 0
  %8843 = vmatprep.subr.bf16.mxu0 0
  %8844 = vmatpush1.bf16.msra.mxu0 0
  %8845 = vmatprep.subr.bf16.mxu0 0
  %8846 = vmatpush1.bf16.msra.mxu0 0
  %8847 = vmatprep.subr.bf16.mxu0 0
  %8848 = vmatpush1.bf16.msra.mxu0 0
  %8849 = vmatprep.subr.bf16.mxu0 0
  %8850 = vmatpush1.bf16.msra.mxu0 0
  %8851 = vmatprep.subr.bf16.mxu0 0
  %8852 = vmatpush1.bf16.msra.mxu0 0
  %8853 = vmatprep.subr.bf16.mxu0 0
  %8854 = vmatpush1.bf16.msra.mxu0 0
  %8855 = vmatprep.subr.bf16.mxu0 0
  %8856 = vmatpush1.bf16.msra.mxu0 %v8837
  %8857 = vmatprep.subr.bf16.mxu0 0
  %8858 = vmatpush1.bf16.msra.mxu0 %v8836
  %8859 = vmatprep.subr.bf16.mxu0 0
  %8860 = vmatpush2.bf16.msra.mxu0 0
  %8861 = vmatprep.subr.bf16.mxu0 0
  %8862 = vmatpush2.bf16.msra.mxu0 0
  %8863 = vmatprep.subr.bf16.mxu0 0
  %8864 = vmatpush2.bf16.msra.mxu0 0
  %8865 = vmatprep.subr.bf16.mxu0 0
  %8866 = vmatpush2.bf16.msra.mxu0 0
  %8867 = vmatprep.subr.bf16.mxu0 0
  %8868 = vmatpush2.bf16.msra.mxu0 0
  %8869 = vmatprep.subr.bf16.mxu0 0
  %8870 = vmatpush2.bf16.msra.mxu0 0
  %8871 = vmatprep.subr.bf16.mxu0 0
  %8872 = vmatpush2.bf16.msra.mxu0 0
  %8873 = vmatprep.subr.bf16.mxu0 0
  %8874 = vmatpush2.bf16.msra.mxu0 0
  %8875 = vmatprep.mubr.bf16.mxu0 0
  %8876 = vmatmul.mubr.bf16.gmra.mxu0 %v8841
  %v8877 = vpop.f32.mrf.mxu0
  %v8878 = vadd.f32 %v8784, %v8877
  %v8879 = vpop.f32.mrf.mxu0
  %v8880 = vpop.f32.mrf.mxu0
  %v8881 = vadd.f32 %v8784, %v8880
  %v8882 = vpop.f32.mrf.mxu0
  %8883 = vdwg.mxu0
  %v8884 = vtanh.pop %v8878
  %v8885 = vtanh.pop %v8881
  %vm8886 = vcmp.ne.f32.partialorder %v8884, %v8884
  %vm8887 = vcmp.ne.f32.partialorder %v8885, %v8885
  %v8888 = vsel %vm8886, 0.0, %v8884
  %v8889 = vsel %vm8887, 0.0, %v8885
  %v8890 = vmax.f32 %v8888, -3.4028235e+38
  %v8891 = vmax.f32 %v8889, -3.4028235e+38
  %v8892 = vmin.f32 %v8890, 3.4028235e+38
  %v8893 = vmin.f32 %v8891, 3.4028235e+38
  %v8894 = vld [vmem:[%s4] sm:$0xff]
  %v8895 = vld [vmem:[%s4 + $0x8] sm:$0x3]
  %8897 = vset.pattern.permute.xlu0 0
  %8898 = vperm.xlu0 %8897, %v8894
  %v8899 = vpop.permute.xlu0 %8898
  %8902 = vset.pattern.permute.xlu0 0
  %8903 = vperm.xlu0 %8902, %v8895
  %v8904 = vpop.permute.xlu0 %8903
  %v8906 = vmul.f32 %v8892, %v8899
  %v8907 = vmul.f32 %v8893, %v8904
  %v8908 = vpack.c.bf16 %v8907, %v8906
  %v8909 = vld [vmem:[%s5 + $0x29] sm:$0x1]
  %v8910 = vlaneseq
  %v8911 = vshrl.u32 %v8910, 7
  %v8912 = vsub.s32 0, %v8911
  %v8913 = vrot.slane %v8909, %v8912
  %v8918 = vunpack.c.l.b16 %v66
  %v8919 = vunpack.c.l.b16 %v67
  %v8920 = vunpack.c.l.b16 %v68
  %v8921 = vunpack.c.l.b16 %v69
  %v8922 = vpack.c.b16 %v8919, %v8918
  %v8923 = vpack.c.b16 %v8921, %v8920
  %v8927 = vsel %vm79, %v8908, 0
  %8929 = vmatprep.subr.bf16.mxu0 0
  %8930 = vmatpush1.bf16.msra.mxu0 0
  %8931 = vmatprep.subr.bf16.mxu0 0
  %8932 = vmatpush1.bf16.msra.mxu0 0
  %8933 = vmatprep.subr.bf16.mxu0 0
  %8934 = vmatpush1.bf16.msra.mxu0 0
  %8935 = vmatprep.subr.bf16.mxu0 0
  %8936 = vmatpush1.bf16.msra.mxu0 0
  %8937 = vmatprep.subr.bf16.mxu0 0
  %8938 = vmatpush1.bf16.msra.mxu0 0
  %8939 = vmatprep.subr.bf16.mxu0 0
  %8940 = vmatpush1.bf16.msra.mxu0 0
  %8941 = vmatprep.subr.bf16.mxu0 0
  %8942 = vmatpush1.bf16.msra.mxu0 %v8923
  %8943 = vmatprep.subr.bf16.mxu0 0
  %8944 = vmatpush1.bf16.msra.mxu0 %v8922
  %8945 = vmatprep.subr.bf16.mxu0 0
  %8946 = vmatpush2.bf16.msra.mxu0 0
  %8947 = vmatprep.subr.bf16.mxu0 0
  %8948 = vmatpush2.bf16.msra.mxu0 0
  %8949 = vmatprep.subr.bf16.mxu0 0
  %8950 = vmatpush2.bf16.msra.mxu0 0
  %8951 = vmatprep.subr.bf16.mxu0 0
  %8952 = vmatpush2.bf16.msra.mxu0 0
  %8953 = vmatprep.subr.bf16.mxu0 0
  %8954 = vmatpush2.bf16.msra.mxu0 0
  %8955 = vmatprep.subr.bf16.mxu0 0
  %8956 = vmatpush2.bf16.msra.mxu0 0
  %8957 = vmatprep.subr.bf16.mxu0 0
  %8958 = vmatpush2.bf16.msra.mxu0 0
  %8959 = vmatprep.subr.bf16.mxu0 0
  %8960 = vmatpush2.bf16.msra.mxu0 0
  %8961 = vmatprep.mubr.bf16.mxu0 0
  %8962 = vmatmul.mubr.bf16.gmra.mxu0 %v8927
  %v8963 = vpop.f32.mrf.mxu0
  %v8964 = vadd.f32 %v8913, %v8963
  %v8965 = vpop.f32.mrf.mxu0
  %v8966 = vpop.f32.mrf.mxu0
  %v8967 = vadd.f32 %v8913, %v8966
  %v8968 = vpop.f32.mrf.mxu0
  %8969 = vdwg.mxu0
  %v8970 = vld [vmem:[%s5 + $0x2a] sm:$0x1]
  %v8971 = vld [vmem:[%s5 + $0x2b] sm:$0x1]
  %v8972 = vld [vmem:[%s5 + $0x2c] sm:$0x1]
  %v8973 = vld [vmem:[%s5 + $0x2d] sm:$0x1]
  %v8978 = vunpack.c.l.b16 %v70
  %v8979 = vunpack.c.l.b16 %v71
  %v8980 = vunpack.c.l.b16 %v72
  %v8981 = vunpack.c.l.b16 %v73
  %v8982 = vpack.c.b16 %v8979, %v8978
  %v8983 = vpack.c.b16 %v8981, %v8980
  %v8987 = vsel %vm79, 0, 0
  %8989 = vmatprep.subr.bf16.mxu0 0
  %8990 = vmatpush1.bf16.msra.mxu0 0
  %8991 = vmatprep.subr.bf16.mxu0 0
  %8992 = vmatpush1.bf16.msra.mxu0 0
  %8993 = vmatprep.subr.bf16.mxu0 0
  %8994 = vmatpush1.bf16.msra.mxu0 0
  %8995 = vmatprep.subr.bf16.mxu0 0
  %8996 = vmatpush1.bf16.msra.mxu0 0
  %8997 = vmatprep.subr.bf16.mxu0 0
  %8998 = vmatpush1.bf16.msra.mxu0 0
  %8999 = vmatprep.subr.bf16.mxu0 0
  %9000 = vmatpush1.bf16.msra.mxu0 0
  %9001 = vmatprep.subr.bf16.mxu0 0
  %9002 = vmatpush1.bf16.msra.mxu0 %v8983
  %9003 = vmatprep.subr.bf16.mxu0 0
  %9004 = vmatpush1.bf16.msra.mxu0 %v8982
  %9005 = vmatprep.subr.bf16.mxu0 0
  %9006 = vmatpush2.bf16.msra.mxu0 0
  %9007 = vmatprep.subr.bf16.mxu0 0
  %9008 = vmatpush2.bf16.msra.mxu0 0
  %9009 = vmatprep.subr.bf16.mxu0 0
  %9010 = vmatpush2.bf16.msra.mxu0 0
  %9011 = vmatprep.subr.bf16.mxu0 0
  %9012 = vmatpush2.bf16.msra.mxu0 0
  %9013 = vmatprep.subr.bf16.mxu0 0
  %9014 = vmatpush2.bf16.msra.mxu0 0
  %9015 = vmatprep.subr.bf16.mxu0 0
  %9016 = vmatpush2.bf16.msra.mxu0 0
  %9017 = vmatprep.subr.bf16.mxu0 0
  %9018 = vmatpush2.bf16.msra.mxu0 0
  %9019 = vmatprep.subr.bf16.mxu0 0
  %9020 = vmatpush2.bf16.msra.mxu0 0
  %9021 = vmatprep.mubr.bf16.mxu0 0
  %9022 = vmatmul.mubr.bf16.gmra.mxu0 %v8987
  %v9023 = vpop.f32.mrf.mxu0
  %v9024 = vadd.f32 0.0, %v9023
  %v9025 = vpop.f32.mrf.mxu0
  %v9026 = vpop.f32.mrf.mxu0
  %v9027 = vpop.f32.mrf.mxu0
  %9028 = vdwg.mxu0
  %v9029 = vadd.f32 %v8964, %v9024
  %v9030 = vxor.u32 %v9029, 2147483648
  %v9031 = vmul.f32 %v9030, 1.442695
  %v9032 = vpow.pop %v9031
  %v9033 = vadd.f32 %v9032, 1.0
  %v9034 = vrcp.pop %v9033
  %v9035 = vmul.f32 1.0, %v9034
  %v9036 = vtanh.pop %v9029
  %v9037 = vmul.f32 %v9035, 0.0
  %9039 = vrot.lane.b32.xlu0 %v9036, 64
  %v9040 = vpop.permute.xlu0 %9039
  %v9042 = vmul.f32 %v9035, %v9040
  %9044 = vrot.lane.b32.xlu0 %v9042, 32
  %v9045 = vpop.permute.xlu0 %9044
  %v9047 = vadd.f32 %v9037, %v9045
  %v9048 = vtanh.pop %v9047
  %9050 = vrot.lane.b32.xlu0 %v9048, 64
  %v9051 = vpop.permute.xlu0 %9050
  %v9053 = vmul.f32 %v9035, %v9051
  %v9054 = vmul.f32 %v9053, %v8899
  %v9055 = vpack.c.bf16 %v9054, %v9054
  %v9056 = vlaneseq
  %v9057 = vshrl.u32 %v9056, 7
  %v9058 = vsub.s32 0, %v9057
  %v9059 = vrot.slane %v8970, %v9058
  %9061 = vrot.lane.b32.xlu0 %v9055, 32
  %v9062 = vpop.permute.xlu0 %9061
  %v9067 = vunpack.c.l.b16 %v62
  %v9068 = vunpack.c.l.b16 %v63
  %v9069 = vunpack.c.l.b16 %v64
  %v9070 = vunpack.c.l.b16 %v65
  %v9071 = vpack.c.b16 %v9068, %v9067
  %v9072 = vpack.c.b16 %v9070, %v9069
  %v9076 = vsel %vm79, %v9062, 0
  %9078 = vmatprep.subr.bf16.mxu0 0
  %9079 = vmatpush1.bf16.msra.mxu0 0
  %9080 = vmatprep.subr.bf16.mxu0 0
  %9081 = vmatpush1.bf16.msra.mxu0 0
  %9082 = vmatprep.subr.bf16.mxu0 0
  %9083 = vmatpush1.bf16.msra.mxu0 0
  %9084 = vmatprep.subr.bf16.mxu0 0
  %9085 = vmatpush1.bf16.msra.mxu0 0
  %9086 = vmatprep.subr.bf16.mxu0 0
  %9087 = vmatpush1.bf16.msra.mxu0 0
  %9088 = vmatprep.subr.bf16.mxu0 0
  %9089 = vmatpush1.bf16.msra.mxu0 0
  %9090 = vmatprep.subr.bf16.mxu0 0
  %9091 = vmatpush1.bf16.msra.mxu0 %v9072
  %9092 = vmatprep.subr.bf16.mxu0 0
  %9093 = vmatpush1.bf16.msra.mxu0 %v9071
  %9094 = vmatprep.subr.bf16.mxu0 0
  %9095 = vmatpush2.bf16.msra.mxu0 0
  %9096 = vmatprep.subr.bf16.mxu0 0
  %9097 = vmatpush2.bf16.msra.mxu0 0
  %9098 = vmatprep.subr.bf16.mxu0 0
  %9099 = vmatpush2.bf16.msra.mxu0 0
  %9100 = vmatprep.subr.bf16.mxu0 0
  %9101 = vmatpush2.bf16.msra.mxu0 0
  %9102 = vmatprep.subr.bf16.mxu0 0
  %9103 = vmatpush2.bf16.msra.mxu0 0
  %9104 = vmatprep.subr.bf16.mxu0 0
  %9105 = vmatpush2.bf16.msra.mxu0 0
  %9106 = vmatprep.subr.bf16.mxu0 0
  %9107 = vmatpush2.bf16.msra.mxu0 0
  %9108 = vmatprep.subr.bf16.mxu0 0
  %9109 = vmatpush2.bf16.msra.mxu0 0
  %9110 = vmatprep.mubr.bf16.mxu0 0
  %9111 = vmatmul.mubr.bf16.gmra.mxu0 %v9076
  %v9112 = vpop.f32.mrf.mxu0
  %v9113 = vadd.f32 %v9059, %v9112
  %v9114 = vpop.f32.mrf.mxu0
  %v9115 = vpop.f32.mrf.mxu0
  %v9116 = vpop.f32.mrf.mxu0
  %9117 = vdwg.mxu0
  %v9118 = vtanh.pop %v9113
  %v9119 = vlaneseq
  %v9120 = vshrl.u32 %v9119, 7
  %v9121 = vsub.s32 0, %v9120
  %v9122 = vrot.slane %v8971, %v9121
  %v9123 = vmul.f32 %v9118, %v9122
  %v9124 = vsel %vm1954, %v9123, 0.0
  %9125 = vadd.xlane.f32.xlu0 %v9124
  %v9126 = vpop.xlane.xlu0 %9125
  %v9127 = vpack.c.bf16 %v9053, %v9053
  %9129 = vrot.lane.b32.xlu0 %v9127, 32
  %v9130 = vpop.permute.xlu0 %9129
  %v9132 = vsel %vm79, %v9130, 0
  %9134 = vmatprep.subr.bf16.mxu0 0
  %9135 = vmatpush1.bf16.msra.mxu0 0
  %9136 = vmatprep.subr.bf16.mxu0 0
  %9137 = vmatpush1.bf16.msra.mxu0 0
  %9138 = vmatprep.subr.bf16.mxu0 0
  %9139 = vmatpush1.bf16.msra.mxu0 0
  %9140 = vmatprep.subr.bf16.mxu0 0
  %9141 = vmatpush1.bf16.msra.mxu0 0
  %9142 = vmatprep.subr.bf16.mxu0 0
  %9143 = vmatpush1.bf16.msra.mxu0 0
  %9144 = vmatprep.subr.bf16.mxu0 0
  %9145 = vmatpush1.bf16.msra.mxu0 0
  %9146 = vmatprep.subr.bf16.mxu0 0
  %9147 = vmatpush1.bf16.msra.mxu0 %v8983
  %9148 = vmatprep.subr.bf16.mxu0 0
  %9149 = vmatpush1.bf16.msra.mxu0 %v8982
  %9150 = vmatprep.subr.bf16.mxu0 0
  %9151 = vmatpush2.bf16.msra.mxu0 0
  %9152 = vmatprep.subr.bf16.mxu0 0
  %9153 = vmatpush2.bf16.msra.mxu0 0
  %9154 = vmatprep.subr.bf16.mxu0 0
  %9155 = vmatpush2.bf16.msra.mxu0 0
  %9156 = vmatprep.subr.bf16.mxu0 0
  %9157 = vmatpush2.bf16.msra.mxu0 0
  %9158 = vmatprep.subr.bf16.mxu0 0
  %9159 = vmatpush2.bf16.msra.mxu0 0
  %9160 = vmatprep.subr.bf16.mxu0 0
  %9161 = vmatpush2.bf16.msra.mxu0 0
  %9162 = vmatprep.subr.bf16.mxu0 0
  %9163 = vmatpush2.bf16.msra.mxu0 0
  %9164 = vmatprep.subr.bf16.mxu0 0
  %9165 = vmatpush2.bf16.msra.mxu0 0
  %9166 = vmatprep.mubr.bf16.mxu0 0
  %9167 = vmatmul.mubr.bf16.gmra.mxu0 %v9132
  %v9168 = vpop.f32.mrf.mxu0
  %v9169 = vadd.f32 0.0, %v9168
  %v9170 = vpop.f32.mrf.mxu0
  %v9171 = vpop.f32.mrf.mxu0
  %v9172 = vpop.f32.mrf.mxu0
  %9173 = vdwg.mxu0
  %v9175 = vrot.slane %v9169, 6
  %v9177 = vadd.f32 %v8964, %v9175
  %v9178 = vxor.u32 %v9177, 2147483648
  %v9179 = vmul.f32 %v9178, 1.442695
  %v9180 = vpow.pop %v9179
  %v9181 = vadd.f32 %v9180, 1.0
  %v9182 = vrcp.pop %v9181
  %v9183 = vmul.f32 1.0, %v9182
  %v9184 = vtanh.pop %v9177
  %v9186 = vrot.slane %v9047, 6
  %v9188 = vmul.f32 %v9183, %v9186
  %9190 = vrot.lane.b32.xlu0 %v9184, 64
  %v9191 = vpop.permute.xlu0 %9190
  %v9193 = vmul.f32 %v9183, %v9191
  %9195 = vrot.lane.b32.xlu0 %v9193, 32
  %v9196 = vpop.permute.xlu0 %9195
  %v9198 = vadd.f32 %v9188, %v9196
  %v9199 = vtanh.pop %v9198
  %9201 = vrot.lane.b32.xlu0 %v9199, 64
  %v9202 = vpop.permute.xlu0 %9201
  %v9204 = vmul.f32 %v9183, %v9202
  %v9205 = vmul.f32 %v9204, %v8899
  %v9206 = vpack.c.bf16 %v9205, %v9205
  %v9208 = vrot.slane %v9206, 1
  %9209 = vrot.lane.b32.xlu0 %v9208, 32
  %v9210 = vpop.permute.xlu0 %9209
  %v9212 = vsel %vm79, %v9210, 0
  %9214 = vmatprep.subr.bf16.mxu0 0
  %9215 = vmatpush1.bf16.msra.mxu0 0
  %9216 = vmatprep.subr.bf16.mxu0 0
  %9217 = vmatpush1.bf16.msra.mxu0 0
  %9218 = vmatprep.subr.bf16.mxu0 0
  %9219 = vmatpush1.bf16.msra.mxu0 0
  %9220 = vmatprep.subr.bf16.mxu0 0
  %9221 = vmatpush1.bf16.msra.mxu0 0
  %9222 = vmatprep.subr.bf16.mxu0 0
  %9223 = vmatpush1.bf16.msra.mxu0 0
  %9224 = vmatprep.subr.bf16.mxu0 0
  %9225 = vmatpush1.bf16.msra.mxu0 0
  %9226 = vmatprep.subr.bf16.mxu0 0
  %9227 = vmatpush1.bf16.msra.mxu0 %v9072
  %9228 = vmatprep.subr.bf16.mxu0 0
  %9229 = vmatpush1.bf16.msra.mxu0 %v9071
  %9230 = vmatprep.subr.bf16.mxu0 0
  %9231 = vmatpush2.bf16.msra.mxu0 0
  %9232 = vmatprep.subr.bf16.mxu0 0
  %9233 = vmatpush2.bf16.msra.mxu0 0
  %9234 = vmatprep.subr.bf16.mxu0 0
  %9235 = vmatpush2.bf16.msra.mxu0 0
  %9236 = vmatprep.subr.bf16.mxu0 0
  %9237 = vmatpush2.bf16.msra.mxu0 0
  %9238 = vmatprep.subr.bf16.mxu0 0
  %9239 = vmatpush2.bf16.msra.mxu0 0
  %9240 = vmatprep.subr.bf16.mxu0 0
  %9241 = vmatpush2.bf16.msra.mxu0 0
  %9242 = vmatprep.subr.bf16.mxu0 0
  %9243 = vmatpush2.bf16.msra.mxu0 0
  %9244 = vmatprep.subr.bf16.mxu0 0
  %9245 = vmatpush2.bf16.msra.mxu0 0
  %9246 = vmatprep.mubr.bf16.mxu0 0
  %9247 = vmatmul.mubr.bf16.gmra.mxu0 %v9212
  %v9248 = vpop.f32.mrf.mxu0
  %v9249 = vadd.f32 %v9059, %v9248
  %v9250 = vpop.f32.mrf.mxu0
  %v9251 = vpop.f32.mrf.mxu0
  %v9252 = vpop.f32.mrf.mxu0
  %9253 = vdwg.mxu0
  %v9254 = vtanh.pop %v9249
  %v9255 = vmul.f32 %v9254, %v9122
  %v9256 = vsel %vm1954, %v9255, 0.0
  %9257 = vadd.xlane.f32.xlu0 %v9256
  %v9258 = vpop.xlane.xlu0 %9257
  %v9259 = vpack.c.bf16 %v9204, %v9204
  %v9261 = vrot.slane %v9259, 1
  %9262 = vrot.lane.b32.xlu0 %v9261, 32
  %v9263 = vpop.permute.xlu0 %9262
  %v9265 = vsel %vm79, %v9263, 0
  %9267 = vmatprep.subr.bf16.mxu0 0
  %9268 = vmatpush1.bf16.msra.mxu0 0
  %9269 = vmatprep.subr.bf16.mxu0 0
  %9270 = vmatpush1.bf16.msra.mxu0 0
  %9271 = vmatprep.subr.bf16.mxu0 0
  %9272 = vmatpush1.bf16.msra.mxu0 0
  %9273 = vmatprep.subr.bf16.mxu0 0
  %9274 = vmatpush1.bf16.msra.mxu0 0
  %9275 = vmatprep.subr.bf16.mxu0 0
  %9276 = vmatpush1.bf16.msra.mxu0 0
  %9277 = vmatprep.subr.bf16.mxu0 0
  %9278 = vmatpush1.bf16.msra.mxu0 0
  %9279 = vmatprep.subr.bf16.mxu0 0
  %9280 = vmatpush1.bf16.msra.mxu0 %v8983
  %9281 = vmatprep.subr.bf16.mxu0 0
  %9282 = vmatpush1.bf16.msra.mxu0 %v8982
  %9283 = vmatprep.subr.bf16.mxu0 0
  %9284 = vmatpush2.bf16.msra.mxu0 0
  %9285 = vmatprep.subr.bf16.mxu0 0
  %9286 = vmatpush2.bf16.msra.mxu0 0
  %9287 = vmatprep.subr.bf16.mxu0 0
  %9288 = vmatpush2.bf16.msra.mxu0 0
  %9289 = vmatprep.subr.bf16.mxu0 0
  %9290 = vmatpush2.bf16.msra.mxu0 0
  %9291 = vmatprep.subr.bf16.mxu0 0
  %9292 = vmatpush2.bf16.msra.mxu0 0
  %9293 = vmatprep.subr.bf16.mxu0 0
  %9294 = vmatpush2.bf16.msra.mxu0 0
  %9295 = vmatprep.subr.bf16.mxu0 0
  %9296 = vmatpush2.bf16.msra.mxu0 0
  %9297 = vmatprep.subr.bf16.mxu0 0
  %9298 = vmatpush2.bf16.msra.mxu0 0
  %9299 = vmatprep.mubr.bf16.mxu0 0
  %9300 = vmatmul.mubr.bf16.gmra.mxu0 %v9265
  %v9301 = vpop.f32.mrf.mxu0
  %v9302 = vadd.f32 0.0, %v9301
  %v9303 = vpop.f32.mrf.mxu0
  %v9304 = vpop.f32.mrf.mxu0
  %v9305 = vpop.f32.mrf.mxu0
  %9306 = vdwg.mxu0
  %v9308 = vrot.slane %v9302, 4
  %v9310 = vadd.f32 %v8964, %v9308
  %v9311 = vxor.u32 %v9310, 2147483648
  %v9312 = vmul.f32 %v9311, 1.442695
  %v9313 = vpow.pop %v9312
  %v9314 = vadd.f32 %v9313, 1.0
  %v9315 = vrcp.pop %v9314
  %v9316 = vmul.f32 1.0, %v9315
  %v9317 = vtanh.pop %v9310
  %v9319 = vrot.slane %v9198, 6
  %v9321 = vmul.f32 %v9316, %v9319
  %9323 = vrot.lane.b32.xlu0 %v9317, 64
  %v9324 = vpop.permute.xlu0 %9323
  %v9326 = vmul.f32 %v9316, %v9324
  %9328 = vrot.lane.b32.xlu0 %v9326, 32
  %v9329 = vpop.permute.xlu0 %9328
  %v9331 = vadd.f32 %v9321, %v9329
  %v9332 = vtanh.pop %v9331
  %9334 = vrot.lane.b32.xlu0 %v9332, 64
  %v9335 = vpop.permute.xlu0 %9334
  %v9337 = vmul.f32 %v9316, %v9335
  %v9338 = vmul.f32 %v9337, %v8899
  %v9339 = vpack.c.bf16 %v9338, %v9338
  %v9341 = vrot.slane %v9339, 2
  %9342 = vrot.lane.b32.xlu0 %v9341, 32
  %v9343 = vpop.permute.xlu0 %9342
  %v9345 = vsel %vm79, %v9343, 0
  %9347 = vmatprep.subr.bf16.mxu0 0
  %9348 = vmatpush1.bf16.msra.mxu0 0
  %9349 = vmatprep.subr.bf16.mxu0 0
  %9350 = vmatpush1.bf16.msra.mxu0 0
  %9351 = vmatprep.subr.bf16.mxu0 0
  %9352 = vmatpush1.bf16.msra.mxu0 0
  %9353 = vmatprep.subr.bf16.mxu0 0
  %9354 = vmatpush1.bf16.msra.mxu0 0
  %9355 = vmatprep.subr.bf16.mxu0 0
  %9356 = vmatpush1.bf16.msra.mxu0 0
  %9357 = vmatprep.subr.bf16.mxu0 0
  %9358 = vmatpush1.bf16.msra.mxu0 0
  %9359 = vmatprep.subr.bf16.mxu0 0
  %9360 = vmatpush1.bf16.msra.mxu0 %v9072
  %9361 = vmatprep.subr.bf16.mxu0 0
  %9362 = vmatpush1.bf16.msra.mxu0 %v9071
  %9363 = vmatprep.subr.bf16.mxu0 0
  %9364 = vmatpush2.bf16.msra.mxu0 0
  %9365 = vmatprep.subr.bf16.mxu0 0
  %9366 = vmatpush2.bf16.msra.mxu0 0
  %9367 = vmatprep.subr.bf16.mxu0 0
  %9368 = vmatpush2.bf16.msra.mxu0 0
  %9369 = vmatprep.subr.bf16.mxu0 0
  %9370 = vmatpush2.bf16.msra.mxu0 0
  %9371 = vmatprep.subr.bf16.mxu0 0
  %9372 = vmatpush2.bf16.msra.mxu0 0
  %9373 = vmatprep.subr.bf16.mxu0 0
  %9374 = vmatpush2.bf16.msra.mxu0 0
  %9375 = vmatprep.subr.bf16.mxu0 0
  %9376 = vmatpush2.bf16.msra.mxu0 0
  %9377 = vmatprep.subr.bf16.mxu0 0
  %9378 = vmatpush2.bf16.msra.mxu0 0
  %9379 = vmatprep.mubr.bf16.mxu0 0
  %9380 = vmatmul.mubr.bf16.gmra.mxu0 %v9345
  %v9381 = vpop.f32.mrf.mxu0
  %v9382 = vadd.f32 %v9059, %v9381
  %v9383 = vpop.f32.mrf.mxu0
  %v9384 = vpop.f32.mrf.mxu0
  %v9385 = vpop.f32.mrf.mxu0
  %9386 = vdwg.mxu0
  %v9387 = vtanh.pop %v9382
  %v9388 = vmul.f32 %v9387, %v9122
  %v9389 = vsel %vm1954, %v9388, 0.0
  %9390 = vadd.xlane.f32.xlu0 %v9389
  %v9391 = vpop.xlane.xlu0 %9390
  %v9392 = vmax.f32 %v9126, %v9258
  %v9393 = vmax.f32 %v9392, %v9391
  %v9394 = vsub.f32 %v9126, %v9393
  %v9395 = vmul.f32 %v9394, 1.442695
  %v9396 = vpow.pop %v9395
  %v9397 = vsub.f32 %v9258, %v9393
  %v9398 = vmul.f32 %v9397, 1.442695
  %v9399 = vpow.pop %v9398
  %v9400 = vsub.f32 %v9391, %v9393
  %v9401 = vmul.f32 %v9400, 1.442695
  %v9402 = vpow.pop %v9401
  %v9403 = vadd.f32 %v9396, %v9399
  %v9404 = vadd.f32 %v9403, %v9402
  %v9405 = vrcp.pop %v9404
  %v9406 = vmul.f32 %v9396, %v9405
  %v9407 = vmul.f32 %v9054, %v9406
  %v9408 = vmul.f32 %v9399, %v9405
  %v9410 = vrot.slane %v9408, 6
  %v9412 = vmul.f32 %v9205, %v9410
  %v9414 = vrot.slane %v9412, 2
  %v9416 = vadd.f32 %v9407, %v9414
  %v9417 = vmul.f32 %v9402, %v9405
  %v9419 = vrot.slane %v9417, 4
  %v9421 = vmul.f32 %v9338, %v9419
  %v9423 = vrot.slane %v9421, 4
  %v9425 = vadd.f32 %v9416, %v9423
  %v9426 = vlaneseq
  %v9427 = vshrl.u32 %v9426, 7
  %v9428 = vsub.s32 0, %v9427
  %v9429 = vrot.slane %v8972, %v9428
  %9431 = vrot.lane.b32.xlu0 %v9429, 96
  %v9432 = vpop.permute.xlu0 %9431
  %v9434 = vmul.f32 %v9425, %v9432
  %9436 = vrot.lane.b32.xlu0 %v9434, 32
  %v9437 = vpop.permute.xlu0 %9436
  %v9439 = vsel %vm1954, %v9437, 0.0
  %9440 = vadd.xlane.f32.xlu0 %v9439
  %v9441 = vpop.xlane.xlu0 %9440
  %v9442 = vlaneseq
  %v9443 = vshrl.u32 %v9442, 7
  %v9444 = vsub.s32 0, %v9443
  %v9445 = vrot.slane %v8973, %v9444
  %v9446 = vadd.f32 %v9441, %v9445
  %v9447 = vxor.u32 %v9446, 2147483648
  %v9448 = vmul.f32 %v9447, 1.442695
  %v9449 = vpow.pop %v9448
  %v9450 = vadd.f32 %v9449, 1.0
  %v9451 = vrcp.pop %v9450
  %v9452 = vmul.f32 1.0, %v9451
  %v9453 = vadd.f32 %v1979, %v9452
  %v9455 = vrot.slane %v9024, 2
  %v9457 = vadd.f32 %v8964, %v9455
  %v9458 = vxor.u32 %v9457, 2147483648
  %v9459 = vmul.f32 %v9458, 1.442695
  %v9460 = vpow.pop %v9459
  %v9461 = vadd.f32 %v9460, 1.0
  %v9462 = vrcp.pop %v9461
  %v9463 = vmul.f32 1.0, %v9462
  %v9464 = vtanh.pop %v9457
  %v9465 = vmul.f32 %v9463, 0.0
  %9467 = vrot.lane.b32.xlu0 %v9464, 64
  %v9468 = vpop.permute.xlu0 %9467
  %v9470 = vmul.f32 %v9463, %v9468
  %9472 = vrot.lane.b32.xlu0 %v9470, 32
  %v9473 = vpop.permute.xlu0 %9472
  %v9475 = vadd.f32 %v9465, %v9473
  %v9476 = vtanh.pop %v9475
  %9478 = vrot.lane.b32.xlu0 %v9476, 64
  %v9479 = vpop.permute.xlu0 %9478
  %v9481 = vmul.f32 %v9463, %v9479
  %v9482 = vmul.f32 %v9481, %v8899
  %v9483 = vpack.c.bf16 %v9482, %v9482
  %v9485 = vrot.slane %v9483, 3
  %9486 = vrot.lane.b32.xlu0 %v9485, 32
  %v9487 = vpop.permute.xlu0 %9486
  %v9489 = vsel %vm79, %v9487, 0
  %9491 = vmatprep.subr.bf16.mxu0 0
  %9492 = vmatpush1.bf16.msra.mxu0 0
  %9493 = vmatprep.subr.bf16.mxu0 0
  %9494 = vmatpush1.bf16.msra.mxu0 0
  %9495 = vmatprep.subr.bf16.mxu0 0
  %9496 = vmatpush1.bf16.msra.mxu0 0
  %9497 = vmatprep.subr.bf16.mxu0 0
  %9498 = vmatpush1.bf16.msra.mxu0 0
  %9499 = vmatprep.subr.bf16.mxu0 0
  %9500 = vmatpush1.bf16.msra.mxu0 0
  %9501 = vmatprep.subr.bf16.mxu0 0
  %9502 = vmatpush1.bf16.msra.mxu0 0
  %9503 = vmatprep.subr.bf16.mxu0 0
  %9504 = vmatpush1.bf16.msra.mxu0 %v9072
  %9505 = vmatprep.subr.bf16.mxu0 0
  %9506 = vmatpush1.bf16.msra.mxu0 %v9071
  %9507 = vmatprep.subr.bf16.mxu0 0
  %9508 = vmatpush2.bf16.msra.mxu0 0
  %9509 = vmatprep.subr.bf16.mxu0 0
  %9510 = vmatpush2.bf16.msra.mxu0 0
  %9511 = vmatprep.subr.bf16.mxu0 0
  %9512 = vmatpush2.bf16.msra.mxu0 0
  %9513 = vmatprep.subr.bf16.mxu0 0
  %9514 = vmatpush2.bf16.msra.mxu0 0
  %9515 = vmatprep.subr.bf16.mxu0 0
  %9516 = vmatpush2.bf16.msra.mxu0 0
  %9517 = vmatprep.subr.bf16.mxu0 0
  %9518 = vmatpush2.bf16.msra.mxu0 0
  %9519 = vmatprep.subr.bf16.mxu0 0
  %9520 = vmatpush2.bf16.msra.mxu0 0
  %9521 = vmatprep.subr.bf16.mxu0 0
  %9522 = vmatpush2.bf16.msra.mxu0 0
  %9523 = vmatprep.mubr.bf16.mxu0 0
  %9524 = vmatmul.mubr.bf16.gmra.mxu0 %v9489
  %v9525 = vpop.f32.mrf.mxu0
  %v9526 = vadd.f32 %v9059, %v9525
  %v9527 = vpop.f32.mrf.mxu0
  %v9528 = vpop.f32.mrf.mxu0
  %v9529 = vpop.f32.mrf.mxu0
  %9530 = vdwg.mxu0
  %v9531 = vtanh.pop %v9526
  %v9532 = vmul.f32 %v9531, %v9122
  %v9533 = vsel %vm1954, %v9532, 0.0
  %9534 = vadd.xlane.f32.xlu0 %v9533
  %v9535 = vpop.xlane.xlu0 %9534
  %v9536 = vpack.c.bf16 %v9481, %v9481
  %v9538 = vrot.slane %v9536, 3
  %9539 = vrot.lane.b32.xlu0 %v9538, 32
  %v9540 = vpop.permute.xlu0 %9539
  %v9542 = vsel %vm79, %v9540, 0
  %9544 = vmatprep.subr.bf16.mxu0 0
  %9545 = vmatpush1.bf16.msra.mxu0 0
  %9546 = vmatprep.subr.bf16.mxu0 0
  %9547 = vmatpush1.bf16.msra.mxu0 0
  %9548 = vmatprep.subr.bf16.mxu0 0
  %9549 = vmatpush1.bf16.msra.mxu0 0
  %9550 = vmatprep.subr.bf16.mxu0 0
  %9551 = vmatpush1.bf16.msra.mxu0 0
  %9552 = vmatprep.subr.bf16.mxu0 0
  %9553 = vmatpush1.bf16.msra.mxu0 0
  %9554 = vmatprep.subr.bf16.mxu0 0
  %9555 = vmatpush1.bf16.msra.mxu0 0
  %9556 = vmatprep.subr.bf16.mxu0 0
  %9557 = vmatpush1.bf16.msra.mxu0 %v8983
  %9558 = vmatprep.subr.bf16.mxu0 0
  %9559 = vmatpush1.bf16.msra.mxu0 %v8982
  %9560 = vmatprep.subr.bf16.mxu0 0
  %9561 = vmatpush2.bf16.msra.mxu0 0
  %9562 = vmatprep.subr.bf16.mxu0 0
  %9563 = vmatpush2.bf16.msra.mxu0 0
  %9564 = vmatprep.subr.bf16.mxu0 0
  %9565 = vmatpush2.bf16.msra.mxu0 0
  %9566 = vmatprep.subr.bf16.mxu0 0
  %9567 = vmatpush2.bf16.msra.mxu0 0
  %9568 = vmatprep.subr.bf16.mxu0 0
  %9569 = vmatpush2.bf16.msra.mxu0 0
  %9570 = vmatprep.subr.bf16.mxu0 0
  %9571 = vmatpush2.bf16.msra.mxu0 0
  %9572 = vmatprep.subr.bf16.mxu0 0
  %9573 = vmatpush2.bf16.msra.mxu0 0
  %9574 = vmatprep.subr.bf16.mxu0 0
  %9575 = vmatpush2.bf16.msra.mxu0 0
  %9576 = vmatprep.mubr.bf16.mxu0 0
  %9577 = vmatmul.mubr.bf16.gmra.mxu0 %v9542
  %v9578 = vpop.f32.mrf.mxu0
  %v9579 = vadd.f32 0.0, %v9578
  %v9580 = vpop.f32.mrf.mxu0
  %v9581 = vpop.f32.mrf.mxu0
  %v9582 = vpop.f32.mrf.mxu0
  %9583 = vdwg.mxu0
  %v9584 = vadd.f32 %v8967, %v9579
  %v9585 = vxor.u32 %v9584, 2147483648
  %v9586 = vmul.f32 %v9585, 1.442695
  %v9587 = vpow.pop %v9586
  %v9588 = vadd.f32 %v9587, 1.0
  %v9589 = vrcp.pop %v9588
  %v9590 = vmul.f32 1.0, %v9589
  %v9591 = vtanh.pop %v9584
  %v9593 = vrot.slane %v9475, 6
  %v9595 = vmul.f32 %v9590, %v9593
  %9597 = vrot.lane.b32.xlu0 %v9591, 64
  %v9598 = vpop.permute.xlu0 %9597
  %v9600 = vmul.f32 %v9590, %v9598
  %9602 = vrot.lane.b32.xlu0 %v9600, 32
  %v9603 = vpop.permute.xlu0 %9602
  %v9605 = vadd.f32 %v9595, %v9603
  %v9606 = vtanh.pop %v9605
  %9608 = vrot.lane.b32.xlu0 %v9606, 64
  %v9609 = vpop.permute.xlu0 %9608
  %v9611 = vmul.f32 %v9590, %v9609
  %v9612 = vmul.f32 %v9611, %v8904
  %v9613 = vpack.c.bf16 %v9612, %v9612
  %9615 = vrot.lane.b32.xlu0 %v9613, 32
  %v9616 = vpop.permute.xlu0 %9615
  %v9618 = vsel %vm79, %v9616, 0
  %9620 = vmatprep.subr.bf16.mxu0 0
  %9621 = vmatpush1.bf16.msra.mxu0 0
  %9622 = vmatprep.subr.bf16.mxu0 0
  %9623 = vmatpush1.bf16.msra.mxu0 0
  %9624 = vmatprep.subr.bf16.mxu0 0
  %9625 = vmatpush1.bf16.msra.mxu0 0
  %9626 = vmatprep.subr.bf16.mxu0 0
  %9627 = vmatpush1.bf16.msra.mxu0 0
  %9628 = vmatprep.subr.bf16.mxu0 0
  %9629 = vmatpush1.bf16.msra.mxu0 0
  %9630 = vmatprep.subr.bf16.mxu0 0
  %9631 = vmatpush1.bf16.msra.mxu0 0
  %9632 = vmatprep.subr.bf16.mxu0 0
  %9633 = vmatpush1.bf16.msra.mxu0 %v9072
  %9634 = vmatprep.subr.bf16.mxu0 0
  %9635 = vmatpush1.bf16.msra.mxu0 %v9071
  %9636 = vmatprep.subr.bf16.mxu0 0
  %9637 = vmatpush2.bf16.msra.mxu0 0
  %9638 = vmatprep.subr.bf16.mxu0 0
  %9639 = vmatpush2.bf16.msra.mxu0 0
  %9640 = vmatprep.subr.bf16.mxu0 0
  %9641 = vmatpush2.bf16.msra.mxu0 0
  %9642 = vmatprep.subr.bf16.mxu0 0
  %9643 = vmatpush2.bf16.msra.mxu0 0
  %9644 = vmatprep.subr.bf16.mxu0 0
  %9645 = vmatpush2.bf16.msra.mxu0 0
  %9646 = vmatprep.subr.bf16.mxu0 0
  %9647 = vmatpush2.bf16.msra.mxu0 0
  %9648 = vmatprep.subr.bf16.mxu0 0
  %9649 = vmatpush2.bf16.msra.mxu0 0
  %9650 = vmatprep.subr.bf16.mxu0 0
  %9651 = vmatpush2.bf16.msra.mxu0 0
  %9652 = vmatprep.mubr.bf16.mxu0 0
  %9653 = vmatmul.mubr.bf16.gmra.mxu0 %v9618
  %v9654 = vpop.f32.mrf.mxu0
  %v9655 = vadd.f32 %v9059, %v9654
  %v9656 = vpop.f32.mrf.mxu0
  %v9657 = vpop.f32.mrf.mxu0
  %v9658 = vpop.f32.mrf.mxu0
  %9659 = vdwg.mxu0
  %v9660 = vtanh.pop %v9655
  %v9661 = vmul.f32 %v9660, %v9122
  %v9662 = vsel %vm1954, %v9661, 0.0
  %9663 = vadd.xlane.f32.xlu0 %v9662
  %v9664 = vpop.xlane.xlu0 %9663
  %v9665 = vmax.f32 %v9535, %v9664
  %v9666 = vsub.f32 %v9535, %v9665
  %v9667 = vmul.f32 %v9666, 1.442695
  %v9668 = vpow.pop %v9667
  %v9669 = vsub.f32 %v9664, %v9665
  %v9670 = vmul.f32 %v9669, 1.442695
  %v9671 = vpow.pop %v9670
  %v9672 = vadd.f32 %v9668, %v9671
  %v9673 = vrcp.pop %v9672
  %v9674 = vmul.f32 %v9668, %v9673
  %v9676 = vrot.slane %v9674, 2
  %v9678 = vmul.f32 %v9482, %v9676
  %v9679 = vmul.f32 %v9671, %v9673
  %v9680 = vmul.f32 %v9612, %v9679
  %v9682 = vrot.slane %v9680, 2
  %v9684 = vadd.f32 %v9678, %v9682
  %v9685 = vmul.f32 %v9684, %v9432
  %9687 = vrot.lane.b32.xlu0 %v9685, 32
  %v9688 = vpop.permute.xlu0 %9687
  %vm9690 = vcmask 261126
  %v9691 = vsel %vm9690, %v9688, 0.0
  %9692 = vadd.xlane.f32.xlu0 %v9691
  %v9693 = vpop.xlane.xlu0 %9692
  %v9694 = vadd.f32 %v9693, %v9445
  %v9695 = vxor.u32 %v9694, 2147483648
  %v9696 = vmul.f32 %v9695, 1.442695
  %v9697 = vpow.pop %v9696
  %v9698 = vadd.f32 %v9697, 1.0
  %v9699 = vrcp.pop %v9698
  %v9700 = vmul.f32 1.0, %v9699
  %v9702 = vrot.slane %v9700, 6
  %v9704 = vadd.f32 %v9453, %v9702
  %vm9705 = vcmask 1024
  %9706 = vst.msk [vmem:[%s16] sm:$0x3] %vm9705, %v9704
  // Predicated region
  $region66: #{run.1} parent=0 // pred_check
    _
  $region67: #{run.1} parent=0 // pred_check_branch
    %9708 = sbr.rel (0) target = $region69
  $region68: #{run.1} parent=0 // pred_region
    _
  $region69: #{run.1} parent=0 // pred_fallthru
    _
  // Predicated region
  $region70: #{run.1} parent=0 // pred_check
    _
  $region71: #{run.1} parent=0 // pred_check_branch
    %9710 = sbr.rel (0) target = $region73
  $region72: #{run.1} parent=0 // pred_region
    _
  $region73: #{run.1} parent=0 // pred_fallthru
    _

</llo_original>
